<compile_context>
chip_gen: v5e
topology: v5e:2x2
jax: 0.10.0
libtpu: 0.0.40
codegen_flags: <defaults>
</compile_context>

<pallas_src>
import functools

import jax
import jax.numpy as jnp
from jax.experimental import pallas as pl
from jax.experimental.pallas import tpu as pltpu


def _round_up(n, m):
    return ((n + m - 1) // m) * m


# ---------------------------------------------------------------------------
# Stage 1: avg_embeds[b] = mean_c emb_table[x[b, c]]   (manual DMA gather)
# ---------------------------------------------------------------------------
def gather_mean_kernel(x_sm, emb_hbm, avg_ref, rows_vmem, sem, *, ctx, tb):
    """Gather tb*ctx embedding rows from HBM and write their per-example mean.

    x_sm     : SMEM (B_pad*ctx,) int32 -- scalar-prefetched token ids (flat).
    emb_hbm  : (V_pad, E_pad) f32 ref left in HBM (memory_space=pl.ANY).
    avg_ref  : (tb, E_pad) bf16 output block for this batch tile.
    rows_vmem: VMEM (tb*ctx, E_pad) f32 gather landing buffer.
    sem      : single DMA semaphore shared by all row copies of this step.
    """
    bt = pl.program_id(0)
    n_rows = tb * ctx
    base = bt * n_rows

    # Issue every gather DMA for this batch tile up front so they all overlap.
    # (One DMA per (batch, context) row; unrolled statically -- keep tb modest.)
    copies = []
    for r in range(n_rows):
        idx = x_sm[base + r]
        cp = pltpu.make_async_copy(
            emb_hbm.at[pl.ds(idx, 1), :],
            rows_vmem.at[pl.ds(r, 1), :],
            sem.at[0])
        cp.start()
        copies.append(cp)
    # All copies signal the same semaphore with identical sizes; draining all
    # waits before touching the data is sufficient for correctness.
    for cp in copies:
        cp.wait()

    rows = rows_vmem[...]                                  # (tb*ctx, E_pad) f32

    # Block-diagonal ones matrix -> per-example context sum as one MXU matmul
    # (exact in f32), then a single scale + bf16 cast for the mean.
    r_ids = jax.lax.broadcasted_iota(jnp.int32, (tb, n_rows), 0)
    c_ids = jax.lax.broadcasted_iota(jnp.int32, (tb, n_rows), 1)
    lo = r_ids * ctx
    sel = (c_ids >= lo) & (c_ids < lo + ctx)
    ones_blk = jnp.where(sel, 1.0, 0.0).astype(rows.dtype)

    summed = jnp.dot(ones_blk, rows, preferred_element_type=jnp.float32)
    avg_ref[...] = (summed * (1.0 / ctx)).astype(avg_ref.dtype)


# ---------------------------------------------------------------------------
# Stage 2: logits = avg @ W.T + b, W pre-transposed to (E, V), tiled over V
# (lane-dense stores; "parallel" -> megacore).
# ---------------------------------------------------------------------------
def linear_kernel(avg_ref, wt_ref, b_ref, out_ref):
    out_ref[...] = jnp.dot(avg_ref[...], wt_ref[...],
                           preferred_element_type=jnp.float32) + b_ref[...]


# ---------------------------------------------------------------------------
# Wrapper: padding, pre-transpose, dtype casts, two pallas_calls.
# ---------------------------------------------------------------------------
@functools.partial(jax.jit, static_argnames=("tile_v", "tile_b"))
def cbow_forward(x, emb_table, w, b, *, tile_v=4096, tile_b=16):
    """x: (B, C) int32; emb_table: (V, E) f32; w: (V, E) f32; b: (V,) f32."""
    B, C = x.shape
    V, E = emb_table.shape
    w_dtype = jnp.bfloat16

    E_pad = _round_up(E, 128)                 # lane dim / MXU K dim
    V_pad_emb = _round_up(V, 8)               # table only needs sublane padding
    V_pad_lin = _round_up(V, 128)             # logits / W.T V axis: lane padding
    tb = min(_round_up(tile_b, 16), _round_up(B, 16))   # bf16 sublane pack
    B_pad = _round_up(B, tb)
    tv = min(_round_up(tile_v, 128), V_pad_lin)

    emb_p = jnp.zeros((V_pad_emb, E_pad), jnp.float32).at[:V, :E].set(emb_table)
    # Pre-transpose W once outside the kernel: (V, E) -> (E_pad, V_pad_lin) bf16.
    wt_p = jnp.zeros((E_pad, V_pad_lin), w_dtype).at[:E, :V].set(
        w.T.astype(w_dtype))
    b_p = jnp.zeros((1, V_pad_lin), jnp.float32).at[0, :V].set(b)
    # Padded batch rows read token 0 -- harmless, their logits are sliced off.
    x_flat = jnp.zeros((B_pad, C), jnp.int32).at[:B, :].set(x).reshape(-1)

    n_b_tiles = B_pad // tb
    n_v_tiles = pl.cdiv(V_pad_lin, tv)

    # --- Stage 1: averaged context embeddings via DMA gather, (B_pad, E_pad) bf16
    avg = pl.pallas_call(
        functools.partial(gather_mean_kernel, ctx=C, tb=tb),
        out_shape=jax.ShapeDtypeStruct((B_pad, E_pad), jnp.bfloat16),
        grid_spec=pltpu.PrefetchScalarGridSpec(
            num_scalar_prefetch=1,                       # x_flat -> SMEM
            grid=(n_b_tiles,),
            in_specs=[pl.BlockSpec(memory_space=pl.ANY)],  # emb table stays in HBM
            out_specs=pl.BlockSpec((tb, E_pad), lambda i, x_ref: (i, 0)),
            scratch_shapes=[pltpu.VMEM((tb * C, E_pad), jnp.float32),
                            pltpu.SemaphoreType.DMA((1,))]),
        compiler_params=pltpu.CompilerParams(
            dimension_semantics=("parallel",)),          # batch tiles -> megacore
    )(x_flat, emb_p)

    # --- Stage 2: logits, tiled over V (parallel, lane-dense stores) ----------
    logits = pl.pallas_call(
        linear_kernel,
        out_shape=jax.ShapeDtypeStruct((B_pad, V_pad_lin), jnp.float32),
        grid_spec=pltpu.PrefetchScalarGridSpec(
            num_scalar_prefetch=0,
            grid=(n_v_tiles,),
            in_specs=[
                pl.BlockSpec((B_pad, E_pad), lambda j: (0, 0)),   # avg, resident
                pl.BlockSpec((E_pad, tv), lambda j: (0, j)),      # W.T tile
                pl.BlockSpec((1, tv), lambda j: (0, j)),          # bias tile
            ],
            out_specs=pl.BlockSpec((B_pad, tv), lambda j: (0, j)),
        ),
        compiler_params=pltpu.CompilerParams(
            dimension_semantics=("parallel",)),
    )(avg, wt_p, b_p)

    return logits[:B, :V]


if __name__ == "__main__":
    # Small, deterministic synthetic setup consistent with the module.
    vocab_size = 32
    embedding_size = 10
    context_size = 4
    batch = 8

    key = jax.random.PRNGKey(0)
    k_emb, k_w, k_b, k_x = jax.random.split(key, 4)

    # nn.Embedding default init: N(0, 1); nn.Linear default: U(-1/sqrt(in), 1/sqrt(in)).
    emb_table = jax.random.normal(k_emb, (vocab_size, embedding_size), jnp.float32)
    bound = 1.0 / (embedding_size ** 0.5)
    w = jax.random.uniform(k_w, (vocab_size, embedding_size), jnp.float32,
                           minval=-bound, maxval=bound)
    b = jax.random.uniform(k_b, (vocab_size,), jnp.float32,
                           minval=-bound, maxval=bound)
    x = jax.random.randint(k_x, (batch, context_size), 0, vocab_size,
                           dtype=jnp.int32)

    logits = cbow_forward(x, emb_table, w, b)
    jax.block_until_ready(logits)

    # Reference mirroring the kernel's precision: exact f32 gather+mean, then
    # bf16 avg/W for the linear with f32 accumulation -- identical to the
    # PyTorch gather -> mean -> linear semantics up to bf16 weight precision.
    avg_f32 = jnp.mean(emb_table[x], axis=1)
    avg_bf = avg_f32.astype(jnp.bfloat16).astype(jnp.float32)
    w_bf = w.astype(jnp.bfloat16).astype(jnp.float32)
    ref = avg_bf @ w_bf.T + b

    assert logits.shape == (batch, vocab_size)
    max_err = float(jnp.max(jnp.abs(logits - ref)))
    assert jnp.allclose(logits, ref, atol=1e-2, rtol=1e-2), max_err

    print("KERNEL_OK")
</pallas_src>

<mosaic_0001>
module attributes {stable_mosaic.version = 11 : i64} {
  func.func @linear_kernel(%arg0: i32, %arg1: memref<16x128xbf16, #tpu.memory_space<vmem>>, %arg2: memref<128x128xbf16, #tpu.memory_space<vmem>>, %arg3: memref<1x128xf32, #tpu.memory_space<vmem>>, %arg4: memref<16x128xf32, #tpu.memory_space<vmem>>) attributes {dimension_semantics = [#tpu.dimension_semantics<parallel>], iteration_bounds = array<i64: 1>, scalar_prefetch = 0 : i64, scratch_operands = 0 : i64, tpu.core_type = #tpu.core_type<tc>, window_params = [{pipeline_mode = #tpu.pipeline_mode<synchronous>, transform_indices = @transform_0, window_bounds = array<i64: 16, 128>}, {transform_indices = @transform_1, window_bounds = array<i64: 128, 128>}, {transform_indices = @transform_2, window_bounds = array<i64: 1, 128>}, {transform_indices = @transform_3, window_bounds = array<i64: 16, 128>}]} {
    %c0 = arith.constant 0 : index
    %c0_0 = arith.constant 0 : index
    %0 = vector.load %arg1[%c0, %c0_0] : memref<16x128xbf16, #tpu.memory_space<vmem>>, vector<16x128xbf16>
    %c0_1 = arith.constant 0 : index
    %c0_2 = arith.constant 0 : index
    %1 = vector.load %arg2[%c0_1, %c0_2] : memref<128x128xbf16, #tpu.memory_space<vmem>>, vector<128x128xbf16>
    %cst = arith.constant dense<0.000000e+00> : vector<16x128xf32>
    %2 = tpu.matmul %0, %1, %cst {dimension_numbers = #tpu.dot_dimension_numbers<[1], [0], [0], [1], [0, 0, 1, 1], [], []>} : vector<16x128xbf16>, vector<128x128xbf16>, vector<16x128xf32> -> vector<16x128xf32>
    %c0_3 = arith.constant 0 : index
    %c0_4 = arith.constant 0 : index
    %3 = vector.load %arg3[%c0_3, %c0_4] : memref<1x128xf32, #tpu.memory_space<vmem>>, vector<1x128xf32>
    %4 = vector.broadcast %3 : vector<1x128xf32> to vector<16x128xf32>
    %5 = arith.addf %2, %4 : vector<16x128xf32>
    %c0_5 = arith.constant 0 : index
    %c0_6 = arith.constant 0 : index
    %6 = vector.load %arg4[%c0_5, %c0_6] : memref<16x128xf32, #tpu.memory_space<vmem>>, vector<16x128xf32>
    tpu.vector_store %arg4[%c0_5, %c0_6], %5 {strides = array<i32>} : memref<16x128xf32, #tpu.memory_space<vmem>>, vector<16x128xf32>,
    return
  }
  func.func @transform_0(%arg0: i32) -> (i32, i32) {
    %c0_i32 = arith.constant 0 : i32
    %c0_i32_0 = arith.constant 0 : i32
    %c0_i32_1 = arith.constant 0 : i32
    return %c0_i32, %c0_i32_0 : i32, i32
  }
  func.func @transform_1(%arg0: i32) -> (i32, i32) {
    %c0_i32 = arith.constant 0 : i32
    %c0_i32_0 = arith.constant 0 : i32
    return %c0_i32, %arg0 : i32, i32
  }
  func.func @transform_2(%arg0: i32) -> (i32, i32) {
    %c0_i32 = arith.constant 0 : i32
    %c0_i32_0 = arith.constant 0 : i32
    return %c0_i32, %arg0 : i32, i32
  }
  func.func @transform_3(%arg0: i32) -> (i32, i32) {
    %c0_i32 = arith.constant 0 : i32
    %c0_i32_0 = arith.constant 0 : i32
    return %c0_i32, %arg0 : i32, i32
  }
}

module attributes {stable_mosaic.version = 11 : i64} {
  func.func @gather_mean_kernel(%arg0: i32, %arg1: memref<64xi32, #tpu.memory_space<smem>>, %arg2: memref<32x128xf32, #tpu.memory_space<any>>, %arg3: memref<16x128xbf16, #tpu.memory_space<vmem>>, %arg4: memref<64x128xf32, #tpu.memory_space<vmem>>, %arg5: memref<1x!tpu.dma_semaphore, #tpu.memory_space<semaphore_mem>>) attributes {dimension_semantics = [#tpu.dimension_semantics<parallel>], iteration_bounds = array<i64: 1>, scalar_prefetch = 1 : i64, scratch_operands = 2 : i64, tpu.core_type = #tpu.core_type<tc>, window_params = [{}, {transform_indices = @transform_1, window_bounds = array<i64: 16, 128>}]} {
    %c64_i32 = arith.constant 64 : i32
    %0 = arith.muli %arg0, %c64_i32 : i32
    %c0_i32 = arith.constant 0 : i32
    %1 = arith.addi %0, %c0_i32 : i32
    %2 = arith.index_cast %1 : i32 to index
    %3 = memref.load %arg1[%2] : memref<64xi32, #tpu.memory_space<smem>>
    %c0_i32_0 = arith.constant 0 : i32
    %c0_i32_1 = arith.constant 0 : i32
    %4 = tpu.memref_slice %arg2[%3, %c0_i32_1] : memref<32x128xf32, #tpu.memory_space<any>> -> memref<1x128xf32, #tpu.memory_space<any>>
    %c0_i32_2 = arith.constant 0 : i32
    %c0_i32_3 = arith.constant 0 : i32
    %5 = tpu.memref_slice %arg4[%c0_i32_2, %c0_i32_3] : memref<64x128xf32, #tpu.memory_space<vmem>> -> memref<1x128xf32, #tpu.memory_space<vmem>>
    %6 = tpu.memref_slice %arg5[%c0_i32_0] : memref<1x!tpu.dma_semaphore, #tpu.memory_space<semaphore_mem>> -> memref<1x!tpu.dma_semaphore, #tpu.memory_space<semaphore_mem>>
    %7 = tpu.memref_squeeze %6 : memref<1x!tpu.dma_semaphore, #tpu.memory_space<semaphore_mem>> -> memref<!tpu.dma_semaphore, #tpu.memory_space<semaphore_mem>>
    tpu.enqueue_dma source(%4 : memref<1x128xf32, #tpu.memory_space<any>>) target(%5 : memref<1x128xf32, #tpu.memory_space<vmem>>) target_semaphore(%7 : memref<!tpu.dma_semaphore, #tpu.memory_space<semaphore_mem>>)
    %c1_i32 = arith.constant 1 : i32
    %8 = arith.addi %0, %c1_i32 : i32
    %9 = arith.index_cast %8 : i32 to index
    %10 = memref.load %arg1[%9] : memref<64xi32, #tpu.memory_space<smem>>
    %c0_i32_4 = arith.constant 0 : i32
    %c0_i32_5 = arith.constant 0 : i32
    %11 = tpu.memref_slice %arg2[%10, %c0_i32_5] : memref<32x128xf32, #tpu.memory_space<any>> -> memref<1x128xf32, #tpu.memory_space<any>>
    %c1_i32_6 = arith.constant 1 : i32
    %c0_i32_7 = arith.constant 0 : i32
    %12 = tpu.memref_slice %arg4[%c1_i32_6, %c0_i32_7] : memref<64x128xf32, #tpu.memory_space<vmem>> -> memref<1x128xf32, #tpu.memory_space<vmem>>
    %13 = tpu.memref_slice %arg5[%c0_i32_4] : memref<1x!tpu.dma_semaphore, #tpu.memory_space<semaphore_mem>> -> memref<1x!tpu.dma_semaphore, #tpu.memory_space<semaphore_mem>>
    %14 = tpu.memref_squeeze %13 : memref<1x!tpu.dma_semaphore, #tpu.memory_space<semaphore_mem>> -> memref<!tpu.dma_semaphore, #tpu.memory_space<semaphore_mem>>
    tpu.enqueue_dma source(%11 : memref<1x128xf32, #tpu.memory_space<any>>) target(%12 : memref<1x128xf32, #tpu.memory_space<vmem>>) target_semaphore(%14 : memref<!tpu.dma_semaphore, #tpu.memory_space<semaphore_mem>>)
    %c2_i32 = arith.constant 2 : i32
    %15 = arith.addi %0, %c2_i32 : i32
    %16 = arith.index_cast %15 : i32 to index
    %17 = memref.load %arg1[%16] : memref<64xi32, #tpu.memory_space<smem>>
    %c0_i32_8 = arith.constant 0 : i32
    %c0_i32_9 = arith.constant 0 : i32
    %18 = tpu.memref_slice %arg2[%17, %c0_i32_9] : memref<32x128xf32, #tpu.memory_space<any>> -> memref<1x128xf32, #tpu.memory_space<any>>
    %c2_i32_10 = arith.constant 2 : i32
    %c0_i32_11 = arith.constant 0 : i32
    %19 = tpu.memref_slice %arg4[%c2_i32_10, %c0_i32_11] : memref<64x128xf32, #tpu.memory_space<vmem>> -> memref<1x128xf32, #tpu.memory_space<vmem>>
    %20 = tpu.memref_slice %arg5[%c0_i32_8] : memref<1x!tpu.dma_semaphore, #tpu.memory_space<semaphore_mem>> -> memref<1x!tpu.dma_semaphore, #tpu.memory_space<semaphore_mem>>
    %21 = tpu.memref_squeeze %20 : memref<1x!tpu.dma_semaphore, #tpu.memory_space<semaphore_mem>> -> memref<!tpu.dma_semaphore, #tpu.memory_space<semaphore_mem>>
    tpu.enqueue_dma source(%18 : memref<1x128xf32, #tpu.memory_space<any>>) target(%19 : memref<1x128xf32, #tpu.memory_space<vmem>>) target_semaphore(%21 : memref<!tpu.dma_semaphore, #tpu.memory_space<semaphore_mem>>)
    %c3_i32 = arith.constant 3 : i32
    %22 = arith.addi %0, %c3_i32 : i32
    %23 = arith.index_cast %22 : i32 to index
    %24 = memref.load %arg1[%23] : memref<64xi32, #tpu.memory_space<smem>>
    %c0_i32_12 = arith.constant 0 : i32
    %c0_i32_13 = arith.constant 0 : i32
    %25 = tpu.memref_slice %arg2[%24, %c0_i32_13] : memref<32x128xf32, #tpu.memory_space<any>> -> memref<1x128xf32, #tpu.memory_space<any>>
    %c3_i32_14 = arith.constant 3 : i32
    %c0_i32_15 = arith.constant 0 : i32
    %26 = tpu.memref_slice %arg4[%c3_i32_14, %c0_i32_15] : memref<64x128xf32, #tpu.memory_space<vmem>> -> memref<1x128xf32, #tpu.memory_space<vmem>>
    %27 = tpu.memref_slice %arg5[%c0_i32_12] : memref<1x!tpu.dma_semaphore, #tpu.memory_space<semaphore_mem>> -> memref<1x!tpu.dma_semaphore, #tpu.memory_space<semaphore_mem>>
    %28 = tpu.memref_squeeze %27 : memref<1x!tpu.dma_semaphore, #tpu.memory_space<semaphore_mem>> -> memref<!tpu.dma_semaphore, #tpu.memory_space<semaphore_mem>>
    tpu.enqueue_dma source(%25 : memref<1x128xf32, #tpu.memory_space<any>>) target(%26 : memref<1x128xf32, #tpu.memory_space<vmem>>) target_semaphore(%28 : memref<!tpu.dma_semaphore, #tpu.memory_space<semaphore_mem>>)
    %c4_i32 = arith.constant 4 : i32
    %29 = arith.addi %0, %c4_i32 : i32
    %30 = arith.index_cast %29 : i32 to index
    %31 = memref.load %arg1[%30] : memref<64xi32, #tpu.memory_space<smem>>
    %c0_i32_16 = arith.constant 0 : i32
    %c0_i32_17 = arith.constant 0 : i32
    %32 = tpu.memref_slice %arg2[%31, %c0_i32_17] : memref<32x128xf32, #tpu.memory_space<any>> -> memref<1x128xf32, #tpu.memory_space<any>>
    %c4_i32_18 = arith.constant 4 : i32
    %c0_i32_19 = arith.constant 0 : i32
    %33 = tpu.memref_slice %arg4[%c4_i32_18, %c0_i32_19] : memref<64x128xf32, #tpu.memory_space<vmem>> -> memref<1x128xf32, #tpu.memory_space<vmem>>
    %34 = tpu.memref_slice %arg5[%c0_i32_16] : memref<1x!tpu.dma_semaphore, #tpu.memory_space<semaphore_mem>> -> memref<1x!tpu.dma_semaphore, #tpu.memory_space<semaphore_mem>>
    %35 = tpu.memref_squeeze %34 : memref<1x!tpu.dma_semaphore, #tpu.memory_space<semaphore_mem>> -> memref<!tpu.dma_semaphore, #tpu.memory_space<semaphore_mem>>
    tpu.enqueue_dma source(%32 : memref<1x128xf32, #tpu.memory_space<any>>) target(%33 : memref<1x128xf32, #tpu.memory_space<vmem>>) target_semaphore(%35 : memref<!tpu.dma_semaphore, #tpu.memory_space<semaphore_mem>>)
    %c5_i32 = arith.constant 5 : i32
    %36 = arith.addi %0, %c5_i32 : i32
    %37 = arith.index_cast %36 : i32 to index
    %38 = memref.load %arg1[%37] : memref<64xi32, #tpu.memory_space<smem>>
    %c0_i32_20 = arith.constant 0 : i32
    %c0_i32_21 = arith.constant 0 : i32
    %39 = tpu.memref_slice %arg2[%38, %c0_i32_21] : memref<32x128xf32, #tpu.memory_space<any>> -> memref<1x128xf32, #tpu.memory_space<any>>
    %c5_i32_22 = arith.constant 5 : i32
    %c0_i32_23 = arith.constant 0 : i32
    %40 = tpu.memref_slice %arg4[%c5_i32_22, %c0_i32_23] : memref<64x128xf32, #tpu.memory_space<vmem>> -> memref<1x128xf32, #tpu.memory_space<vmem>>
    %41 = tpu.memref_slice %arg5[%c0_i32_20] : memref<1x!tpu.dma_semaphore, #tpu.memory_space<semaphore_mem>> -> memref<1x!tpu.dma_semaphore, #tpu.memory_space<semaphore_mem>>
    %42 = tpu.memref_squeeze %41 : memref<1x!tpu.dma_semaphore, #tpu.memory_space<semaphore_mem>> -> memref<!tpu.dma_semaphore, #tpu.memory_space<semaphore_mem>>
    tpu.enqueue_dma source(%39 : memref<1x128xf32, #tpu.memory_space<any>>) target(%40 : memref<1x128xf32, #tpu.memory_space<vmem>>) target_semaphore(%42 : memref<!tpu.dma_semaphore, #tpu.memory_space<semaphore_mem>>)
    %c6_i32 = arith.constant 6 : i32
    %43 = arith.addi %0, %c6_i32 : i32
    %44 = arith.index_cast %43 : i32 to index
    %45 = memref.load %arg1[%44] : memref<64xi32, #tpu.memory_space<smem>>
    %c0_i32_24 = arith.constant 0 : i32
    %c0_i32_25 = arith.constant 0 : i32
    %46 = tpu.memref_slice %arg2[%45, %c0_i32_25] : memref<32x128xf32, #tpu.memory_space<any>> -> memref<1x128xf32, #tpu.memory_space<any>>
    %c6_i32_26 = arith.constant 6 : i32
    %c0_i32_27 = arith.constant 0 : i32
    %47 = tpu.memref_slice %arg4[%c6_i32_26, %c0_i32_27] : memref<64x128xf32, #tpu.memory_space<vmem>> -> memref<1x128xf32, #tpu.memory_space<vmem>>
    %48 = tpu.memref_slice %arg5[%c0_i32_24] : memref<1x!tpu.dma_semaphore, #tpu.memory_space<semaphore_mem>> -> memref<1x!tpu.dma_semaphore, #tpu.memory_space<semaphore_mem>>
    %49 = tpu.memref_squeeze %48 : memref<1x!tpu.dma_semaphore, #tpu.memory_space<semaphore_mem>> -> memref<!tpu.dma_semaphore, #tpu.memory_space<semaphore_mem>>
    tpu.enqueue_dma source(%46 : memref<1x128xf32, #tpu.memory_space<any>>) target(%47 : memref<1x128xf32, #tpu.memory_space<vmem>>) target_semaphore(%49 : memref<!tpu.dma_semaphore, #tpu.memory_space<semaphore_mem>>)
    %c7_i32 = arith.constant 7 : i32
    %50 = arith.addi %0, %c7_i32 : i32
    %51 = arith.index_cast %50 : i32 to index
    %52 = memref.load %arg1[%51] : memref<64xi32, #tpu.memory_space<smem>>
    %c0_i32_28 = arith.constant 0 : i32
    %c0_i32_29 = arith.constant 0 : i32
    %53 = tpu.memref_slice %arg2[%52, %c0_i32_29] : memref<32x128xf32, #tpu.memory_space<any>> -> memref<1x128xf32, #tpu.memory_space<any>>
    %c7_i32_30 = arith.constant 7 : i32
    %c0_i32_31 = arith.constant 0 : i32
    %54 = tpu.memref_slice %arg4[%c7_i32_30, %c0_i32_31] : memref<64x128xf32, #tpu.memory_space<vmem>> -> memref<1x128xf32, #tpu.memory_space<vmem>>
    %55 = tpu.memref_slice %arg5[%c0_i32_28] : memref<1x!tpu.dma_semaphore, #tpu.memory_space<semaphore_mem>> -> memref<1x!tpu.dma_semaphore, #tpu.memory_space<semaphore_mem>>
    %56 = tpu.memref_squeeze %55 : memref<1x!tpu.dma_semaphore, #tpu.memory_space<semaphore_mem>> -> memref<!tpu.dma_semaphore, #tpu.memory_space<semaphore_mem>>
    tpu.enqueue_dma source(%53 : memref<1x128xf32, #tpu.memory_space<any>>) target(%54 : memref<1x128xf32, #tpu.memory_space<vmem>>) target_semaphore(%56 : memref<!tpu.dma_semaphore, #tpu.memory_space<semaphore_mem>>)
    %c8_i32 = arith.constant 8 : i32
    %57 = arith.addi %0, %c8_i32 : i32
    %58 = arith.index_cast %57 : i32 to index
    %59 = memref.load %arg1[%58] : memref<64xi32, #tpu.memory_space<smem>>
    %c0_i32_32 = arith.constant 0 : i32
    %c0_i32_33 = arith.constant 0 : i32
    %60 = tpu.memref_slice %arg2[%59, %c0_i32_33] : memref<32x128xf32, #tpu.memory_space<any>> -> memref<1x128xf32, #tpu.memory_space<any>>
    %c8_i32_34 = arith.constant 8 : i32
    %c0_i32_35 = arith.constant 0 : i32
    %61 = tpu.memref_slice %arg4[%c8_i32_34, %c0_i32_35] : memref<64x128xf32, #tpu.memory_space<vmem>> -> memref<1x128xf32, #tpu.memory_space<vmem>>
    %62 = tpu.memref_slice %arg5[%c0_i32_32] : memref<1x!tpu.dma_semaphore, #tpu.memory_space<semaphore_mem>> -> memref<1x!tpu.dma_semaphore, #tpu.memory_space<semaphore_mem>>
    %63 = tpu.memref_squeeze %62 : memref<1x!tpu.dma_semaphore, #tpu.memory_space<semaphore_mem>> -> memref<!tpu.dma_semaphore, #tpu.memory_space<semaphore_mem>>
    tpu.enqueue_dma source(%60 : memref<1x128xf32, #tpu.memory_space<any>>) target(%61 : memref<1x128xf32, #tpu.memory_space<vmem>>) target_semaphore(%63 : memref<!tpu.dma_semaphore, #tpu.memory_space<semaphore_mem>>)
    %c9_i32 = arith.constant 9 : i32
    %64 = arith.addi %0, %c9_i32 : i32
    %65 = arith.index_cast %64 : i32 to index
    %66 = memref.load %arg1[%65] : memref<64xi32, #tpu.memory_space<smem>>
    %c0_i32_36 = arith.constant 0 : i32
    %c0_i32_37 = arith.constant 0 : i32
    %67 = tpu.memref_slice %arg2[%66, %c0_i32_37] : memref<32x128xf32, #tpu.memory_space<any>> -> memref<1x128xf32, #tpu.memory_space<any>>
    %c9_i32_38 = arith.constant 9 : i32
    %c0_i32_39 = arith.constant 0 : i32
    %68 = tpu.memref_slice %arg4[%c9_i32_38, %c0_i32_39] : memref<64x128xf32, #tpu.memory_space<vmem>> -> memref<1x128xf32, #tpu.memory_space<vmem>>
    %69 = tpu.memref_slice %arg5[%c0_i32_36] : memref<1x!tpu.dma_semaphore, #tpu.memory_space<semaphore_mem>> -> memref<1x!tpu.dma_semaphore, #tpu.memory_space<semaphore_mem>>
    %70 = tpu.memref_squeeze %69 : memref<1x!tpu.dma_semaphore, #tpu.memory_space<semaphore_mem>> -> memref<!tpu.dma_semaphore, #tpu.memory_space<semaphore_mem>>
    tpu.enqueue_dma source(%67 : memref<1x128xf32, #tpu.memory_space<any>>) target(%68 : memref<1x128xf32, #tpu.memory_space<vmem>>) target_semaphore(%70 : memref<!tpu.dma_semaphore, #tpu.memory_space<semaphore_mem>>)
    %c10_i32 = arith.constant 10 : i32
    %71 = arith.addi %0, %c10_i32 : i32
    %72 = arith.index_cast %71 : i32 to index
    %73 = memref.load %arg1[%72] : memref<64xi32, #tpu.memory_space<smem>>
    %c0_i32_40 = arith.constant 0 : i32
    %c0_i32_41 = arith.constant 0 : i32
    %74 = tpu.memref_slice %arg2[%73, %c0_i32_41] : memref<32x128xf32, #tpu.memory_space<any>> -> memref<1x128xf32, #tpu.memory_space<any>>
    %c10_i32_42 = arith.constant 10 : i32
    %c0_i32_43 = arith.constant 0 : i32
    %75 = tpu.memref_slice %arg4[%c10_i32_42, %c0_i32_43] : memref<64x128xf32, #tpu.memory_space<vmem>> -> memref<1x128xf32, #tpu.memory_space<vmem>>
    %76 = tpu.memref_slice %arg5[%c0_i32_40] : memref<1x!tpu.dma_semaphore, #tpu.memory_space<semaphore_mem>> -> memref<1x!tpu.dma_semaphore, #tpu.memory_space<semaphore_mem>>
    %77 = tpu.memref_squeeze %76 : memref<1x!tpu.dma_semaphore, #tpu.memory_space<semaphore_mem>> -> memref<!tpu.dma_semaphore, #tpu.memory_space<semaphore_mem>>
    tpu.enqueue_dma source(%74 : memref<1x128xf32, #tpu.memory_space<any>>) target(%75 : memref<1x128xf32, #tpu.memory_space<vmem>>) target_semaphore(%77 : memref<!tpu.dma_semaphore, #tpu.memory_space<semaphore_mem>>)
    %c11_i32 = arith.constant 11 : i32
    %78 = arith.addi %0, %c11_i32 : i32
    %79 = arith.index_cast %78 : i32 to index
    %80 = memref.load %arg1[%79] : memref<64xi32, #tpu.memory_space<smem>>
    %c0_i32_44 = arith.constant 0 : i32
    %c0_i32_45 = arith.constant 0 : i32
    %81 = tpu.memref_slice %arg2[%80, %c0_i32_45] : memref<32x128xf32, #tpu.memory_space<any>> -> memref<1x128xf32, #tpu.memory_space<any>>
    %c11_i32_46 = arith.constant 11 : i32
    %c0_i32_47 = arith.constant 0 : i32
    %82 = tpu.memref_slice %arg4[%c11_i32_46, %c0_i32_47] : memref<64x128xf32, #tpu.memory_space<vmem>> -> memref<1x128xf32, #tpu.memory_space<vmem>>
    %83 = tpu.memref_slice %arg5[%c0_i32_44] : memref<1x!tpu.dma_semaphore, #tpu.memory_space<semaphore_mem>> -> memref<1x!tpu.dma_semaphore, #tpu.memory_space<semaphore_mem>>
    %84 = tpu.memref_squeeze %83 : memref<1x!tpu.dma_semaphore, #tpu.memory_space<semaphore_mem>> -> memref<!tpu.dma_semaphore, #tpu.memory_space<semaphore_mem>>
    tpu.enqueue_dma source(%81 : memref<1x128xf32, #tpu.memory_space<any>>) target(%82 : memref<1x128xf32, #tpu.memory_space<vmem>>) target_semaphore(%84 : memref<!tpu.dma_semaphore, #tpu.memory_space<semaphore_mem>>)
    %c12_i32 = arith.constant 12 : i32
    %85 = arith.addi %0, %c12_i32 : i32
    %86 = arith.index_cast %85 : i32 to index
    %87 = memref.load %arg1[%86] : memref<64xi32, #tpu.memory_space<smem>>
    %c0_i32_48 = arith.constant 0 : i32
    %c0_i32_49 = arith.constant 0 : i32
    %88 = tpu.memref_slice %arg2[%87, %c0_i32_49] : memref<32x128xf32, #tpu.memory_space<any>> -> memref<1x128xf32, #tpu.memory_space<any>>
    %c12_i32_50 = arith.constant 12 : i32
    %c0_i32_51 = arith.constant 0 : i32
    %89 = tpu.memref_slice %arg4[%c12_i32_50, %c0_i32_51] : memref<64x128xf32, #tpu.memory_space<vmem>> -> memref<1x128xf32, #tpu.memory_space<vmem>>
    %90 = tpu.memref_slice %arg5[%c0_i32_48] : memref<1x!tpu.dma_semaphore, #tpu.memory_space<semaphore_mem>> -> memref<1x!tpu.dma_semaphore, #tpu.memory_space<semaphore_mem>>
    %91 = tpu.memref_squeeze %90 : memref<1x!tpu.dma_semaphore, #tpu.memory_space<semaphore_mem>> -> memref<!tpu.dma_semaphore, #tpu.memory_space<semaphore_mem>>
    tpu.enqueue_dma source(%88 : memref<1x128xf32, #tpu.memory_space<any>>) target(%89 : memref<1x128xf32, #tpu.memory_space<vmem>>) target_semaphore(%91 : memref<!tpu.dma_semaphore, #tpu.memory_space<semaphore_mem>>)
    %c13_i32 = arith.constant 13 : i32
    %92 = arith.addi %0, %c13_i32 : i32
    %93 = arith.index_cast %92 : i32 to index
    %94 = memref.load %arg1[%93] : memref<64xi32, #tpu.memory_space<smem>>
    %c0_i32_52 = arith.constant 0 : i32
    %c0_i32_53 = arith.constant 0 : i32
    %95 = tpu.memref_slice %arg2[%94, %c0_i32_53] : memref<32x128xf32, #tpu.memory_space<any>> -> memref<1x128xf32, #tpu.memory_space<any>>
    %c13_i32_54 = arith.constant 13 : i32
    %c0_i32_55 = arith.constant 0 : i32
    %96 = tpu.memref_slice %arg4[%c13_i32_54, %c0_i32_55] : memref<64x128xf32, #tpu.memory_space<vmem>> -> memref<1x128xf32, #tpu.memory_space<vmem>>
    %97 = tpu.memref_slice %arg5[%c0_i32_52] : memref<1x!tpu.dma_semaphore, #tpu.memory_space<semaphore_mem>> -> memref<1x!tpu.dma_semaphore, #tpu.memory_space<semaphore_mem>>
    %98 = tpu.memref_squeeze %97 : memref<1x!tpu.dma_semaphore, #tpu.memory_space<semaphore_mem>> -> memref<!tpu.dma_semaphore, #tpu.memory_space<semaphore_mem>>
    tpu.enqueue_dma source(%95 : memref<1x128xf32, #tpu.memory_space<any>>) target(%96 : memref<1x128xf32, #tpu.memory_space<vmem>>) target_semaphore(%98 : memref<!tpu.dma_semaphore, #tpu.memory_space<semaphore_mem>>)
    %c14_i32 = arith.constant 14 : i32
    %99 = arith.addi %0, %c14_i32 : i32
    %100 = arith.index_cast %99 : i32 to index
    %101 = memref.load %arg1[%100] : memref<64xi32, #tpu.memory_space<smem>>
    %c0_i32_56 = arith.constant 0 : i32
    %c0_i32_57 = arith.constant 0 : i32
    %102 = tpu.memref_slice %arg2[%101, %c0_i32_57] : memref<32x128xf32, #tpu.memory_space<any>> -> memref<1x128xf32, #tpu.memory_space<any>>
    %c14_i32_58 = arith.constant 14 : i32
    %c0_i32_59 = arith.constant 0 : i32
    %103 = tpu.memref_slice %arg4[%c14_i32_58, %c0_i32_59] : memref<64x128xf32, #tpu.memory_space<vmem>> -> memref<1x128xf32, #tpu.memory_space<vmem>>
    %104 = tpu.memref_slice %arg5[%c0_i32_56] : memref<1x!tpu.dma_semaphore, #tpu.memory_space<semaphore_mem>> -> memref<1x!tpu.dma_semaphore, #tpu.memory_space<semaphore_mem>>
    %105 = tpu.memref_squeeze %104 : memref<1x!tpu.dma_semaphore, #tpu.memory_space<semaphore_mem>> -> memref<!tpu.dma_semaphore, #tpu.memory_space<semaphore_mem>>
    tpu.enqueue_dma source(%102 : memref<1x128xf32, #tpu.memory_space<any>>) target(%103 : memref<1x128xf32, #tpu.memory_space<vmem>>) target_semaphore(%105 : memref<!tpu.dma_semaphore, #tpu.memory_space<semaphore_mem>>)
    %c15_i32 = arith.constant 15 : i32
    %106 = arith.addi %0, %c15_i32 : i32
    %107 = arith.index_cast %106 : i32 to index
    %108 = memref.load %arg1[%107] : memref<64xi32, #tpu.memory_space<smem>>
    %c0_i32_60 = arith.constant 0 : i32
    %c0_i32_61 = arith.constant 0 : i32
    %109 = tpu.memref_slice %arg2[%108, %c0_i32_61] : memref<32x128xf32, #tpu.memory_space<any>> -> memref<1x128xf32, #tpu.memory_space<any>>
    %c15_i32_62 = arith.constant 15 : i32
    %c0_i32_63 = arith.constant 0 : i32
    %110 = tpu.memref_slice %arg4[%c15_i32_62, %c0_i32_63] : memref<64x128xf32, #tpu.memory_space<vmem>> -> memref<1x128xf32, #tpu.memory_space<vmem>>
    %111 = tpu.memref_slice %arg5[%c0_i32_60] : memref<1x!tpu.dma_semaphore, #tpu.memory_space<semaphore_mem>> -> memref<1x!tpu.dma_semaphore, #tpu.memory_space<semaphore_mem>>
    %112 = tpu.memref_squeeze %111 : memref<1x!tpu.dma_semaphore, #tpu.memory_space<semaphore_mem>> -> memref<!tpu.dma_semaphore, #tpu.memory_space<semaphore_mem>>
    tpu.enqueue_dma source(%109 : memref<1x128xf32, #tpu.memory_space<any>>) target(%110 : memref<1x128xf32, #tpu.memory_space<vmem>>) target_semaphore(%112 : memref<!tpu.dma_semaphore, #tpu.memory_space<semaphore_mem>>)
    %c16_i32 = arith.constant 16 : i32
    %113 = arith.addi %0, %c16_i32 : i32
    %114 = arith.index_cast %113 : i32 to index
    %115 = memref.load %arg1[%114] : memref<64xi32, #tpu.memory_space<smem>>
    %c0_i32_64 = arith.constant 0 : i32
    %c0_i32_65 = arith.constant 0 : i32
    %116 = tpu.memref_slice %arg2[%115, %c0_i32_65] : memref<32x128xf32, #tpu.memory_space<any>> -> memref<1x128xf32, #tpu.memory_space<any>>
    %c16_i32_66 = arith.constant 16 : i32
    %c0_i32_67 = arith.constant 0 : i32
    %117 = tpu.memref_slice %arg4[%c16_i32_66, %c0_i32_67] : memref<64x128xf32, #tpu.memory_space<vmem>> -> memref<1x128xf32, #tpu.memory_space<vmem>>
    %118 = tpu.memref_slice %arg5[%c0_i32_64] : memref<1x!tpu.dma_semaphore, #tpu.memory_space<semaphore_mem>> -> memref<1x!tpu.dma_semaphore, #tpu.memory_space<semaphore_mem>>
    %119 = tpu.memref_squeeze %118 : memref<1x!tpu.dma_semaphore, #tpu.memory_space<semaphore_mem>> -> memref<!tpu.dma_semaphore, #tpu.memory_space<semaphore_mem>>
    tpu.enqueue_dma source(%116 : memref<1x128xf32, #tpu.memory_space<any>>) target(%117 : memref<1x128xf32, #tpu.memory_space<vmem>>) target_semaphore(%119 : memref<!tpu.dma_semaphore, #tpu.memory_space<semaphore_mem>>)
    %c17_i32 = arith.constant 17 : i32
    %120 = arith.addi %0, %c17_i32 : i32
    %121 = arith.index_cast %120 : i32 to index
    %122 = memref.load %arg1[%121] : memref<64xi32, #tpu.memory_space<smem>>
    %c0_i32_68 = arith.constant 0 : i32
    %c0_i32_69 = arith.constant 0 : i32
    %123 = tpu.memref_slice %arg2[%122, %c0_i32_69] : memref<32x128xf32, #tpu.memory_space<any>> -> memref<1x128xf32, #tpu.memory_space<any>>
    %c17_i32_70 = arith.constant 17 : i32
    %c0_i32_71 = arith.constant 0 : i32
    %124 = tpu.memref_slice %arg4[%c17_i32_70, %c0_i32_71] : memref<64x128xf32, #tpu.memory_space<vmem>> -> memref<1x128xf32, #tpu.memory_space<vmem>>
    %125 = tpu.memref_slice %arg5[%c0_i32_68] : memref<1x!tpu.dma_semaphore, #tpu.memory_space<semaphore_mem>> -> memref<1x!tpu.dma_semaphore, #tpu.memory_space<semaphore_mem>>
    %126 = tpu.memref_squeeze %125 : memref<1x!tpu.dma_semaphore, #tpu.memory_space<semaphore_mem>> -> memref<!tpu.dma_semaphore, #tpu.memory_space<semaphore_mem>>
    tpu.enqueue_dma source(%123 : memref<1x128xf32, #tpu.memory_space<any>>) target(%124 : memref<1x128xf32, #tpu.memory_space<vmem>>) target_semaphore(%126 : memref<!tpu.dma_semaphore, #tpu.memory_space<semaphore_mem>>)
    %c18_i32 = arith.constant 18 : i32
    %127 = arith.addi %0, %c18_i32 : i32
    %128 = arith.index_cast %127 : i32 to index
    %129 = memref.load %arg1[%128] : memref<64xi32, #tpu.memory_space<smem>>
    %c0_i32_72 = arith.constant 0 : i32
    %c0_i32_73 = arith.constant 0 : i32
    %130 = tpu.memref_slice %arg2[%129, %c0_i32_73] : memref<32x128xf32, #tpu.memory_space<any>> -> memref<1x128xf32, #tpu.memory_space<any>>
    %c18_i32_74 = arith.constant 18 : i32
    %c0_i32_75 = arith.constant 0 : i32
    %131 = tpu.memref_slice %arg4[%c18_i32_74, %c0_i32_75] : memref<64x128xf32, #tpu.memory_space<vmem>> -> memref<1x128xf32, #tpu.memory_space<vmem>>
    %132 = tpu.memref_slice %arg5[%c0_i32_72] : memref<1x!tpu.dma_semaphore, #tpu.memory_space<semaphore_mem>> -> memref<1x!tpu.dma_semaphore, #tpu.memory_space<semaphore_mem>>
    %133 = tpu.memref_squeeze %132 : memref<1x!tpu.dma_semaphore, #tpu.memory_space<semaphore_mem>> -> memref<!tpu.dma_semaphore, #tpu.memory_space<semaphore_mem>>
    tpu.enqueue_dma source(%130 : memref<1x128xf32, #tpu.memory_space<any>>) target(%131 : memref<1x128xf32, #tpu.memory_space<vmem>>) target_semaphore(%133 : memref<!tpu.dma_semaphore, #tpu.memory_space<semaphore_mem>>)
    %c19_i32 = arith.constant 19 : i32
    %134 = arith.addi %0, %c19_i32 : i32
    %135 = arith.index_cast %134 : i32 to index
    %136 = memref.load %arg1[%135] : memref<64xi32, #tpu.memory_space<smem>>
    %c0_i32_76 = arith.constant 0 : i32
    %c0_i32_77 = arith.constant 0 : i32
    %137 = tpu.memref_slice %arg2[%136, %c0_i32_77] : memref<32x128xf32, #tpu.memory_space<any>> -> memref<1x128xf32, #tpu.memory_space<any>>
    %c19_i32_78 = arith.constant 19 : i32
    %c0_i32_79 = arith.constant 0 : i32
    %138 = tpu.memref_slice %arg4[%c19_i32_78, %c0_i32_79] : memref<64x128xf32, #tpu.memory_space<vmem>> -> memref<1x128xf32, #tpu.memory_space<vmem>>
    %139 = tpu.memref_slice %arg5[%c0_i32_76] : memref<1x!tpu.dma_semaphore, #tpu.memory_space<semaphore_mem>> -> memref<1x!tpu.dma_semaphore, #tpu.memory_space<semaphore_mem>>
    %140 = tpu.memref_squeeze %139 : memref<1x!tpu.dma_semaphore, #tpu.memory_space<semaphore_mem>> -> memref<!tpu.dma_semaphore, #tpu.memory_space<semaphore_mem>>
    tpu.enqueue_dma source(%137 : memref<1x128xf32, #tpu.memory_space<any>>) target(%138 : memref<1x128xf32, #tpu.memory_space<vmem>>) target_semaphore(%140 : memref<!tpu.dma_semaphore, #tpu.memory_space<semaphore_mem>>)
    %c20_i32 = arith.constant 20 : i32
    %141 = arith.addi %0, %c20_i32 : i32
    %142 = arith.index_cast %141 : i32 to index
    %143 = memref.load %arg1[%142] : memref<64xi32, #tpu.memory_space<smem>>
    %c0_i32_80 = arith.constant 0 : i32
    %c0_i32_81 = arith.constant 0 : i32
    %144 = tpu.memref_slice %arg2[%143, %c0_i32_81] : memref<32x128xf32, #tpu.memory_space<any>> -> memref<1x128xf32, #tpu.memory_space<any>>
    %c20_i32_82 = arith.constant 20 : i32
    %c0_i32_83 = arith.constant 0 : i32
    %145 = tpu.memref_slice %arg4[%c20_i32_82, %c0_i32_83] : memref<64x128xf32, #tpu.memory_space<vmem>> -> memref<1x128xf32, #tpu.memory_space<vmem>>
    %146 = tpu.memref_slice %arg5[%c0_i32_80] : memref<1x!tpu.dma_semaphore, #tpu.memory_space<semaphore_mem>> -> memref<1x!tpu.dma_semaphore, #tpu.memory_space<semaphore_mem>>
    %147 = tpu.memref_squeeze %146 : memref<1x!tpu.dma_semaphore, #tpu.memory_space<semaphore_mem>> -> memref<!tpu.dma_semaphore, #tpu.memory_space<semaphore_mem>>
    tpu.enqueue_dma source(%144 : memref<1x128xf32, #tpu.memory_space<any>>) target(%145 : memref<1x128xf32, #tpu.memory_space<vmem>>) target_semaphore(%147 : memref<!tpu.dma_semaphore, #tpu.memory_space<semaphore_mem>>)
    %c21_i32 = arith.constant 21 : i32
    %148 = arith.addi %0, %c21_i32 : i32
    %149 = arith.index_cast %148 : i32 to index
    %150 = memref.load %arg1[%149] : memref<64xi32, #tpu.memory_space<smem>>
    %c0_i32_84 = arith.constant 0 : i32
    %c0_i32_85 = arith.constant 0 : i32
    %151 = tpu.memref_slice %arg2[%150, %c0_i32_85] : memref<32x128xf32, #tpu.memory_space<any>> -> memref<1x128xf32, #tpu.memory_space<any>>
    %c21_i32_86 = arith.constant 21 : i32
    %c0_i32_87 = arith.constant 0 : i32
    %152 = tpu.memref_slice %arg4[%c21_i32_86, %c0_i32_87] : memref<64x128xf32, #tpu.memory_space<vmem>> -> memref<1x128xf32, #tpu.memory_space<vmem>>
    %153 = tpu.memref_slice %arg5[%c0_i32_84] : memref<1x!tpu.dma_semaphore, #tpu.memory_space<semaphore_mem>> -> memref<1x!tpu.dma_semaphore, #tpu.memory_space<semaphore_mem>>
    %154 = tpu.memref_squeeze %153 : memref<1x!tpu.dma_semaphore, #tpu.memory_space<semaphore_mem>> -> memref<!tpu.dma_semaphore, #tpu.memory_space<semaphore_mem>>
    tpu.enqueue_dma source(%151 : memref<1x128xf32, #tpu.memory_space<any>>) target(%152 : memref<1x128xf32, #tpu.memory_space<vmem>>) target_semaphore(%154 : memref<!tpu.dma_semaphore, #tpu.memory_space<semaphore_mem>>)
    %c22_i32 = arith.constant 22 : i32
    %155 = arith.addi %0, %c22_i32 : i32
    %156 = arith.index_cast %155 : i32 to index
    %157 = memref.load %arg1[%156] : memref<64xi32, #tpu.memory_space<smem>>
    %c0_i32_88 = arith.constant 0 : i32
    %c0_i32_89 = arith.constant 0 : i32
    %158 = tpu.memref_slice %arg2[%157, %c0_i32_89] : memref<32x128xf32, #tpu.memory_space<any>> -> memref<1x128xf32, #tpu.memory_space<any>>
    %c22_i32_90 = arith.constant 22 : i32
    %c0_i32_91 = arith.constant 0 : i32
    %159 = tpu.memref_slice %arg4[%c22_i32_90, %c0_i32_91] : memref<64x128xf32, #tpu.memory_space<vmem>> -> memref<1x128xf32, #tpu.memory_space<vmem>>
    %160 = tpu.memref_slice %arg5[%c0_i32_88] : memref<1x!tpu.dma_semaphore, #tpu.memory_space<semaphore_mem>> -> memref<1x!tpu.dma_semaphore, #tpu.memory_space<semaphore_mem>>
    %161 = tpu.memref_squeeze %160 : memref<1x!tpu.dma_semaphore, #tpu.memory_space<semaphore_mem>> -> memref<!tpu.dma_semaphore, #tpu.memory_space<semaphore_mem>>
    tpu.enqueue_dma source(%158 : memref<1x128xf32, #tpu.memory_space<any>>) target(%159 : memref<1x128xf32, #tpu.memory_space<vmem>>) target_semaphore(%161 : memref<!tpu.dma_semaphore, #tpu.memory_space<semaphore_mem>>)
    %c23_i32 = arith.constant 23 : i32
    %162 = arith.addi %0, %c23_i32 : i32
    %163 = arith.index_cast %162 : i32 to index
    %164 = memref.load %arg1[%163] : memref<64xi32, #tpu.memory_space<smem>>
    %c0_i32_92 = arith.constant 0 : i32
    %c0_i32_93 = arith.constant 0 : i32
    %165 = tpu.memref_slice %arg2[%164, %c0_i32_93] : memref<32x128xf32, #tpu.memory_space<any>> -> memref<1x128xf32, #tpu.memory_space<any>>
    %c23_i32_94 = arith.constant 23 : i32
    %c0_i32_95 = arith.constant 0 : i32
    %166 = tpu.memref_slice %arg4[%c23_i32_94, %c0_i32_95] : memref<64x128xf32, #tpu.memory_space<vmem>> -> memref<1x128xf32, #tpu.memory_space<vmem>>
    %167 = tpu.memref_slice %arg5[%c0_i32_92] : memref<1x!tpu.dma_semaphore, #tpu.memory_space<semaphore_mem>> -> memref<1x!tpu.dma_semaphore, #tpu.memory_space<semaphore_mem>>
    %168 = tpu.memref_squeeze %167 : memref<1x!tpu.dma_semaphore, #tpu.memory_space<semaphore_mem>> -> memref<!tpu.dma_semaphore, #tpu.memory_space<semaphore_mem>>
    tpu.enqueue_dma source(%165 : memref<1x128xf32, #tpu.memory_space<any>>) target(%166 : memref<1x128xf32, #tpu.memory_space<vmem>>) target_semaphore(%168 : memref<!tpu.dma_semaphore, #tpu.memory_space<semaphore_mem>>)
    %c24_i32 = arith.constant 24 : i32
    %169 = arith.addi %0, %c24_i32 : i32
    %170 = arith.index_cast %169 : i32 to index
    %171 = memref.load %arg1[%170] : memref<64xi32, #tpu.memory_space<smem>>
    %c0_i32_96 = arith.constant 0 : i32
    %c0_i32_97 = arith.constant 0 : i32
    %172 = tpu.memref_slice %arg2[%171, %c0_i32_97] : memref<32x128xf32, #tpu.memory_space<any>> -> memref<1x128xf32, #tpu.memory_space<any>>
    %c24_i32_98 = arith.constant 24 : i32
    %c0_i32_99 = arith.constant 0 : i32
    %173 = tpu.memref_slice %arg4[%c24_i32_98, %c0_i32_99] : memref<64x128xf32, #tpu.memory_space<vmem>> -> memref<1x128xf32, #tpu.memory_space<vmem>>
    %174 = tpu.memref_slice %arg5[%c0_i32_96] : memref<1x!tpu.dma_semaphore, #tpu.memory_space<semaphore_mem>> -> memref<1x!tpu.dma_semaphore, #tpu.memory_space<semaphore_mem>>
    %175 = tpu.memref_squeeze %174 : memref<1x!tpu.dma_semaphore, #tpu.memory_space<semaphore_mem>> -> memref<!tpu.dma_semaphore, #tpu.memory_space<semaphore_mem>>
    tpu.enqueue_dma source(%172 : memref<1x128xf32, #tpu.memory_space<any>>) target(%173 : memref<1x128xf32, #tpu.memory_space<vmem>>) target_semaphore(%175 : memref<!tpu.dma_semaphore, #tpu.memory_space<semaphore_mem>>)
    %c25_i32 = arith.constant 25 : i32
    %176 = arith.addi %0, %c25_i32 : i32
    %177 = arith.index_cast %176 : i32 to index
    %178 = memref.load %arg1[%177] : memref<64xi32, #tpu.memory_space<smem>>
    %c0_i32_100 = arith.constant 0 : i32
    %c0_i32_101 = arith.constant 0 : i32
    %179 = tpu.memref_slice %arg2[%178, %c0_i32_101] : memref<32x128xf32, #tpu.memory_space<any>> -> memref<1x128xf32, #tpu.memory_space<any>>
    %c25_i32_102 = arith.constant 25 : i32
    %c0_i32_103 = arith.constant 0 : i32
    %180 = tpu.memref_slice %arg4[%c25_i32_102, %c0_i32_103] : memref<64x128xf32, #tpu.memory_space<vmem>> -> memref<1x128xf32, #tpu.memory_space<vmem>>
    %181 = tpu.memref_slice %arg5[%c0_i32_100] : memref<1x!tpu.dma_semaphore, #tpu.memory_space<semaphore_mem>> -> memref<1x!tpu.dma_semaphore, #tpu.memory_space<semaphore_mem>>
    %182 = tpu.memref_squeeze %181 : memref<1x!tpu.dma_semaphore, #tpu.memory_space<semaphore_mem>> -> memref<!tpu.dma_semaphore, #tpu.memory_space<semaphore_mem>>
    tpu.enqueue_dma source(%179 : memref<1x128xf32, #tpu.memory_space<any>>) target(%180 : memref<1x128xf32, #tpu.memory_space<vmem>>) target_semaphore(%182 : memref<!tpu.dma_semaphore, #tpu.memory_space<semaphore_mem>>)
    %c26_i32 = arith.constant 26 : i32
    %183 = arith.addi %0, %c26_i32 : i32
    %184 = arith.index_cast %183 : i32 to index
    %185 = memref.load %arg1[%184] : memref<64xi32, #tpu.memory_space<smem>>
    %c0_i32_104 = arith.constant 0 : i32
    %c0_i32_105 = arith.constant 0 : i32
    %186 = tpu.memref_slice %arg2[%185, %c0_i32_105] : memref<32x128xf32, #tpu.memory_space<any>> -> memref<1x128xf32, #tpu.memory_space<any>>
    %c26_i32_106 = arith.constant 26 : i32
    %c0_i32_107 = arith.constant 0 : i32
    %187 = tpu.memref_slice %arg4[%c26_i32_106, %c0_i32_107] : memref<64x128xf32, #tpu.memory_space<vmem>> -> memref<1x128xf32, #tpu.memory_space<vmem>>
    %188 = tpu.memref_slice %arg5[%c0_i32_104] : memref<1x!tpu.dma_semaphore, #tpu.memory_space<semaphore_mem>> -> memref<1x!tpu.dma_semaphore, #tpu.memory_space<semaphore_mem>>
    %189 = tpu.memref_squeeze %188 : memref<1x!tpu.dma_semaphore, #tpu.memory_space<semaphore_mem>> -> memref<!tpu.dma_semaphore, #tpu.memory_space<semaphore_mem>>
    tpu.enqueue_dma source(%186 : memref<1x128xf32, #tpu.memory_space<any>>) target(%187 : memref<1x128xf32, #tpu.memory_space<vmem>>) target_semaphore(%189 : memref<!tpu.dma_semaphore, #tpu.memory_space<semaphore_mem>>)
    %c27_i32 = arith.constant 27 : i32
    %190 = arith.addi %0, %c27_i32 : i32
    %191 = arith.index_cast %190 : i32 to index
    %192 = memref.load %arg1[%191] : memref<64xi32, #tpu.memory_space<smem>>
    %c0_i32_108 = arith.constant 0 : i32
    %c0_i32_109 = arith.constant 0 : i32
    %193 = tpu.memref_slice %arg2[%192, %c0_i32_109] : memref<32x128xf32, #tpu.memory_space<any>> -> memref<1x128xf32, #tpu.memory_space<any>>
    %c27_i32_110 = arith.constant 27 : i32
    %c0_i32_111 = arith.constant 0 : i32
    %194 = tpu.memref_slice %arg4[%c27_i32_110, %c0_i32_111] : memref<64x128xf32, #tpu.memory_space<vmem>> -> memref<1x128xf32, #tpu.memory_space<vmem>>
    %195 = tpu.memref_slice %arg5[%c0_i32_108] : memref<1x!tpu.dma_semaphore, #tpu.memory_space<semaphore_mem>> -> memref<1x!tpu.dma_semaphore, #tpu.memory_space<semaphore_mem>>
    %196 = tpu.memref_squeeze %195 : memref<1x!tpu.dma_semaphore, #tpu.memory_space<semaphore_mem>> -> memref<!tpu.dma_semaphore, #tpu.memory_space<semaphore_mem>>
    tpu.enqueue_dma source(%193 : memref<1x128xf32, #tpu.memory_space<any>>) target(%194 : memref<1x128xf32, #tpu.memory_space<vmem>>) target_semaphore(%196 : memref<!tpu.dma_semaphore, #tpu.memory_space<semaphore_mem>>)
    %c28_i32 = arith.constant 28 : i32
    %197 = arith.addi %0, %c28_i32 : i32
    %198 = arith.index_cast %197 : i32 to index
    %199 = memref.load %arg1[%198] : memref<64xi32, #tpu.memory_space<smem>>
    %c0_i32_112 = arith.constant 0 : i32
    %c0_i32_113 = arith.constant 0 : i32
    %200 = tpu.memref_slice %arg2[%199, %c0_i32_113] : memref<32x128xf32, #tpu.memory_space<any>> -> memref<1x128xf32, #tpu.memory_space<any>>
    %c28_i32_114 = arith.constant 28 : i32
    %c0_i32_115 = arith.constant 0 : i32
    %201 = tpu.memref_slice %arg4[%c28_i32_114, %c0_i32_115] : memref<64x128xf32, #tpu.memory_space<vmem>> -> memref<1x128xf32, #tpu.memory_space<vmem>>
    %202 = tpu.memref_slice %arg5[%c0_i32_112] : memref<1x!tpu.dma_semaphore, #tpu.memory_space<semaphore_mem>> -> memref<1x!tpu.dma_semaphore, #tpu.memory_space<semaphore_mem>>
    %203 = tpu.memref_squeeze %202 : memref<1x!tpu.dma_semaphore, #tpu.memory_space<semaphore_mem>> -> memref<!tpu.dma_semaphore, #tpu.memory_space<semaphore_mem>>
    tpu.enqueue_dma source(%200 : memref<1x128xf32, #tpu.memory_space<any>>) target(%201 : memref<1x128xf32, #tpu.memory_space<vmem>>) target_semaphore(%203 : memref<!tpu.dma_semaphore, #tpu.memory_space<semaphore_mem>>)
    %c29_i32 = arith.constant 29 : i32
    %204 = arith.addi %0, %c29_i32 : i32
    %205 = arith.index_cast %204 : i32 to index
    %206 = memref.load %arg1[%205] : memref<64xi32, #tpu.memory_space<smem>>
    %c0_i32_116 = arith.constant 0 : i32
    %c0_i32_117 = arith.constant 0 : i32
    %207 = tpu.memref_slice %arg2[%206, %c0_i32_117] : memref<32x128xf32, #tpu.memory_space<any>> -> memref<1x128xf32, #tpu.memory_space<any>>
    %c29_i32_118 = arith.constant 29 : i32
    %c0_i32_119 = arith.constant 0 : i32
    %208 = tpu.memref_slice %arg4[%c29_i32_118, %c0_i32_119] : memref<64x128xf32, #tpu.memory_space<vmem>> -> memref<1x128xf32, #tpu.memory_space<vmem>>
    %209 = tpu.memref_slice %arg5[%c0_i32_116] : memref<1x!tpu.dma_semaphore, #tpu.memory_space<semaphore_mem>> -> memref<1x!tpu.dma_semaphore, #tpu.memory_space<semaphore_mem>>
    %210 = tpu.memref_squeeze %209 : memref<1x!tpu.dma_semaphore, #tpu.memory_space<semaphore_mem>> -> memref<!tpu.dma_semaphore, #tpu.memory_space<semaphore_mem>>
    tpu.enqueue_dma source(%207 : memref<1x128xf32, #tpu.memory_space<any>>) target(%208 : memref<1x128xf32, #tpu.memory_space<vmem>>) target_semaphore(%210 : memref<!tpu.dma_semaphore, #tpu.memory_space<semaphore_mem>>)
    %c30_i32 = arith.constant 30 : i32
    %211 = arith.addi %0, %c30_i32 : i32
    %212 = arith.index_cast %211 : i32 to index
    %213 = memref.load %arg1[%212] : memref<64xi32, #tpu.memory_space<smem>>
    %c0_i32_120 = arith.constant 0 : i32
    %c0_i32_121 = arith.constant 0 : i32
    %214 = tpu.memref_slice %arg2[%213, %c0_i32_121] : memref<32x128xf32, #tpu.memory_space<any>> -> memref<1x128xf32, #tpu.memory_space<any>>
    %c30_i32_122 = arith.constant 30 : i32
    %c0_i32_123 = arith.constant 0 : i32
    %215 = tpu.memref_slice %arg4[%c30_i32_122, %c0_i32_123] : memref<64x128xf32, #tpu.memory_space<vmem>> -> memref<1x128xf32, #tpu.memory_space<vmem>>
    %216 = tpu.memref_slice %arg5[%c0_i32_120] : memref<1x!tpu.dma_semaphore, #tpu.memory_space<semaphore_mem>> -> memref<1x!tpu.dma_semaphore, #tpu.memory_space<semaphore_mem>>
    %217 = tpu.memref_squeeze %216 : memref<1x!tpu.dma_semaphore, #tpu.memory_space<semaphore_mem>> -> memref<!tpu.dma_semaphore, #tpu.memory_space<semaphore_mem>>
    tpu.enqueue_dma source(%214 : memref<1x128xf32, #tpu.memory_space<any>>) target(%215 : memref<1x128xf32, #tpu.memory_space<vmem>>) target_semaphore(%217 : memref<!tpu.dma_semaphore, #tpu.memory_space<semaphore_mem>>)
    %c31_i32 = arith.constant 31 : i32
    %218 = arith.addi %0, %c31_i32 : i32
    %219 = arith.index_cast %218 : i32 to index
    %220 = memref.load %arg1[%219] : memref<64xi32, #tpu.memory_space<smem>>
    %c0_i32_124 = arith.constant 0 : i32
    %c0_i32_125 = arith.constant 0 : i32
    %221 = tpu.memref_slice %arg2[%220, %c0_i32_125] : memref<32x128xf32, #tpu.memory_space<any>> -> memref<1x128xf32, #tpu.memory_space<any>>
    %c31_i32_126 = arith.constant 31 : i32
    %c0_i32_127 = arith.constant 0 : i32
    %222 = tpu.memref_slice %arg4[%c31_i32_126, %c0_i32_127] : memref<64x128xf32, #tpu.memory_space<vmem>> -> memref<1x128xf32, #tpu.memory_space<vmem>>
    %223 = tpu.memref_slice %arg5[%c0_i32_124] : memref<1x!tpu.dma_semaphore, #tpu.memory_space<semaphore_mem>> -> memref<1x!tpu.dma_semaphore, #tpu.memory_space<semaphore_mem>>
    %224 = tpu.memref_squeeze %223 : memref<1x!tpu.dma_semaphore, #tpu.memory_space<semaphore_mem>> -> memref<!tpu.dma_semaphore, #tpu.memory_space<semaphore_mem>>
    tpu.enqueue_dma source(%221 : memref<1x128xf32, #tpu.memory_space<any>>) target(%222 : memref<1x128xf32, #tpu.memory_space<vmem>>) target_semaphore(%224 : memref<!tpu.dma_semaphore, #tpu.memory_space<semaphore_mem>>)
    %c32_i32 = arith.constant 32 : i32
    %225 = arith.addi %0, %c32_i32 : i32
    %226 = arith.index_cast %225 : i32 to index
    %227 = memref.load %arg1[%226] : memref<64xi32, #tpu.memory_space<smem>>
    %c0_i32_128 = arith.constant 0 : i32
    %c0_i32_129 = arith.constant 0 : i32
    %228 = tpu.memref_slice %arg2[%227, %c0_i32_129] : memref<32x128xf32, #tpu.memory_space<any>> -> memref<1x128xf32, #tpu.memory_space<any>>
    %c32_i32_130 = arith.constant 32 : i32
    %c0_i32_131 = arith.constant 0 : i32
    %229 = tpu.memref_slice %arg4[%c32_i32_130, %c0_i32_131] : memref<64x128xf32, #tpu.memory_space<vmem>> -> memref<1x128xf32, #tpu.memory_space<vmem>>
    %230 = tpu.memref_slice %arg5[%c0_i32_128] : memref<1x!tpu.dma_semaphore, #tpu.memory_space<semaphore_mem>> -> memref<1x!tpu.dma_semaphore, #tpu.memory_space<semaphore_mem>>
    %231 = tpu.memref_squeeze %230 : memref<1x!tpu.dma_semaphore, #tpu.memory_space<semaphore_mem>> -> memref<!tpu.dma_semaphore, #tpu.memory_space<semaphore_mem>>
    tpu.enqueue_dma source(%228 : memref<1x128xf32, #tpu.memory_space<any>>) target(%229 : memref<1x128xf32, #tpu.memory_space<vmem>>) target_semaphore(%231 : memref<!tpu.dma_semaphore, #tpu.memory_space<semaphore_mem>>)
    %c33_i32 = arith.constant 33 : i32
    %232 = arith.addi %0, %c33_i32 : i32
    %233 = arith.index_cast %232 : i32 to index
    %234 = memref.load %arg1[%233] : memref<64xi32, #tpu.memory_space<smem>>
    %c0_i32_132 = arith.constant 0 : i32
    %c0_i32_133 = arith.constant 0 : i32
    %235 = tpu.memref_slice %arg2[%234, %c0_i32_133] : memref<32x128xf32, #tpu.memory_space<any>> -> memref<1x128xf32, #tpu.memory_space<any>>
    %c33_i32_134 = arith.constant 33 : i32
    %c0_i32_135 = arith.constant 0 : i32
    %236 = tpu.memref_slice %arg4[%c33_i32_134, %c0_i32_135] : memref<64x128xf32, #tpu.memory_space<vmem>> -> memref<1x128xf32, #tpu.memory_space<vmem>>
    %237 = tpu.memref_slice %arg5[%c0_i32_132] : memref<1x!tpu.dma_semaphore, #tpu.memory_space<semaphore_mem>> -> memref<1x!tpu.dma_semaphore, #tpu.memory_space<semaphore_mem>>
    %238 = tpu.memref_squeeze %237 : memref<1x!tpu.dma_semaphore, #tpu.memory_space<semaphore_mem>> -> memref<!tpu.dma_semaphore, #tpu.memory_space<semaphore_mem>>
    tpu.enqueue_dma source(%235 : memref<1x128xf32, #tpu.memory_space<any>>) target(%236 : memref<1x128xf32, #tpu.memory_space<vmem>>) target_semaphore(%238 : memref<!tpu.dma_semaphore, #tpu.memory_space<semaphore_mem>>)
    %c34_i32 = arith.constant 34 : i32
    %239 = arith.addi %0, %c34_i32 : i32
    %240 = arith.index_cast %239 : i32 to index
    %241 = memref.load %arg1[%240] : memref<64xi32, #tpu.memory_space<smem>>
    %c0_i32_136 = arith.constant 0 : i32
    %c0_i32_137 = arith.constant 0 : i32
    %242 = tpu.memref_slice %arg2[%241, %c0_i32_137] : memref<32x128xf32, #tpu.memory_space<any>> -> memref<1x128xf32, #tpu.memory_space<any>>
    %c34_i32_138 = arith.constant 34 : i32
    %c0_i32_139 = arith.constant 0 : i32
    %243 = tpu.memref_slice %arg4[%c34_i32_138, %c0_i32_139] : memref<64x128xf32, #tpu.memory_space<vmem>> -> memref<1x128xf32, #tpu.memory_space<vmem>>
    %244 = tpu.memref_slice %arg5[%c0_i32_136] : memref<1x!tpu.dma_semaphore, #tpu.memory_space<semaphore_mem>> -> memref<1x!tpu.dma_semaphore, #tpu.memory_space<semaphore_mem>>
    %245 = tpu.memref_squeeze %244 : memref<1x!tpu.dma_semaphore, #tpu.memory_space<semaphore_mem>> -> memref<!tpu.dma_semaphore, #tpu.memory_space<semaphore_mem>>
    tpu.enqueue_dma source(%242 : memref<1x128xf32, #tpu.memory_space<any>>) target(%243 : memref<1x128xf32, #tpu.memory_space<vmem>>) target_semaphore(%245 : memref<!tpu.dma_semaphore, #tpu.memory_space<semaphore_mem>>)
    %c35_i32 = arith.constant 35 : i32
    %246 = arith.addi %0, %c35_i32 : i32
    %247 = arith.index_cast %246 : i32 to index
    %248 = memref.load %arg1[%247] : memref<64xi32, #tpu.memory_space<smem>>
    %c0_i32_140 = arith.constant 0 : i32
    %c0_i32_141 = arith.constant 0 : i32
    %249 = tpu.memref_slice %arg2[%248, %c0_i32_141] : memref<32x128xf32, #tpu.memory_space<any>> -> memref<1x128xf32, #tpu.memory_space<any>>
    %c35_i32_142 = arith.constant 35 : i32
    %c0_i32_143 = arith.constant 0 : i32
    %250 = tpu.memref_slice %arg4[%c35_i32_142, %c0_i32_143] : memref<64x128xf32, #tpu.memory_space<vmem>> -> memref<1x128xf32, #tpu.memory_space<vmem>>
    %251 = tpu.memref_slice %arg5[%c0_i32_140] : memref<1x!tpu.dma_semaphore, #tpu.memory_space<semaphore_mem>> -> memref<1x!tpu.dma_semaphore, #tpu.memory_space<semaphore_mem>>
    %252 = tpu.memref_squeeze %251 : memref<1x!tpu.dma_semaphore, #tpu.memory_space<semaphore_mem>> -> memref<!tpu.dma_semaphore, #tpu.memory_space<semaphore_mem>>
    tpu.enqueue_dma source(%249 : memref<1x128xf32, #tpu.memory_space<any>>) target(%250 : memref<1x128xf32, #tpu.memory_space<vmem>>) target_semaphore(%252 : memref<!tpu.dma_semaphore, #tpu.memory_space<semaphore_mem>>)
    %c36_i32 = arith.constant 36 : i32
    %253 = arith.addi %0, %c36_i32 : i32
    %254 = arith.index_cast %253 : i32 to index
    %255 = memref.load %arg1[%254] : memref<64xi32, #tpu.memory_space<smem>>
    %c0_i32_144 = arith.constant 0 : i32
    %c0_i32_145 = arith.constant 0 : i32
    %256 = tpu.memref_slice %arg2[%255, %c0_i32_145] : memref<32x128xf32, #tpu.memory_space<any>> -> memref<1x128xf32, #tpu.memory_space<any>>
    %c36_i32_146 = arith.constant 36 : i32
    %c0_i32_147 = arith.constant 0 : i32
    %257 = tpu.memref_slice %arg4[%c36_i32_146, %c0_i32_147] : memref<64x128xf32, #tpu.memory_space<vmem>> -> memref<1x128xf32, #tpu.memory_space<vmem>>
    %258 = tpu.memref_slice %arg5[%c0_i32_144] : memref<1x!tpu.dma_semaphore, #tpu.memory_space<semaphore_mem>> -> memref<1x!tpu.dma_semaphore, #tpu.memory_space<semaphore_mem>>
    %259 = tpu.memref_squeeze %258 : memref<1x!tpu.dma_semaphore, #tpu.memory_space<semaphore_mem>> -> memref<!tpu.dma_semaphore, #tpu.memory_space<semaphore_mem>>
    tpu.enqueue_dma source(%256 : memref<1x128xf32, #tpu.memory_space<any>>) target(%257 : memref<1x128xf32, #tpu.memory_space<vmem>>) target_semaphore(%259 : memref<!tpu.dma_semaphore, #tpu.memory_space<semaphore_mem>>)
    %c37_i32 = arith.constant 37 : i32
    %260 = arith.addi %0, %c37_i32 : i32
    %261 = arith.index_cast %260 : i32 to index
    %262 = memref.load %arg1[%261] : memref<64xi32, #tpu.memory_space<smem>>
    %c0_i32_148 = arith.constant 0 : i32
    %c0_i32_149 = arith.constant 0 : i32
    %263 = tpu.memref_slice %arg2[%262, %c0_i32_149] : memref<32x128xf32, #tpu.memory_space<any>> -> memref<1x128xf32, #tpu.memory_space<any>>
    %c37_i32_150 = arith.constant 37 : i32
    %c0_i32_151 = arith.constant 0 : i32
    %264 = tpu.memref_slice %arg4[%c37_i32_150, %c0_i32_151] : memref<64x128xf32, #tpu.memory_space<vmem>> -> memref<1x128xf32, #tpu.memory_space<vmem>>
    %265 = tpu.memref_slice %arg5[%c0_i32_148] : memref<1x!tpu.dma_semaphore, #tpu.memory_space<semaphore_mem>> -> memref<1x!tpu.dma_semaphore, #tpu.memory_space<semaphore_mem>>
    %266 = tpu.memref_squeeze %265 : memref<1x!tpu.dma_semaphore, #tpu.memory_space<semaphore_mem>> -> memref<!tpu.dma_semaphore, #tpu.memory_space<semaphore_mem>>
    tpu.enqueue_dma source(%263 : memref<1x128xf32, #tpu.memory_space<any>>) target(%264 : memref<1x128xf32, #tpu.memory_space<vmem>>) target_semaphore(%266 : memref<!tpu.dma_semaphore, #tpu.memory_space<semaphore_mem>>)
    %c38_i32 = arith.constant 38 : i32
    %267 = arith.addi %0, %c38_i32 : i32
    %268 = arith.index_cast %267 : i32 to index
    %269 = memref.load %arg1[%268] : memref<64xi32, #tpu.memory_space<smem>>
    %c0_i32_152 = arith.constant 0 : i32
    %c0_i32_153 = arith.constant 0 : i32
    %270 = tpu.memref_slice %arg2[%269, %c0_i32_153] : memref<32x128xf32, #tpu.memory_space<any>> -> memref<1x128xf32, #tpu.memory_space<any>>
    %c38_i32_154 = arith.constant 38 : i32
    %c0_i32_155 = arith.constant 0 : i32
    %271 = tpu.memref_slice %arg4[%c38_i32_154, %c0_i32_155] : memref<64x128xf32, #tpu.memory_space<vmem>> -> memref<1x128xf32, #tpu.memory_space<vmem>>
    %272 = tpu.memref_slice %arg5[%c0_i32_152] : memref<1x!tpu.dma_semaphore, #tpu.memory_space<semaphore_mem>> -> memref<1x!tpu.dma_semaphore, #tpu.memory_space<semaphore_mem>>
    %273 = tpu.memref_squeeze %272 : memref<1x!tpu.dma_semaphore, #tpu.memory_space<semaphore_mem>> -> memref<!tpu.dma_semaphore, #tpu.memory_space<semaphore_mem>>
    tpu.enqueue_dma source(%270 : memref<1x128xf32, #tpu.memory_space<any>>) target(%271 : memref<1x128xf32, #tpu.memory_space<vmem>>) target_semaphore(%273 : memref<!tpu.dma_semaphore, #tpu.memory_space<semaphore_mem>>)
    %c39_i32 = arith.constant 39 : i32
    %274 = arith.addi %0, %c39_i32 : i32
    %275 = arith.index_cast %274 : i32 to index
    %276 = memref.load %arg1[%275] : memref<64xi32, #tpu.memory_space<smem>>
    %c0_i32_156 = arith.constant 0 : i32
    %c0_i32_157 = arith.constant 0 : i32
    %277 = tpu.memref_slice %arg2[%276, %c0_i32_157] : memref<32x128xf32, #tpu.memory_space<any>> -> memref<1x128xf32, #tpu.memory_space<any>>
    %c39_i32_158 = arith.constant 39 : i32
    %c0_i32_159 = arith.constant 0 : i32
    %278 = tpu.memref_slice %arg4[%c39_i32_158, %c0_i32_159] : memref<64x128xf32, #tpu.memory_space<vmem>> -> memref<1x128xf32, #tpu.memory_space<vmem>>
    %279 = tpu.memref_slice %arg5[%c0_i32_156] : memref<1x!tpu.dma_semaphore, #tpu.memory_space<semaphore_mem>> -> memref<1x!tpu.dma_semaphore, #tpu.memory_space<semaphore_mem>>
    %280 = tpu.memref_squeeze %279 : memref<1x!tpu.dma_semaphore, #tpu.memory_space<semaphore_mem>> -> memref<!tpu.dma_semaphore, #tpu.memory_space<semaphore_mem>>
    tpu.enqueue_dma source(%277 : memref<1x128xf32, #tpu.memory_space<any>>) target(%278 : memref<1x128xf32, #tpu.memory_space<vmem>>) target_semaphore(%280 : memref<!tpu.dma_semaphore, #tpu.memory_space<semaphore_mem>>)
    %c40_i32 = arith.constant 40 : i32
    %281 = arith.addi %0, %c40_i32 : i32
    %282 = arith.index_cast %281 : i32 to index
    %283 = memref.load %arg1[%282] : memref<64xi32, #tpu.memory_space<smem>>
    %c0_i32_160 = arith.constant 0 : i32
    %c0_i32_161 = arith.constant 0 : i32
    %284 = tpu.memref_slice %arg2[%283, %c0_i32_161] : memref<32x128xf32, #tpu.memory_space<any>> -> memref<1x128xf32, #tpu.memory_space<any>>
    %c40_i32_162 = arith.constant 40 : i32
    %c0_i32_163 = arith.constant 0 : i32
    %285 = tpu.memref_slice %arg4[%c40_i32_162, %c0_i32_163] : memref<64x128xf32, #tpu.memory_space<vmem>> -> memref<1x128xf32, #tpu.memory_space<vmem>>
    %286 = tpu.memref_slice %arg5[%c0_i32_160] : memref<1x!tpu.dma_semaphore, #tpu.memory_space<semaphore_mem>> -> memref<1x!tpu.dma_semaphore, #tpu.memory_space<semaphore_mem>>
    %287 = tpu.memref_squeeze %286 : memref<1x!tpu.dma_semaphore, #tpu.memory_space<semaphore_mem>> -> memref<!tpu.dma_semaphore, #tpu.memory_space<semaphore_mem>>
    tpu.enqueue_dma source(%284 : memref<1x128xf32, #tpu.memory_space<any>>) target(%285 : memref<1x128xf32, #tpu.memory_space<vmem>>) target_semaphore(%287 : memref<!tpu.dma_semaphore, #tpu.memory_space<semaphore_mem>>)
    %c41_i32 = arith.constant 41 : i32
    %288 = arith.addi %0, %c41_i32 : i32
    %289 = arith.index_cast %288 : i32 to index
    %290 = memref.load %arg1[%289] : memref<64xi32, #tpu.memory_space<smem>>
    %c0_i32_164 = arith.constant 0 : i32
    %c0_i32_165 = arith.constant 0 : i32
    %291 = tpu.memref_slice %arg2[%290, %c0_i32_165] : memref<32x128xf32, #tpu.memory_space<any>> -> memref<1x128xf32, #tpu.memory_space<any>>
    %c41_i32_166 = arith.constant 41 : i32
    %c0_i32_167 = arith.constant 0 : i32
    %292 = tpu.memref_slice %arg4[%c41_i32_166, %c0_i32_167] : memref<64x128xf32, #tpu.memory_space<vmem>> -> memref<1x128xf32, #tpu.memory_space<vmem>>
    %293 = tpu.memref_slice %arg5[%c0_i32_164] : memref<1x!tpu.dma_semaphore, #tpu.memory_space<semaphore_mem>> -> memref<1x!tpu.dma_semaphore, #tpu.memory_space<semaphore_mem>>
    %294 = tpu.memref_squeeze %293 : memref<1x!tpu.dma_semaphore, #tpu.memory_space<semaphore_mem>> -> memref<!tpu.dma_semaphore, #tpu.memory_space<semaphore_mem>>
    tpu.enqueue_dma source(%291 : memref<1x128xf32, #tpu.memory_space<any>>) target(%292 : memref<1x128xf32, #tpu.memory_space<vmem>>) target_semaphore(%294 : memref<!tpu.dma_semaphore, #tpu.memory_space<semaphore_mem>>)
    %c42_i32 = arith.constant 42 : i32
    %295 = arith.addi %0, %c42_i32 : i32
    %296 = arith.index_cast %295 : i32 to index
    %297 = memref.load %arg1[%296] : memref<64xi32, #tpu.memory_space<smem>>
    %c0_i32_168 = arith.constant 0 : i32
    %c0_i32_169 = arith.constant 0 : i32
    %298 = tpu.memref_slice %arg2[%297, %c0_i32_169] : memref<32x128xf32, #tpu.memory_space<any>> -> memref<1x128xf32, #tpu.memory_space<any>>
    %c42_i32_170 = arith.constant 42 : i32
    %c0_i32_171 = arith.constant 0 : i32
    %299 = tpu.memref_slice %arg4[%c42_i32_170, %c0_i32_171] : memref<64x128xf32, #tpu.memory_space<vmem>> -> memref<1x128xf32, #tpu.memory_space<vmem>>
    %300 = tpu.memref_slice %arg5[%c0_i32_168] : memref<1x!tpu.dma_semaphore, #tpu.memory_space<semaphore_mem>> -> memref<1x!tpu.dma_semaphore, #tpu.memory_space<semaphore_mem>>
    %301 = tpu.memref_squeeze %300 : memref<1x!tpu.dma_semaphore, #tpu.memory_space<semaphore_mem>> -> memref<!tpu.dma_semaphore, #tpu.memory_space<semaphore_mem>>
    tpu.enqueue_dma source(%298 : memref<1x128xf32, #tpu.memory_space<any>>) target(%299 : memref<1x128xf32, #tpu.memory_space<vmem>>) target_semaphore(%301 : memref<!tpu.dma_semaphore, #tpu.memory_space<semaphore_mem>>)
    %c43_i32 = arith.constant 43 : i32
    %302 = arith.addi %0, %c43_i32 : i32
    %303 = arith.index_cast %302 : i32 to index
    %304 = memref.load %arg1[%303] : memref<64xi32, #tpu.memory_space<smem>>
    %c0_i32_172 = arith.constant 0 : i32
    %c0_i32_173 = arith.constant 0 : i32
    %305 = tpu.memref_slice %arg2[%304, %c0_i32_173] : memref<32x128xf32, #tpu.memory_space<any>> -> memref<1x128xf32, #tpu.memory_space<any>>
    %c43_i32_174 = arith.constant 43 : i32
    %c0_i32_175 = arith.constant 0 : i32
    %306 = tpu.memref_slice %arg4[%c43_i32_174, %c0_i32_175] : memref<64x128xf32, #tpu.memory_space<vmem>> -> memref<1x128xf32, #tpu.memory_space<vmem>>
    %307 = tpu.memref_slice %arg5[%c0_i32_172] : memref<1x!tpu.dma_semaphore, #tpu.memory_space<semaphore_mem>> -> memref<1x!tpu.dma_semaphore, #tpu.memory_space<semaphore_mem>>
    %308 = tpu.memref_squeeze %307 : memref<1x!tpu.dma_semaphore, #tpu.memory_space<semaphore_mem>> -> memref<!tpu.dma_semaphore, #tpu.memory_space<semaphore_mem>>
    tpu.enqueue_dma source(%305 : memref<1x128xf32, #tpu.memory_space<any>>) target(%306 : memref<1x128xf32, #tpu.memory_space<vmem>>) target_semaphore(%308 : memref<!tpu.dma_semaphore, #tpu.memory_space<semaphore_mem>>)
    %c44_i32 = arith.constant 44 : i32
    %309 = arith.addi %0, %c44_i32 : i32
    %310 = arith.index_cast %309 : i32 to index
    %311 = memref.load %arg1[%310] : memref<64xi32, #tpu.memory_space<smem>>
    %c0_i32_176 = arith.constant 0 : i32
    %c0_i32_177 = arith.constant 0 : i32
    %312 = tpu.memref_slice %arg2[%311, %c0_i32_177] : memref<32x128xf32, #tpu.memory_space<any>> -> memref<1x128xf32, #tpu.memory_space<any>>
    %c44_i32_178 = arith.constant 44 : i32
    %c0_i32_179 = arith.constant 0 : i32
    %313 = tpu.memref_slice %arg4[%c44_i32_178, %c0_i32_179] : memref<64x128xf32, #tpu.memory_space<vmem>> -> memref<1x128xf32, #tpu.memory_space<vmem>>
    %314 = tpu.memref_slice %arg5[%c0_i32_176] : memref<1x!tpu.dma_semaphore, #tpu.memory_space<semaphore_mem>> -> memref<1x!tpu.dma_semaphore, #tpu.memory_space<semaphore_mem>>
    %315 = tpu.memref_squeeze %314 : memref<1x!tpu.dma_semaphore, #tpu.memory_space<semaphore_mem>> -> memref<!tpu.dma_semaphore, #tpu.memory_space<semaphore_mem>>
    tpu.enqueue_dma source(%312 : memref<1x128xf32, #tpu.memory_space<any>>) target(%313 : memref<1x128xf32, #tpu.memory_space<vmem>>) target_semaphore(%315 : memref<!tpu.dma_semaphore, #tpu.memory_space<semaphore_mem>>)
    %c45_i32 = arith.constant 45 : i32
    %316 = arith.addi %0, %c45_i32 : i32
    %317 = arith.index_cast %316 : i32 to index
    %318 = memref.load %arg1[%317] : memref<64xi32, #tpu.memory_space<smem>>
    %c0_i32_180 = arith.constant 0 : i32
    %c0_i32_181 = arith.constant 0 : i32
    %319 = tpu.memref_slice %arg2[%318, %c0_i32_181] : memref<32x128xf32, #tpu.memory_space<any>> -> memref<1x128xf32, #tpu.memory_space<any>>
    %c45_i32_182 = arith.constant 45 : i32
    %c0_i32_183 = arith.constant 0 : i32
    %320 = tpu.memref_slice %arg4[%c45_i32_182, %c0_i32_183] : memref<64x128xf32, #tpu.memory_space<vmem>> -> memref<1x128xf32, #tpu.memory_space<vmem>>
    %321 = tpu.memref_slice %arg5[%c0_i32_180] : memref<1x!tpu.dma_semaphore, #tpu.memory_space<semaphore_mem>> -> memref<1x!tpu.dma_semaphore, #tpu.memory_space<semaphore_mem>>
    %322 = tpu.memref_squeeze %321 : memref<1x!tpu.dma_semaphore, #tpu.memory_space<semaphore_mem>> -> memref<!tpu.dma_semaphore, #tpu.memory_space<semaphore_mem>>
    tpu.enqueue_dma source(%319 : memref<1x128xf32, #tpu.memory_space<any>>) target(%320 : memref<1x128xf32, #tpu.memory_space<vmem>>) target_semaphore(%322 : memref<!tpu.dma_semaphore, #tpu.memory_space<semaphore_mem>>)
    %c46_i32 = arith.constant 46 : i32
    %323 = arith.addi %0, %c46_i32 : i32
    %324 = arith.index_cast %323 : i32 to index
    %325 = memref.load %arg1[%324] : memref<64xi32, #tpu.memory_space<smem>>
    %c0_i32_184 = arith.constant 0 : i32
    %c0_i32_185 = arith.constant 0 : i32
    %326 = tpu.memref_slice %arg2[%325, %c0_i32_185] : memref<32x128xf32, #tpu.memory_space<any>> -> memref<1x128xf32, #tpu.memory_space<any>>
    %c46_i32_186 = arith.constant 46 : i32
    %c0_i32_187 = arith.constant 0 : i32
    %327 = tpu.memref_slice %arg4[%c46_i32_186, %c0_i32_187] : memref<64x128xf32, #tpu.memory_space<vmem>> -> memref<1x128xf32, #tpu.memory_space<vmem>>
    %328 = tpu.memref_slice %arg5[%c0_i32_184] : memref<1x!tpu.dma_semaphore, #tpu.memory_space<semaphore_mem>> -> memref<1x!tpu.dma_semaphore, #tpu.memory_space<semaphore_mem>>
    %329 = tpu.memref_squeeze %328 : memref<1x!tpu.dma_semaphore, #tpu.memory_space<semaphore_mem>> -> memref<!tpu.dma_semaphore, #tpu.memory_space<semaphore_mem>>
    tpu.enqueue_dma source(%326 : memref<1x128xf32, #tpu.memory_space<any>>) target(%327 : memref<1x128xf32, #tpu.memory_space<vmem>>) target_semaphore(%329 : memref<!tpu.dma_semaphore, #tpu.memory_space<semaphore_mem>>)
    %c47_i32 = arith.constant 47 : i32
    %330 = arith.addi %0, %c47_i32 : i32
    %331 = arith.index_cast %330 : i32 to index
    %332 = memref.load %arg1[%331] : memref<64xi32, #tpu.memory_space<smem>>
    %c0_i32_188 = arith.constant 0 : i32
    %c0_i32_189 = arith.constant 0 : i32
    %333 = tpu.memref_slice %arg2[%332, %c0_i32_189] : memref<32x128xf32, #tpu.memory_space<any>> -> memref<1x128xf32, #tpu.memory_space<any>>
    %c47_i32_190 = arith.constant 47 : i32
    %c0_i32_191 = arith.constant 0 : i32
    %334 = tpu.memref_slice %arg4[%c47_i32_190, %c0_i32_191] : memref<64x128xf32, #tpu.memory_space<vmem>> -> memref<1x128xf32, #tpu.memory_space<vmem>>
    %335 = tpu.memref_slice %arg5[%c0_i32_188] : memref<1x!tpu.dma_semaphore, #tpu.memory_space<semaphore_mem>> -> memref<1x!tpu.dma_semaphore, #tpu.memory_space<semaphore_mem>>
    %336 = tpu.memref_squeeze %335 : memref<1x!tpu.dma_semaphore, #tpu.memory_space<semaphore_mem>> -> memref<!tpu.dma_semaphore, #tpu.memory_space<semaphore_mem>>
    tpu.enqueue_dma source(%333 : memref<1x128xf32, #tpu.memory_space<any>>) target(%334 : memref<1x128xf32, #tpu.memory_space<vmem>>) target_semaphore(%336 : memref<!tpu.dma_semaphore, #tpu.memory_space<semaphore_mem>>)
    %c48_i32 = arith.constant 48 : i32
    %337 = arith.addi %0, %c48_i32 : i32
    %338 = arith.index_cast %337 : i32 to index
    %339 = memref.load %arg1[%338] : memref<64xi32, #tpu.memory_space<smem>>
    %c0_i32_192 = arith.constant 0 : i32
    %c0_i32_193 = arith.constant 0 : i32
    %340 = tpu.memref_slice %arg2[%339, %c0_i32_193] : memref<32x128xf32, #tpu.memory_space<any>> -> memref<1x128xf32, #tpu.memory_space<any>>
    %c48_i32_194 = arith.constant 48 : i32
    %c0_i32_195 = arith.constant 0 : i32
    %341 = tpu.memref_slice %arg4[%c48_i32_194, %c0_i32_195] : memref<64x128xf32, #tpu.memory_space<vmem>> -> memref<1x128xf32, #tpu.memory_space<vmem>>
    %342 = tpu.memref_slice %arg5[%c0_i32_192] : memref<1x!tpu.dma_semaphore, #tpu.memory_space<semaphore_mem>> -> memref<1x!tpu.dma_semaphore, #tpu.memory_space<semaphore_mem>>
    %343 = tpu.memref_squeeze %342 : memref<1x!tpu.dma_semaphore, #tpu.memory_space<semaphore_mem>> -> memref<!tpu.dma_semaphore, #tpu.memory_space<semaphore_mem>>
    tpu.enqueue_dma source(%340 : memref<1x128xf32, #tpu.memory_space<any>>) target(%341 : memref<1x128xf32, #tpu.memory_space<vmem>>) target_semaphore(%343 : memref<!tpu.dma_semaphore, #tpu.memory_space<semaphore_mem>>)
    %c49_i32 = arith.constant 49 : i32
    %344 = arith.addi %0, %c49_i32 : i32
    %345 = arith.index_cast %344 : i32 to index
    %346 = memref.load %arg1[%345] : memref<64xi32, #tpu.memory_space<smem>>
    %c0_i32_196 = arith.constant 0 : i32
    %c0_i32_197 = arith.constant 0 : i32
    %347 = tpu.memref_slice %arg2[%346, %c0_i32_197] : memref<32x128xf32, #tpu.memory_space<any>> -> memref<1x128xf32, #tpu.memory_space<any>>
    %c49_i32_198 = arith.constant 49 : i32
    %c0_i32_199 = arith.constant 0 : i32
    %348 = tpu.memref_slice %arg4[%c49_i32_198, %c0_i32_199] : memref<64x128xf32, #tpu.memory_space<vmem>> -> memref<1x128xf32, #tpu.memory_space<vmem>>
    %349 = tpu.memref_slice %arg5[%c0_i32_196] : memref<1x!tpu.dma_semaphore, #tpu.memory_space<semaphore_mem>> -> memref<1x!tpu.dma_semaphore, #tpu.memory_space<semaphore_mem>>
    %350 = tpu.memref_squeeze %349 : memref<1x!tpu.dma_semaphore, #tpu.memory_space<semaphore_mem>> -> memref<!tpu.dma_semaphore, #tpu.memory_space<semaphore_mem>>
    tpu.enqueue_dma source(%347 : memref<1x128xf32, #tpu.memory_space<any>>) target(%348 : memref<1x128xf32, #tpu.memory_space<vmem>>) target_semaphore(%350 : memref<!tpu.dma_semaphore, #tpu.memory_space<semaphore_mem>>)
    %c50_i32 = arith.constant 50 : i32
    %351 = arith.addi %0, %c50_i32 : i32
    %352 = arith.index_cast %351 : i32 to index
    %353 = memref.load %arg1[%352] : memref<64xi32, #tpu.memory_space<smem>>
    %c0_i32_200 = arith.constant 0 : i32
    %c0_i32_201 = arith.constant 0 : i32
    %354 = tpu.memref_slice %arg2[%353, %c0_i32_201] : memref<32x128xf32, #tpu.memory_space<any>> -> memref<1x128xf32, #tpu.memory_space<any>>
    %c50_i32_202 = arith.constant 50 : i32
    %c0_i32_203 = arith.constant 0 : i32
    %355 = tpu.memref_slice %arg4[%c50_i32_202, %c0_i32_203] : memref<64x128xf32, #tpu.memory_space<vmem>> -> memref<1x128xf32, #tpu.memory_space<vmem>>
    %356 = tpu.memref_slice %arg5[%c0_i32_200] : memref<1x!tpu.dma_semaphore, #tpu.memory_space<semaphore_mem>> -> memref<1x!tpu.dma_semaphore, #tpu.memory_space<semaphore_mem>>
    %357 = tpu.memref_squeeze %356 : memref<1x!tpu.dma_semaphore, #tpu.memory_space<semaphore_mem>> -> memref<!tpu.dma_semaphore, #tpu.memory_space<semaphore_mem>>
    tpu.enqueue_dma source(%354 : memref<1x128xf32, #tpu.memory_space<any>>) target(%355 : memref<1x128xf32, #tpu.memory_space<vmem>>) target_semaphore(%357 : memref<!tpu.dma_semaphore, #tpu.memory_space<semaphore_mem>>)
    %c51_i32 = arith.constant 51 : i32
    %358 = arith.addi %0, %c51_i32 : i32
    %359 = arith.index_cast %358 : i32 to index
    %360 = memref.load %arg1[%359] : memref<64xi32, #tpu.memory_space<smem>>
    %c0_i32_204 = arith.constant 0 : i32
    %c0_i32_205 = arith.constant 0 : i32
    %361 = tpu.memref_slice %arg2[%360, %c0_i32_205] : memref<32x128xf32, #tpu.memory_space<any>> -> memref<1x128xf32, #tpu.memory_space<any>>
    %c51_i32_206 = arith.constant 51 : i32
    %c0_i32_207 = arith.constant 0 : i32
    %362 = tpu.memref_slice %arg4[%c51_i32_206, %c0_i32_207] : memref<64x128xf32, #tpu.memory_space<vmem>> -> memref<1x128xf32, #tpu.memory_space<vmem>>
    %363 = tpu.memref_slice %arg5[%c0_i32_204] : memref<1x!tpu.dma_semaphore, #tpu.memory_space<semaphore_mem>> -> memref<1x!tpu.dma_semaphore, #tpu.memory_space<semaphore_mem>>
    %364 = tpu.memref_squeeze %363 : memref<1x!tpu.dma_semaphore, #tpu.memory_space<semaphore_mem>> -> memref<!tpu.dma_semaphore, #tpu.memory_space<semaphore_mem>>
    tpu.enqueue_dma source(%361 : memref<1x128xf32, #tpu.memory_space<any>>) target(%362 : memref<1x128xf32, #tpu.memory_space<vmem>>) target_semaphore(%364 : memref<!tpu.dma_semaphore, #tpu.memory_space<semaphore_mem>>)
    %c52_i32 = arith.constant 52 : i32
    %365 = arith.addi %0, %c52_i32 : i32
    %366 = arith.index_cast %365 : i32 to index
    %367 = memref.load %arg1[%366] : memref<64xi32, #tpu.memory_space<smem>>
    %c0_i32_208 = arith.constant 0 : i32
    %c0_i32_209 = arith.constant 0 : i32
    %368 = tpu.memref_slice %arg2[%367, %c0_i32_209] : memref<32x128xf32, #tpu.memory_space<any>> -> memref<1x128xf32, #tpu.memory_space<any>>
    %c52_i32_210 = arith.constant 52 : i32
    %c0_i32_211 = arith.constant 0 : i32
    %369 = tpu.memref_slice %arg4[%c52_i32_210, %c0_i32_211] : memref<64x128xf32, #tpu.memory_space<vmem>> -> memref<1x128xf32, #tpu.memory_space<vmem>>
    %370 = tpu.memref_slice %arg5[%c0_i32_208] : memref<1x!tpu.dma_semaphore, #tpu.memory_space<semaphore_mem>> -> memref<1x!tpu.dma_semaphore, #tpu.memory_space<semaphore_mem>>
    %371 = tpu.memref_squeeze %370 : memref<1x!tpu.dma_semaphore, #tpu.memory_space<semaphore_mem>> -> memref<!tpu.dma_semaphore, #tpu.memory_space<semaphore_mem>>
    tpu.enqueue_dma source(%368 : memref<1x128xf32, #tpu.memory_space<any>>) target(%369 : memref<1x128xf32, #tpu.memory_space<vmem>>) target_semaphore(%371 : memref<!tpu.dma_semaphore, #tpu.memory_space<semaphore_mem>>)
    %c53_i32 = arith.constant 53 : i32
    %372 = arith.addi %0, %c53_i32 : i32
    %373 = arith.index_cast %372 : i32 to index
    %374 = memref.load %arg1[%373] : memref<64xi32, #tpu.memory_space<smem>>
    %c0_i32_212 = arith.constant 0 : i32
    %c0_i32_213 = arith.constant 0 : i32
    %375 = tpu.memref_slice %arg2[%374, %c0_i32_213] : memref<32x128xf32, #tpu.memory_space<any>> -> memref<1x128xf32, #tpu.memory_space<any>>
    %c53_i32_214 = arith.constant 53 : i32
    %c0_i32_215 = arith.constant 0 : i32
    %376 = tpu.memref_slice %arg4[%c53_i32_214, %c0_i32_215] : memref<64x128xf32, #tpu.memory_space<vmem>> -> memref<1x128xf32, #tpu.memory_space<vmem>>
    %377 = tpu.memref_slice %arg5[%c0_i32_212] : memref<1x!tpu.dma_semaphore, #tpu.memory_space<semaphore_mem>> -> memref<1x!tpu.dma_semaphore, #tpu.memory_space<semaphore_mem>>
    %378 = tpu.memref_squeeze %377 : memref<1x!tpu.dma_semaphore, #tpu.memory_space<semaphore_mem>> -> memref<!tpu.dma_semaphore, #tpu.memory_space<semaphore_mem>>
    tpu.enqueue_dma source(%375 : memref<1x128xf32, #tpu.memory_space<any>>) target(%376 : memref<1x128xf32, #tpu.memory_space<vmem>>) target_semaphore(%378 : memref<!tpu.dma_semaphore, #tpu.memory_space<semaphore_mem>>)
    %c54_i32 = arith.constant 54 : i32
    %379 = arith.addi %0, %c54_i32 : i32
    %380 = arith.index_cast %379 : i32 to index
    %381 = memref.load %arg1[%380] : memref<64xi32, #tpu.memory_space<smem>>
    %c0_i32_216 = arith.constant 0 : i32
    %c0_i32_217 = arith.constant 0 : i32
    %382 = tpu.memref_slice %arg2[%381, %c0_i32_217] : memref<32x128xf32, #tpu.memory_space<any>> -> memref<1x128xf32, #tpu.memory_space<any>>
    %c54_i32_218 = arith.constant 54 : i32
    %c0_i32_219 = arith.constant 0 : i32
    %383 = tpu.memref_slice %arg4[%c54_i32_218, %c0_i32_219] : memref<64x128xf32, #tpu.memory_space<vmem>> -> memref<1x128xf32, #tpu.memory_space<vmem>>
    %384 = tpu.memref_slice %arg5[%c0_i32_216] : memref<1x!tpu.dma_semaphore, #tpu.memory_space<semaphore_mem>> -> memref<1x!tpu.dma_semaphore, #tpu.memory_space<semaphore_mem>>
    %385 = tpu.memref_squeeze %384 : memref<1x!tpu.dma_semaphore, #tpu.memory_space<semaphore_mem>> -> memref<!tpu.dma_semaphore, #tpu.memory_space<semaphore_mem>>
    tpu.enqueue_dma source(%382 : memref<1x128xf32, #tpu.memory_space<any>>) target(%383 : memref<1x128xf32, #tpu.memory_space<vmem>>) target_semaphore(%385 : memref<!tpu.dma_semaphore, #tpu.memory_space<semaphore_mem>>)
    %c55_i32 = arith.constant 55 : i32
    %386 = arith.addi %0, %c55_i32 : i32
    %387 = arith.index_cast %386 : i32 to index
    %388 = memref.load %arg1[%387] : memref<64xi32, #tpu.memory_space<smem>>
    %c0_i32_220 = arith.constant 0 : i32
    %c0_i32_221 = arith.constant 0 : i32
    %389 = tpu.memref_slice %arg2[%388, %c0_i32_221] : memref<32x128xf32, #tpu.memory_space<any>> -> memref<1x128xf32, #tpu.memory_space<any>>
    %c55_i32_222 = arith.constant 55 : i32
    %c0_i32_223 = arith.constant 0 : i32
    %390 = tpu.memref_slice %arg4[%c55_i32_222, %c0_i32_223] : memref<64x128xf32, #tpu.memory_space<vmem>> -> memref<1x128xf32, #tpu.memory_space<vmem>>
    %391 = tpu.memref_slice %arg5[%c0_i32_220] : memref<1x!tpu.dma_semaphore, #tpu.memory_space<semaphore_mem>> -> memref<1x!tpu.dma_semaphore, #tpu.memory_space<semaphore_mem>>
    %392 = tpu.memref_squeeze %391 : memref<1x!tpu.dma_semaphore, #tpu.memory_space<semaphore_mem>> -> memref<!tpu.dma_semaphore, #tpu.memory_space<semaphore_mem>>
    tpu.enqueue_dma source(%389 : memref<1x128xf32, #tpu.memory_space<any>>) target(%390 : memref<1x128xf32, #tpu.memory_space<vmem>>) target_semaphore(%392 : memref<!tpu.dma_semaphore, #tpu.memory_space<semaphore_mem>>)
    %c56_i32 = arith.constant 56 : i32
    %393 = arith.addi %0, %c56_i32 : i32
    %394 = arith.index_cast %393 : i32 to index
    %395 = memref.load %arg1[%394] : memref<64xi32, #tpu.memory_space<smem>>
    %c0_i32_224 = arith.constant 0 : i32
    %c0_i32_225 = arith.constant 0 : i32
    %396 = tpu.memref_slice %arg2[%395, %c0_i32_225] : memref<32x128xf32, #tpu.memory_space<any>> -> memref<1x128xf32, #tpu.memory_space<any>>
    %c56_i32_226 = arith.constant 56 : i32
    %c0_i32_227 = arith.constant 0 : i32
    %397 = tpu.memref_slice %arg4[%c56_i32_226, %c0_i32_227] : memref<64x128xf32, #tpu.memory_space<vmem>> -> memref<1x128xf32, #tpu.memory_space<vmem>>
    %398 = tpu.memref_slice %arg5[%c0_i32_224] : memref<1x!tpu.dma_semaphore, #tpu.memory_space<semaphore_mem>> -> memref<1x!tpu.dma_semaphore, #tpu.memory_space<semaphore_mem>>
    %399 = tpu.memref_squeeze %398 : memref<1x!tpu.dma_semaphore, #tpu.memory_space<semaphore_mem>> -> memref<!tpu.dma_semaphore, #tpu.memory_space<semaphore_mem>>
    tpu.enqueue_dma source(%396 : memref<1x128xf32, #tpu.memory_space<any>>) target(%397 : memref<1x128xf32, #tpu.memory_space<vmem>>) target_semaphore(%399 : memref<!tpu.dma_semaphore, #tpu.memory_space<semaphore_mem>>)
    %c57_i32 = arith.constant 57 : i32
    %400 = arith.addi %0, %c57_i32 : i32
    %401 = arith.index_cast %400 : i32 to index
    %402 = memref.load %arg1[%401] : memref<64xi32, #tpu.memory_space<smem>>
    %c0_i32_228 = arith.constant 0 : i32
    %c0_i32_229 = arith.constant 0 : i32
    %403 = tpu.memref_slice %arg2[%402, %c0_i32_229] : memref<32x128xf32, #tpu.memory_space<any>> -> memref<1x128xf32, #tpu.memory_space<any>>
    %c57_i32_230 = arith.constant 57 : i32
    %c0_i32_231 = arith.constant 0 : i32
    %404 = tpu.memref_slice %arg4[%c57_i32_230, %c0_i32_231] : memref<64x128xf32, #tpu.memory_space<vmem>> -> memref<1x128xf32, #tpu.memory_space<vmem>>
    %405 = tpu.memref_slice %arg5[%c0_i32_228] : memref<1x!tpu.dma_semaphore, #tpu.memory_space<semaphore_mem>> -> memref<1x!tpu.dma_semaphore, #tpu.memory_space<semaphore_mem>>
    %406 = tpu.memref_squeeze %405 : memref<1x!tpu.dma_semaphore, #tpu.memory_space<semaphore_mem>> -> memref<!tpu.dma_semaphore, #tpu.memory_space<semaphore_mem>>
    tpu.enqueue_dma source(%403 : memref<1x128xf32, #tpu.memory_space<any>>) target(%404 : memref<1x128xf32, #tpu.memory_space<vmem>>) target_semaphore(%406 : memref<!tpu.dma_semaphore, #tpu.memory_space<semaphore_mem>>)
    %c58_i32 = arith.constant 58 : i32
    %407 = arith.addi %0, %c58_i32 : i32
    %408 = arith.index_cast %407 : i32 to index
    %409 = memref.load %arg1[%408] : memref<64xi32, #tpu.memory_space<smem>>
    %c0_i32_232 = arith.constant 0 : i32
    %c0_i32_233 = arith.constant 0 : i32
    %410 = tpu.memref_slice %arg2[%409, %c0_i32_233] : memref<32x128xf32, #tpu.memory_space<any>> -> memref<1x128xf32, #tpu.memory_space<any>>
    %c58_i32_234 = arith.constant 58 : i32
    %c0_i32_235 = arith.constant 0 : i32
    %411 = tpu.memref_slice %arg4[%c58_i32_234, %c0_i32_235] : memref<64x128xf32, #tpu.memory_space<vmem>> -> memref<1x128xf32, #tpu.memory_space<vmem>>
    %412 = tpu.memref_slice %arg5[%c0_i32_232] : memref<1x!tpu.dma_semaphore, #tpu.memory_space<semaphore_mem>> -> memref<1x!tpu.dma_semaphore, #tpu.memory_space<semaphore_mem>>
    %413 = tpu.memref_squeeze %412 : memref<1x!tpu.dma_semaphore, #tpu.memory_space<semaphore_mem>> -> memref<!tpu.dma_semaphore, #tpu.memory_space<semaphore_mem>>
    tpu.enqueue_dma source(%410 : memref<1x128xf32, #tpu.memory_space<any>>) target(%411 : memref<1x128xf32, #tpu.memory_space<vmem>>) target_semaphore(%413 : memref<!tpu.dma_semaphore, #tpu.memory_space<semaphore_mem>>)
    %c59_i32 = arith.constant 59 : i32
    %414 = arith.addi %0, %c59_i32 : i32
    %415 = arith.index_cast %414 : i32 to index
    %416 = memref.load %arg1[%415] : memref<64xi32, #tpu.memory_space<smem>>
    %c0_i32_236 = arith.constant 0 : i32
    %c0_i32_237 = arith.constant 0 : i32
    %417 = tpu.memref_slice %arg2[%416, %c0_i32_237] : memref<32x128xf32, #tpu.memory_space<any>> -> memref<1x128xf32, #tpu.memory_space<any>>
    %c59_i32_238 = arith.constant 59 : i32
    %c0_i32_239 = arith.constant 0 : i32
    %418 = tpu.memref_slice %arg4[%c59_i32_238, %c0_i32_239] : memref<64x128xf32, #tpu.memory_space<vmem>> -> memref<1x128xf32, #tpu.memory_space<vmem>>
    %419 = tpu.memref_slice %arg5[%c0_i32_236] : memref<1x!tpu.dma_semaphore, #tpu.memory_space<semaphore_mem>> -> memref<1x!tpu.dma_semaphore, #tpu.memory_space<semaphore_mem>>
    %420 = tpu.memref_squeeze %419 : memref<1x!tpu.dma_semaphore, #tpu.memory_space<semaphore_mem>> -> memref<!tpu.dma_semaphore, #tpu.memory_space<semaphore_mem>>
    tpu.enqueue_dma source(%417 : memref<1x128xf32, #tpu.memory_space<any>>) target(%418 : memref<1x128xf32, #tpu.memory_space<vmem>>) target_semaphore(%420 : memref<!tpu.dma_semaphore, #tpu.memory_space<semaphore_mem>>)
    %c60_i32 = arith.constant 60 : i32
    %421 = arith.addi %0, %c60_i32 : i32
    %422 = arith.index_cast %421 : i32 to index
    %423 = memref.load %arg1[%422] : memref<64xi32, #tpu.memory_space<smem>>
    %c0_i32_240 = arith.constant 0 : i32
    %c0_i32_241 = arith.constant 0 : i32
    %424 = tpu.memref_slice %arg2[%423, %c0_i32_241] : memref<32x128xf32, #tpu.memory_space<any>> -> memref<1x128xf32, #tpu.memory_space<any>>
    %c60_i32_242 = arith.constant 60 : i32
    %c0_i32_243 = arith.constant 0 : i32
    %425 = tpu.memref_slice %arg4[%c60_i32_242, %c0_i32_243] : memref<64x128xf32, #tpu.memory_space<vmem>> -> memref<1x128xf32, #tpu.memory_space<vmem>>
    %426 = tpu.memref_slice %arg5[%c0_i32_240] : memref<1x!tpu.dma_semaphore, #tpu.memory_space<semaphore_mem>> -> memref<1x!tpu.dma_semaphore, #tpu.memory_space<semaphore_mem>>
    %427 = tpu.memref_squeeze %426 : memref<1x!tpu.dma_semaphore, #tpu.memory_space<semaphore_mem>> -> memref<!tpu.dma_semaphore, #tpu.memory_space<semaphore_mem>>
    tpu.enqueue_dma source(%424 : memref<1x128xf32, #tpu.memory_space<any>>) target(%425 : memref<1x128xf32, #tpu.memory_space<vmem>>) target_semaphore(%427 : memref<!tpu.dma_semaphore, #tpu.memory_space<semaphore_mem>>)
    %c61_i32 = arith.constant 61 : i32
    %428 = arith.addi %0, %c61_i32 : i32
    %429 = arith.index_cast %428 : i32 to index
    %430 = memref.load %arg1[%429] : memref<64xi32, #tpu.memory_space<smem>>
    %c0_i32_244 = arith.constant 0 : i32
    %c0_i32_245 = arith.constant 0 : i32
    %431 = tpu.memref_slice %arg2[%430, %c0_i32_245] : memref<32x128xf32, #tpu.memory_space<any>> -> memref<1x128xf32, #tpu.memory_space<any>>
    %c61_i32_246 = arith.constant 61 : i32
    %c0_i32_247 = arith.constant 0 : i32
    %432 = tpu.memref_slice %arg4[%c61_i32_246, %c0_i32_247] : memref<64x128xf32, #tpu.memory_space<vmem>> -> memref<1x128xf32, #tpu.memory_space<vmem>>
    %433 = tpu.memref_slice %arg5[%c0_i32_244] : memref<1x!tpu.dma_semaphore, #tpu.memory_space<semaphore_mem>> -> memref<1x!tpu.dma_semaphore, #tpu.memory_space<semaphore_mem>>
    %434 = tpu.memref_squeeze %433 : memref<1x!tpu.dma_semaphore, #tpu.memory_space<semaphore_mem>> -> memref<!tpu.dma_semaphore, #tpu.memory_space<semaphore_mem>>
    tpu.enqueue_dma source(%431 : memref<1x128xf32, #tpu.memory_space<any>>) target(%432 : memref<1x128xf32, #tpu.memory_space<vmem>>) target_semaphore(%434 : memref<!tpu.dma_semaphore, #tpu.memory_space<semaphore_mem>>)
    %c62_i32 = arith.constant 62 : i32
    %435 = arith.addi %0, %c62_i32 : i32
    %436 = arith.index_cast %435 : i32 to index
    %437 = memref.load %arg1[%436] : memref<64xi32, #tpu.memory_space<smem>>
    %c0_i32_248 = arith.constant 0 : i32
    %c0_i32_249 = arith.constant 0 : i32
    %438 = tpu.memref_slice %arg2[%437, %c0_i32_249] : memref<32x128xf32, #tpu.memory_space<any>> -> memref<1x128xf32, #tpu.memory_space<any>>
    %c62_i32_250 = arith.constant 62 : i32
    %c0_i32_251 = arith.constant 0 : i32
    %439 = tpu.memref_slice %arg4[%c62_i32_250, %c0_i32_251] : memref<64x128xf32, #tpu.memory_space<vmem>> -> memref<1x128xf32, #tpu.memory_space<vmem>>
    %440 = tpu.memref_slice %arg5[%c0_i32_248] : memref<1x!tpu.dma_semaphore, #tpu.memory_space<semaphore_mem>> -> memref<1x!tpu.dma_semaphore, #tpu.memory_space<semaphore_mem>>
    %441 = tpu.memref_squeeze %440 : memref<1x!tpu.dma_semaphore, #tpu.memory_space<semaphore_mem>> -> memref<!tpu.dma_semaphore, #tpu.memory_space<semaphore_mem>>
    tpu.enqueue_dma source(%438 : memref<1x128xf32, #tpu.memory_space<any>>) target(%439 : memref<1x128xf32, #tpu.memory_space<vmem>>) target_semaphore(%441 : memref<!tpu.dma_semaphore, #tpu.memory_space<semaphore_mem>>)
    %c63_i32 = arith.constant 63 : i32
    %442 = arith.addi %0, %c63_i32 : i32
    %443 = arith.index_cast %442 : i32 to index
    %444 = memref.load %arg1[%443] : memref<64xi32, #tpu.memory_space<smem>>
    %c0_i32_252 = arith.constant 0 : i32
    %c0_i32_253 = arith.constant 0 : i32
    %445 = tpu.memref_slice %arg2[%444, %c0_i32_253] : memref<32x128xf32, #tpu.memory_space<any>> -> memref<1x128xf32, #tpu.memory_space<any>>
    %c63_i32_254 = arith.constant 63 : i32
    %c0_i32_255 = arith.constant 0 : i32
    %446 = tpu.memref_slice %arg4[%c63_i32_254, %c0_i32_255] : memref<64x128xf32, #tpu.memory_space<vmem>> -> memref<1x128xf32, #tpu.memory_space<vmem>>
    %447 = tpu.memref_slice %arg5[%c0_i32_252] : memref<1x!tpu.dma_semaphore, #tpu.memory_space<semaphore_mem>> -> memref<1x!tpu.dma_semaphore, #tpu.memory_space<semaphore_mem>>
    %448 = tpu.memref_squeeze %447 : memref<1x!tpu.dma_semaphore, #tpu.memory_space<semaphore_mem>> -> memref<!tpu.dma_semaphore, #tpu.memory_space<semaphore_mem>>
    tpu.enqueue_dma source(%445 : memref<1x128xf32, #tpu.memory_space<any>>) target(%446 : memref<1x128xf32, #tpu.memory_space<vmem>>) target_semaphore(%448 : memref<!tpu.dma_semaphore, #tpu.memory_space<semaphore_mem>>)
    %c0_i32_256 = arith.constant 0 : i32
    %c0_i32_257 = arith.constant 0 : i32
    %449 = tpu.memref_slice %arg2[%3, %c0_i32_257] : memref<32x128xf32, #tpu.memory_space<any>> -> memref<1x128xf32, #tpu.memory_space<any>>
    %c0_i32_258 = arith.constant 0 : i32
    %c0_i32_259 = arith.constant 0 : i32
    %450 = tpu.memref_slice %arg4[%c0_i32_258, %c0_i32_259] : memref<64x128xf32, #tpu.memory_space<vmem>> -> memref<1x128xf32, #tpu.memory_space<vmem>>
    %451 = tpu.memref_slice %arg5[%c0_i32_256] : memref<1x!tpu.dma_semaphore, #tpu.memory_space<semaphore_mem>> -> memref<1x!tpu.dma_semaphore, #tpu.memory_space<semaphore_mem>>
    %452 = tpu.memref_squeeze %451 : memref<1x!tpu.dma_semaphore, #tpu.memory_space<semaphore_mem>> -> memref<!tpu.dma_semaphore, #tpu.memory_space<semaphore_mem>>
    tpu.wait_dma2 semaphore(%452 : memref<!tpu.dma_semaphore, #tpu.memory_space<semaphore_mem>>) src(%449 : memref<1x128xf32, #tpu.memory_space<any>>) dst(%450 : memref<1x128xf32, #tpu.memory_space<vmem>>)
    %c0_i32_260 = arith.constant 0 : i32
    %c0_i32_261 = arith.constant 0 : i32
    %453 = tpu.memref_slice %arg2[%10, %c0_i32_261] : memref<32x128xf32, #tpu.memory_space<any>> -> memref<1x128xf32, #tpu.memory_space<any>>
    %c1_i32_262 = arith.constant 1 : i32
    %c0_i32_263 = arith.constant 0 : i32
    %454 = tpu.memref_slice %arg4[%c1_i32_262, %c0_i32_263] : memref<64x128xf32, #tpu.memory_space<vmem>> -> memref<1x128xf32, #tpu.memory_space<vmem>>
    %455 = tpu.memref_slice %arg5[%c0_i32_260] : memref<1x!tpu.dma_semaphore, #tpu.memory_space<semaphore_mem>> -> memref<1x!tpu.dma_semaphore, #tpu.memory_space<semaphore_mem>>
    %456 = tpu.memref_squeeze %455 : memref<1x!tpu.dma_semaphore, #tpu.memory_space<semaphore_mem>> -> memref<!tpu.dma_semaphore, #tpu.memory_space<semaphore_mem>>
    tpu.wait_dma2 semaphore(%456 : memref<!tpu.dma_semaphore, #tpu.memory_space<semaphore_mem>>) src(%453 : memref<1x128xf32, #tpu.memory_space<any>>) dst(%454 : memref<1x128xf32, #tpu.memory_space<vmem>>)
    %c0_i32_264 = arith.constant 0 : i32
    %c0_i32_265 = arith.constant 0 : i32
    %457 = tpu.memref_slice %arg2[%17, %c0_i32_265] : memref<32x128xf32, #tpu.memory_space<any>> -> memref<1x128xf32, #tpu.memory_space<any>>
    %c2_i32_266 = arith.constant 2 : i32
    %c0_i32_267 = arith.constant 0 : i32
    %458 = tpu.memref_slice %arg4[%c2_i32_266, %c0_i32_267] : memref<64x128xf32, #tpu.memory_space<vmem>> -> memref<1x128xf32, #tpu.memory_space<vmem>>
    %459 = tpu.memref_slice %arg5[%c0_i32_264] : memref<1x!tpu.dma_semaphore, #tpu.memory_space<semaphore_mem>> -> memref<1x!tpu.dma_semaphore, #tpu.memory_space<semaphore_mem>>
    %460 = tpu.memref_squeeze %459 : memref<1x!tpu.dma_semaphore, #tpu.memory_space<semaphore_mem>> -> memref<!tpu.dma_semaphore, #tpu.memory_space<semaphore_mem>>
    tpu.wait_dma2 semaphore(%460 : memref<!tpu.dma_semaphore, #tpu.memory_space<semaphore_mem>>) src(%457 : memref<1x128xf32, #tpu.memory_space<any>>) dst(%458 : memref<1x128xf32, #tpu.memory_space<vmem>>)
    %c0_i32_268 = arith.constant 0 : i32
    %c0_i32_269 = arith.constant 0 : i32
    %461 = tpu.memref_slice %arg2[%24, %c0_i32_269] : memref<32x128xf32, #tpu.memory_space<any>> -> memref<1x128xf32, #tpu.memory_space<any>>
    %c3_i32_270 = arith.constant 3 : i32
    %c0_i32_271 = arith.constant 0 : i32
    %462 = tpu.memref_slice %arg4[%c3_i32_270, %c0_i32_271] : memref<64x128xf32, #tpu.memory_space<vmem>> -> memref<1x128xf32, #tpu.memory_space<vmem>>
    %463 = tpu.memref_slice %arg5[%c0_i32_268] : memref<1x!tpu.dma_semaphore, #tpu.memory_space<semaphore_mem>> -> memref<1x!tpu.dma_semaphore, #tpu.memory_space<semaphore_mem>>
    %464 = tpu.memref_squeeze %463 : memref<1x!tpu.dma_semaphore, #tpu.memory_space<semaphore_mem>> -> memref<!tpu.dma_semaphore, #tpu.memory_space<semaphore_mem>>
    tpu.wait_dma2 semaphore(%464 : memref<!tpu.dma_semaphore, #tpu.memory_space<semaphore_mem>>) src(%461 : memref<1x128xf32, #tpu.memory_space<any>>) dst(%462 : memref<1x128xf32, #tpu.memory_space<vmem>>)
    %c0_i32_272 = arith.constant 0 : i32
    %c0_i32_273 = arith.constant 0 : i32
    %465 = tpu.memref_slice %arg2[%31, %c0_i32_273] : memref<32x128xf32, #tpu.memory_space<any>> -> memref<1x128xf32, #tpu.memory_space<any>>
    %c4_i32_274 = arith.constant 4 : i32
    %c0_i32_275 = arith.constant 0 : i32
    %466 = tpu.memref_slice %arg4[%c4_i32_274, %c0_i32_275] : memref<64x128xf32, #tpu.memory_space<vmem>> -> memref<1x128xf32, #tpu.memory_space<vmem>>
    %467 = tpu.memref_slice %arg5[%c0_i32_272] : memref<1x!tpu.dma_semaphore, #tpu.memory_space<semaphore_mem>> -> memref<1x!tpu.dma_semaphore, #tpu.memory_space<semaphore_mem>>
    %468 = tpu.memref_squeeze %467 : memref<1x!tpu.dma_semaphore, #tpu.memory_space<semaphore_mem>> -> memref<!tpu.dma_semaphore, #tpu.memory_space<semaphore_mem>>
    tpu.wait_dma2 semaphore(%468 : memref<!tpu.dma_semaphore, #tpu.memory_space<semaphore_mem>>) src(%465 : memref<1x128xf32, #tpu.memory_space<any>>) dst(%466 : memref<1x128xf32, #tpu.memory_space<vmem>>)
    %c0_i32_276 = arith.constant 0 : i32
    %c0_i32_277 = arith.constant 0 : i32
    %469 = tpu.memref_slice %arg2[%38, %c0_i32_277] : memref<32x128xf32, #tpu.memory_space<any>> -> memref<1x128xf32, #tpu.memory_space<any>>
    %c5_i32_278 = arith.constant 5 : i32
    %c0_i32_279 = arith.constant 0 : i32
    %470 = tpu.memref_slice %arg4[%c5_i32_278, %c0_i32_279] : memref<64x128xf32, #tpu.memory_space<vmem>> -> memref<1x128xf32, #tpu.memory_space<vmem>>
    %471 = tpu.memref_slice %arg5[%c0_i32_276] : memref<1x!tpu.dma_semaphore, #tpu.memory_space<semaphore_mem>> -> memref<1x!tpu.dma_semaphore, #tpu.memory_space<semaphore_mem>>
    %472 = tpu.memref_squeeze %471 : memref<1x!tpu.dma_semaphore, #tpu.memory_space<semaphore_mem>> -> memref<!tpu.dma_semaphore, #tpu.memory_space<semaphore_mem>>
    tpu.wait_dma2 semaphore(%472 : memref<!tpu.dma_semaphore, #tpu.memory_space<semaphore_mem>>) src(%469 : memref<1x128xf32, #tpu.memory_space<any>>) dst(%470 : memref<1x128xf32, #tpu.memory_space<vmem>>)
    %c0_i32_280 = arith.constant 0 : i32
    %c0_i32_281 = arith.constant 0 : i32
    %473 = tpu.memref_slice %arg2[%45, %c0_i32_281] : memref<32x128xf32, #tpu.memory_space<any>> -> memref<1x128xf32, #tpu.memory_space<any>>
    %c6_i32_282 = arith.constant 6 : i32
    %c0_i32_283 = arith.constant 0 : i32
    %474 = tpu.memref_slice %arg4[%c6_i32_282, %c0_i32_283] : memref<64x128xf32, #tpu.memory_space<vmem>> -> memref<1x128xf32, #tpu.memory_space<vmem>>
    %475 = tpu.memref_slice %arg5[%c0_i32_280] : memref<1x!tpu.dma_semaphore, #tpu.memory_space<semaphore_mem>> -> memref<1x!tpu.dma_semaphore, #tpu.memory_space<semaphore_mem>>
    %476 = tpu.memref_squeeze %475 : memref<1x!tpu.dma_semaphore, #tpu.memory_space<semaphore_mem>> -> memref<!tpu.dma_semaphore, #tpu.memory_space<semaphore_mem>>
    tpu.wait_dma2 semaphore(%476 : memref<!tpu.dma_semaphore, #tpu.memory_space<semaphore_mem>>) src(%473 : memref<1x128xf32, #tpu.memory_space<any>>) dst(%474 : memref<1x128xf32, #tpu.memory_space<vmem>>)
    %c0_i32_284 = arith.constant 0 : i32
    %c0_i32_285 = arith.constant 0 : i32
    %477 = tpu.memref_slice %arg2[%52, %c0_i32_285] : memref<32x128xf32, #tpu.memory_space<any>> -> memref<1x128xf32, #tpu.memory_space<any>>
    %c7_i32_286 = arith.constant 7 : i32
    %c0_i32_287 = arith.constant 0 : i32
    %478 = tpu.memref_slice %arg4[%c7_i32_286, %c0_i32_287] : memref<64x128xf32, #tpu.memory_space<vmem>> -> memref<1x128xf32, #tpu.memory_space<vmem>>
    %479 = tpu.memref_slice %arg5[%c0_i32_284] : memref<1x!tpu.dma_semaphore, #tpu.memory_space<semaphore_mem>> -> memref<1x!tpu.dma_semaphore, #tpu.memory_space<semaphore_mem>>
    %480 = tpu.memref_squeeze %479 : memref<1x!tpu.dma_semaphore, #tpu.memory_space<semaphore_mem>> -> memref<!tpu.dma_semaphore, #tpu.memory_space<semaphore_mem>>
    tpu.wait_dma2 semaphore(%480 : memref<!tpu.dma_semaphore, #tpu.memory_space<semaphore_mem>>) src(%477 : memref<1x128xf32, #tpu.memory_space<any>>) dst(%478 : memref<1x128xf32, #tpu.memory_space<vmem>>)
    %c0_i32_288 = arith.constant 0 : i32
    %c0_i32_289 = arith.constant 0 : i32
    %481 = tpu.memref_slice %arg2[%59, %c0_i32_289] : memref<32x128xf32, #tpu.memory_space<any>> -> memref<1x128xf32, #tpu.memory_space<any>>
    %c8_i32_290 = arith.constant 8 : i32
    %c0_i32_291 = arith.constant 0 : i32
    %482 = tpu.memref_slice %arg4[%c8_i32_290, %c0_i32_291] : memref<64x128xf32, #tpu.memory_space<vmem>> -> memref<1x128xf32, #tpu.memory_space<vmem>>
    %483 = tpu.memref_slice %arg5[%c0_i32_288] : memref<1x!tpu.dma_semaphore, #tpu.memory_space<semaphore_mem>> -> memref<1x!tpu.dma_semaphore, #tpu.memory_space<semaphore_mem>>
    %484 = tpu.memref_squeeze %483 : memref<1x!tpu.dma_semaphore, #tpu.memory_space<semaphore_mem>> -> memref<!tpu.dma_semaphore, #tpu.memory_space<semaphore_mem>>
    tpu.wait_dma2 semaphore(%484 : memref<!tpu.dma_semaphore, #tpu.memory_space<semaphore_mem>>) src(%481 : memref<1x128xf32, #tpu.memory_space<any>>) dst(%482 : memref<1x128xf32, #tpu.memory_space<vmem>>)
    %c0_i32_292 = arith.constant 0 : i32
    %c0_i32_293 = arith.constant 0 : i32
    %485 = tpu.memref_slice %arg2[%66, %c0_i32_293] : memref<32x128xf32, #tpu.memory_space<any>> -> memref<1x128xf32, #tpu.memory_space<any>>
    %c9_i32_294 = arith.constant 9 : i32
    %c0_i32_295 = arith.constant 0 : i32
    %486 = tpu.memref_slice %arg4[%c9_i32_294, %c0_i32_295] : memref<64x128xf32, #tpu.memory_space<vmem>> -> memref<1x128xf32, #tpu.memory_space<vmem>>
    %487 = tpu.memref_slice %arg5[%c0_i32_292] : memref<1x!tpu.dma_semaphore, #tpu.memory_space<semaphore_mem>> -> memref<1x!tpu.dma_semaphore, #tpu.memory_space<semaphore_mem>>
    %488 = tpu.memref_squeeze %487 : memref<1x!tpu.dma_semaphore, #tpu.memory_space<semaphore_mem>> -> memref<!tpu.dma_semaphore, #tpu.memory_space<semaphore_mem>>
    tpu.wait_dma2 semaphore(%488 : memref<!tpu.dma_semaphore, #tpu.memory_space<semaphore_mem>>) src(%485 : memref<1x128xf32, #tpu.memory_space<any>>) dst(%486 : memref<1x128xf32, #tpu.memory_space<vmem>>)
    %c0_i32_296 = arith.constant 0 : i32
    %c0_i32_297 = arith.constant 0 : i32
    %489 = tpu.memref_slice %arg2[%73, %c0_i32_297] : memref<32x128xf32, #tpu.memory_space<any>> -> memref<1x128xf32, #tpu.memory_space<any>>
    %c10_i32_298 = arith.constant 10 : i32
    %c0_i32_299 = arith.constant 0 : i32
    %490 = tpu.memref_slice %arg4[%c10_i32_298, %c0_i32_299] : memref<64x128xf32, #tpu.memory_space<vmem>> -> memref<1x128xf32, #tpu.memory_space<vmem>>
    %491 = tpu.memref_slice %arg5[%c0_i32_296] : memref<1x!tpu.dma_semaphore, #tpu.memory_space<semaphore_mem>> -> memref<1x!tpu.dma_semaphore, #tpu.memory_space<semaphore_mem>>
    %492 = tpu.memref_squeeze %491 : memref<1x!tpu.dma_semaphore, #tpu.memory_space<semaphore_mem>> -> memref<!tpu.dma_semaphore, #tpu.memory_space<semaphore_mem>>
    tpu.wait_dma2 semaphore(%492 : memref<!tpu.dma_semaphore, #tpu.memory_space<semaphore_mem>>) src(%489 : memref<1x128xf32, #tpu.memory_space<any>>) dst(%490 : memref<1x128xf32, #tpu.memory_space<vmem>>)
    %c0_i32_300 = arith.constant 0 : i32
    %c0_i32_301 = arith.constant 0 : i32
    %493 = tpu.memref_slice %arg2[%80, %c0_i32_301] : memref<32x128xf32, #tpu.memory_space<any>> -> memref<1x128xf32, #tpu.memory_space<any>>
    %c11_i32_302 = arith.constant 11 : i32
    %c0_i32_303 = arith.constant 0 : i32
    %494 = tpu.memref_slice %arg4[%c11_i32_302, %c0_i32_303] : memref<64x128xf32, #tpu.memory_space<vmem>> -> memref<1x128xf32, #tpu.memory_space<vmem>>
    %495 = tpu.memref_slice %arg5[%c0_i32_300] : memref<1x!tpu.dma_semaphore, #tpu.memory_space<semaphore_mem>> -> memref<1x!tpu.dma_semaphore, #tpu.memory_space<semaphore_mem>>
    %496 = tpu.memref_squeeze %495 : memref<1x!tpu.dma_semaphore, #tpu.memory_space<semaphore_mem>> -> memref<!tpu.dma_semaphore, #tpu.memory_space<semaphore_mem>>
    tpu.wait_dma2 semaphore(%496 : memref<!tpu.dma_semaphore, #tpu.memory_space<semaphore_mem>>) src(%493 : memref<1x128xf32, #tpu.memory_space<any>>) dst(%494 : memref<1x128xf32, #tpu.memory_space<vmem>>)
    %c0_i32_304 = arith.constant 0 : i32
    %c0_i32_305 = arith.constant 0 : i32
    %497 = tpu.memref_slice %arg2[%87, %c0_i32_305] : memref<32x128xf32, #tpu.memory_space<any>> -> memref<1x128xf32, #tpu.memory_space<any>>
    %c12_i32_306 = arith.constant 12 : i32
    %c0_i32_307 = arith.constant 0 : i32
    %498 = tpu.memref_slice %arg4[%c12_i32_306, %c0_i32_307] : memref<64x128xf32, #tpu.memory_space<vmem>> -> memref<1x128xf32, #tpu.memory_space<vmem>>
    %499 = tpu.memref_slice %arg5[%c0_i32_304] : memref<1x!tpu.dma_semaphore, #tpu.memory_space<semaphore_mem>> -> memref<1x!tpu.dma_semaphore, #tpu.memory_space<semaphore_mem>>
    %500 = tpu.memref_squeeze %499 : memref<1x!tpu.dma_semaphore, #tpu.memory_space<semaphore_mem>> -> memref<!tpu.dma_semaphore, #tpu.memory_space<semaphore_mem>>
    tpu.wait_dma2 semaphore(%500 : memref<!tpu.dma_semaphore, #tpu.memory_space<semaphore_mem>>) src(%497 : memref<1x128xf32, #tpu.memory_space<any>>) dst(%498 : memref<1x128xf32, #tpu.memory_space<vmem>>)
    %c0_i32_308 = arith.constant 0 : i32
    %c0_i32_309 = arith.constant 0 : i32
    %501 = tpu.memref_slice %arg2[%94, %c0_i32_309] : memref<32x128xf32, #tpu.memory_space<any>> -> memref<1x128xf32, #tpu.memory_space<any>>
    %c13_i32_310 = arith.constant 13 : i32
    %c0_i32_311 = arith.constant 0 : i32
    %502 = tpu.memref_slice %arg4[%c13_i32_310, %c0_i32_311] : memref<64x128xf32, #tpu.memory_space<vmem>> -> memref<1x128xf32, #tpu.memory_space<vmem>>
    %503 = tpu.memref_slice %arg5[%c0_i32_308] : memref<1x!tpu.dma_semaphore, #tpu.memory_space<semaphore_mem>> -> memref<1x!tpu.dma_semaphore, #tpu.memory_space<semaphore_mem>>
    %504 = tpu.memref_squeeze %503 : memref<1x!tpu.dma_semaphore, #tpu.memory_space<semaphore_mem>> -> memref<!tpu.dma_semaphore, #tpu.memory_space<semaphore_mem>>
    tpu.wait_dma2 semaphore(%504 : memref<!tpu.dma_semaphore, #tpu.memory_space<semaphore_mem>>) src(%501 : memref<1x128xf32, #tpu.memory_space<any>>) dst(%502 : memref<1x128xf32, #tpu.memory_space<vmem>>)
    %c0_i32_312 = arith.constant 0 : i32
    %c0_i32_313 = arith.constant 0 : i32
    %505 = tpu.memref_slice %arg2[%101, %c0_i32_313] : memref<32x128xf32, #tpu.memory_space<any>> -> memref<1x128xf32, #tpu.memory_space<any>>
    %c14_i32_314 = arith.constant 14 : i32
    %c0_i32_315 = arith.constant 0 : i32
    %506 = tpu.memref_slice %arg4[%c14_i32_314, %c0_i32_315] : memref<64x128xf32, #tpu.memory_space<vmem>> -> memref<1x128xf32, #tpu.memory_space<vmem>>
    %507 = tpu.memref_slice %arg5[%c0_i32_312] : memref<1x!tpu.dma_semaphore, #tpu.memory_space<semaphore_mem>> -> memref<1x!tpu.dma_semaphore, #tpu.memory_space<semaphore_mem>>
    %508 = tpu.memref_squeeze %507 : memref<1x!tpu.dma_semaphore, #tpu.memory_space<semaphore_mem>> -> memref<!tpu.dma_semaphore, #tpu.memory_space<semaphore_mem>>
    tpu.wait_dma2 semaphore(%508 : memref<!tpu.dma_semaphore, #tpu.memory_space<semaphore_mem>>) src(%505 : memref<1x128xf32, #tpu.memory_space<any>>) dst(%506 : memref<1x128xf32, #tpu.memory_space<vmem>>)
    %c0_i32_316 = arith.constant 0 : i32
    %c0_i32_317 = arith.constant 0 : i32
    %509 = tpu.memref_slice %arg2[%108, %c0_i32_317] : memref<32x128xf32, #tpu.memory_space<any>> -> memref<1x128xf32, #tpu.memory_space<any>>
    %c15_i32_318 = arith.constant 15 : i32
    %c0_i32_319 = arith.constant 0 : i32
    %510 = tpu.memref_slice %arg4[%c15_i32_318, %c0_i32_319] : memref<64x128xf32, #tpu.memory_space<vmem>> -> memref<1x128xf32, #tpu.memory_space<vmem>>
    %511 = tpu.memref_slice %arg5[%c0_i32_316] : memref<1x!tpu.dma_semaphore, #tpu.memory_space<semaphore_mem>> -> memref<1x!tpu.dma_semaphore, #tpu.memory_space<semaphore_mem>>
    %512 = tpu.memref_squeeze %511 : memref<1x!tpu.dma_semaphore, #tpu.memory_space<semaphore_mem>> -> memref<!tpu.dma_semaphore, #tpu.memory_space<semaphore_mem>>
    tpu.wait_dma2 semaphore(%512 : memref<!tpu.dma_semaphore, #tpu.memory_space<semaphore_mem>>) src(%509 : memref<1x128xf32, #tpu.memory_space<any>>) dst(%510 : memref<1x128xf32, #tpu.memory_space<vmem>>)
    %c0_i32_320 = arith.constant 0 : i32
    %c0_i32_321 = arith.constant 0 : i32
    %513 = tpu.memref_slice %arg2[%115, %c0_i32_321] : memref<32x128xf32, #tpu.memory_space<any>> -> memref<1x128xf32, #tpu.memory_space<any>>
    %c16_i32_322 = arith.constant 16 : i32
    %c0_i32_323 = arith.constant 0 : i32
    %514 = tpu.memref_slice %arg4[%c16_i32_322, %c0_i32_323] : memref<64x128xf32, #tpu.memory_space<vmem>> -> memref<1x128xf32, #tpu.memory_space<vmem>>
    %515 = tpu.memref_slice %arg5[%c0_i32_320] : memref<1x!tpu.dma_semaphore, #tpu.memory_space<semaphore_mem>> -> memref<1x!tpu.dma_semaphore, #tpu.memory_space<semaphore_mem>>
    %516 = tpu.memref_squeeze %515 : memref<1x!tpu.dma_semaphore, #tpu.memory_space<semaphore_mem>> -> memref<!tpu.dma_semaphore, #tpu.memory_space<semaphore_mem>>
    tpu.wait_dma2 semaphore(%516 : memref<!tpu.dma_semaphore, #tpu.memory_space<semaphore_mem>>) src(%513 : memref<1x128xf32, #tpu.memory_space<any>>) dst(%514 : memref<1x128xf32, #tpu.memory_space<vmem>>)
    %c0_i32_324 = arith.constant 0 : i32
    %c0_i32_325 = arith.constant 0 : i32
    %517 = tpu.memref_slice %arg2[%122, %c0_i32_325] : memref<32x128xf32, #tpu.memory_space<any>> -> memref<1x128xf32, #tpu.memory_space<any>>
    %c17_i32_326 = arith.constant 17 : i32
    %c0_i32_327 = arith.constant 0 : i32
    %518 = tpu.memref_slice %arg4[%c17_i32_326, %c0_i32_327] : memref<64x128xf32, #tpu.memory_space<vmem>> -> memref<1x128xf32, #tpu.memory_space<vmem>>
    %519 = tpu.memref_slice %arg5[%c0_i32_324] : memref<1x!tpu.dma_semaphore, #tpu.memory_space<semaphore_mem>> -> memref<1x!tpu.dma_semaphore, #tpu.memory_space<semaphore_mem>>
    %520 = tpu.memref_squeeze %519 : memref<1x!tpu.dma_semaphore, #tpu.memory_space<semaphore_mem>> -> memref<!tpu.dma_semaphore, #tpu.memory_space<semaphore_mem>>
    tpu.wait_dma2 semaphore(%520 : memref<!tpu.dma_semaphore, #tpu.memory_space<semaphore_mem>>) src(%517 : memref<1x128xf32, #tpu.memory_space<any>>) dst(%518 : memref<1x128xf32, #tpu.memory_space<vmem>>)
    %c0_i32_328 = arith.constant 0 : i32
    %c0_i32_329 = arith.constant 0 : i32
    %521 = tpu.memref_slice %arg2[%129, %c0_i32_329] : memref<32x128xf32, #tpu.memory_space<any>> -> memref<1x128xf32, #tpu.memory_space<any>>
    %c18_i32_330 = arith.constant 18 : i32
    %c0_i32_331 = arith.constant 0 : i32
    %522 = tpu.memref_slice %arg4[%c18_i32_330, %c0_i32_331] : memref<64x128xf32, #tpu.memory_space<vmem>> -> memref<1x128xf32, #tpu.memory_space<vmem>>
    %523 = tpu.memref_slice %arg5[%c0_i32_328] : memref<1x!tpu.dma_semaphore, #tpu.memory_space<semaphore_mem>> -> memref<1x!tpu.dma_semaphore, #tpu.memory_space<semaphore_mem>>
    %524 = tpu.memref_squeeze %523 : memref<1x!tpu.dma_semaphore, #tpu.memory_space<semaphore_mem>> -> memref<!tpu.dma_semaphore, #tpu.memory_space<semaphore_mem>>
    tpu.wait_dma2 semaphore(%524 : memref<!tpu.dma_semaphore, #tpu.memory_space<semaphore_mem>>) src(%521 : memref<1x128xf32, #tpu.memory_space<any>>) dst(%522 : memref<1x128xf32, #tpu.memory_space<vmem>>)
    %c0_i32_332 = arith.constant 0 : i32
    %c0_i32_333 = arith.constant 0 : i32
    %525 = tpu.memref_slice %arg2[%136, %c0_i32_333] : memref<32x128xf32, #tpu.memory_space<any>> -> memref<1x128xf32, #tpu.memory_space<any>>
    %c19_i32_334 = arith.constant 19 : i32
    %c0_i32_335 = arith.constant 0 : i32
    %526 = tpu.memref_slice %arg4[%c19_i32_334, %c0_i32_335] : memref<64x128xf32, #tpu.memory_space<vmem>> -> memref<1x128xf32, #tpu.memory_space<vmem>>
    %527 = tpu.memref_slice %arg5[%c0_i32_332] : memref<1x!tpu.dma_semaphore, #tpu.memory_space<semaphore_mem>> -> memref<1x!tpu.dma_semaphore, #tpu.memory_space<semaphore_mem>>
    %528 = tpu.memref_squeeze %527 : memref<1x!tpu.dma_semaphore, #tpu.memory_space<semaphore_mem>> -> memref<!tpu.dma_semaphore, #tpu.memory_space<semaphore_mem>>
    tpu.wait_dma2 semaphore(%528 : memref<!tpu.dma_semaphore, #tpu.memory_space<semaphore_mem>>) src(%525 : memref<1x128xf32, #tpu.memory_space<any>>) dst(%526 : memref<1x128xf32, #tpu.memory_space<vmem>>)
    %c0_i32_336 = arith.constant 0 : i32
    %c0_i32_337 = arith.constant 0 : i32
    %529 = tpu.memref_slice %arg2[%143, %c0_i32_337] : memref<32x128xf32, #tpu.memory_space<any>> -> memref<1x128xf32, #tpu.memory_space<any>>
    %c20_i32_338 = arith.constant 20 : i32
    %c0_i32_339 = arith.constant 0 : i32
    %530 = tpu.memref_slice %arg4[%c20_i32_338, %c0_i32_339] : memref<64x128xf32, #tpu.memory_space<vmem>> -> memref<1x128xf32, #tpu.memory_space<vmem>>
    %531 = tpu.memref_slice %arg5[%c0_i32_336] : memref<1x!tpu.dma_semaphore, #tpu.memory_space<semaphore_mem>> -> memref<1x!tpu.dma_semaphore, #tpu.memory_space<semaphore_mem>>
    %532 = tpu.memref_squeeze %531 : memref<1x!tpu.dma_semaphore, #tpu.memory_space<semaphore_mem>> -> memref<!tpu.dma_semaphore, #tpu.memory_space<semaphore_mem>>
    tpu.wait_dma2 semaphore(%532 : memref<!tpu.dma_semaphore, #tpu.memory_space<semaphore_mem>>) src(%529 : memref<1x128xf32, #tpu.memory_space<any>>) dst(%530 : memref<1x128xf32, #tpu.memory_space<vmem>>)
    %c0_i32_340 = arith.constant 0 : i32
    %c0_i32_341 = arith.constant 0 : i32
    %533 = tpu.memref_slice %arg2[%150, %c0_i32_341] : memref<32x128xf32, #tpu.memory_space<any>> -> memref<1x128xf32, #tpu.memory_space<any>>
    %c21_i32_342 = arith.constant 21 : i32
    %c0_i32_343 = arith.constant 0 : i32
    %534 = tpu.memref_slice %arg4[%c21_i32_342, %c0_i32_343] : memref<64x128xf32, #tpu.memory_space<vmem>> -> memref<1x128xf32, #tpu.memory_space<vmem>>
    %535 = tpu.memref_slice %arg5[%c0_i32_340] : memref<1x!tpu.dma_semaphore, #tpu.memory_space<semaphore_mem>> -> memref<1x!tpu.dma_semaphore, #tpu.memory_space<semaphore_mem>>
    %536 = tpu.memref_squeeze %535 : memref<1x!tpu.dma_semaphore, #tpu.memory_space<semaphore_mem>> -> memref<!tpu.dma_semaphore, #tpu.memory_space<semaphore_mem>>
    tpu.wait_dma2 semaphore(%536 : memref<!tpu.dma_semaphore, #tpu.memory_space<semaphore_mem>>) src(%533 : memref<1x128xf32, #tpu.memory_space<any>>) dst(%534 : memref<1x128xf32, #tpu.memory_space<vmem>>)
    %c0_i32_344 = arith.constant 0 : i32
    %c0_i32_345 = arith.constant 0 : i32
    %537 = tpu.memref_slice %arg2[%157, %c0_i32_345] : memref<32x128xf32, #tpu.memory_space<any>> -> memref<1x128xf32, #tpu.memory_space<any>>
    %c22_i32_346 = arith.constant 22 : i32
    %c0_i32_347 = arith.constant 0 : i32
    %538 = tpu.memref_slice %arg4[%c22_i32_346, %c0_i32_347] : memref<64x128xf32, #tpu.memory_space<vmem>> -> memref<1x128xf32, #tpu.memory_space<vmem>>
    %539 = tpu.memref_slice %arg5[%c0_i32_344] : memref<1x!tpu.dma_semaphore, #tpu.memory_space<semaphore_mem>> -> memref<1x!tpu.dma_semaphore, #tpu.memory_space<semaphore_mem>>
    %540 = tpu.memref_squeeze %539 : memref<1x!tpu.dma_semaphore, #tpu.memory_space<semaphore_mem>> -> memref<!tpu.dma_semaphore, #tpu.memory_space<semaphore_mem>>
    tpu.wait_dma2 semaphore(%540 : memref<!tpu.dma_semaphore, #tpu.memory_space<semaphore_mem>>) src(%537 : memref<1x128xf32, #tpu.memory_space<any>>) dst(%538 : memref<1x128xf32, #tpu.memory_space<vmem>>)
    %c0_i32_348 = arith.constant 0 : i32
    %c0_i32_349 = arith.constant 0 : i32
    %541 = tpu.memref_slice %arg2[%164, %c0_i32_349] : memref<32x128xf32, #tpu.memory_space<any>> -> memref<1x128xf32, #tpu.memory_space<any>>
    %c23_i32_350 = arith.constant 23 : i32
    %c0_i32_351 = arith.constant 0 : i32
    %542 = tpu.memref_slice %arg4[%c23_i32_350, %c0_i32_351] : memref<64x128xf32, #tpu.memory_space<vmem>> -> memref<1x128xf32, #tpu.memory_space<vmem>>
    %543 = tpu.memref_slice %arg5[%c0_i32_348] : memref<1x!tpu.dma_semaphore, #tpu.memory_space<semaphore_mem>> -> memref<1x!tpu.dma_semaphore, #tpu.memory_space<semaphore_mem>>
    %544 = tpu.memref_squeeze %543 : memref<1x!tpu.dma_semaphore, #tpu.memory_space<semaphore_mem>> -> memref<!tpu.dma_semaphore, #tpu.memory_space<semaphore_mem>>
    tpu.wait_dma2 semaphore(%544 : memref<!tpu.dma_semaphore, #tpu.memory_space<semaphore_mem>>) src(%541 : memref<1x128xf32, #tpu.memory_space<any>>) dst(%542 : memref<1x128xf32, #tpu.memory_space<vmem>>)
    %c0_i32_352 = arith.constant 0 : i32
    %c0_i32_353 = arith.constant 0 : i32
    %545 = tpu.memref_slice %arg2[%171, %c0_i32_353] : memref<32x128xf32, #tpu.memory_space<any>> -> memref<1x128xf32, #tpu.memory_space<any>>
    %c24_i32_354 = arith.constant 24 : i32
    %c0_i32_355 = arith.constant 0 : i32
    %546 = tpu.memref_slice %arg4[%c24_i32_354, %c0_i32_355] : memref<64x128xf32, #tpu.memory_space<vmem>> -> memref<1x128xf32, #tpu.memory_space<vmem>>
    %547 = tpu.memref_slice %arg5[%c0_i32_352] : memref<1x!tpu.dma_semaphore, #tpu.memory_space<semaphore_mem>> -> memref<1x!tpu.dma_semaphore, #tpu.memory_space<semaphore_mem>>
    %548 = tpu.memref_squeeze %547 : memref<1x!tpu.dma_semaphore, #tpu.memory_space<semaphore_mem>> -> memref<!tpu.dma_semaphore, #tpu.memory_space<semaphore_mem>>
    tpu.wait_dma2 semaphore(%548 : memref<!tpu.dma_semaphore, #tpu.memory_space<semaphore_mem>>) src(%545 : memref<1x128xf32, #tpu.memory_space<any>>) dst(%546 : memref<1x128xf32, #tpu.memory_space<vmem>>)
    %c0_i32_356 = arith.constant 0 : i32
    %c0_i32_357 = arith.constant 0 : i32
    %549 = tpu.memref_slice %arg2[%178, %c0_i32_357] : memref<32x128xf32, #tpu.memory_space<any>> -> memref<1x128xf32, #tpu.memory_space<any>>
    %c25_i32_358 = arith.constant 25 : i32
    %c0_i32_359 = arith.constant 0 : i32
    %550 = tpu.memref_slice %arg4[%c25_i32_358, %c0_i32_359] : memref<64x128xf32, #tpu.memory_space<vmem>> -> memref<1x128xf32, #tpu.memory_space<vmem>>
    %551 = tpu.memref_slice %arg5[%c0_i32_356] : memref<1x!tpu.dma_semaphore, #tpu.memory_space<semaphore_mem>> -> memref<1x!tpu.dma_semaphore, #tpu.memory_space<semaphore_mem>>
    %552 = tpu.memref_squeeze %551 : memref<1x!tpu.dma_semaphore, #tpu.memory_space<semaphore_mem>> -> memref<!tpu.dma_semaphore, #tpu.memory_space<semaphore_mem>>
    tpu.wait_dma2 semaphore(%552 : memref<!tpu.dma_semaphore, #tpu.memory_space<semaphore_mem>>) src(%549 : memref<1x128xf32, #tpu.memory_space<any>>) dst(%550 : memref<1x128xf32, #tpu.memory_space<vmem>>)
    %c0_i32_360 = arith.constant 0 : i32
    %c0_i32_361 = arith.constant 0 : i32
    %553 = tpu.memref_slice %arg2[%185, %c0_i32_361] : memref<32x128xf32, #tpu.memory_space<any>> -> memref<1x128xf32, #tpu.memory_space<any>>
    %c26_i32_362 = arith.constant 26 : i32
    %c0_i32_363 = arith.constant 0 : i32
    %554 = tpu.memref_slice %arg4[%c26_i32_362, %c0_i32_363] : memref<64x128xf32, #tpu.memory_space<vmem>> -> memref<1x128xf32, #tpu.memory_space<vmem>>
    %555 = tpu.memref_slice %arg5[%c0_i32_360] : memref<1x!tpu.dma_semaphore, #tpu.memory_space<semaphore_mem>> -> memref<1x!tpu.dma_semaphore, #tpu.memory_space<semaphore_mem>>
    %556 = tpu.memref_squeeze %555 : memref<1x!tpu.dma_semaphore, #tpu.memory_space<semaphore_mem>> -> memref<!tpu.dma_semaphore, #tpu.memory_space<semaphore_mem>>
    tpu.wait_dma2 semaphore(%556 : memref<!tpu.dma_semaphore, #tpu.memory_space<semaphore_mem>>) src(%553 : memref<1x128xf32, #tpu.memory_space<any>>) dst(%554 : memref<1x128xf32, #tpu.memory_space<vmem>>)
    %c0_i32_364 = arith.constant 0 : i32
    %c0_i32_365 = arith.constant 0 : i32
    %557 = tpu.memref_slice %arg2[%192, %c0_i32_365] : memref<32x128xf32, #tpu.memory_space<any>> -> memref<1x128xf32, #tpu.memory_space<any>>
    %c27_i32_366 = arith.constant 27 : i32
    %c0_i32_367 = arith.constant 0 : i32
    %558 = tpu.memref_slice %arg4[%c27_i32_366, %c0_i32_367] : memref<64x128xf32, #tpu.memory_space<vmem>> -> memref<1x128xf32, #tpu.memory_space<vmem>>
    %559 = tpu.memref_slice %arg5[%c0_i32_364] : memref<1x!tpu.dma_semaphore, #tpu.memory_space<semaphore_mem>> -> memref<1x!tpu.dma_semaphore, #tpu.memory_space<semaphore_mem>>
    %560 = tpu.memref_squeeze %559 : memref<1x!tpu.dma_semaphore, #tpu.memory_space<semaphore_mem>> -> memref<!tpu.dma_semaphore, #tpu.memory_space<semaphore_mem>>
    tpu.wait_dma2 semaphore(%560 : memref<!tpu.dma_semaphore, #tpu.memory_space<semaphore_mem>>) src(%557 : memref<1x128xf32, #tpu.memory_space<any>>) dst(%558 : memref<1x128xf32, #tpu.memory_space<vmem>>)
    %c0_i32_368 = arith.constant 0 : i32
    %c0_i32_369 = arith.constant 0 : i32
    %561 = tpu.memref_slice %arg2[%199, %c0_i32_369] : memref<32x128xf32, #tpu.memory_space<any>> -> memref<1x128xf32, #tpu.memory_space<any>>
    %c28_i32_370 = arith.constant 28 : i32
    %c0_i32_371 = arith.constant 0 : i32
    %562 = tpu.memref_slice %arg4[%c28_i32_370, %c0_i32_371] : memref<64x128xf32, #tpu.memory_space<vmem>> -> memref<1x128xf32, #tpu.memory_space<vmem>>
    %563 = tpu.memref_slice %arg5[%c0_i32_368] : memref<1x!tpu.dma_semaphore, #tpu.memory_space<semaphore_mem>> -> memref<1x!tpu.dma_semaphore, #tpu.memory_space<semaphore_mem>>
    %564 = tpu.memref_squeeze %563 : memref<1x!tpu.dma_semaphore, #tpu.memory_space<semaphore_mem>> -> memref<!tpu.dma_semaphore, #tpu.memory_space<semaphore_mem>>
    tpu.wait_dma2 semaphore(%564 : memref<!tpu.dma_semaphore, #tpu.memory_space<semaphore_mem>>) src(%561 : memref<1x128xf32, #tpu.memory_space<any>>) dst(%562 : memref<1x128xf32, #tpu.memory_space<vmem>>)
    %c0_i32_372 = arith.constant 0 : i32
    %c0_i32_373 = arith.constant 0 : i32
    %565 = tpu.memref_slice %arg2[%206, %c0_i32_373] : memref<32x128xf32, #tpu.memory_space<any>> -> memref<1x128xf32, #tpu.memory_space<any>>
    %c29_i32_374 = arith.constant 29 : i32
    %c0_i32_375 = arith.constant 0 : i32
    %566 = tpu.memref_slice %arg4[%c29_i32_374, %c0_i32_375] : memref<64x128xf32, #tpu.memory_space<vmem>> -> memref<1x128xf32, #tpu.memory_space<vmem>>
    %567 = tpu.memref_slice %arg5[%c0_i32_372] : memref<1x!tpu.dma_semaphore, #tpu.memory_space<semaphore_mem>> -> memref<1x!tpu.dma_semaphore, #tpu.memory_space<semaphore_mem>>
    %568 = tpu.memref_squeeze %567 : memref<1x!tpu.dma_semaphore, #tpu.memory_space<semaphore_mem>> -> memref<!tpu.dma_semaphore, #tpu.memory_space<semaphore_mem>>
    tpu.wait_dma2 semaphore(%568 : memref<!tpu.dma_semaphore, #tpu.memory_space<semaphore_mem>>) src(%565 : memref<1x128xf32, #tpu.memory_space<any>>) dst(%566 : memref<1x128xf32, #tpu.memory_space<vmem>>)
    %c0_i32_376 = arith.constant 0 : i32
    %c0_i32_377 = arith.constant 0 : i32
    %569 = tpu.memref_slice %arg2[%213, %c0_i32_377] : memref<32x128xf32, #tpu.memory_space<any>> -> memref<1x128xf32, #tpu.memory_space<any>>
    %c30_i32_378 = arith.constant 30 : i32
    %c0_i32_379 = arith.constant 0 : i32
    %570 = tpu.memref_slice %arg4[%c30_i32_378, %c0_i32_379] : memref<64x128xf32, #tpu.memory_space<vmem>> -> memref<1x128xf32, #tpu.memory_space<vmem>>
    %571 = tpu.memref_slice %arg5[%c0_i32_376] : memref<1x!tpu.dma_semaphore, #tpu.memory_space<semaphore_mem>> -> memref<1x!tpu.dma_semaphore, #tpu.memory_space<semaphore_mem>>
    %572 = tpu.memref_squeeze %571 : memref<1x!tpu.dma_semaphore, #tpu.memory_space<semaphore_mem>> -> memref<!tpu.dma_semaphore, #tpu.memory_space<semaphore_mem>>
    tpu.wait_dma2 semaphore(%572 : memref<!tpu.dma_semaphore, #tpu.memory_space<semaphore_mem>>) src(%569 : memref<1x128xf32, #tpu.memory_space<any>>) dst(%570 : memref<1x128xf32, #tpu.memory_space<vmem>>)
    %c0_i32_380 = arith.constant 0 : i32
    %c0_i32_381 = arith.constant 0 : i32
    %573 = tpu.memref_slice %arg2[%220, %c0_i32_381] : memref<32x128xf32, #tpu.memory_space<any>> -> memref<1x128xf32, #tpu.memory_space<any>>
    %c31_i32_382 = arith.constant 31 : i32
    %c0_i32_383 = arith.constant 0 : i32
    %574 = tpu.memref_slice %arg4[%c31_i32_382, %c0_i32_383] : memref<64x128xf32, #tpu.memory_space<vmem>> -> memref<1x128xf32, #tpu.memory_space<vmem>>
    %575 = tpu.memref_slice %arg5[%c0_i32_380] : memref<1x!tpu.dma_semaphore, #tpu.memory_space<semaphore_mem>> -> memref<1x!tpu.dma_semaphore, #tpu.memory_space<semaphore_mem>>
    %576 = tpu.memref_squeeze %575 : memref<1x!tpu.dma_semaphore, #tpu.memory_space<semaphore_mem>> -> memref<!tpu.dma_semaphore, #tpu.memory_space<semaphore_mem>>
    tpu.wait_dma2 semaphore(%576 : memref<!tpu.dma_semaphore, #tpu.memory_space<semaphore_mem>>) src(%573 : memref<1x128xf32, #tpu.memory_space<any>>) dst(%574 : memref<1x128xf32, #tpu.memory_space<vmem>>)
    %c0_i32_384 = arith.constant 0 : i32
    %c0_i32_385 = arith.constant 0 : i32
    %577 = tpu.memref_slice %arg2[%227, %c0_i32_385] : memref<32x128xf32, #tpu.memory_space<any>> -> memref<1x128xf32, #tpu.memory_space<any>>
    %c32_i32_386 = arith.constant 32 : i32
    %c0_i32_387 = arith.constant 0 : i32
    %578 = tpu.memref_slice %arg4[%c32_i32_386, %c0_i32_387] : memref<64x128xf32, #tpu.memory_space<vmem>> -> memref<1x128xf32, #tpu.memory_space<vmem>>
    %579 = tpu.memref_slice %arg5[%c0_i32_384] : memref<1x!tpu.dma_semaphore, #tpu.memory_space<semaphore_mem>> -> memref<1x!tpu.dma_semaphore, #tpu.memory_space<semaphore_mem>>
    %580 = tpu.memref_squeeze %579 : memref<1x!tpu.dma_semaphore, #tpu.memory_space<semaphore_mem>> -> memref<!tpu.dma_semaphore, #tpu.memory_space<semaphore_mem>>
    tpu.wait_dma2 semaphore(%580 : memref<!tpu.dma_semaphore, #tpu.memory_space<semaphore_mem>>) src(%577 : memref<1x128xf32, #tpu.memory_space<any>>) dst(%578 : memref<1x128xf32, #tpu.memory_space<vmem>>)
    %c0_i32_388 = arith.constant 0 : i32
    %c0_i32_389 = arith.constant 0 : i32
    %581 = tpu.memref_slice %arg2[%234, %c0_i32_389] : memref<32x128xf32, #tpu.memory_space<any>> -> memref<1x128xf32, #tpu.memory_space<any>>
    %c33_i32_390 = arith.constant 33 : i32
    %c0_i32_391 = arith.constant 0 : i32
    %582 = tpu.memref_slice %arg4[%c33_i32_390, %c0_i32_391] : memref<64x128xf32, #tpu.memory_space<vmem>> -> memref<1x128xf32, #tpu.memory_space<vmem>>
    %583 = tpu.memref_slice %arg5[%c0_i32_388] : memref<1x!tpu.dma_semaphore, #tpu.memory_space<semaphore_mem>> -> memref<1x!tpu.dma_semaphore, #tpu.memory_space<semaphore_mem>>
    %584 = tpu.memref_squeeze %583 : memref<1x!tpu.dma_semaphore, #tpu.memory_space<semaphore_mem>> -> memref<!tpu.dma_semaphore, #tpu.memory_space<semaphore_mem>>
    tpu.wait_dma2 semaphore(%584 : memref<!tpu.dma_semaphore, #tpu.memory_space<semaphore_mem>>) src(%581 : memref<1x128xf32, #tpu.memory_space<any>>) dst(%582 : memref<1x128xf32, #tpu.memory_space<vmem>>)
    %c0_i32_392 = arith.constant 0 : i32
    %c0_i32_393 = arith.constant 0 : i32
    %585 = tpu.memref_slice %arg2[%241, %c0_i32_393] : memref<32x128xf32, #tpu.memory_space<any>> -> memref<1x128xf32, #tpu.memory_space<any>>
    %c34_i32_394 = arith.constant 34 : i32
    %c0_i32_395 = arith.constant 0 : i32
    %586 = tpu.memref_slice %arg4[%c34_i32_394, %c0_i32_395] : memref<64x128xf32, #tpu.memory_space<vmem>> -> memref<1x128xf32, #tpu.memory_space<vmem>>
    %587 = tpu.memref_slice %arg5[%c0_i32_392] : memref<1x!tpu.dma_semaphore, #tpu.memory_space<semaphore_mem>> -> memref<1x!tpu.dma_semaphore, #tpu.memory_space<semaphore_mem>>
    %588 = tpu.memref_squeeze %587 : memref<1x!tpu.dma_semaphore, #tpu.memory_space<semaphore_mem>> -> memref<!tpu.dma_semaphore, #tpu.memory_space<semaphore_mem>>
    tpu.wait_dma2 semaphore(%588 : memref<!tpu.dma_semaphore, #tpu.memory_space<semaphore_mem>>) src(%585 : memref<1x128xf32, #tpu.memory_space<any>>) dst(%586 : memref<1x128xf32, #tpu.memory_space<vmem>>)
    %c0_i32_396 = arith.constant 0 : i32
    %c0_i32_397 = arith.constant 0 : i32
    %589 = tpu.memref_slice %arg2[%248, %c0_i32_397] : memref<32x128xf32, #tpu.memory_space<any>> -> memref<1x128xf32, #tpu.memory_space<any>>
    %c35_i32_398 = arith.constant 35 : i32
    %c0_i32_399 = arith.constant 0 : i32
    %590 = tpu.memref_slice %arg4[%c35_i32_398, %c0_i32_399] : memref<64x128xf32, #tpu.memory_space<vmem>> -> memref<1x128xf32, #tpu.memory_space<vmem>>
    %591 = tpu.memref_slice %arg5[%c0_i32_396] : memref<1x!tpu.dma_semaphore, #tpu.memory_space<semaphore_mem>> -> memref<1x!tpu.dma_semaphore, #tpu.memory_space<semaphore_mem>>
    %592 = tpu.memref_squeeze %591 : memref<1x!tpu.dma_semaphore, #tpu.memory_space<semaphore_mem>> -> memref<!tpu.dma_semaphore, #tpu.memory_space<semaphore_mem>>
    tpu.wait_dma2 semaphore(%592 : memref<!tpu.dma_semaphore, #tpu.memory_space<semaphore_mem>>) src(%589 : memref<1x128xf32, #tpu.memory_space<any>>) dst(%590 : memref<1x128xf32, #tpu.memory_space<vmem>>)
    %c0_i32_400 = arith.constant 0 : i32
    %c0_i32_401 = arith.constant 0 : i32
    %593 = tpu.memref_slice %arg2[%255, %c0_i32_401] : memref<32x128xf32, #tpu.memory_space<any>> -> memref<1x128xf32, #tpu.memory_space<any>>
    %c36_i32_402 = arith.constant 36 : i32
    %c0_i32_403 = arith.constant 0 : i32
    %594 = tpu.memref_slice %arg4[%c36_i32_402, %c0_i32_403] : memref<64x128xf32, #tpu.memory_space<vmem>> -> memref<1x128xf32, #tpu.memory_space<vmem>>
    %595 = tpu.memref_slice %arg5[%c0_i32_400] : memref<1x!tpu.dma_semaphore, #tpu.memory_space<semaphore_mem>> -> memref<1x!tpu.dma_semaphore, #tpu.memory_space<semaphore_mem>>
    %596 = tpu.memref_squeeze %595 : memref<1x!tpu.dma_semaphore, #tpu.memory_space<semaphore_mem>> -> memref<!tpu.dma_semaphore, #tpu.memory_space<semaphore_mem>>
    tpu.wait_dma2 semaphore(%596 : memref<!tpu.dma_semaphore, #tpu.memory_space<semaphore_mem>>) src(%593 : memref<1x128xf32, #tpu.memory_space<any>>) dst(%594 : memref<1x128xf32, #tpu.memory_space<vmem>>)
    %c0_i32_404 = arith.constant 0 : i32
    %c0_i32_405 = arith.constant 0 : i32
    %597 = tpu.memref_slice %arg2[%262, %c0_i32_405] : memref<32x128xf32, #tpu.memory_space<any>> -> memref<1x128xf32, #tpu.memory_space<any>>
    %c37_i32_406 = arith.constant 37 : i32
    %c0_i32_407 = arith.constant 0 : i32
    %598 = tpu.memref_slice %arg4[%c37_i32_406, %c0_i32_407] : memref<64x128xf32, #tpu.memory_space<vmem>> -> memref<1x128xf32, #tpu.memory_space<vmem>>
    %599 = tpu.memref_slice %arg5[%c0_i32_404] : memref<1x!tpu.dma_semaphore, #tpu.memory_space<semaphore_mem>> -> memref<1x!tpu.dma_semaphore, #tpu.memory_space<semaphore_mem>>
    %600 = tpu.memref_squeeze %599 : memref<1x!tpu.dma_semaphore, #tpu.memory_space<semaphore_mem>> -> memref<!tpu.dma_semaphore, #tpu.memory_space<semaphore_mem>>
    tpu.wait_dma2 semaphore(%600 : memref<!tpu.dma_semaphore, #tpu.memory_space<semaphore_mem>>) src(%597 : memref<1x128xf32, #tpu.memory_space<any>>) dst(%598 : memref<1x128xf32, #tpu.memory_space<vmem>>)
    %c0_i32_408 = arith.constant 0 : i32
    %c0_i32_409 = arith.constant 0 : i32
    %601 = tpu.memref_slice %arg2[%269, %c0_i32_409] : memref<32x128xf32, #tpu.memory_space<any>> -> memref<1x128xf32, #tpu.memory_space<any>>
    %c38_i32_410 = arith.constant 38 : i32
    %c0_i32_411 = arith.constant 0 : i32
    %602 = tpu.memref_slice %arg4[%c38_i32_410, %c0_i32_411] : memref<64x128xf32, #tpu.memory_space<vmem>> -> memref<1x128xf32, #tpu.memory_space<vmem>>
    %603 = tpu.memref_slice %arg5[%c0_i32_408] : memref<1x!tpu.dma_semaphore, #tpu.memory_space<semaphore_mem>> -> memref<1x!tpu.dma_semaphore, #tpu.memory_space<semaphore_mem>>
    %604 = tpu.memref_squeeze %603 : memref<1x!tpu.dma_semaphore, #tpu.memory_space<semaphore_mem>> -> memref<!tpu.dma_semaphore, #tpu.memory_space<semaphore_mem>>
    tpu.wait_dma2 semaphore(%604 : memref<!tpu.dma_semaphore, #tpu.memory_space<semaphore_mem>>) src(%601 : memref<1x128xf32, #tpu.memory_space<any>>) dst(%602 : memref<1x128xf32, #tpu.memory_space<vmem>>)
    %c0_i32_412 = arith.constant 0 : i32
    %c0_i32_413 = arith.constant 0 : i32
    %605 = tpu.memref_slice %arg2[%276, %c0_i32_413] : memref<32x128xf32, #tpu.memory_space<any>> -> memref<1x128xf32, #tpu.memory_space<any>>
    %c39_i32_414 = arith.constant 39 : i32
    %c0_i32_415 = arith.constant 0 : i32
    %606 = tpu.memref_slice %arg4[%c39_i32_414, %c0_i32_415] : memref<64x128xf32, #tpu.memory_space<vmem>> -> memref<1x128xf32, #tpu.memory_space<vmem>>
    %607 = tpu.memref_slice %arg5[%c0_i32_412] : memref<1x!tpu.dma_semaphore, #tpu.memory_space<semaphore_mem>> -> memref<1x!tpu.dma_semaphore, #tpu.memory_space<semaphore_mem>>
    %608 = tpu.memref_squeeze %607 : memref<1x!tpu.dma_semaphore, #tpu.memory_space<semaphore_mem>> -> memref<!tpu.dma_semaphore, #tpu.memory_space<semaphore_mem>>
    tpu.wait_dma2 semaphore(%608 : memref<!tpu.dma_semaphore, #tpu.memory_space<semaphore_mem>>) src(%605 : memref<1x128xf32, #tpu.memory_space<any>>) dst(%606 : memref<1x128xf32, #tpu.memory_space<vmem>>)
    %c0_i32_416 = arith.constant 0 : i32
    %c0_i32_417 = arith.constant 0 : i32
    %609 = tpu.memref_slice %arg2[%283, %c0_i32_417] : memref<32x128xf32, #tpu.memory_space<any>> -> memref<1x128xf32, #tpu.memory_space<any>>
    %c40_i32_418 = arith.constant 40 : i32
    %c0_i32_419 = arith.constant 0 : i32
    %610 = tpu.memref_slice %arg4[%c40_i32_418, %c0_i32_419] : memref<64x128xf32, #tpu.memory_space<vmem>> -> memref<1x128xf32, #tpu.memory_space<vmem>>
    %611 = tpu.memref_slice %arg5[%c0_i32_416] : memref<1x!tpu.dma_semaphore, #tpu.memory_space<semaphore_mem>> -> memref<1x!tpu.dma_semaphore, #tpu.memory_space<semaphore_mem>>
    %612 = tpu.memref_squeeze %611 : memref<1x!tpu.dma_semaphore, #tpu.memory_space<semaphore_mem>> -> memref<!tpu.dma_semaphore, #tpu.memory_space<semaphore_mem>>
    tpu.wait_dma2 semaphore(%612 : memref<!tpu.dma_semaphore, #tpu.memory_space<semaphore_mem>>) src(%609 : memref<1x128xf32, #tpu.memory_space<any>>) dst(%610 : memref<1x128xf32, #tpu.memory_space<vmem>>)
    %c0_i32_420 = arith.constant 0 : i32
    %c0_i32_421 = arith.constant 0 : i32
    %613 = tpu.memref_slice %arg2[%290, %c0_i32_421] : memref<32x128xf32, #tpu.memory_space<any>> -> memref<1x128xf32, #tpu.memory_space<any>>
    %c41_i32_422 = arith.constant 41 : i32
    %c0_i32_423 = arith.constant 0 : i32
    %614 = tpu.memref_slice %arg4[%c41_i32_422, %c0_i32_423] : memref<64x128xf32, #tpu.memory_space<vmem>> -> memref<1x128xf32, #tpu.memory_space<vmem>>
    %615 = tpu.memref_slice %arg5[%c0_i32_420] : memref<1x!tpu.dma_semaphore, #tpu.memory_space<semaphore_mem>> -> memref<1x!tpu.dma_semaphore, #tpu.memory_space<semaphore_mem>>
    %616 = tpu.memref_squeeze %615 : memref<1x!tpu.dma_semaphore, #tpu.memory_space<semaphore_mem>> -> memref<!tpu.dma_semaphore, #tpu.memory_space<semaphore_mem>>
    tpu.wait_dma2 semaphore(%616 : memref<!tpu.dma_semaphore, #tpu.memory_space<semaphore_mem>>) src(%613 : memref<1x128xf32, #tpu.memory_space<any>>) dst(%614 : memref<1x128xf32, #tpu.memory_space<vmem>>)
    %c0_i32_424 = arith.constant 0 : i32
    %c0_i32_425 = arith.constant 0 : i32
    %617 = tpu.memref_slice %arg2[%297, %c0_i32_425] : memref<32x128xf32, #tpu.memory_space<any>> -> memref<1x128xf32, #tpu.memory_space<any>>
    %c42_i32_426 = arith.constant 42 : i32
    %c0_i32_427 = arith.constant 0 : i32
    %618 = tpu.memref_slice %arg4[%c42_i32_426, %c0_i32_427] : memref<64x128xf32, #tpu.memory_space<vmem>> -> memref<1x128xf32, #tpu.memory_space<vmem>>
    %619 = tpu.memref_slice %arg5[%c0_i32_424] : memref<1x!tpu.dma_semaphore, #tpu.memory_space<semaphore_mem>> -> memref<1x!tpu.dma_semaphore, #tpu.memory_space<semaphore_mem>>
    %620 = tpu.memref_squeeze %619 : memref<1x!tpu.dma_semaphore, #tpu.memory_space<semaphore_mem>> -> memref<!tpu.dma_semaphore, #tpu.memory_space<semaphore_mem>>
    tpu.wait_dma2 semaphore(%620 : memref<!tpu.dma_semaphore, #tpu.memory_space<semaphore_mem>>) src(%617 : memref<1x128xf32, #tpu.memory_space<any>>) dst(%618 : memref<1x128xf32, #tpu.memory_space<vmem>>)
    %c0_i32_428 = arith.constant 0 : i32
    %c0_i32_429 = arith.constant 0 : i32
    %621 = tpu.memref_slice %arg2[%304, %c0_i32_429] : memref<32x128xf32, #tpu.memory_space<any>> -> memref<1x128xf32, #tpu.memory_space<any>>
    %c43_i32_430 = arith.constant 43 : i32
    %c0_i32_431 = arith.constant 0 : i32
    %622 = tpu.memref_slice %arg4[%c43_i32_430, %c0_i32_431] : memref<64x128xf32, #tpu.memory_space<vmem>> -> memref<1x128xf32, #tpu.memory_space<vmem>>
    %623 = tpu.memref_slice %arg5[%c0_i32_428] : memref<1x!tpu.dma_semaphore, #tpu.memory_space<semaphore_mem>> -> memref<1x!tpu.dma_semaphore, #tpu.memory_space<semaphore_mem>>
    %624 = tpu.memref_squeeze %623 : memref<1x!tpu.dma_semaphore, #tpu.memory_space<semaphore_mem>> -> memref<!tpu.dma_semaphore, #tpu.memory_space<semaphore_mem>>
    tpu.wait_dma2 semaphore(%624 : memref<!tpu.dma_semaphore, #tpu.memory_space<semaphore_mem>>) src(%621 : memref<1x128xf32, #tpu.memory_space<any>>) dst(%622 : memref<1x128xf32, #tpu.memory_space<vmem>>)
    %c0_i32_432 = arith.constant 0 : i32
    %c0_i32_433 = arith.constant 0 : i32
    %625 = tpu.memref_slice %arg2[%311, %c0_i32_433] : memref<32x128xf32, #tpu.memory_space<any>> -> memref<1x128xf32, #tpu.memory_space<any>>
    %c44_i32_434 = arith.constant 44 : i32
    %c0_i32_435 = arith.constant 0 : i32
    %626 = tpu.memref_slice %arg4[%c44_i32_434, %c0_i32_435] : memref<64x128xf32, #tpu.memory_space<vmem>> -> memref<1x128xf32, #tpu.memory_space<vmem>>
    %627 = tpu.memref_slice %arg5[%c0_i32_432] : memref<1x!tpu.dma_semaphore, #tpu.memory_space<semaphore_mem>> -> memref<1x!tpu.dma_semaphore, #tpu.memory_space<semaphore_mem>>
    %628 = tpu.memref_squeeze %627 : memref<1x!tpu.dma_semaphore, #tpu.memory_space<semaphore_mem>> -> memref<!tpu.dma_semaphore, #tpu.memory_space<semaphore_mem>>
    tpu.wait_dma2 semaphore(%628 : memref<!tpu.dma_semaphore, #tpu.memory_space<semaphore_mem>>) src(%625 : memref<1x128xf32, #tpu.memory_space<any>>) dst(%626 : memref<1x128xf32, #tpu.memory_space<vmem>>)
    %c0_i32_436 = arith.constant 0 : i32
    %c0_i32_437 = arith.constant 0 : i32
    %629 = tpu.memref_slice %arg2[%318, %c0_i32_437] : memref<32x128xf32, #tpu.memory_space<any>> -> memref<1x128xf32, #tpu.memory_space<any>>
    %c45_i32_438 = arith.constant 45 : i32
    %c0_i32_439 = arith.constant 0 : i32
    %630 = tpu.memref_slice %arg4[%c45_i32_438, %c0_i32_439] : memref<64x128xf32, #tpu.memory_space<vmem>> -> memref<1x128xf32, #tpu.memory_space<vmem>>
    %631 = tpu.memref_slice %arg5[%c0_i32_436] : memref<1x!tpu.dma_semaphore, #tpu.memory_space<semaphore_mem>> -> memref<1x!tpu.dma_semaphore, #tpu.memory_space<semaphore_mem>>
    %632 = tpu.memref_squeeze %631 : memref<1x!tpu.dma_semaphore, #tpu.memory_space<semaphore_mem>> -> memref<!tpu.dma_semaphore, #tpu.memory_space<semaphore_mem>>
    tpu.wait_dma2 semaphore(%632 : memref<!tpu.dma_semaphore, #tpu.memory_space<semaphore_mem>>) src(%629 : memref<1x128xf32, #tpu.memory_space<any>>) dst(%630 : memref<1x128xf32, #tpu.memory_space<vmem>>)
    %c0_i32_440 = arith.constant 0 : i32
    %c0_i32_441 = arith.constant 0 : i32
    %633 = tpu.memref_slice %arg2[%325, %c0_i32_441] : memref<32x128xf32, #tpu.memory_space<any>> -> memref<1x128xf32, #tpu.memory_space<any>>
    %c46_i32_442 = arith.constant 46 : i32
    %c0_i32_443 = arith.constant 0 : i32
    %634 = tpu.memref_slice %arg4[%c46_i32_442, %c0_i32_443] : memref<64x128xf32, #tpu.memory_space<vmem>> -> memref<1x128xf32, #tpu.memory_space<vmem>>
    %635 = tpu.memref_slice %arg5[%c0_i32_440] : memref<1x!tpu.dma_semaphore, #tpu.memory_space<semaphore_mem>> -> memref<1x!tpu.dma_semaphore, #tpu.memory_space<semaphore_mem>>
    %636 = tpu.memref_squeeze %635 : memref<1x!tpu.dma_semaphore, #tpu.memory_space<semaphore_mem>> -> memref<!tpu.dma_semaphore, #tpu.memory_space<semaphore_mem>>
    tpu.wait_dma2 semaphore(%636 : memref<!tpu.dma_semaphore, #tpu.memory_space<semaphore_mem>>) src(%633 : memref<1x128xf32, #tpu.memory_space<any>>) dst(%634 : memref<1x128xf32, #tpu.memory_space<vmem>>)
    %c0_i32_444 = arith.constant 0 : i32
    %c0_i32_445 = arith.constant 0 : i32
    %637 = tpu.memref_slice %arg2[%332, %c0_i32_445] : memref<32x128xf32, #tpu.memory_space<any>> -> memref<1x128xf32, #tpu.memory_space<any>>
    %c47_i32_446 = arith.constant 47 : i32
    %c0_i32_447 = arith.constant 0 : i32
    %638 = tpu.memref_slice %arg4[%c47_i32_446, %c0_i32_447] : memref<64x128xf32, #tpu.memory_space<vmem>> -> memref<1x128xf32, #tpu.memory_space<vmem>>
    %639 = tpu.memref_slice %arg5[%c0_i32_444] : memref<1x!tpu.dma_semaphore, #tpu.memory_space<semaphore_mem>> -> memref<1x!tpu.dma_semaphore, #tpu.memory_space<semaphore_mem>>
    %640 = tpu.memref_squeeze %639 : memref<1x!tpu.dma_semaphore, #tpu.memory_space<semaphore_mem>> -> memref<!tpu.dma_semaphore, #tpu.memory_space<semaphore_mem>>
    tpu.wait_dma2 semaphore(%640 : memref<!tpu.dma_semaphore, #tpu.memory_space<semaphore_mem>>) src(%637 : memref<1x128xf32, #tpu.memory_space<any>>) dst(%638 : memref<1x128xf32, #tpu.memory_space<vmem>>)
    %c0_i32_448 = arith.constant 0 : i32
    %c0_i32_449 = arith.constant 0 : i32
    %641 = tpu.memref_slice %arg2[%339, %c0_i32_449] : memref<32x128xf32, #tpu.memory_space<any>> -> memref<1x128xf32, #tpu.memory_space<any>>
    %c48_i32_450 = arith.constant 48 : i32
    %c0_i32_451 = arith.constant 0 : i32
    %642 = tpu.memref_slice %arg4[%c48_i32_450, %c0_i32_451] : memref<64x128xf32, #tpu.memory_space<vmem>> -> memref<1x128xf32, #tpu.memory_space<vmem>>
    %643 = tpu.memref_slice %arg5[%c0_i32_448] : memref<1x!tpu.dma_semaphore, #tpu.memory_space<semaphore_mem>> -> memref<1x!tpu.dma_semaphore, #tpu.memory_space<semaphore_mem>>
    %644 = tpu.memref_squeeze %643 : memref<1x!tpu.dma_semaphore, #tpu.memory_space<semaphore_mem>> -> memref<!tpu.dma_semaphore, #tpu.memory_space<semaphore_mem>>
    tpu.wait_dma2 semaphore(%644 : memref<!tpu.dma_semaphore, #tpu.memory_space<semaphore_mem>>) src(%641 : memref<1x128xf32, #tpu.memory_space<any>>) dst(%642 : memref<1x128xf32, #tpu.memory_space<vmem>>)
    %c0_i32_452 = arith.constant 0 : i32
    %c0_i32_453 = arith.constant 0 : i32
    %645 = tpu.memref_slice %arg2[%346, %c0_i32_453] : memref<32x128xf32, #tpu.memory_space<any>> -> memref<1x128xf32, #tpu.memory_space<any>>
    %c49_i32_454 = arith.constant 49 : i32
    %c0_i32_455 = arith.constant 0 : i32
    %646 = tpu.memref_slice %arg4[%c49_i32_454, %c0_i32_455] : memref<64x128xf32, #tpu.memory_space<vmem>> -> memref<1x128xf32, #tpu.memory_space<vmem>>
    %647 = tpu.memref_slice %arg5[%c0_i32_452] : memref<1x!tpu.dma_semaphore, #tpu.memory_space<semaphore_mem>> -> memref<1x!tpu.dma_semaphore, #tpu.memory_space<semaphore_mem>>
    %648 = tpu.memref_squeeze %647 : memref<1x!tpu.dma_semaphore, #tpu.memory_space<semaphore_mem>> -> memref<!tpu.dma_semaphore, #tpu.memory_space<semaphore_mem>>
    tpu.wait_dma2 semaphore(%648 : memref<!tpu.dma_semaphore, #tpu.memory_space<semaphore_mem>>) src(%645 : memref<1x128xf32, #tpu.memory_space<any>>) dst(%646 : memref<1x128xf32, #tpu.memory_space<vmem>>)
    %c0_i32_456 = arith.constant 0 : i32
    %c0_i32_457 = arith.constant 0 : i32
    %649 = tpu.memref_slice %arg2[%353, %c0_i32_457] : memref<32x128xf32, #tpu.memory_space<any>> -> memref<1x128xf32, #tpu.memory_space<any>>
    %c50_i32_458 = arith.constant 50 : i32
    %c0_i32_459 = arith.constant 0 : i32
    %650 = tpu.memref_slice %arg4[%c50_i32_458, %c0_i32_459] : memref<64x128xf32, #tpu.memory_space<vmem>> -> memref<1x128xf32, #tpu.memory_space<vmem>>
    %651 = tpu.memref_slice %arg5[%c0_i32_456] : memref<1x!tpu.dma_semaphore, #tpu.memory_space<semaphore_mem>> -> memref<1x!tpu.dma_semaphore, #tpu.memory_space<semaphore_mem>>
    %652 = tpu.memref_squeeze %651 : memref<1x!tpu.dma_semaphore, #tpu.memory_space<semaphore_mem>> -> memref<!tpu.dma_semaphore, #tpu.memory_space<semaphore_mem>>
    tpu.wait_dma2 semaphore(%652 : memref<!tpu.dma_semaphore, #tpu.memory_space<semaphore_mem>>) src(%649 : memref<1x128xf32, #tpu.memory_space<any>>) dst(%650 : memref<1x128xf32, #tpu.memory_space<vmem>>)
    %c0_i32_460 = arith.constant 0 : i32
    %c0_i32_461 = arith.constant 0 : i32
    %653 = tpu.memref_slice %arg2[%360, %c0_i32_461] : memref<32x128xf32, #tpu.memory_space<any>> -> memref<1x128xf32, #tpu.memory_space<any>>
    %c51_i32_462 = arith.constant 51 : i32
    %c0_i32_463 = arith.constant 0 : i32
    %654 = tpu.memref_slice %arg4[%c51_i32_462, %c0_i32_463] : memref<64x128xf32, #tpu.memory_space<vmem>> -> memref<1x128xf32, #tpu.memory_space<vmem>>
    %655 = tpu.memref_slice %arg5[%c0_i32_460] : memref<1x!tpu.dma_semaphore, #tpu.memory_space<semaphore_mem>> -> memref<1x!tpu.dma_semaphore, #tpu.memory_space<semaphore_mem>>
    %656 = tpu.memref_squeeze %655 : memref<1x!tpu.dma_semaphore, #tpu.memory_space<semaphore_mem>> -> memref<!tpu.dma_semaphore, #tpu.memory_space<semaphore_mem>>
    tpu.wait_dma2 semaphore(%656 : memref<!tpu.dma_semaphore, #tpu.memory_space<semaphore_mem>>) src(%653 : memref<1x128xf32, #tpu.memory_space<any>>) dst(%654 : memref<1x128xf32, #tpu.memory_space<vmem>>)
    %c0_i32_464 = arith.constant 0 : i32
    %c0_i32_465 = arith.constant 0 : i32
    %657 = tpu.memref_slice %arg2[%367, %c0_i32_465] : memref<32x128xf32, #tpu.memory_space<any>> -> memref<1x128xf32, #tpu.memory_space<any>>
    %c52_i32_466 = arith.constant 52 : i32
    %c0_i32_467 = arith.constant 0 : i32
    %658 = tpu.memref_slice %arg4[%c52_i32_466, %c0_i32_467] : memref<64x128xf32, #tpu.memory_space<vmem>> -> memref<1x128xf32, #tpu.memory_space<vmem>>
    %659 = tpu.memref_slice %arg5[%c0_i32_464] : memref<1x!tpu.dma_semaphore, #tpu.memory_space<semaphore_mem>> -> memref<1x!tpu.dma_semaphore, #tpu.memory_space<semaphore_mem>>
    %660 = tpu.memref_squeeze %659 : memref<1x!tpu.dma_semaphore, #tpu.memory_space<semaphore_mem>> -> memref<!tpu.dma_semaphore, #tpu.memory_space<semaphore_mem>>
    tpu.wait_dma2 semaphore(%660 : memref<!tpu.dma_semaphore, #tpu.memory_space<semaphore_mem>>) src(%657 : memref<1x128xf32, #tpu.memory_space<any>>) dst(%658 : memref<1x128xf32, #tpu.memory_space<vmem>>)
    %c0_i32_468 = arith.constant 0 : i32
    %c0_i32_469 = arith.constant 0 : i32
    %661 = tpu.memref_slice %arg2[%374, %c0_i32_469] : memref<32x128xf32, #tpu.memory_space<any>> -> memref<1x128xf32, #tpu.memory_space<any>>
    %c53_i32_470 = arith.constant 53 : i32
    %c0_i32_471 = arith.constant 0 : i32
    %662 = tpu.memref_slice %arg4[%c53_i32_470, %c0_i32_471] : memref<64x128xf32, #tpu.memory_space<vmem>> -> memref<1x128xf32, #tpu.memory_space<vmem>>
    %663 = tpu.memref_slice %arg5[%c0_i32_468] : memref<1x!tpu.dma_semaphore, #tpu.memory_space<semaphore_mem>> -> memref<1x!tpu.dma_semaphore, #tpu.memory_space<semaphore_mem>>
    %664 = tpu.memref_squeeze %663 : memref<1x!tpu.dma_semaphore, #tpu.memory_space<semaphore_mem>> -> memref<!tpu.dma_semaphore, #tpu.memory_space<semaphore_mem>>
    tpu.wait_dma2 semaphore(%664 : memref<!tpu.dma_semaphore, #tpu.memory_space<semaphore_mem>>) src(%661 : memref<1x128xf32, #tpu.memory_space<any>>) dst(%662 : memref<1x128xf32, #tpu.memory_space<vmem>>)
    %c0_i32_472 = arith.constant 0 : i32
    %c0_i32_473 = arith.constant 0 : i32
    %665 = tpu.memref_slice %arg2[%381, %c0_i32_473] : memref<32x128xf32, #tpu.memory_space<any>> -> memref<1x128xf32, #tpu.memory_space<any>>
    %c54_i32_474 = arith.constant 54 : i32
    %c0_i32_475 = arith.constant 0 : i32
    %666 = tpu.memref_slice %arg4[%c54_i32_474, %c0_i32_475] : memref<64x128xf32, #tpu.memory_space<vmem>> -> memref<1x128xf32, #tpu.memory_space<vmem>>
    %667 = tpu.memref_slice %arg5[%c0_i32_472] : memref<1x!tpu.dma_semaphore, #tpu.memory_space<semaphore_mem>> -> memref<1x!tpu.dma_semaphore, #tpu.memory_space<semaphore_mem>>
    %668 = tpu.memref_squeeze %667 : memref<1x!tpu.dma_semaphore, #tpu.memory_space<semaphore_mem>> -> memref<!tpu.dma_semaphore, #tpu.memory_space<semaphore_mem>>
    tpu.wait_dma2 semaphore(%668 : memref<!tpu.dma_semaphore, #tpu.memory_space<semaphore_mem>>) src(%665 : memref<1x128xf32, #tpu.memory_space<any>>) dst(%666 : memref<1x128xf32, #tpu.memory_space<vmem>>)
    %c0_i32_476 = arith.constant 0 : i32
    %c0_i32_477 = arith.constant 0 : i32
    %669 = tpu.memref_slice %arg2[%388, %c0_i32_477] : memref<32x128xf32, #tpu.memory_space<any>> -> memref<1x128xf32, #tpu.memory_space<any>>
    %c55_i32_478 = arith.constant 55 : i32
    %c0_i32_479 = arith.constant 0 : i32
    %670 = tpu.memref_slice %arg4[%c55_i32_478, %c0_i32_479] : memref<64x128xf32, #tpu.memory_space<vmem>> -> memref<1x128xf32, #tpu.memory_space<vmem>>
    %671 = tpu.memref_slice %arg5[%c0_i32_476] : memref<1x!tpu.dma_semaphore, #tpu.memory_space<semaphore_mem>> -> memref<1x!tpu.dma_semaphore, #tpu.memory_space<semaphore_mem>>
    %672 = tpu.memref_squeeze %671 : memref<1x!tpu.dma_semaphore, #tpu.memory_space<semaphore_mem>> -> memref<!tpu.dma_semaphore, #tpu.memory_space<semaphore_mem>>
    tpu.wait_dma2 semaphore(%672 : memref<!tpu.dma_semaphore, #tpu.memory_space<semaphore_mem>>) src(%669 : memref<1x128xf32, #tpu.memory_space<any>>) dst(%670 : memref<1x128xf32, #tpu.memory_space<vmem>>)
    %c0_i32_480 = arith.constant 0 : i32
    %c0_i32_481 = arith.constant 0 : i32
    %673 = tpu.memref_slice %arg2[%395, %c0_i32_481] : memref<32x128xf32, #tpu.memory_space<any>> -> memref<1x128xf32, #tpu.memory_space<any>>
    %c56_i32_482 = arith.constant 56 : i32
    %c0_i32_483 = arith.constant 0 : i32
    %674 = tpu.memref_slice %arg4[%c56_i32_482, %c0_i32_483] : memref<64x128xf32, #tpu.memory_space<vmem>> -> memref<1x128xf32, #tpu.memory_space<vmem>>
    %675 = tpu.memref_slice %arg5[%c0_i32_480] : memref<1x!tpu.dma_semaphore, #tpu.memory_space<semaphore_mem>> -> memref<1x!tpu.dma_semaphore, #tpu.memory_space<semaphore_mem>>
    %676 = tpu.memref_squeeze %675 : memref<1x!tpu.dma_semaphore, #tpu.memory_space<semaphore_mem>> -> memref<!tpu.dma_semaphore, #tpu.memory_space<semaphore_mem>>
    tpu.wait_dma2 semaphore(%676 : memref<!tpu.dma_semaphore, #tpu.memory_space<semaphore_mem>>) src(%673 : memref<1x128xf32, #tpu.memory_space<any>>) dst(%674 : memref<1x128xf32, #tpu.memory_space<vmem>>)
    %c0_i32_484 = arith.constant 0 : i32
    %c0_i32_485 = arith.constant 0 : i32
    %677 = tpu.memref_slice %arg2[%402, %c0_i32_485] : memref<32x128xf32, #tpu.memory_space<any>> -> memref<1x128xf32, #tpu.memory_space<any>>
    %c57_i32_486 = arith.constant 57 : i32
    %c0_i32_487 = arith.constant 0 : i32
    %678 = tpu.memref_slice %arg4[%c57_i32_486, %c0_i32_487] : memref<64x128xf32, #tpu.memory_space<vmem>> -> memref<1x128xf32, #tpu.memory_space<vmem>>
    %679 = tpu.memref_slice %arg5[%c0_i32_484] : memref<1x!tpu.dma_semaphore, #tpu.memory_space<semaphore_mem>> -> memref<1x!tpu.dma_semaphore, #tpu.memory_space<semaphore_mem>>
    %680 = tpu.memref_squeeze %679 : memref<1x!tpu.dma_semaphore, #tpu.memory_space<semaphore_mem>> -> memref<!tpu.dma_semaphore, #tpu.memory_space<semaphore_mem>>
    tpu.wait_dma2 semaphore(%680 : memref<!tpu.dma_semaphore, #tpu.memory_space<semaphore_mem>>) src(%677 : memref<1x128xf32, #tpu.memory_space<any>>) dst(%678 : memref<1x128xf32, #tpu.memory_space<vmem>>)
    %c0_i32_488 = arith.constant 0 : i32
    %c0_i32_489 = arith.constant 0 : i32
    %681 = tpu.memref_slice %arg2[%409, %c0_i32_489] : memref<32x128xf32, #tpu.memory_space<any>> -> memref<1x128xf32, #tpu.memory_space<any>>
    %c58_i32_490 = arith.constant 58 : i32
    %c0_i32_491 = arith.constant 0 : i32
    %682 = tpu.memref_slice %arg4[%c58_i32_490, %c0_i32_491] : memref<64x128xf32, #tpu.memory_space<vmem>> -> memref<1x128xf32, #tpu.memory_space<vmem>>
    %683 = tpu.memref_slice %arg5[%c0_i32_488] : memref<1x!tpu.dma_semaphore, #tpu.memory_space<semaphore_mem>> -> memref<1x!tpu.dma_semaphore, #tpu.memory_space<semaphore_mem>>
    %684 = tpu.memref_squeeze %683 : memref<1x!tpu.dma_semaphore, #tpu.memory_space<semaphore_mem>> -> memref<!tpu.dma_semaphore, #tpu.memory_space<semaphore_mem>>
    tpu.wait_dma2 semaphore(%684 : memref<!tpu.dma_semaphore, #tpu.memory_space<semaphore_mem>>) src(%681 : memref<1x128xf32, #tpu.memory_space<any>>) dst(%682 : memref<1x128xf32, #tpu.memory_space<vmem>>)
    %c0_i32_492 = arith.constant 0 : i32
    %c0_i32_493 = arith.constant 0 : i32
    %685 = tpu.memref_slice %arg2[%416, %c0_i32_493] : memref<32x128xf32, #tpu.memory_space<any>> -> memref<1x128xf32, #tpu.memory_space<any>>
    %c59_i32_494 = arith.constant 59 : i32
    %c0_i32_495 = arith.constant 0 : i32
    %686 = tpu.memref_slice %arg4[%c59_i32_494, %c0_i32_495] : memref<64x128xf32, #tpu.memory_space<vmem>> -> memref<1x128xf32, #tpu.memory_space<vmem>>
    %687 = tpu.memref_slice %arg5[%c0_i32_492] : memref<1x!tpu.dma_semaphore, #tpu.memory_space<semaphore_mem>> -> memref<1x!tpu.dma_semaphore, #tpu.memory_space<semaphore_mem>>
    %688 = tpu.memref_squeeze %687 : memref<1x!tpu.dma_semaphore, #tpu.memory_space<semaphore_mem>> -> memref<!tpu.dma_semaphore, #tpu.memory_space<semaphore_mem>>
    tpu.wait_dma2 semaphore(%688 : memref<!tpu.dma_semaphore, #tpu.memory_space<semaphore_mem>>) src(%685 : memref<1x128xf32, #tpu.memory_space<any>>) dst(%686 : memref<1x128xf32, #tpu.memory_space<vmem>>)
    %c0_i32_496 = arith.constant 0 : i32
    %c0_i32_497 = arith.constant 0 : i32
    %689 = tpu.memref_slice %arg2[%423, %c0_i32_497] : memref<32x128xf32, #tpu.memory_space<any>> -> memref<1x128xf32, #tpu.memory_space<any>>
    %c60_i32_498 = arith.constant 60 : i32
    %c0_i32_499 = arith.constant 0 : i32
    %690 = tpu.memref_slice %arg4[%c60_i32_498, %c0_i32_499] : memref<64x128xf32, #tpu.memory_space<vmem>> -> memref<1x128xf32, #tpu.memory_space<vmem>>
    %691 = tpu.memref_slice %arg5[%c0_i32_496] : memref<1x!tpu.dma_semaphore, #tpu.memory_space<semaphore_mem>> -> memref<1x!tpu.dma_semaphore, #tpu.memory_space<semaphore_mem>>
    %692 = tpu.memref_squeeze %691 : memref<1x!tpu.dma_semaphore, #tpu.memory_space<semaphore_mem>> -> memref<!tpu.dma_semaphore, #tpu.memory_space<semaphore_mem>>
    tpu.wait_dma2 semaphore(%692 : memref<!tpu.dma_semaphore, #tpu.memory_space<semaphore_mem>>) src(%689 : memref<1x128xf32, #tpu.memory_space<any>>) dst(%690 : memref<1x128xf32, #tpu.memory_space<vmem>>)
    %c0_i32_500 = arith.constant 0 : i32
    %c0_i32_501 = arith.constant 0 : i32
    %693 = tpu.memref_slice %arg2[%430, %c0_i32_501] : memref<32x128xf32, #tpu.memory_space<any>> -> memref<1x128xf32, #tpu.memory_space<any>>
    %c61_i32_502 = arith.constant 61 : i32
    %c0_i32_503 = arith.constant 0 : i32
    %694 = tpu.memref_slice %arg4[%c61_i32_502, %c0_i32_503] : memref<64x128xf32, #tpu.memory_space<vmem>> -> memref<1x128xf32, #tpu.memory_space<vmem>>
    %695 = tpu.memref_slice %arg5[%c0_i32_500] : memref<1x!tpu.dma_semaphore, #tpu.memory_space<semaphore_mem>> -> memref<1x!tpu.dma_semaphore, #tpu.memory_space<semaphore_mem>>
    %696 = tpu.memref_squeeze %695 : memref<1x!tpu.dma_semaphore, #tpu.memory_space<semaphore_mem>> -> memref<!tpu.dma_semaphore, #tpu.memory_space<semaphore_mem>>
    tpu.wait_dma2 semaphore(%696 : memref<!tpu.dma_semaphore, #tpu.memory_space<semaphore_mem>>) src(%693 : memref<1x128xf32, #tpu.memory_space<any>>) dst(%694 : memref<1x128xf32, #tpu.memory_space<vmem>>)
    %c0_i32_504 = arith.constant 0 : i32
    %c0_i32_505 = arith.constant 0 : i32
    %697 = tpu.memref_slice %arg2[%437, %c0_i32_505] : memref<32x128xf32, #tpu.memory_space<any>> -> memref<1x128xf32, #tpu.memory_space<any>>
    %c62_i32_506 = arith.constant 62 : i32
    %c0_i32_507 = arith.constant 0 : i32
    %698 = tpu.memref_slice %arg4[%c62_i32_506, %c0_i32_507] : memref<64x128xf32, #tpu.memory_space<vmem>> -> memref<1x128xf32, #tpu.memory_space<vmem>>
    %699 = tpu.memref_slice %arg5[%c0_i32_504] : memref<1x!tpu.dma_semaphore, #tpu.memory_space<semaphore_mem>> -> memref<1x!tpu.dma_semaphore, #tpu.memory_space<semaphore_mem>>
    %700 = tpu.memref_squeeze %699 : memref<1x!tpu.dma_semaphore, #tpu.memory_space<semaphore_mem>> -> memref<!tpu.dma_semaphore, #tpu.memory_space<semaphore_mem>>
    tpu.wait_dma2 semaphore(%700 : memref<!tpu.dma_semaphore, #tpu.memory_space<semaphore_mem>>) src(%697 : memref<1x128xf32, #tpu.memory_space<any>>) dst(%698 : memref<1x128xf32, #tpu.memory_space<vmem>>)
    %c0_i32_508 = arith.constant 0 : i32
    %c0_i32_509 = arith.constant 0 : i32
    %701 = tpu.memref_slice %arg2[%444, %c0_i32_509] : memref<32x128xf32, #tpu.memory_space<any>> -> memref<1x128xf32, #tpu.memory_space<any>>
    %c63_i32_510 = arith.constant 63 : i32
    %c0_i32_511 = arith.constant 0 : i32
    %702 = tpu.memref_slice %arg4[%c63_i32_510, %c0_i32_511] : memref<64x128xf32, #tpu.memory_space<vmem>> -> memref<1x128xf32, #tpu.memory_space<vmem>>
    %703 = tpu.memref_slice %arg5[%c0_i32_508] : memref<1x!tpu.dma_semaphore, #tpu.memory_space<semaphore_mem>> -> memref<1x!tpu.dma_semaphore, #tpu.memory_space<semaphore_mem>>
    %704 = tpu.memref_squeeze %703 : memref<1x!tpu.dma_semaphore, #tpu.memory_space<semaphore_mem>> -> memref<!tpu.dma_semaphore, #tpu.memory_space<semaphore_mem>>
    tpu.wait_dma2 semaphore(%704 : memref<!tpu.dma_semaphore, #tpu.memory_space<semaphore_mem>>) src(%701 : memref<1x128xf32, #tpu.memory_space<any>>) dst(%702 : memref<1x128xf32, #tpu.memory_space<vmem>>)
    %c0 = arith.constant 0 : index
    %c0_512 = arith.constant 0 : index
    %705 = vector.load %arg4[%c0, %c0_512] : memref<64x128xf32, #tpu.memory_space<vmem>>, vector<64x128xf32>
    %706 = tpu.iota {dimensions = array<i32: 0>} : vector<16x64xi32>
    %707 = tpu.iota {dimensions = array<i32: 1>} : vector<16x64xi32>
    %c4_i32_513 = arith.constant 4 : i32
    %708 = vector.broadcast %c4_i32_513 : i32 to vector<16x64xi32>
    %709 = arith.muli %706, %708 : vector<16x64xi32>
    %710 = arith.cmpi sge, %707, %709 : vector<16x64xi32>
    %c4_i32_514 = arith.constant 4 : i32
    %711 = vector.broadcast %c4_i32_514 : i32 to vector<16x64xi32>
    %712 = arith.addi %709, %711 : vector<16x64xi32>
    %713 = arith.cmpi slt, %707, %712 : vector<16x64xi32>
    %714 = arith.andi %710, %713 : vector<16x64xi1>
    %cst = arith.constant 1.000000e+00 : f32
    %cst_515 = arith.constant 0.000000e+00 : f32
    %715 = vector.broadcast %cst : f32 to vector<16x64xf32>
    %716 = vector.broadcast %cst_515 : f32 to vector<16x64xf32>
    %717 = arith.select %714, %715, %716 : vector<16x64xi1>, vector<16x64xf32>
    %cst_516 = arith.constant dense<0.000000e+00> : vector<16x128xf32>
    %718 = tpu.matmul %717, %705, %cst_516 {dimension_numbers = #tpu.dot_dimension_numbers<[1], [0], [0], [1], [0, 0, 1, 1], [], []>} : vector<16x64xf32>, vector<64x128xf32>, vector<16x128xf32> -> vector<16x128xf32>
    %cst_517 = arith.constant 2.500000e-01 : f32
    %719 = vector.broadcast %cst_517 : f32 to vector<16x128xf32>
    %720 = arith.mulf %718, %719 : vector<16x128xf32>
    %721 = arith.truncf %720 : vector<16x128xf32> to vector<16x128xbf16>
    %c0_518 = arith.constant 0 : index
    %c0_519 = arith.constant 0 : index
    %722 = vector.load %arg3[%c0_518, %c0_519] : memref<16x128xbf16, #tpu.memory_space<vmem>>, vector<16x128xbf16>
    tpu.vector_store %arg3[%c0_518, %c0_519], %721 {strides = array<i32>} : memref<16x128xbf16, #tpu.memory_space<vmem>>, vector<16x128xbf16>,
    return
  }
  func.func @transform_1(%arg0: i32, %arg1: memref<64xi32, #tpu.memory_space<smem>>) -> (i32, i32) {
    %c0_i32 = arith.constant 0 : i32
    %c0_i32_0 = arith.constant 0 : i32
    return %arg0, %c0_i32 : i32, i32
  }
}

</mosaic_0001>

<llo_original>
// kernel: cbow_forward.3
$region0: #{cbow_forward.3}
  #allocation0 [shape = 'u32[]', space=smem, size = 0x4, offset = 0x4, fixed_abs, tag = 'smem constant byte address 0x4 - core index']
  #allocation1 [shape = 'u32[72,128]{1,0:T(1,128)}', space=vmem, size = 0x9000, scoped, tag = 'internal scratch']
  %s0 = inlined_call_operand.vmem [shape: bf16[16,128], index: 0, kind: input, shape index: {}]
  %s1 = inlined_call_operand.vmem [shape: bf16[128,128], index: 1, kind: input, shape index: {}]
  %s2 = inlined_call_operand.vmem [shape: f32[1,128], index: 2, kind: input, shape index: {}]
  %s3 = inlined_call_operand.vmem [shape: f32[16,128], index: 3, kind: output, shape index: {}]
  %s4 = sld [smem:[#allocation0]]
  $region22: #{cbow_forward.3} parent=0
    _
  %s6 = ssub.s32 1, %s4
  %s7 = scalar_select 0, %s6, %s4
  // Predicated region
  $region2: #{cbow_forward.3} parent=0 // pred_check
    _
  $region3: #{cbow_forward.3} parent=0 // pred_check_branch
    %9 = sbr.rel (0) target = $region5
  $region4: #{cbow_forward.3} parent=0 // pred_region
    _
  $region5: #{cbow_forward.3} parent=0 // pred_fallthru
    _
  // Predicated region
  $region6: #{cbow_forward.3} parent=0 // pred_check
    _
  $region7: #{cbow_forward.3} parent=0 // pred_check_branch
    %11 = sbr.rel (0) target = $region9
  $region8: #{cbow_forward.3} parent=0 // pred_region
    _
  $region9: #{cbow_forward.3} parent=0 // pred_fallthru
    _
  // Predicated region
  $region10: #{cbow_forward.3} parent=0 // pred_check
    _
  $region11: #{cbow_forward.3} parent=0 // pred_check_branch
    %13 = sbr.rel (0) target = $region13
  $region12: #{cbow_forward.3} parent=0 // pred_region
    _
  $region13: #{cbow_forward.3} parent=0 // pred_fallthru
    _
  %v14 = vld [vmem:[%s0] sm:$0xf]
  %v15 = vld [vmem:[%s0 + $0x4] sm:$0xf]
  %v16 = vld [vmem:[%s1] sm:$0xf]
  %v17 = vld [vmem:[%s1 + $0x4] sm:$0xf]
  %v18 = vld [vmem:[%s1 + $0x8] sm:$0xf]
  %v19 = vld [vmem:[%s1 + $0xc] sm:$0xf]
  %v20 = vld [vmem:[%s1 + $0x10] sm:$0xf]
  %v21 = vld [vmem:[%s1 + $0x14] sm:$0xf]
  %v22 = vld [vmem:[%s1 + $0x18] sm:$0xf]
  %v23 = vld [vmem:[%s1 + $0x1c] sm:$0xf]
  %v24 = vld [vmem:[%s1 + $0x20] sm:$0xf]
  %v25 = vld [vmem:[%s1 + $0x24] sm:$0xf]
  %v26 = vld [vmem:[%s1 + $0x28] sm:$0xf]
  %v27 = vld [vmem:[%s1 + $0x2c] sm:$0xf]
  %v28 = vld [vmem:[%s1 + $0x30] sm:$0xf]
  %v29 = vld [vmem:[%s1 + $0x34] sm:$0xf]
  %v30 = vld [vmem:[%s1 + $0x38] sm:$0xf]
  %v31 = vld [vmem:[%s1 + $0x3c] sm:$0xf]
  %v32 = vld [vmem:[%s2] sm:$0x1]
  %v34 = vperm.slane %v32, 0
  %v38 = vunpack.c.l.b16 %v14
  %v39 = vunpack.c.l.b16 %v15
  %v40 = vpack.c.b16 %v39, %v38
  %v58 = vunpack.c.l.b16 %v16
  %v59 = vunpack.c.l.b16 %v17
  %v60 = vunpack.c.l.b16 %v18
  %v61 = vunpack.c.l.b16 %v19
  %v62 = vunpack.c.l.b16 %v20
  %v63 = vunpack.c.l.b16 %v21
  %v64 = vunpack.c.l.b16 %v22
  %v65 = vunpack.c.l.b16 %v23
  %v66 = vunpack.c.l.b16 %v24
  %v67 = vunpack.c.l.b16 %v25
  %v68 = vunpack.c.l.b16 %v26
  %v69 = vunpack.c.l.b16 %v27
  %v70 = vunpack.c.l.b16 %v28
  %v71 = vunpack.c.l.b16 %v29
  %v72 = vunpack.c.l.b16 %v30
  %v73 = vunpack.c.l.b16 %v31
  %v74 = vpack.c.b16 %v59, %v58
  %v75 = vpack.c.b16 %v61, %v60
  %v76 = vpack.c.b16 %v63, %v62
  %v77 = vpack.c.b16 %v65, %v64
  %v78 = vpack.c.b16 %v67, %v66
  %v79 = vpack.c.b16 %v69, %v68
  %v80 = vpack.c.b16 %v71, %v70
  %v81 = vpack.c.b16 %v73, %v72
  %90 = vmatpush.bf16.msra.mxu0 %v81
  %91 = vmatpush.bf16.msra.mxu0 %v80
  %92 = vmatpush.bf16.msra.mxu0 %v79
  %93 = vmatpush.bf16.msra.mxu0 %v78
  %94 = vmatpush.bf16.msra.mxu0 %v77
  %95 = vmatpush.bf16.msra.mxu0 %v76
  %96 = vmatpush.bf16.msra.mxu0 %v75
  %97 = vmatpush.bf16.msra.mxu0 %v74
  %98 = vmatmul.bf16.gmra.mxu0 %v40
  %v99 = vpop.f32.mrf.mxu0
  %v100 = vadd.f32 %v34, %v99
  %v101 = vpop.f32.mrf.mxu0
  %v102 = vadd.f32 %v34, %v101
  %103 = vdwg.mxu0
  %104 = vst [vmem:[%s3] sm:$0xff] %v100
  %105 = vst [vmem:[%s3 + $0x8] sm:$0xff] %v102
  // Predicated region
  $region14: #{cbow_forward.3} parent=0 // pred_check
    _
  $region15: #{cbow_forward.3} parent=0 // pred_check_branch
    %107 = sbr.rel (0) target = $region17
  $region16: #{cbow_forward.3} parent=0 // pred_region
    _
  $region17: #{cbow_forward.3} parent=0 // pred_fallthru
    _
  // Predicated region
  $region18: #{cbow_forward.3} parent=0 // pred_check
    _
  $region19: #{cbow_forward.3} parent=0 // pred_check_branch
    %109 = sbr.rel (0) target = $region21
  $region20: #{cbow_forward.3} parent=0 // pred_region
    _
  $region21: #{cbow_forward.3} parent=0 // pred_fallthru
    _

// kernel: cbow_forward.2
$region0: #{cbow_forward.2}
  #allocation0 [shape = 'u32[]', space=smem, size = 0x4, offset = 0x4, fixed_abs, tag = 'smem constant byte address 0x4 - core index']
  #allocation1 [shape = 'u32[72,128]{1,0:T(1,128)}', space=vmem, size = 0x9000, scoped, tag = 'internal scratch']
  #allocation2 [shape = 'f32[64,128]{1,0:T(8,128)}', space=vmem, size = 0x8000, scoped, tag = 'scratch operand']
  #allocation3 [shape = 's32[1]{0}', space=sflag, size = 0x4, scoped, tag = 'scratch operand']
  #allocation4 [shape = 's32[1]{0}', space=sflag, size = 0x4, scoped, tag = 'scoped memory for cbow_forward.2']
  #allocation5 [shape = 'u8[512]{0}', space=smem, size = 0x200, scoped, tag = 'prefetched SMEM operand 0']
  #allocation6 [shape = 's32[]', space=sflag, size = 0x4, offset = 0, fixed_abs, tag = 'sflag constant byte address 0x0 - dummy sync flag']
  #allocation7 [shape = 's32[]', space=sflag, size = 0x4, offset = 0, fixed_abs, tag = 'sflag constant byte address 0x0 - dummy sync flag']
  #allocation8 [shape = 's32[]', space=sflag, size = 0x4, offset = 0, fixed_abs, tag = 'sflag constant byte address 0x0 - dummy sync flag']
  #allocation9 [shape = 's32[]', space=sflag, size = 0x4, offset = 0, fixed_abs, tag = 'sflag constant byte address 0x0 - dummy sync flag']
  #allocation10 [shape = 's32[]', space=sflag, size = 0x4, offset = 0, fixed_abs, tag = 'sflag constant byte address 0x0 - dummy sync flag']
  #allocation11 [shape = 's32[]', space=sflag, size = 0x4, offset = 0, fixed_abs, tag = 'sflag constant byte address 0x0 - dummy sync flag']
  #allocation12 [shape = 's32[]', space=sflag, size = 0x4, offset = 0, fixed_abs, tag = 'sflag constant byte address 0x0 - dummy sync flag']
  #allocation13 [shape = 's32[]', space=sflag, size = 0x4, offset = 0, fixed_abs, tag = 'sflag constant byte address 0x0 - dummy sync flag']
  #allocation14 [shape = 's32[]', space=sflag, size = 0x4, offset = 0, fixed_abs, tag = 'sflag constant byte address 0x0 - dummy sync flag']
  #allocation15 [shape = 's32[]', space=sflag, size = 0x4, offset = 0, fixed_abs, tag = 'sflag constant byte address 0x0 - dummy sync flag']
  #allocation16 [shape = 's32[]', space=sflag, size = 0x4, offset = 0, fixed_abs, tag = 'sflag constant byte address 0x0 - dummy sync flag']
  #allocation17 [shape = 's32[]', space=sflag, size = 0x4, offset = 0, fixed_abs, tag = 'sflag constant byte address 0x0 - dummy sync flag']
  #allocation18 [shape = 's32[]', space=sflag, size = 0x4, offset = 0, fixed_abs, tag = 'sflag constant byte address 0x0 - dummy sync flag']
  #allocation19 [shape = 's32[]', space=sflag, size = 0x4, offset = 0, fixed_abs, tag = 'sflag constant byte address 0x0 - dummy sync flag']
  #allocation20 [shape = 's32[]', space=sflag, size = 0x4, offset = 0, fixed_abs, tag = 'sflag constant byte address 0x0 - dummy sync flag']
  #allocation21 [shape = 's32[]', space=sflag, size = 0x4, offset = 0, fixed_abs, tag = 'sflag constant byte address 0x0 - dummy sync flag']
  #allocation22 [shape = 's32[]', space=sflag, size = 0x4, offset = 0, fixed_abs, tag = 'sflag constant byte address 0x0 - dummy sync flag']
  #allocation23 [shape = 's32[]', space=sflag, size = 0x4, offset = 0, fixed_abs, tag = 'sflag constant byte address 0x0 - dummy sync flag']
  #allocation24 [shape = 's32[]', space=sflag, size = 0x4, offset = 0, fixed_abs, tag = 'sflag constant byte address 0x0 - dummy sync flag']
  #allocation25 [shape = 's32[]', space=sflag, size = 0x4, offset = 0, fixed_abs, tag = 'sflag constant byte address 0x0 - dummy sync flag']
  #allocation26 [shape = 's32[]', space=sflag, size = 0x4, offset = 0, fixed_abs, tag = 'sflag constant byte address 0x0 - dummy sync flag']
  #allocation27 [shape = 's32[]', space=sflag, size = 0x4, offset = 0, fixed_abs, tag = 'sflag constant byte address 0x0 - dummy sync flag']
  #allocation28 [shape = 's32[]', space=sflag, size = 0x4, offset = 0, fixed_abs, tag = 'sflag constant byte address 0x0 - dummy sync flag']
  #allocation29 [shape = 's32[]', space=sflag, size = 0x4, offset = 0, fixed_abs, tag = 'sflag constant byte address 0x0 - dummy sync flag']
  #allocation30 [shape = 's32[]', space=sflag, size = 0x4, offset = 0, fixed_abs, tag = 'sflag constant byte address 0x0 - dummy sync flag']
  #allocation31 [shape = 's32[]', space=sflag, size = 0x4, offset = 0, fixed_abs, tag = 'sflag constant byte address 0x0 - dummy sync flag']
  #allocation32 [shape = 's32[]', space=sflag, size = 0x4, offset = 0, fixed_abs, tag = 'sflag constant byte address 0x0 - dummy sync flag']
  #allocation33 [shape = 's32[]', space=sflag, size = 0x4, offset = 0, fixed_abs, tag = 'sflag constant byte address 0x0 - dummy sync flag']
  #allocation34 [shape = 's32[]', space=sflag, size = 0x4, offset = 0, fixed_abs, tag = 'sflag constant byte address 0x0 - dummy sync flag']
  #allocation35 [shape = 's32[]', space=sflag, size = 0x4, offset = 0, fixed_abs, tag = 'sflag constant byte address 0x0 - dummy sync flag']
  #allocation36 [shape = 's32[]', space=sflag, size = 0x4, offset = 0, fixed_abs, tag = 'sflag constant byte address 0x0 - dummy sync flag']
  #allocation37 [shape = 's32[]', space=sflag, size = 0x4, offset = 0, fixed_abs, tag = 'sflag constant byte address 0x0 - dummy sync flag']
  #allocation38 [shape = 's32[]', space=sflag, size = 0x4, offset = 0, fixed_abs, tag = 'sflag constant byte address 0x0 - dummy sync flag']
  #allocation39 [shape = 's32[]', space=sflag, size = 0x4, offset = 0, fixed_abs, tag = 'sflag constant byte address 0x0 - dummy sync flag']
  #allocation40 [shape = 's32[]', space=sflag, size = 0x4, offset = 0, fixed_abs, tag = 'sflag constant byte address 0x0 - dummy sync flag']
  #allocation41 [shape = 's32[]', space=sflag, size = 0x4, offset = 0, fixed_abs, tag = 'sflag constant byte address 0x0 - dummy sync flag']
  #allocation42 [shape = 's32[]', space=sflag, size = 0x4, offset = 0, fixed_abs, tag = 'sflag constant byte address 0x0 - dummy sync flag']
  #allocation43 [shape = 's32[]', space=sflag, size = 0x4, offset = 0, fixed_abs, tag = 'sflag constant byte address 0x0 - dummy sync flag']
  #allocation44 [shape = 's32[]', space=sflag, size = 0x4, offset = 0, fixed_abs, tag = 'sflag constant byte address 0x0 - dummy sync flag']
  #allocation45 [shape = 's32[]', space=sflag, size = 0x4, offset = 0, fixed_abs, tag = 'sflag constant byte address 0x0 - dummy sync flag']
  #allocation46 [shape = 's32[]', space=sflag, size = 0x4, offset = 0, fixed_abs, tag = 'sflag constant byte address 0x0 - dummy sync flag']
  #allocation47 [shape = 's32[]', space=sflag, size = 0x4, offset = 0, fixed_abs, tag = 'sflag constant byte address 0x0 - dummy sync flag']
  #allocation48 [shape = 's32[]', space=sflag, size = 0x4, offset = 0, fixed_abs, tag = 'sflag constant byte address 0x0 - dummy sync flag']
  #allocation49 [shape = 's32[]', space=sflag, size = 0x4, offset = 0, fixed_abs, tag = 'sflag constant byte address 0x0 - dummy sync flag']
  #allocation50 [shape = 's32[]', space=sflag, size = 0x4, offset = 0, fixed_abs, tag = 'sflag constant byte address 0x0 - dummy sync flag']
  #allocation51 [shape = 's32[]', space=sflag, size = 0x4, offset = 0, fixed_abs, tag = 'sflag constant byte address 0x0 - dummy sync flag']
  #allocation52 [shape = 's32[]', space=sflag, size = 0x4, offset = 0, fixed_abs, tag = 'sflag constant byte address 0x0 - dummy sync flag']
  #allocation53 [shape = 's32[]', space=sflag, size = 0x4, offset = 0, fixed_abs, tag = 'sflag constant byte address 0x0 - dummy sync flag']
  #allocation54 [shape = 's32[]', space=sflag, size = 0x4, offset = 0, fixed_abs, tag = 'sflag constant byte address 0x0 - dummy sync flag']
  #allocation55 [shape = 's32[]', space=sflag, size = 0x4, offset = 0, fixed_abs, tag = 'sflag constant byte address 0x0 - dummy sync flag']
  #allocation56 [shape = 's32[]', space=sflag, size = 0x4, offset = 0, fixed_abs, tag = 'sflag constant byte address 0x0 - dummy sync flag']
  #allocation57 [shape = 's32[]', space=sflag, size = 0x4, offset = 0, fixed_abs, tag = 'sflag constant byte address 0x0 - dummy sync flag']
  #allocation58 [shape = 's32[]', space=sflag, size = 0x4, offset = 0, fixed_abs, tag = 'sflag constant byte address 0x0 - dummy sync flag']
  #allocation59 [shape = 's32[]', space=sflag, size = 0x4, offset = 0, fixed_abs, tag = 'sflag constant byte address 0x0 - dummy sync flag']
  #allocation60 [shape = 's32[]', space=sflag, size = 0x4, offset = 0, fixed_abs, tag = 'sflag constant byte address 0x0 - dummy sync flag']
  #allocation61 [shape = 's32[]', space=sflag, size = 0x4, offset = 0, fixed_abs, tag = 'sflag constant byte address 0x0 - dummy sync flag']
  #allocation62 [shape = 's32[]', space=sflag, size = 0x4, offset = 0, fixed_abs, tag = 'sflag constant byte address 0x0 - dummy sync flag']
  #allocation63 [shape = 's32[]', space=sflag, size = 0x4, offset = 0, fixed_abs, tag = 'sflag constant byte address 0x0 - dummy sync flag']
  #allocation64 [shape = 's32[]', space=sflag, size = 0x4, offset = 0, fixed_abs, tag = 'sflag constant byte address 0x0 - dummy sync flag']
  #allocation65 [shape = 's32[]', space=sflag, size = 0x4, offset = 0, fixed_abs, tag = 'sflag constant byte address 0x0 - dummy sync flag']
  #allocation66 [shape = 's32[]', space=sflag, size = 0x4, offset = 0, fixed_abs, tag = 'sflag constant byte address 0x0 - dummy sync flag']
  #allocation67 [shape = 's32[]', space=sflag, size = 0x4, offset = 0, fixed_abs, tag = 'sflag constant byte address 0x0 - dummy sync flag']
  #allocation68 [shape = 's32[]', space=sflag, size = 0x4, offset = 0, fixed_abs, tag = 'sflag constant byte address 0x0 - dummy sync flag']
  #allocation69 [shape = 's32[]', space=sflag, size = 0x4, offset = 0, fixed_abs, tag = 'sflag constant byte address 0x0 - dummy sync flag']
  %s0 = inlined_call_operand.vmem [shape: s32[64], index: 0, kind: input, shape index: {}]
  %s1 = inlined_call_operand.vmem [shape: f32[32,128], index: 1, kind: input, shape index: {}]
  %s2 = inlined_call_operand.vmem [shape: bf16[16,128], index: 2, kind: output, shape index: {}]
  %s3 = sld [smem:[#allocation0]]
  $region1930: #{cbow_forward.2} parent=0
    _
  %s5 = ssub.s32 1, %s3
  %s6 = scalar_select 0, %s5, %s3
  %s8 = sshll.u32 %s0, 4
  %s9 = int_to_ptr.vmem [resolvable:$true] %s8
  %11 = dma.vmem_to_smem %s9, 16, [#allocation5], [#allocation4]
  %13 = dma.done [#allocation4], 16
  %14 = sfence
  %s15 = smul.u32 0, 64
  %s16 = sld [smem:[#allocation5 + %s15]]
  %s17 = scalar_lea.vmem %s1, %s16
  // Predicated region
  $region2: #{cbow_forward.2} parent=0 // pred_check
    _
  $region3: #{cbow_forward.2} parent=0 // pred_check_branch
    %19 = sbr.rel target = $region5
  $region4: #{cbow_forward.2} parent=0 // pred_region
    // Predicated region
    $region17: #{cbow_forward.2} parent=4 // pred_check
      _
    $region18: #{cbow_forward.2} parent=4 // pred_check_branch
      %35 = sbr.rel (0) target = $region20
    $region19: #{cbow_forward.2} parent=4 // pred_region
      %s37 = ssub.s32 2, 1
      loop: start=0, step=1, limit=1
      $region21: #{cbow_forward.2} parent=19 // loop_pre_header
        _
      $region22: #{cbow_forward.2} parent=19 // loop_header
        %s39 = sphi 0, %s43
        %p40 = scmp.ge.s32.totalorder %s39, 1
        %s44 = sphi %s17, %s17
        %s45 = sphi [#allocation2], [#allocation2]
      $region23: #{cbow_forward.2} parent=19 // loop_header_branch
        %42 = sbr.rel (%p40) target = $region27
      $region24: #{cbow_forward.2} parent=19 // loop_body
        %v46 = vld [vmem:[%s44] sm:%s37]
        %47 = vst [vmem:[%s45] sm:%s37] %v46
      $region25: #{cbow_forward.2} parent=19 // loop_footer
        %s43 = sadd.s32 1, %s39
      $region26: #{cbow_forward.2} parent=19 // loop_footer_branch
        %38 = sbr.rel target = $region22
      $region27: #{cbow_forward.2} parent=19 // loop_exit
        _
    $region20: #{cbow_forward.2} parent=4 // pred_fallthru
      _
  $region5: #{cbow_forward.2} parent=0 // pred_fallthru
    _
  // Predicated region
  $region6: #{cbow_forward.2} parent=0 // pred_check
    _
  $region7: #{cbow_forward.2} parent=0 // pred_check_branch
    %21 = sbr.rel (0) target = $region9
  $region8: #{cbow_forward.2} parent=0 // pred_region
    %s23 = ssub.s32 2, 1
    loop: start=0, step=1, limit=1
    $region10: #{cbow_forward.2} parent=8 // loop_pre_header
      _
    $region11: #{cbow_forward.2} parent=8 // loop_header
      %s25 = sphi 0, %s29
      %p26 = scmp.ge.s32.totalorder %s25, 1
      %s30 = sphi %s17, %s17
      %s31 = sphi [#allocation2], [#allocation2]
    $region12: #{cbow_forward.2} parent=8 // loop_header_branch
      %28 = sbr.rel (%p26) target = $region16
    $region13: #{cbow_forward.2} parent=8 // loop_body
      %v32 = vld [vmem:[%s30] sm:%s23]
      %33 = vst [vmem:[%s31] sm:%s23] %v32
    $region14: #{cbow_forward.2} parent=8 // loop_footer
      %s29 = sadd.s32 1, %s25
    $region15: #{cbow_forward.2} parent=8 // loop_footer_branch
      %24 = sbr.rel target = $region11
    $region16: #{cbow_forward.2} parent=8 // loop_exit
      _
  $region9: #{cbow_forward.2} parent=0 // pred_fallthru
    _
  // Predicated region
  $region28: #{cbow_forward.2} parent=0 // pred_check
    _
  $region29: #{cbow_forward.2} parent=0 // pred_check_branch
    %50 = sbr.rel (0) target = $region31
  $region30: #{cbow_forward.2} parent=0 // pred_region
    %51 = vsyncadd [#allocation3], 16
  $region31: #{cbow_forward.2} parent=0 // pred_fallthru
    _
  %s52 = sadd.s32 %s15, 1
  %s53 = sld [smem:[#allocation5 + %s52]]
  %s54 = scalar_lea.vmem %s1, %s53
  %s55 = scalar_lea.vmem [#allocation2], 1
  // Predicated region
  $region32: #{cbow_forward.2} parent=0 // pred_check
    _
  $region33: #{cbow_forward.2} parent=0 // pred_check_branch
    %57 = sbr.rel target = $region35
  $region34: #{cbow_forward.2} parent=0 // pred_region
    // Predicated region
    $region47: #{cbow_forward.2} parent=34 // pred_check
      _
    $region48: #{cbow_forward.2} parent=34 // pred_check_branch
      %73 = sbr.rel (0) target = $region50
    $region49: #{cbow_forward.2} parent=34 // pred_region
      %s75 = ssub.s32 2, 1
      loop: start=0, step=1, limit=1
      $region51: #{cbow_forward.2} parent=49 // loop_pre_header
        _
      $region52: #{cbow_forward.2} parent=49 // loop_header
        %s77 = sphi 0, %s81
        %p78 = scmp.ge.s32.totalorder %s77, 1
        %s82 = sphi %s54, %s54
        %s83 = sphi %s55, %s55
      $region53: #{cbow_forward.2} parent=49 // loop_header_branch
        %80 = sbr.rel (%p78) target = $region57
      $region54: #{cbow_forward.2} parent=49 // loop_body
        %v84 = vld [vmem:[%s82] sm:%s75]
        %85 = vst [vmem:[%s83] sm:%s75] %v84
      $region55: #{cbow_forward.2} parent=49 // loop_footer
        %s81 = sadd.s32 1, %s77
      $region56: #{cbow_forward.2} parent=49 // loop_footer_branch
        %76 = sbr.rel target = $region52
      $region57: #{cbow_forward.2} parent=49 // loop_exit
        _
    $region50: #{cbow_forward.2} parent=34 // pred_fallthru
      _
  $region35: #{cbow_forward.2} parent=0 // pred_fallthru
    _
  // Predicated region
  $region36: #{cbow_forward.2} parent=0 // pred_check
    _
  $region37: #{cbow_forward.2} parent=0 // pred_check_branch
    %59 = sbr.rel (0) target = $region39
  $region38: #{cbow_forward.2} parent=0 // pred_region
    %s61 = ssub.s32 2, 1
    loop: start=0, step=1, limit=1
    $region40: #{cbow_forward.2} parent=38 // loop_pre_header
      _
    $region41: #{cbow_forward.2} parent=38 // loop_header
      %s63 = sphi 0, %s67
      %p64 = scmp.ge.s32.totalorder %s63, 1
      %s68 = sphi %s54, %s54
      %s69 = sphi %s55, %s55
    $region42: #{cbow_forward.2} parent=38 // loop_header_branch
      %66 = sbr.rel (%p64) target = $region46
    $region43: #{cbow_forward.2} parent=38 // loop_body
      %v70 = vld [vmem:[%s68] sm:%s61]
      %71 = vst [vmem:[%s69] sm:%s61] %v70
    $region44: #{cbow_forward.2} parent=38 // loop_footer
      %s67 = sadd.s32 1, %s63
    $region45: #{cbow_forward.2} parent=38 // loop_footer_branch
      %62 = sbr.rel target = $region41
    $region46: #{cbow_forward.2} parent=38 // loop_exit
      _
  $region39: #{cbow_forward.2} parent=0 // pred_fallthru
    _
  // Predicated region
  $region58: #{cbow_forward.2} parent=0 // pred_check
    _
  $region59: #{cbow_forward.2} parent=0 // pred_check_branch
    %88 = sbr.rel (0) target = $region61
  $region60: #{cbow_forward.2} parent=0 // pred_region
    %89 = vsyncadd [#allocation3], 16
  $region61: #{cbow_forward.2} parent=0 // pred_fallthru
    _
  %s90 = sadd.s32 %s15, 2
  %s91 = sld [smem:[#allocation5 + %s90]]
  %s92 = scalar_lea.vmem %s1, %s91
  %s93 = scalar_lea.vmem [#allocation2], 2
  // Predicated region
  $region62: #{cbow_forward.2} parent=0 // pred_check
    _
  $region63: #{cbow_forward.2} parent=0 // pred_check_branch
    %95 = sbr.rel target = $region65
  $region64: #{cbow_forward.2} parent=0 // pred_region
    // Predicated region
    $region77: #{cbow_forward.2} parent=64 // pred_check
      _
    $region78: #{cbow_forward.2} parent=64 // pred_check_branch
      %111 = sbr.rel (0) target = $region80
    $region79: #{cbow_forward.2} parent=64 // pred_region
      %s113 = ssub.s32 2, 1
      loop: start=0, step=1, limit=1
      $region81: #{cbow_forward.2} parent=79 // loop_pre_header
        _
      $region82: #{cbow_forward.2} parent=79 // loop_header
        %s115 = sphi 0, %s119
        %p116 = scmp.ge.s32.totalorder %s115, 1
        %s120 = sphi %s92, %s92
        %s121 = sphi %s93, %s93
      $region83: #{cbow_forward.2} parent=79 // loop_header_branch
        %118 = sbr.rel (%p116) target = $region87
      $region84: #{cbow_forward.2} parent=79 // loop_body
        %v122 = vld [vmem:[%s120] sm:%s113]
        %123 = vst [vmem:[%s121] sm:%s113] %v122
      $region85: #{cbow_forward.2} parent=79 // loop_footer
        %s119 = sadd.s32 1, %s115
      $region86: #{cbow_forward.2} parent=79 // loop_footer_branch
        %114 = sbr.rel target = $region82
      $region87: #{cbow_forward.2} parent=79 // loop_exit
        _
    $region80: #{cbow_forward.2} parent=64 // pred_fallthru
      _
  $region65: #{cbow_forward.2} parent=0 // pred_fallthru
    _
  // Predicated region
  $region66: #{cbow_forward.2} parent=0 // pred_check
    _
  $region67: #{cbow_forward.2} parent=0 // pred_check_branch
    %97 = sbr.rel (0) target = $region69
  $region68: #{cbow_forward.2} parent=0 // pred_region
    %s99 = ssub.s32 2, 1
    loop: start=0, step=1, limit=1
    $region70: #{cbow_forward.2} parent=68 // loop_pre_header
      _
    $region71: #{cbow_forward.2} parent=68 // loop_header
      %s101 = sphi 0, %s105
      %p102 = scmp.ge.s32.totalorder %s101, 1
      %s106 = sphi %s92, %s92
      %s107 = sphi %s93, %s93
    $region72: #{cbow_forward.2} parent=68 // loop_header_branch
      %104 = sbr.rel (%p102) target = $region76
    $region73: #{cbow_forward.2} parent=68 // loop_body
      %v108 = vld [vmem:[%s106] sm:%s99]
      %109 = vst [vmem:[%s107] sm:%s99] %v108
    $region74: #{cbow_forward.2} parent=68 // loop_footer
      %s105 = sadd.s32 1, %s101
    $region75: #{cbow_forward.2} parent=68 // loop_footer_branch
      %100 = sbr.rel target = $region71
    $region76: #{cbow_forward.2} parent=68 // loop_exit
      _
  $region69: #{cbow_forward.2} parent=0 // pred_fallthru
    _
  // Predicated region
  $region88: #{cbow_forward.2} parent=0 // pred_check
    _
  $region89: #{cbow_forward.2} parent=0 // pred_check_branch
    %126 = sbr.rel (0) target = $region91
  $region90: #{cbow_forward.2} parent=0 // pred_region
    %127 = vsyncadd [#allocation3], 16
  $region91: #{cbow_forward.2} parent=0 // pred_fallthru
    _
  %s128 = sadd.s32 %s15, 3
  %s129 = sld [smem:[#allocation5 + %s128]]
  %s130 = scalar_lea.vmem %s1, %s129
  %s131 = scalar_lea.vmem [#allocation2], 3
  // Predicated region
  $region92: #{cbow_forward.2} parent=0 // pred_check
    _
  $region93: #{cbow_forward.2} parent=0 // pred_check_branch
    %133 = sbr.rel target = $region95
  $region94: #{cbow_forward.2} parent=0 // pred_region
    // Predicated region
    $region107: #{cbow_forward.2} parent=94 // pred_check
      _
    $region108: #{cbow_forward.2} parent=94 // pred_check_branch
      %149 = sbr.rel (0) target = $region110
    $region109: #{cbow_forward.2} parent=94 // pred_region
      %s151 = ssub.s32 2, 1
      loop: start=0, step=1, limit=1
      $region111: #{cbow_forward.2} parent=109 // loop_pre_header
        _
      $region112: #{cbow_forward.2} parent=109 // loop_header
        %s153 = sphi 0, %s157
        %p154 = scmp.ge.s32.totalorder %s153, 1
        %s158 = sphi %s130, %s130
        %s159 = sphi %s131, %s131
      $region113: #{cbow_forward.2} parent=109 // loop_header_branch
        %156 = sbr.rel (%p154) target = $region117
      $region114: #{cbow_forward.2} parent=109 // loop_body
        %v160 = vld [vmem:[%s158] sm:%s151]
        %161 = vst [vmem:[%s159] sm:%s151] %v160
      $region115: #{cbow_forward.2} parent=109 // loop_footer
        %s157 = sadd.s32 1, %s153
      $region116: #{cbow_forward.2} parent=109 // loop_footer_branch
        %152 = sbr.rel target = $region112
      $region117: #{cbow_forward.2} parent=109 // loop_exit
        _
    $region110: #{cbow_forward.2} parent=94 // pred_fallthru
      _
  $region95: #{cbow_forward.2} parent=0 // pred_fallthru
    _
  // Predicated region
  $region96: #{cbow_forward.2} parent=0 // pred_check
    _
  $region97: #{cbow_forward.2} parent=0 // pred_check_branch
    %135 = sbr.rel (0) target = $region99
  $region98: #{cbow_forward.2} parent=0 // pred_region
    %s137 = ssub.s32 2, 1
    loop: start=0, step=1, limit=1
    $region100: #{cbow_forward.2} parent=98 // loop_pre_header
      _
    $region101: #{cbow_forward.2} parent=98 // loop_header
      %s139 = sphi 0, %s143
      %p140 = scmp.ge.s32.totalorder %s139, 1
      %s144 = sphi %s130, %s130
      %s145 = sphi %s131, %s131
    $region102: #{cbow_forward.2} parent=98 // loop_header_branch
      %142 = sbr.rel (%p140) target = $region106
    $region103: #{cbow_forward.2} parent=98 // loop_body
      %v146 = vld [vmem:[%s144] sm:%s137]
      %147 = vst [vmem:[%s145] sm:%s137] %v146
    $region104: #{cbow_forward.2} parent=98 // loop_footer
      %s143 = sadd.s32 1, %s139
    $region105: #{cbow_forward.2} parent=98 // loop_footer_branch
      %138 = sbr.rel target = $region101
    $region106: #{cbow_forward.2} parent=98 // loop_exit
      _
  $region99: #{cbow_forward.2} parent=0 // pred_fallthru
    _
  // Predicated region
  $region118: #{cbow_forward.2} parent=0 // pred_check
    _
  $region119: #{cbow_forward.2} parent=0 // pred_check_branch
    %164 = sbr.rel (0) target = $region121
  $region120: #{cbow_forward.2} parent=0 // pred_region
    %165 = vsyncadd [#allocation3], 16
  $region121: #{cbow_forward.2} parent=0 // pred_fallthru
    _
  %s166 = sadd.s32 %s15, 4
  %s167 = sld [smem:[#allocation5 + %s166]]
  %s168 = scalar_lea.vmem %s1, %s167
  %s169 = scalar_lea.vmem [#allocation2], 4
  // Predicated region
  $region122: #{cbow_forward.2} parent=0 // pred_check
    _
  $region123: #{cbow_forward.2} parent=0 // pred_check_branch
    %171 = sbr.rel target = $region125
  $region124: #{cbow_forward.2} parent=0 // pred_region
    // Predicated region
    $region137: #{cbow_forward.2} parent=124 // pred_check
      _
    $region138: #{cbow_forward.2} parent=124 // pred_check_branch
      %187 = sbr.rel (0) target = $region140
    $region139: #{cbow_forward.2} parent=124 // pred_region
      %s189 = ssub.s32 2, 1
      loop: start=0, step=1, limit=1
      $region141: #{cbow_forward.2} parent=139 // loop_pre_header
        _
      $region142: #{cbow_forward.2} parent=139 // loop_header
        %s191 = sphi 0, %s195
        %p192 = scmp.ge.s32.totalorder %s191, 1
        %s196 = sphi %s168, %s168
        %s197 = sphi %s169, %s169
      $region143: #{cbow_forward.2} parent=139 // loop_header_branch
        %194 = sbr.rel (%p192) target = $region147
      $region144: #{cbow_forward.2} parent=139 // loop_body
        %v198 = vld [vmem:[%s196] sm:%s189]
        %199 = vst [vmem:[%s197] sm:%s189] %v198
      $region145: #{cbow_forward.2} parent=139 // loop_footer
        %s195 = sadd.s32 1, %s191
      $region146: #{cbow_forward.2} parent=139 // loop_footer_branch
        %190 = sbr.rel target = $region142
      $region147: #{cbow_forward.2} parent=139 // loop_exit
        _
    $region140: #{cbow_forward.2} parent=124 // pred_fallthru
      _
  $region125: #{cbow_forward.2} parent=0 // pred_fallthru
    _
  // Predicated region
  $region126: #{cbow_forward.2} parent=0 // pred_check
    _
  $region127: #{cbow_forward.2} parent=0 // pred_check_branch
    %173 = sbr.rel (0) target = $region129
  $region128: #{cbow_forward.2} parent=0 // pred_region
    %s175 = ssub.s32 2, 1
    loop: start=0, step=1, limit=1
    $region130: #{cbow_forward.2} parent=128 // loop_pre_header
      _
    $region131: #{cbow_forward.2} parent=128 // loop_header
      %s177 = sphi 0, %s181
      %p178 = scmp.ge.s32.totalorder %s177, 1
      %s182 = sphi %s168, %s168
      %s183 = sphi %s169, %s169
    $region132: #{cbow_forward.2} parent=128 // loop_header_branch
      %180 = sbr.rel (%p178) target = $region136
    $region133: #{cbow_forward.2} parent=128 // loop_body
      %v184 = vld [vmem:[%s182] sm:%s175]
      %185 = vst [vmem:[%s183] sm:%s175] %v184
    $region134: #{cbow_forward.2} parent=128 // loop_footer
      %s181 = sadd.s32 1, %s177
    $region135: #{cbow_forward.2} parent=128 // loop_footer_branch
      %176 = sbr.rel target = $region131
    $region136: #{cbow_forward.2} parent=128 // loop_exit
      _
  $region129: #{cbow_forward.2} parent=0 // pred_fallthru
    _
  // Predicated region
  $region148: #{cbow_forward.2} parent=0 // pred_check
    _
  $region149: #{cbow_forward.2} parent=0 // pred_check_branch
    %202 = sbr.rel (0) target = $region151
  $region150: #{cbow_forward.2} parent=0 // pred_region
    %203 = vsyncadd [#allocation3], 16
  $region151: #{cbow_forward.2} parent=0 // pred_fallthru
    _
  %s204 = sadd.s32 %s15, 5
  %s205 = sld [smem:[#allocation5 + %s204]]
  %s206 = scalar_lea.vmem %s1, %s205
  %s207 = scalar_lea.vmem [#allocation2], 5
  // Predicated region
  $region152: #{cbow_forward.2} parent=0 // pred_check
    _
  $region153: #{cbow_forward.2} parent=0 // pred_check_branch
    %209 = sbr.rel target = $region155
  $region154: #{cbow_forward.2} parent=0 // pred_region
    // Predicated region
    $region167: #{cbow_forward.2} parent=154 // pred_check
      _
    $region168: #{cbow_forward.2} parent=154 // pred_check_branch
      %225 = sbr.rel (0) target = $region170
    $region169: #{cbow_forward.2} parent=154 // pred_region
      %s227 = ssub.s32 2, 1
      loop: start=0, step=1, limit=1
      $region171: #{cbow_forward.2} parent=169 // loop_pre_header
        _
      $region172: #{cbow_forward.2} parent=169 // loop_header
        %s229 = sphi 0, %s233
        %p230 = scmp.ge.s32.totalorder %s229, 1
        %s234 = sphi %s206, %s206
        %s235 = sphi %s207, %s207
      $region173: #{cbow_forward.2} parent=169 // loop_header_branch
        %232 = sbr.rel (%p230) target = $region177
      $region174: #{cbow_forward.2} parent=169 // loop_body
        %v236 = vld [vmem:[%s234] sm:%s227]
        %237 = vst [vmem:[%s235] sm:%s227] %v236
      $region175: #{cbow_forward.2} parent=169 // loop_footer
        %s233 = sadd.s32 1, %s229
      $region176: #{cbow_forward.2} parent=169 // loop_footer_branch
        %228 = sbr.rel target = $region172
      $region177: #{cbow_forward.2} parent=169 // loop_exit
        _
    $region170: #{cbow_forward.2} parent=154 // pred_fallthru
      _
  $region155: #{cbow_forward.2} parent=0 // pred_fallthru
    _
  // Predicated region
  $region156: #{cbow_forward.2} parent=0 // pred_check
    _
  $region157: #{cbow_forward.2} parent=0 // pred_check_branch
    %211 = sbr.rel (0) target = $region159
  $region158: #{cbow_forward.2} parent=0 // pred_region
    %s213 = ssub.s32 2, 1
    loop: start=0, step=1, limit=1
    $region160: #{cbow_forward.2} parent=158 // loop_pre_header
      _
    $region161: #{cbow_forward.2} parent=158 // loop_header
      %s215 = sphi 0, %s219
      %p216 = scmp.ge.s32.totalorder %s215, 1
      %s220 = sphi %s206, %s206
      %s221 = sphi %s207, %s207
    $region162: #{cbow_forward.2} parent=158 // loop_header_branch
      %218 = sbr.rel (%p216) target = $region166
    $region163: #{cbow_forward.2} parent=158 // loop_body
      %v222 = vld [vmem:[%s220] sm:%s213]
      %223 = vst [vmem:[%s221] sm:%s213] %v222
    $region164: #{cbow_forward.2} parent=158 // loop_footer
      %s219 = sadd.s32 1, %s215
    $region165: #{cbow_forward.2} parent=158 // loop_footer_branch
      %214 = sbr.rel target = $region161
    $region166: #{cbow_forward.2} parent=158 // loop_exit
      _
  $region159: #{cbow_forward.2} parent=0 // pred_fallthru
    _
  // Predicated region
  $region178: #{cbow_forward.2} parent=0 // pred_check
    _
  $region179: #{cbow_forward.2} parent=0 // pred_check_branch
    %240 = sbr.rel (0) target = $region181
  $region180: #{cbow_forward.2} parent=0 // pred_region
    %241 = vsyncadd [#allocation3], 16
  $region181: #{cbow_forward.2} parent=0 // pred_fallthru
    _
  %s242 = sadd.s32 %s15, 6
  %s243 = sld [smem:[#allocation5 + %s242]]
  %s244 = scalar_lea.vmem %s1, %s243
  %s245 = scalar_lea.vmem [#allocation2], 6
  // Predicated region
  $region182: #{cbow_forward.2} parent=0 // pred_check
    _
  $region183: #{cbow_forward.2} parent=0 // pred_check_branch
    %247 = sbr.rel target = $region185
  $region184: #{cbow_forward.2} parent=0 // pred_region
    // Predicated region
    $region197: #{cbow_forward.2} parent=184 // pred_check
      _
    $region198: #{cbow_forward.2} parent=184 // pred_check_branch
      %263 = sbr.rel (0) target = $region200
    $region199: #{cbow_forward.2} parent=184 // pred_region
      %s265 = ssub.s32 2, 1
      loop: start=0, step=1, limit=1
      $region201: #{cbow_forward.2} parent=199 // loop_pre_header
        _
      $region202: #{cbow_forward.2} parent=199 // loop_header
        %s267 = sphi 0, %s271
        %p268 = scmp.ge.s32.totalorder %s267, 1
        %s272 = sphi %s244, %s244
        %s273 = sphi %s245, %s245
      $region203: #{cbow_forward.2} parent=199 // loop_header_branch
        %270 = sbr.rel (%p268) target = $region207
      $region204: #{cbow_forward.2} parent=199 // loop_body
        %v274 = vld [vmem:[%s272] sm:%s265]
        %275 = vst [vmem:[%s273] sm:%s265] %v274
      $region205: #{cbow_forward.2} parent=199 // loop_footer
        %s271 = sadd.s32 1, %s267
      $region206: #{cbow_forward.2} parent=199 // loop_footer_branch
        %266 = sbr.rel target = $region202
      $region207: #{cbow_forward.2} parent=199 // loop_exit
        _
    $region200: #{cbow_forward.2} parent=184 // pred_fallthru
      _
  $region185: #{cbow_forward.2} parent=0 // pred_fallthru
    _
  // Predicated region
  $region186: #{cbow_forward.2} parent=0 // pred_check
    _
  $region187: #{cbow_forward.2} parent=0 // pred_check_branch
    %249 = sbr.rel (0) target = $region189
  $region188: #{cbow_forward.2} parent=0 // pred_region
    %s251 = ssub.s32 2, 1
    loop: start=0, step=1, limit=1
    $region190: #{cbow_forward.2} parent=188 // loop_pre_header
      _
    $region191: #{cbow_forward.2} parent=188 // loop_header
      %s253 = sphi 0, %s257
      %p254 = scmp.ge.s32.totalorder %s253, 1
      %s258 = sphi %s244, %s244
      %s259 = sphi %s245, %s245
    $region192: #{cbow_forward.2} parent=188 // loop_header_branch
      %256 = sbr.rel (%p254) target = $region196
    $region193: #{cbow_forward.2} parent=188 // loop_body
      %v260 = vld [vmem:[%s258] sm:%s251]
      %261 = vst [vmem:[%s259] sm:%s251] %v260
    $region194: #{cbow_forward.2} parent=188 // loop_footer
      %s257 = sadd.s32 1, %s253
    $region195: #{cbow_forward.2} parent=188 // loop_footer_branch
      %252 = sbr.rel target = $region191
    $region196: #{cbow_forward.2} parent=188 // loop_exit
      _
  $region189: #{cbow_forward.2} parent=0 // pred_fallthru
    _
  // Predicated region
  $region208: #{cbow_forward.2} parent=0 // pred_check
    _
  $region209: #{cbow_forward.2} parent=0 // pred_check_branch
    %278 = sbr.rel (0) target = $region211
  $region210: #{cbow_forward.2} parent=0 // pred_region
    %279 = vsyncadd [#allocation3], 16
  $region211: #{cbow_forward.2} parent=0 // pred_fallthru
    _
  %s280 = sadd.s32 %s15, 7
  %s281 = sld [smem:[#allocation5 + %s280]]
  %s282 = scalar_lea.vmem %s1, %s281
  %s283 = scalar_lea.vmem [#allocation2], 7
  // Predicated region
  $region212: #{cbow_forward.2} parent=0 // pred_check
    _
  $region213: #{cbow_forward.2} parent=0 // pred_check_branch
    %285 = sbr.rel target = $region215
  $region214: #{cbow_forward.2} parent=0 // pred_region
    // Predicated region
    $region227: #{cbow_forward.2} parent=214 // pred_check
      _
    $region228: #{cbow_forward.2} parent=214 // pred_check_branch
      %301 = sbr.rel (0) target = $region230
    $region229: #{cbow_forward.2} parent=214 // pred_region
      %s303 = ssub.s32 2, 1
      loop: start=0, step=1, limit=1
      $region231: #{cbow_forward.2} parent=229 // loop_pre_header
        _
      $region232: #{cbow_forward.2} parent=229 // loop_header
        %s305 = sphi 0, %s309
        %p306 = scmp.ge.s32.totalorder %s305, 1
        %s310 = sphi %s282, %s282
        %s311 = sphi %s283, %s283
      $region233: #{cbow_forward.2} parent=229 // loop_header_branch
        %308 = sbr.rel (%p306) target = $region237
      $region234: #{cbow_forward.2} parent=229 // loop_body
        %v312 = vld [vmem:[%s310] sm:%s303]
        %313 = vst [vmem:[%s311] sm:%s303] %v312
      $region235: #{cbow_forward.2} parent=229 // loop_footer
        %s309 = sadd.s32 1, %s305
      $region236: #{cbow_forward.2} parent=229 // loop_footer_branch
        %304 = sbr.rel target = $region232
      $region237: #{cbow_forward.2} parent=229 // loop_exit
        _
    $region230: #{cbow_forward.2} parent=214 // pred_fallthru
      _
  $region215: #{cbow_forward.2} parent=0 // pred_fallthru
    _
  // Predicated region
  $region216: #{cbow_forward.2} parent=0 // pred_check
    _
  $region217: #{cbow_forward.2} parent=0 // pred_check_branch
    %287 = sbr.rel (0) target = $region219
  $region218: #{cbow_forward.2} parent=0 // pred_region
    %s289 = ssub.s32 2, 1
    loop: start=0, step=1, limit=1
    $region220: #{cbow_forward.2} parent=218 // loop_pre_header
      _
    $region221: #{cbow_forward.2} parent=218 // loop_header
      %s291 = sphi 0, %s295
      %p292 = scmp.ge.s32.totalorder %s291, 1
      %s296 = sphi %s282, %s282
      %s297 = sphi %s283, %s283
    $region222: #{cbow_forward.2} parent=218 // loop_header_branch
      %294 = sbr.rel (%p292) target = $region226
    $region223: #{cbow_forward.2} parent=218 // loop_body
      %v298 = vld [vmem:[%s296] sm:%s289]
      %299 = vst [vmem:[%s297] sm:%s289] %v298
    $region224: #{cbow_forward.2} parent=218 // loop_footer
      %s295 = sadd.s32 1, %s291
    $region225: #{cbow_forward.2} parent=218 // loop_footer_branch
      %290 = sbr.rel target = $region221
    $region226: #{cbow_forward.2} parent=218 // loop_exit
      _
  $region219: #{cbow_forward.2} parent=0 // pred_fallthru
    _
  // Predicated region
  $region238: #{cbow_forward.2} parent=0 // pred_check
    _
  $region239: #{cbow_forward.2} parent=0 // pred_check_branch
    %316 = sbr.rel (0) target = $region241
  $region240: #{cbow_forward.2} parent=0 // pred_region
    %317 = vsyncadd [#allocation3], 16
  $region241: #{cbow_forward.2} parent=0 // pred_fallthru
    _
  %s318 = sadd.s32 %s15, 8
  %s319 = sld [smem:[#allocation5 + %s318]]
  %s320 = scalar_lea.vmem %s1, %s319
  %s321 = scalar_lea.vmem [#allocation2], 8
  // Predicated region
  $region242: #{cbow_forward.2} parent=0 // pred_check
    _
  $region243: #{cbow_forward.2} parent=0 // pred_check_branch
    %323 = sbr.rel target = $region245
  $region244: #{cbow_forward.2} parent=0 // pred_region
    // Predicated region
    $region257: #{cbow_forward.2} parent=244 // pred_check
      _
    $region258: #{cbow_forward.2} parent=244 // pred_check_branch
      %339 = sbr.rel (0) target = $region260
    $region259: #{cbow_forward.2} parent=244 // pred_region
      %s341 = ssub.s32 2, 1
      loop: start=0, step=1, limit=1
      $region261: #{cbow_forward.2} parent=259 // loop_pre_header
        _
      $region262: #{cbow_forward.2} parent=259 // loop_header
        %s343 = sphi 0, %s347
        %p344 = scmp.ge.s32.totalorder %s343, 1
        %s348 = sphi %s320, %s320
        %s349 = sphi %s321, %s321
      $region263: #{cbow_forward.2} parent=259 // loop_header_branch
        %346 = sbr.rel (%p344) target = $region267
      $region264: #{cbow_forward.2} parent=259 // loop_body
        %v350 = vld [vmem:[%s348] sm:%s341]
        %351 = vst [vmem:[%s349] sm:%s341] %v350
      $region265: #{cbow_forward.2} parent=259 // loop_footer
        %s347 = sadd.s32 1, %s343
      $region266: #{cbow_forward.2} parent=259 // loop_footer_branch
        %342 = sbr.rel target = $region262
      $region267: #{cbow_forward.2} parent=259 // loop_exit
        _
    $region260: #{cbow_forward.2} parent=244 // pred_fallthru
      _
  $region245: #{cbow_forward.2} parent=0 // pred_fallthru
    _
  // Predicated region
  $region246: #{cbow_forward.2} parent=0 // pred_check
    _
  $region247: #{cbow_forward.2} parent=0 // pred_check_branch
    %325 = sbr.rel (0) target = $region249
  $region248: #{cbow_forward.2} parent=0 // pred_region
    %s327 = ssub.s32 2, 1
    loop: start=0, step=1, limit=1
    $region250: #{cbow_forward.2} parent=248 // loop_pre_header
      _
    $region251: #{cbow_forward.2} parent=248 // loop_header
      %s329 = sphi 0, %s333
      %p330 = scmp.ge.s32.totalorder %s329, 1
      %s334 = sphi %s320, %s320
      %s335 = sphi %s321, %s321
    $region252: #{cbow_forward.2} parent=248 // loop_header_branch
      %332 = sbr.rel (%p330) target = $region256
    $region253: #{cbow_forward.2} parent=248 // loop_body
      %v336 = vld [vmem:[%s334] sm:%s327]
      %337 = vst [vmem:[%s335] sm:%s327] %v336
    $region254: #{cbow_forward.2} parent=248 // loop_footer
      %s333 = sadd.s32 1, %s329
    $region255: #{cbow_forward.2} parent=248 // loop_footer_branch
      %328 = sbr.rel target = $region251
    $region256: #{cbow_forward.2} parent=248 // loop_exit
      _
  $region249: #{cbow_forward.2} parent=0 // pred_fallthru
    _
  // Predicated region
  $region268: #{cbow_forward.2} parent=0 // pred_check
    _
  $region269: #{cbow_forward.2} parent=0 // pred_check_branch
    %354 = sbr.rel (0) target = $region271
  $region270: #{cbow_forward.2} parent=0 // pred_region
    %355 = vsyncadd [#allocation3], 16
  $region271: #{cbow_forward.2} parent=0 // pred_fallthru
    _
  %s356 = sadd.s32 %s15, 9
  %s357 = sld [smem:[#allocation5 + %s356]]
  %s358 = scalar_lea.vmem %s1, %s357
  %s359 = scalar_lea.vmem [#allocation2], 9
  // Predicated region
  $region272: #{cbow_forward.2} parent=0 // pred_check
    _
  $region273: #{cbow_forward.2} parent=0 // pred_check_branch
    %361 = sbr.rel target = $region275
  $region274: #{cbow_forward.2} parent=0 // pred_region
    // Predicated region
    $region287: #{cbow_forward.2} parent=274 // pred_check
      _
    $region288: #{cbow_forward.2} parent=274 // pred_check_branch
      %377 = sbr.rel (0) target = $region290
    $region289: #{cbow_forward.2} parent=274 // pred_region
      %s379 = ssub.s32 2, 1
      loop: start=0, step=1, limit=1
      $region291: #{cbow_forward.2} parent=289 // loop_pre_header
        _
      $region292: #{cbow_forward.2} parent=289 // loop_header
        %s381 = sphi 0, %s385
        %p382 = scmp.ge.s32.totalorder %s381, 1
        %s386 = sphi %s358, %s358
        %s387 = sphi %s359, %s359
      $region293: #{cbow_forward.2} parent=289 // loop_header_branch
        %384 = sbr.rel (%p382) target = $region297
      $region294: #{cbow_forward.2} parent=289 // loop_body
        %v388 = vld [vmem:[%s386] sm:%s379]
        %389 = vst [vmem:[%s387] sm:%s379] %v388
      $region295: #{cbow_forward.2} parent=289 // loop_footer
        %s385 = sadd.s32 1, %s381
      $region296: #{cbow_forward.2} parent=289 // loop_footer_branch
        %380 = sbr.rel target = $region292
      $region297: #{cbow_forward.2} parent=289 // loop_exit
        _
    $region290: #{cbow_forward.2} parent=274 // pred_fallthru
      _
  $region275: #{cbow_forward.2} parent=0 // pred_fallthru
    _
  // Predicated region
  $region276: #{cbow_forward.2} parent=0 // pred_check
    _
  $region277: #{cbow_forward.2} parent=0 // pred_check_branch
    %363 = sbr.rel (0) target = $region279
  $region278: #{cbow_forward.2} parent=0 // pred_region
    %s365 = ssub.s32 2, 1
    loop: start=0, step=1, limit=1
    $region280: #{cbow_forward.2} parent=278 // loop_pre_header
      _
    $region281: #{cbow_forward.2} parent=278 // loop_header
      %s367 = sphi 0, %s371
      %p368 = scmp.ge.s32.totalorder %s367, 1
      %s372 = sphi %s358, %s358
      %s373 = sphi %s359, %s359
    $region282: #{cbow_forward.2} parent=278 // loop_header_branch
      %370 = sbr.rel (%p368) target = $region286
    $region283: #{cbow_forward.2} parent=278 // loop_body
      %v374 = vld [vmem:[%s372] sm:%s365]
      %375 = vst [vmem:[%s373] sm:%s365] %v374
    $region284: #{cbow_forward.2} parent=278 // loop_footer
      %s371 = sadd.s32 1, %s367
    $region285: #{cbow_forward.2} parent=278 // loop_footer_branch
      %366 = sbr.rel target = $region281
    $region286: #{cbow_forward.2} parent=278 // loop_exit
      _
  $region279: #{cbow_forward.2} parent=0 // pred_fallthru
    _
  // Predicated region
  $region298: #{cbow_forward.2} parent=0 // pred_check
    _
  $region299: #{cbow_forward.2} parent=0 // pred_check_branch
    %392 = sbr.rel (0) target = $region301
  $region300: #{cbow_forward.2} parent=0 // pred_region
    %393 = vsyncadd [#allocation3], 16
  $region301: #{cbow_forward.2} parent=0 // pred_fallthru
    _
  %s394 = sadd.s32 %s15, 10
  %s395 = sld [smem:[#allocation5 + %s394]]
  %s396 = scalar_lea.vmem %s1, %s395
  %s397 = scalar_lea.vmem [#allocation2], 10
  // Predicated region
  $region302: #{cbow_forward.2} parent=0 // pred_check
    _
  $region303: #{cbow_forward.2} parent=0 // pred_check_branch
    %399 = sbr.rel target = $region305
  $region304: #{cbow_forward.2} parent=0 // pred_region
    // Predicated region
    $region317: #{cbow_forward.2} parent=304 // pred_check
      _
    $region318: #{cbow_forward.2} parent=304 // pred_check_branch
      %415 = sbr.rel (0) target = $region320
    $region319: #{cbow_forward.2} parent=304 // pred_region
      %s417 = ssub.s32 2, 1
      loop: start=0, step=1, limit=1
      $region321: #{cbow_forward.2} parent=319 // loop_pre_header
        _
      $region322: #{cbow_forward.2} parent=319 // loop_header
        %s419 = sphi 0, %s423
        %p420 = scmp.ge.s32.totalorder %s419, 1
        %s424 = sphi %s396, %s396
        %s425 = sphi %s397, %s397
      $region323: #{cbow_forward.2} parent=319 // loop_header_branch
        %422 = sbr.rel (%p420) target = $region327
      $region324: #{cbow_forward.2} parent=319 // loop_body
        %v426 = vld [vmem:[%s424] sm:%s417]
        %427 = vst [vmem:[%s425] sm:%s417] %v426
      $region325: #{cbow_forward.2} parent=319 // loop_footer
        %s423 = sadd.s32 1, %s419
      $region326: #{cbow_forward.2} parent=319 // loop_footer_branch
        %418 = sbr.rel target = $region322
      $region327: #{cbow_forward.2} parent=319 // loop_exit
        _
    $region320: #{cbow_forward.2} parent=304 // pred_fallthru
      _
  $region305: #{cbow_forward.2} parent=0 // pred_fallthru
    _
  // Predicated region
  $region306: #{cbow_forward.2} parent=0 // pred_check
    _
  $region307: #{cbow_forward.2} parent=0 // pred_check_branch
    %401 = sbr.rel (0) target = $region309
  $region308: #{cbow_forward.2} parent=0 // pred_region
    %s403 = ssub.s32 2, 1
    loop: start=0, step=1, limit=1
    $region310: #{cbow_forward.2} parent=308 // loop_pre_header
      _
    $region311: #{cbow_forward.2} parent=308 // loop_header
      %s405 = sphi 0, %s409
      %p406 = scmp.ge.s32.totalorder %s405, 1
      %s410 = sphi %s396, %s396
      %s411 = sphi %s397, %s397
    $region312: #{cbow_forward.2} parent=308 // loop_header_branch
      %408 = sbr.rel (%p406) target = $region316
    $region313: #{cbow_forward.2} parent=308 // loop_body
      %v412 = vld [vmem:[%s410] sm:%s403]
      %413 = vst [vmem:[%s411] sm:%s403] %v412
    $region314: #{cbow_forward.2} parent=308 // loop_footer
      %s409 = sadd.s32 1, %s405
    $region315: #{cbow_forward.2} parent=308 // loop_footer_branch
      %404 = sbr.rel target = $region311
    $region316: #{cbow_forward.2} parent=308 // loop_exit
      _
  $region309: #{cbow_forward.2} parent=0 // pred_fallthru
    _
  // Predicated region
  $region328: #{cbow_forward.2} parent=0 // pred_check
    _
  $region329: #{cbow_forward.2} parent=0 // pred_check_branch
    %430 = sbr.rel (0) target = $region331
  $region330: #{cbow_forward.2} parent=0 // pred_region
    %431 = vsyncadd [#allocation3], 16
  $region331: #{cbow_forward.2} parent=0 // pred_fallthru
    _
  %s432 = sadd.s32 %s15, 11
  %s433 = sld [smem:[#allocation5 + %s432]]
  %s434 = scalar_lea.vmem %s1, %s433
  %s435 = scalar_lea.vmem [#allocation2], 11
  // Predicated region
  $region332: #{cbow_forward.2} parent=0 // pred_check
    _
  $region333: #{cbow_forward.2} parent=0 // pred_check_branch
    %437 = sbr.rel target = $region335
  $region334: #{cbow_forward.2} parent=0 // pred_region
    // Predicated region
    $region347: #{cbow_forward.2} parent=334 // pred_check
      _
    $region348: #{cbow_forward.2} parent=334 // pred_check_branch
      %453 = sbr.rel (0) target = $region350
    $region349: #{cbow_forward.2} parent=334 // pred_region
      %s455 = ssub.s32 2, 1
      loop: start=0, step=1, limit=1
      $region351: #{cbow_forward.2} parent=349 // loop_pre_header
        _
      $region352: #{cbow_forward.2} parent=349 // loop_header
        %s457 = sphi 0, %s461
        %p458 = scmp.ge.s32.totalorder %s457, 1
        %s462 = sphi %s434, %s434
        %s463 = sphi %s435, %s435
      $region353: #{cbow_forward.2} parent=349 // loop_header_branch
        %460 = sbr.rel (%p458) target = $region357
      $region354: #{cbow_forward.2} parent=349 // loop_body
        %v464 = vld [vmem:[%s462] sm:%s455]
        %465 = vst [vmem:[%s463] sm:%s455] %v464
      $region355: #{cbow_forward.2} parent=349 // loop_footer
        %s461 = sadd.s32 1, %s457
      $region356: #{cbow_forward.2} parent=349 // loop_footer_branch
        %456 = sbr.rel target = $region352
      $region357: #{cbow_forward.2} parent=349 // loop_exit
        _
    $region350: #{cbow_forward.2} parent=334 // pred_fallthru
      _
  $region335: #{cbow_forward.2} parent=0 // pred_fallthru
    _
  // Predicated region
  $region336: #{cbow_forward.2} parent=0 // pred_check
    _
  $region337: #{cbow_forward.2} parent=0 // pred_check_branch
    %439 = sbr.rel (0) target = $region339
  $region338: #{cbow_forward.2} parent=0 // pred_region
    %s441 = ssub.s32 2, 1
    loop: start=0, step=1, limit=1
    $region340: #{cbow_forward.2} parent=338 // loop_pre_header
      _
    $region341: #{cbow_forward.2} parent=338 // loop_header
      %s443 = sphi 0, %s447
      %p444 = scmp.ge.s32.totalorder %s443, 1
      %s448 = sphi %s434, %s434
      %s449 = sphi %s435, %s435
    $region342: #{cbow_forward.2} parent=338 // loop_header_branch
      %446 = sbr.rel (%p444) target = $region346
    $region343: #{cbow_forward.2} parent=338 // loop_body
      %v450 = vld [vmem:[%s448] sm:%s441]
      %451 = vst [vmem:[%s449] sm:%s441] %v450
    $region344: #{cbow_forward.2} parent=338 // loop_footer
      %s447 = sadd.s32 1, %s443
    $region345: #{cbow_forward.2} parent=338 // loop_footer_branch
      %442 = sbr.rel target = $region341
    $region346: #{cbow_forward.2} parent=338 // loop_exit
      _
  $region339: #{cbow_forward.2} parent=0 // pred_fallthru
    _
  // Predicated region
  $region358: #{cbow_forward.2} parent=0 // pred_check
    _
  $region359: #{cbow_forward.2} parent=0 // pred_check_branch
    %468 = sbr.rel (0) target = $region361
  $region360: #{cbow_forward.2} parent=0 // pred_region
    %469 = vsyncadd [#allocation3], 16
  $region361: #{cbow_forward.2} parent=0 // pred_fallthru
    _
  %s470 = sadd.s32 %s15, 12
  %s471 = sld [smem:[#allocation5 + %s470]]
  %s472 = scalar_lea.vmem %s1, %s471
  %s473 = scalar_lea.vmem [#allocation2], 12
  // Predicated region
  $region362: #{cbow_forward.2} parent=0 // pred_check
    _
  $region363: #{cbow_forward.2} parent=0 // pred_check_branch
    %475 = sbr.rel target = $region365
  $region364: #{cbow_forward.2} parent=0 // pred_region
    // Predicated region
    $region377: #{cbow_forward.2} parent=364 // pred_check
      _
    $region378: #{cbow_forward.2} parent=364 // pred_check_branch
      %491 = sbr.rel (0) target = $region380
    $region379: #{cbow_forward.2} parent=364 // pred_region
      %s493 = ssub.s32 2, 1
      loop: start=0, step=1, limit=1
      $region381: #{cbow_forward.2} parent=379 // loop_pre_header
        _
      $region382: #{cbow_forward.2} parent=379 // loop_header
        %s495 = sphi 0, %s499
        %p496 = scmp.ge.s32.totalorder %s495, 1
        %s500 = sphi %s472, %s472
        %s501 = sphi %s473, %s473
      $region383: #{cbow_forward.2} parent=379 // loop_header_branch
        %498 = sbr.rel (%p496) target = $region387
      $region384: #{cbow_forward.2} parent=379 // loop_body
        %v502 = vld [vmem:[%s500] sm:%s493]
        %503 = vst [vmem:[%s501] sm:%s493] %v502
      $region385: #{cbow_forward.2} parent=379 // loop_footer
        %s499 = sadd.s32 1, %s495
      $region386: #{cbow_forward.2} parent=379 // loop_footer_branch
        %494 = sbr.rel target = $region382
      $region387: #{cbow_forward.2} parent=379 // loop_exit
        _
    $region380: #{cbow_forward.2} parent=364 // pred_fallthru
      _
  $region365: #{cbow_forward.2} parent=0 // pred_fallthru
    _
  // Predicated region
  $region366: #{cbow_forward.2} parent=0 // pred_check
    _
  $region367: #{cbow_forward.2} parent=0 // pred_check_branch
    %477 = sbr.rel (0) target = $region369
  $region368: #{cbow_forward.2} parent=0 // pred_region
    %s479 = ssub.s32 2, 1
    loop: start=0, step=1, limit=1
    $region370: #{cbow_forward.2} parent=368 // loop_pre_header
      _
    $region371: #{cbow_forward.2} parent=368 // loop_header
      %s481 = sphi 0, %s485
      %p482 = scmp.ge.s32.totalorder %s481, 1
      %s486 = sphi %s472, %s472
      %s487 = sphi %s473, %s473
    $region372: #{cbow_forward.2} parent=368 // loop_header_branch
      %484 = sbr.rel (%p482) target = $region376
    $region373: #{cbow_forward.2} parent=368 // loop_body
      %v488 = vld [vmem:[%s486] sm:%s479]
      %489 = vst [vmem:[%s487] sm:%s479] %v488
    $region374: #{cbow_forward.2} parent=368 // loop_footer
      %s485 = sadd.s32 1, %s481
    $region375: #{cbow_forward.2} parent=368 // loop_footer_branch
      %480 = sbr.rel target = $region371
    $region376: #{cbow_forward.2} parent=368 // loop_exit
      _
  $region369: #{cbow_forward.2} parent=0 // pred_fallthru
    _
  // Predicated region
  $region388: #{cbow_forward.2} parent=0 // pred_check
    _
  $region389: #{cbow_forward.2} parent=0 // pred_check_branch
    %506 = sbr.rel (0) target = $region391
  $region390: #{cbow_forward.2} parent=0 // pred_region
    %507 = vsyncadd [#allocation3], 16
  $region391: #{cbow_forward.2} parent=0 // pred_fallthru
    _
  %s508 = sadd.s32 %s15, 13
  %s509 = sld [smem:[#allocation5 + %s508]]
  %s510 = scalar_lea.vmem %s1, %s509
  %s511 = scalar_lea.vmem [#allocation2], 13
  // Predicated region
  $region392: #{cbow_forward.2} parent=0 // pred_check
    _
  $region393: #{cbow_forward.2} parent=0 // pred_check_branch
    %513 = sbr.rel target = $region395
  $region394: #{cbow_forward.2} parent=0 // pred_region
    // Predicated region
    $region407: #{cbow_forward.2} parent=394 // pred_check
      _
    $region408: #{cbow_forward.2} parent=394 // pred_check_branch
      %529 = sbr.rel (0) target = $region410
    $region409: #{cbow_forward.2} parent=394 // pred_region
      %s531 = ssub.s32 2, 1
      loop: start=0, step=1, limit=1
      $region411: #{cbow_forward.2} parent=409 // loop_pre_header
        _
      $region412: #{cbow_forward.2} parent=409 // loop_header
        %s533 = sphi 0, %s537
        %p534 = scmp.ge.s32.totalorder %s533, 1
        %s538 = sphi %s510, %s510
        %s539 = sphi %s511, %s511
      $region413: #{cbow_forward.2} parent=409 // loop_header_branch
        %536 = sbr.rel (%p534) target = $region417
      $region414: #{cbow_forward.2} parent=409 // loop_body
        %v540 = vld [vmem:[%s538] sm:%s531]
        %541 = vst [vmem:[%s539] sm:%s531] %v540
      $region415: #{cbow_forward.2} parent=409 // loop_footer
        %s537 = sadd.s32 1, %s533
      $region416: #{cbow_forward.2} parent=409 // loop_footer_branch
        %532 = sbr.rel target = $region412
      $region417: #{cbow_forward.2} parent=409 // loop_exit
        _
    $region410: #{cbow_forward.2} parent=394 // pred_fallthru
      _
  $region395: #{cbow_forward.2} parent=0 // pred_fallthru
    _
  // Predicated region
  $region396: #{cbow_forward.2} parent=0 // pred_check
    _
  $region397: #{cbow_forward.2} parent=0 // pred_check_branch
    %515 = sbr.rel (0) target = $region399
  $region398: #{cbow_forward.2} parent=0 // pred_region
    %s517 = ssub.s32 2, 1
    loop: start=0, step=1, limit=1
    $region400: #{cbow_forward.2} parent=398 // loop_pre_header
      _
    $region401: #{cbow_forward.2} parent=398 // loop_header
      %s519 = sphi 0, %s523
      %p520 = scmp.ge.s32.totalorder %s519, 1
      %s524 = sphi %s510, %s510
      %s525 = sphi %s511, %s511
    $region402: #{cbow_forward.2} parent=398 // loop_header_branch
      %522 = sbr.rel (%p520) target = $region406
    $region403: #{cbow_forward.2} parent=398 // loop_body
      %v526 = vld [vmem:[%s524] sm:%s517]
      %527 = vst [vmem:[%s525] sm:%s517] %v526
    $region404: #{cbow_forward.2} parent=398 // loop_footer
      %s523 = sadd.s32 1, %s519
    $region405: #{cbow_forward.2} parent=398 // loop_footer_branch
      %518 = sbr.rel target = $region401
    $region406: #{cbow_forward.2} parent=398 // loop_exit
      _
  $region399: #{cbow_forward.2} parent=0 // pred_fallthru
    _
  // Predicated region
  $region418: #{cbow_forward.2} parent=0 // pred_check
    _
  $region419: #{cbow_forward.2} parent=0 // pred_check_branch
    %544 = sbr.rel (0) target = $region421
  $region420: #{cbow_forward.2} parent=0 // pred_region
    %545 = vsyncadd [#allocation3], 16
  $region421: #{cbow_forward.2} parent=0 // pred_fallthru
    _
  %s546 = sadd.s32 %s15, 14
  %s547 = sld [smem:[#allocation5 + %s546]]
  %s548 = scalar_lea.vmem %s1, %s547
  %s549 = scalar_lea.vmem [#allocation2], 14
  // Predicated region
  $region422: #{cbow_forward.2} parent=0 // pred_check
    _
  $region423: #{cbow_forward.2} parent=0 // pred_check_branch
    %551 = sbr.rel target = $region425
  $region424: #{cbow_forward.2} parent=0 // pred_region
    // Predicated region
    $region437: #{cbow_forward.2} parent=424 // pred_check
      _
    $region438: #{cbow_forward.2} parent=424 // pred_check_branch
      %567 = sbr.rel (0) target = $region440
    $region439: #{cbow_forward.2} parent=424 // pred_region
      %s569 = ssub.s32 2, 1
      loop: start=0, step=1, limit=1
      $region441: #{cbow_forward.2} parent=439 // loop_pre_header
        _
      $region442: #{cbow_forward.2} parent=439 // loop_header
        %s571 = sphi 0, %s575
        %p572 = scmp.ge.s32.totalorder %s571, 1
        %s576 = sphi %s548, %s548
        %s577 = sphi %s549, %s549
      $region443: #{cbow_forward.2} parent=439 // loop_header_branch
        %574 = sbr.rel (%p572) target = $region447
      $region444: #{cbow_forward.2} parent=439 // loop_body
        %v578 = vld [vmem:[%s576] sm:%s569]
        %579 = vst [vmem:[%s577] sm:%s569] %v578
      $region445: #{cbow_forward.2} parent=439 // loop_footer
        %s575 = sadd.s32 1, %s571
      $region446: #{cbow_forward.2} parent=439 // loop_footer_branch
        %570 = sbr.rel target = $region442
      $region447: #{cbow_forward.2} parent=439 // loop_exit
        _
    $region440: #{cbow_forward.2} parent=424 // pred_fallthru
      _
  $region425: #{cbow_forward.2} parent=0 // pred_fallthru
    _
  // Predicated region
  $region426: #{cbow_forward.2} parent=0 // pred_check
    _
  $region427: #{cbow_forward.2} parent=0 // pred_check_branch
    %553 = sbr.rel (0) target = $region429
  $region428: #{cbow_forward.2} parent=0 // pred_region
    %s555 = ssub.s32 2, 1
    loop: start=0, step=1, limit=1
    $region430: #{cbow_forward.2} parent=428 // loop_pre_header
      _
    $region431: #{cbow_forward.2} parent=428 // loop_header
      %s557 = sphi 0, %s561
      %p558 = scmp.ge.s32.totalorder %s557, 1
      %s562 = sphi %s548, %s548
      %s563 = sphi %s549, %s549
    $region432: #{cbow_forward.2} parent=428 // loop_header_branch
      %560 = sbr.rel (%p558) target = $region436
    $region433: #{cbow_forward.2} parent=428 // loop_body
      %v564 = vld [vmem:[%s562] sm:%s555]
      %565 = vst [vmem:[%s563] sm:%s555] %v564
    $region434: #{cbow_forward.2} parent=428 // loop_footer
      %s561 = sadd.s32 1, %s557
    $region435: #{cbow_forward.2} parent=428 // loop_footer_branch
      %556 = sbr.rel target = $region431
    $region436: #{cbow_forward.2} parent=428 // loop_exit
      _
  $region429: #{cbow_forward.2} parent=0 // pred_fallthru
    _
  // Predicated region
  $region448: #{cbow_forward.2} parent=0 // pred_check
    _
  $region449: #{cbow_forward.2} parent=0 // pred_check_branch
    %582 = sbr.rel (0) target = $region451
  $region450: #{cbow_forward.2} parent=0 // pred_region
    %583 = vsyncadd [#allocation3], 16
  $region451: #{cbow_forward.2} parent=0 // pred_fallthru
    _
  %s584 = sadd.s32 %s15, 15
  %s585 = sld [smem:[#allocation5 + %s584]]
  %s586 = scalar_lea.vmem %s1, %s585
  %s587 = scalar_lea.vmem [#allocation2], 15
  // Predicated region
  $region452: #{cbow_forward.2} parent=0 // pred_check
    _
  $region453: #{cbow_forward.2} parent=0 // pred_check_branch
    %589 = sbr.rel target = $region455
  $region454: #{cbow_forward.2} parent=0 // pred_region
    // Predicated region
    $region467: #{cbow_forward.2} parent=454 // pred_check
      _
    $region468: #{cbow_forward.2} parent=454 // pred_check_branch
      %605 = sbr.rel (0) target = $region470
    $region469: #{cbow_forward.2} parent=454 // pred_region
      %s607 = ssub.s32 2, 1
      loop: start=0, step=1, limit=1
      $region471: #{cbow_forward.2} parent=469 // loop_pre_header
        _
      $region472: #{cbow_forward.2} parent=469 // loop_header
        %s609 = sphi 0, %s613
        %p610 = scmp.ge.s32.totalorder %s609, 1
        %s614 = sphi %s586, %s586
        %s615 = sphi %s587, %s587
      $region473: #{cbow_forward.2} parent=469 // loop_header_branch
        %612 = sbr.rel (%p610) target = $region477
      $region474: #{cbow_forward.2} parent=469 // loop_body
        %v616 = vld [vmem:[%s614] sm:%s607]
        %617 = vst [vmem:[%s615] sm:%s607] %v616
      $region475: #{cbow_forward.2} parent=469 // loop_footer
        %s613 = sadd.s32 1, %s609
      $region476: #{cbow_forward.2} parent=469 // loop_footer_branch
        %608 = sbr.rel target = $region472
      $region477: #{cbow_forward.2} parent=469 // loop_exit
        _
    $region470: #{cbow_forward.2} parent=454 // pred_fallthru
      _
  $region455: #{cbow_forward.2} parent=0 // pred_fallthru
    _
  // Predicated region
  $region456: #{cbow_forward.2} parent=0 // pred_check
    _
  $region457: #{cbow_forward.2} parent=0 // pred_check_branch
    %591 = sbr.rel (0) target = $region459
  $region458: #{cbow_forward.2} parent=0 // pred_region
    %s593 = ssub.s32 2, 1
    loop: start=0, step=1, limit=1
    $region460: #{cbow_forward.2} parent=458 // loop_pre_header
      _
    $region461: #{cbow_forward.2} parent=458 // loop_header
      %s595 = sphi 0, %s599
      %p596 = scmp.ge.s32.totalorder %s595, 1
      %s600 = sphi %s586, %s586
      %s601 = sphi %s587, %s587
    $region462: #{cbow_forward.2} parent=458 // loop_header_branch
      %598 = sbr.rel (%p596) target = $region466
    $region463: #{cbow_forward.2} parent=458 // loop_body
      %v602 = vld [vmem:[%s600] sm:%s593]
      %603 = vst [vmem:[%s601] sm:%s593] %v602
    $region464: #{cbow_forward.2} parent=458 // loop_footer
      %s599 = sadd.s32 1, %s595
    $region465: #{cbow_forward.2} parent=458 // loop_footer_branch
      %594 = sbr.rel target = $region461
    $region466: #{cbow_forward.2} parent=458 // loop_exit
      _
  $region459: #{cbow_forward.2} parent=0 // pred_fallthru
    _
  // Predicated region
  $region478: #{cbow_forward.2} parent=0 // pred_check
    _
  $region479: #{cbow_forward.2} parent=0 // pred_check_branch
    %620 = sbr.rel (0) target = $region481
  $region480: #{cbow_forward.2} parent=0 // pred_region
    %621 = vsyncadd [#allocation3], 16
  $region481: #{cbow_forward.2} parent=0 // pred_fallthru
    _
  %s622 = sadd.s32 %s15, 16
  %s623 = sld [smem:[#allocation5 + %s622]]
  %s624 = scalar_lea.vmem %s1, %s623
  %s625 = scalar_lea.vmem [#allocation2], 16
  // Predicated region
  $region482: #{cbow_forward.2} parent=0 // pred_check
    _
  $region483: #{cbow_forward.2} parent=0 // pred_check_branch
    %627 = sbr.rel target = $region485
  $region484: #{cbow_forward.2} parent=0 // pred_region
    // Predicated region
    $region497: #{cbow_forward.2} parent=484 // pred_check
      _
    $region498: #{cbow_forward.2} parent=484 // pred_check_branch
      %643 = sbr.rel (0) target = $region500
    $region499: #{cbow_forward.2} parent=484 // pred_region
      %s645 = ssub.s32 2, 1
      loop: start=0, step=1, limit=1
      $region501: #{cbow_forward.2} parent=499 // loop_pre_header
        _
      $region502: #{cbow_forward.2} parent=499 // loop_header
        %s647 = sphi 0, %s651
        %p648 = scmp.ge.s32.totalorder %s647, 1
        %s652 = sphi %s624, %s624
        %s653 = sphi %s625, %s625
      $region503: #{cbow_forward.2} parent=499 // loop_header_branch
        %650 = sbr.rel (%p648) target = $region507
      $region504: #{cbow_forward.2} parent=499 // loop_body
        %v654 = vld [vmem:[%s652] sm:%s645]
        %655 = vst [vmem:[%s653] sm:%s645] %v654
      $region505: #{cbow_forward.2} parent=499 // loop_footer
        %s651 = sadd.s32 1, %s647
      $region506: #{cbow_forward.2} parent=499 // loop_footer_branch
        %646 = sbr.rel target = $region502
      $region507: #{cbow_forward.2} parent=499 // loop_exit
        _
    $region500: #{cbow_forward.2} parent=484 // pred_fallthru
      _
  $region485: #{cbow_forward.2} parent=0 // pred_fallthru
    _
  // Predicated region
  $region486: #{cbow_forward.2} parent=0 // pred_check
    _
  $region487: #{cbow_forward.2} parent=0 // pred_check_branch
    %629 = sbr.rel (0) target = $region489
  $region488: #{cbow_forward.2} parent=0 // pred_region
    %s631 = ssub.s32 2, 1
    loop: start=0, step=1, limit=1
    $region490: #{cbow_forward.2} parent=488 // loop_pre_header
      _
    $region491: #{cbow_forward.2} parent=488 // loop_header
      %s633 = sphi 0, %s637
      %p634 = scmp.ge.s32.totalorder %s633, 1
      %s638 = sphi %s624, %s624
      %s639 = sphi %s625, %s625
    $region492: #{cbow_forward.2} parent=488 // loop_header_branch
      %636 = sbr.rel (%p634) target = $region496
    $region493: #{cbow_forward.2} parent=488 // loop_body
      %v640 = vld [vmem:[%s638] sm:%s631]
      %641 = vst [vmem:[%s639] sm:%s631] %v640
    $region494: #{cbow_forward.2} parent=488 // loop_footer
      %s637 = sadd.s32 1, %s633
    $region495: #{cbow_forward.2} parent=488 // loop_footer_branch
      %632 = sbr.rel target = $region491
    $region496: #{cbow_forward.2} parent=488 // loop_exit
      _
  $region489: #{cbow_forward.2} parent=0 // pred_fallthru
    _
  // Predicated region
  $region508: #{cbow_forward.2} parent=0 // pred_check
    _
  $region509: #{cbow_forward.2} parent=0 // pred_check_branch
    %658 = sbr.rel (0) target = $region511
  $region510: #{cbow_forward.2} parent=0 // pred_region
    %659 = vsyncadd [#allocation3], 16
  $region511: #{cbow_forward.2} parent=0 // pred_fallthru
    _
  %s660 = sadd.s32 %s15, 17
  %s661 = sld [smem:[#allocation5 + %s660]]
  %s662 = scalar_lea.vmem %s1, %s661
  %s663 = scalar_lea.vmem [#allocation2], 17
  // Predicated region
  $region512: #{cbow_forward.2} parent=0 // pred_check
    _
  $region513: #{cbow_forward.2} parent=0 // pred_check_branch
    %665 = sbr.rel target = $region515
  $region514: #{cbow_forward.2} parent=0 // pred_region
    // Predicated region
    $region527: #{cbow_forward.2} parent=514 // pred_check
      _
    $region528: #{cbow_forward.2} parent=514 // pred_check_branch
      %681 = sbr.rel (0) target = $region530
    $region529: #{cbow_forward.2} parent=514 // pred_region
      %s683 = ssub.s32 2, 1
      loop: start=0, step=1, limit=1
      $region531: #{cbow_forward.2} parent=529 // loop_pre_header
        _
      $region532: #{cbow_forward.2} parent=529 // loop_header
        %s685 = sphi 0, %s689
        %p686 = scmp.ge.s32.totalorder %s685, 1
        %s690 = sphi %s662, %s662
        %s691 = sphi %s663, %s663
      $region533: #{cbow_forward.2} parent=529 // loop_header_branch
        %688 = sbr.rel (%p686) target = $region537
      $region534: #{cbow_forward.2} parent=529 // loop_body
        %v692 = vld [vmem:[%s690] sm:%s683]
        %693 = vst [vmem:[%s691] sm:%s683] %v692
      $region535: #{cbow_forward.2} parent=529 // loop_footer
        %s689 = sadd.s32 1, %s685
      $region536: #{cbow_forward.2} parent=529 // loop_footer_branch
        %684 = sbr.rel target = $region532
      $region537: #{cbow_forward.2} parent=529 // loop_exit
        _
    $region530: #{cbow_forward.2} parent=514 // pred_fallthru
      _
  $region515: #{cbow_forward.2} parent=0 // pred_fallthru
    _
  // Predicated region
  $region516: #{cbow_forward.2} parent=0 // pred_check
    _
  $region517: #{cbow_forward.2} parent=0 // pred_check_branch
    %667 = sbr.rel (0) target = $region519
  $region518: #{cbow_forward.2} parent=0 // pred_region
    %s669 = ssub.s32 2, 1
    loop: start=0, step=1, limit=1
    $region520: #{cbow_forward.2} parent=518 // loop_pre_header
      _
    $region521: #{cbow_forward.2} parent=518 // loop_header
      %s671 = sphi 0, %s675
      %p672 = scmp.ge.s32.totalorder %s671, 1
      %s676 = sphi %s662, %s662
      %s677 = sphi %s663, %s663
    $region522: #{cbow_forward.2} parent=518 // loop_header_branch
      %674 = sbr.rel (%p672) target = $region526
    $region523: #{cbow_forward.2} parent=518 // loop_body
      %v678 = vld [vmem:[%s676] sm:%s669]
      %679 = vst [vmem:[%s677] sm:%s669] %v678
    $region524: #{cbow_forward.2} parent=518 // loop_footer
      %s675 = sadd.s32 1, %s671
    $region525: #{cbow_forward.2} parent=518 // loop_footer_branch
      %670 = sbr.rel target = $region521
    $region526: #{cbow_forward.2} parent=518 // loop_exit
      _
  $region519: #{cbow_forward.2} parent=0 // pred_fallthru
    _
  // Predicated region
  $region538: #{cbow_forward.2} parent=0 // pred_check
    _
  $region539: #{cbow_forward.2} parent=0 // pred_check_branch
    %696 = sbr.rel (0) target = $region541
  $region540: #{cbow_forward.2} parent=0 // pred_region
    %697 = vsyncadd [#allocation3], 16
  $region541: #{cbow_forward.2} parent=0 // pred_fallthru
    _
  %s698 = sadd.s32 %s15, 18
  %s699 = sld [smem:[#allocation5 + %s698]]
  %s700 = scalar_lea.vmem %s1, %s699
  %s701 = scalar_lea.vmem [#allocation2], 18
  // Predicated region
  $region542: #{cbow_forward.2} parent=0 // pred_check
    _
  $region543: #{cbow_forward.2} parent=0 // pred_check_branch
    %703 = sbr.rel target = $region545
  $region544: #{cbow_forward.2} parent=0 // pred_region
    // Predicated region
    $region557: #{cbow_forward.2} parent=544 // pred_check
      _
    $region558: #{cbow_forward.2} parent=544 // pred_check_branch
      %719 = sbr.rel (0) target = $region560
    $region559: #{cbow_forward.2} parent=544 // pred_region
      %s721 = ssub.s32 2, 1
      loop: start=0, step=1, limit=1
      $region561: #{cbow_forward.2} parent=559 // loop_pre_header
        _
      $region562: #{cbow_forward.2} parent=559 // loop_header
        %s723 = sphi 0, %s727
        %p724 = scmp.ge.s32.totalorder %s723, 1
        %s728 = sphi %s700, %s700
        %s729 = sphi %s701, %s701
      $region563: #{cbow_forward.2} parent=559 // loop_header_branch
        %726 = sbr.rel (%p724) target = $region567
      $region564: #{cbow_forward.2} parent=559 // loop_body
        %v730 = vld [vmem:[%s728] sm:%s721]
        %731 = vst [vmem:[%s729] sm:%s721] %v730
      $region565: #{cbow_forward.2} parent=559 // loop_footer
        %s727 = sadd.s32 1, %s723
      $region566: #{cbow_forward.2} parent=559 // loop_footer_branch
        %722 = sbr.rel target = $region562
      $region567: #{cbow_forward.2} parent=559 // loop_exit
        _
    $region560: #{cbow_forward.2} parent=544 // pred_fallthru
      _
  $region545: #{cbow_forward.2} parent=0 // pred_fallthru
    _
  // Predicated region
  $region546: #{cbow_forward.2} parent=0 // pred_check
    _
  $region547: #{cbow_forward.2} parent=0 // pred_check_branch
    %705 = sbr.rel (0) target = $region549
  $region548: #{cbow_forward.2} parent=0 // pred_region
    %s707 = ssub.s32 2, 1
    loop: start=0, step=1, limit=1
    $region550: #{cbow_forward.2} parent=548 // loop_pre_header
      _
    $region551: #{cbow_forward.2} parent=548 // loop_header
      %s709 = sphi 0, %s713
      %p710 = scmp.ge.s32.totalorder %s709, 1
      %s714 = sphi %s700, %s700
      %s715 = sphi %s701, %s701
    $region552: #{cbow_forward.2} parent=548 // loop_header_branch
      %712 = sbr.rel (%p710) target = $region556
    $region553: #{cbow_forward.2} parent=548 // loop_body
      %v716 = vld [vmem:[%s714] sm:%s707]
      %717 = vst [vmem:[%s715] sm:%s707] %v716
    $region554: #{cbow_forward.2} parent=548 // loop_footer
      %s713 = sadd.s32 1, %s709
    $region555: #{cbow_forward.2} parent=548 // loop_footer_branch
      %708 = sbr.rel target = $region551
    $region556: #{cbow_forward.2} parent=548 // loop_exit
      _
  $region549: #{cbow_forward.2} parent=0 // pred_fallthru
    _
  // Predicated region
  $region568: #{cbow_forward.2} parent=0 // pred_check
    _
  $region569: #{cbow_forward.2} parent=0 // pred_check_branch
    %734 = sbr.rel (0) target = $region571
  $region570: #{cbow_forward.2} parent=0 // pred_region
    %735 = vsyncadd [#allocation3], 16
  $region571: #{cbow_forward.2} parent=0 // pred_fallthru
    _
  %s736 = sadd.s32 %s15, 19
  %s737 = sld [smem:[#allocation5 + %s736]]
  %s738 = scalar_lea.vmem %s1, %s737
  %s739 = scalar_lea.vmem [#allocation2], 19
  // Predicated region
  $region572: #{cbow_forward.2} parent=0 // pred_check
    _
  $region573: #{cbow_forward.2} parent=0 // pred_check_branch
    %741 = sbr.rel target = $region575
  $region574: #{cbow_forward.2} parent=0 // pred_region
    // Predicated region
    $region587: #{cbow_forward.2} parent=574 // pred_check
      _
    $region588: #{cbow_forward.2} parent=574 // pred_check_branch
      %757 = sbr.rel (0) target = $region590
    $region589: #{cbow_forward.2} parent=574 // pred_region
      %s759 = ssub.s32 2, 1
      loop: start=0, step=1, limit=1
      $region591: #{cbow_forward.2} parent=589 // loop_pre_header
        _
      $region592: #{cbow_forward.2} parent=589 // loop_header
        %s761 = sphi 0, %s765
        %p762 = scmp.ge.s32.totalorder %s761, 1
        %s766 = sphi %s738, %s738
        %s767 = sphi %s739, %s739
      $region593: #{cbow_forward.2} parent=589 // loop_header_branch
        %764 = sbr.rel (%p762) target = $region597
      $region594: #{cbow_forward.2} parent=589 // loop_body
        %v768 = vld [vmem:[%s766] sm:%s759]
        %769 = vst [vmem:[%s767] sm:%s759] %v768
      $region595: #{cbow_forward.2} parent=589 // loop_footer
        %s765 = sadd.s32 1, %s761
      $region596: #{cbow_forward.2} parent=589 // loop_footer_branch
        %760 = sbr.rel target = $region592
      $region597: #{cbow_forward.2} parent=589 // loop_exit
        _
    $region590: #{cbow_forward.2} parent=574 // pred_fallthru
      _
  $region575: #{cbow_forward.2} parent=0 // pred_fallthru
    _
  // Predicated region
  $region576: #{cbow_forward.2} parent=0 // pred_check
    _
  $region577: #{cbow_forward.2} parent=0 // pred_check_branch
    %743 = sbr.rel (0) target = $region579
  $region578: #{cbow_forward.2} parent=0 // pred_region
    %s745 = ssub.s32 2, 1
    loop: start=0, step=1, limit=1
    $region580: #{cbow_forward.2} parent=578 // loop_pre_header
      _
    $region581: #{cbow_forward.2} parent=578 // loop_header
      %s747 = sphi 0, %s751
      %p748 = scmp.ge.s32.totalorder %s747, 1
      %s752 = sphi %s738, %s738
      %s753 = sphi %s739, %s739
    $region582: #{cbow_forward.2} parent=578 // loop_header_branch
      %750 = sbr.rel (%p748) target = $region586
    $region583: #{cbow_forward.2} parent=578 // loop_body
      %v754 = vld [vmem:[%s752] sm:%s745]
      %755 = vst [vmem:[%s753] sm:%s745] %v754
    $region584: #{cbow_forward.2} parent=578 // loop_footer
      %s751 = sadd.s32 1, %s747
    $region585: #{cbow_forward.2} parent=578 // loop_footer_branch
      %746 = sbr.rel target = $region581
    $region586: #{cbow_forward.2} parent=578 // loop_exit
      _
  $region579: #{cbow_forward.2} parent=0 // pred_fallthru
    _
  // Predicated region
  $region598: #{cbow_forward.2} parent=0 // pred_check
    _
  $region599: #{cbow_forward.2} parent=0 // pred_check_branch
    %772 = sbr.rel (0) target = $region601
  $region600: #{cbow_forward.2} parent=0 // pred_region
    %773 = vsyncadd [#allocation3], 16
  $region601: #{cbow_forward.2} parent=0 // pred_fallthru
    _
  %s774 = sadd.s32 %s15, 20
  %s775 = sld [smem:[#allocation5 + %s774]]
  %s776 = scalar_lea.vmem %s1, %s775
  %s777 = scalar_lea.vmem [#allocation2], 20
  // Predicated region
  $region602: #{cbow_forward.2} parent=0 // pred_check
    _
  $region603: #{cbow_forward.2} parent=0 // pred_check_branch
    %779 = sbr.rel target = $region605
  $region604: #{cbow_forward.2} parent=0 // pred_region
    // Predicated region
    $region617: #{cbow_forward.2} parent=604 // pred_check
      _
    $region618: #{cbow_forward.2} parent=604 // pred_check_branch
      %795 = sbr.rel (0) target = $region620
    $region619: #{cbow_forward.2} parent=604 // pred_region
      %s797 = ssub.s32 2, 1
      loop: start=0, step=1, limit=1
      $region621: #{cbow_forward.2} parent=619 // loop_pre_header
        _
      $region622: #{cbow_forward.2} parent=619 // loop_header
        %s799 = sphi 0, %s803
        %p800 = scmp.ge.s32.totalorder %s799, 1
        %s804 = sphi %s776, %s776
        %s805 = sphi %s777, %s777
      $region623: #{cbow_forward.2} parent=619 // loop_header_branch
        %802 = sbr.rel (%p800) target = $region627
      $region624: #{cbow_forward.2} parent=619 // loop_body
        %v806 = vld [vmem:[%s804] sm:%s797]
        %807 = vst [vmem:[%s805] sm:%s797] %v806
      $region625: #{cbow_forward.2} parent=619 // loop_footer
        %s803 = sadd.s32 1, %s799
      $region626: #{cbow_forward.2} parent=619 // loop_footer_branch
        %798 = sbr.rel target = $region622
      $region627: #{cbow_forward.2} parent=619 // loop_exit
        _
    $region620: #{cbow_forward.2} parent=604 // pred_fallthru
      _
  $region605: #{cbow_forward.2} parent=0 // pred_fallthru
    _
  // Predicated region
  $region606: #{cbow_forward.2} parent=0 // pred_check
    _
  $region607: #{cbow_forward.2} parent=0 // pred_check_branch
    %781 = sbr.rel (0) target = $region609
  $region608: #{cbow_forward.2} parent=0 // pred_region
    %s783 = ssub.s32 2, 1
    loop: start=0, step=1, limit=1
    $region610: #{cbow_forward.2} parent=608 // loop_pre_header
      _
    $region611: #{cbow_forward.2} parent=608 // loop_header
      %s785 = sphi 0, %s789
      %p786 = scmp.ge.s32.totalorder %s785, 1
      %s790 = sphi %s776, %s776
      %s791 = sphi %s777, %s777
    $region612: #{cbow_forward.2} parent=608 // loop_header_branch
      %788 = sbr.rel (%p786) target = $region616
    $region613: #{cbow_forward.2} parent=608 // loop_body
      %v792 = vld [vmem:[%s790] sm:%s783]
      %793 = vst [vmem:[%s791] sm:%s783] %v792
    $region614: #{cbow_forward.2} parent=608 // loop_footer
      %s789 = sadd.s32 1, %s785
    $region615: #{cbow_forward.2} parent=608 // loop_footer_branch
      %784 = sbr.rel target = $region611
    $region616: #{cbow_forward.2} parent=608 // loop_exit
      _
  $region609: #{cbow_forward.2} parent=0 // pred_fallthru
    _
  // Predicated region
  $region628: #{cbow_forward.2} parent=0 // pred_check
    _
  $region629: #{cbow_forward.2} parent=0 // pred_check_branch
    %810 = sbr.rel (0) target = $region631
  $region630: #{cbow_forward.2} parent=0 // pred_region
    %811 = vsyncadd [#allocation3], 16
  $region631: #{cbow_forward.2} parent=0 // pred_fallthru
    _
  %s812 = sadd.s32 %s15, 21
  %s813 = sld [smem:[#allocation5 + %s812]]
  %s814 = scalar_lea.vmem %s1, %s813
  %s815 = scalar_lea.vmem [#allocation2], 21
  // Predicated region
  $region632: #{cbow_forward.2} parent=0 // pred_check
    _
  $region633: #{cbow_forward.2} parent=0 // pred_check_branch
    %817 = sbr.rel target = $region635
  $region634: #{cbow_forward.2} parent=0 // pred_region
    // Predicated region
    $region647: #{cbow_forward.2} parent=634 // pred_check
      _
    $region648: #{cbow_forward.2} parent=634 // pred_check_branch
      %833 = sbr.rel (0) target = $region650
    $region649: #{cbow_forward.2} parent=634 // pred_region
      %s835 = ssub.s32 2, 1
      loop: start=0, step=1, limit=1
      $region651: #{cbow_forward.2} parent=649 // loop_pre_header
        _
      $region652: #{cbow_forward.2} parent=649 // loop_header
        %s837 = sphi 0, %s841
        %p838 = scmp.ge.s32.totalorder %s837, 1
        %s842 = sphi %s814, %s814
        %s843 = sphi %s815, %s815
      $region653: #{cbow_forward.2} parent=649 // loop_header_branch
        %840 = sbr.rel (%p838) target = $region657
      $region654: #{cbow_forward.2} parent=649 // loop_body
        %v844 = vld [vmem:[%s842] sm:%s835]
        %845 = vst [vmem:[%s843] sm:%s835] %v844
      $region655: #{cbow_forward.2} parent=649 // loop_footer
        %s841 = sadd.s32 1, %s837
      $region656: #{cbow_forward.2} parent=649 // loop_footer_branch
        %836 = sbr.rel target = $region652
      $region657: #{cbow_forward.2} parent=649 // loop_exit
        _
    $region650: #{cbow_forward.2} parent=634 // pred_fallthru
      _
  $region635: #{cbow_forward.2} parent=0 // pred_fallthru
    _
  // Predicated region
  $region636: #{cbow_forward.2} parent=0 // pred_check
    _
  $region637: #{cbow_forward.2} parent=0 // pred_check_branch
    %819 = sbr.rel (0) target = $region639
  $region638: #{cbow_forward.2} parent=0 // pred_region
    %s821 = ssub.s32 2, 1
    loop: start=0, step=1, limit=1
    $region640: #{cbow_forward.2} parent=638 // loop_pre_header
      _
    $region641: #{cbow_forward.2} parent=638 // loop_header
      %s823 = sphi 0, %s827
      %p824 = scmp.ge.s32.totalorder %s823, 1
      %s828 = sphi %s814, %s814
      %s829 = sphi %s815, %s815
    $region642: #{cbow_forward.2} parent=638 // loop_header_branch
      %826 = sbr.rel (%p824) target = $region646
    $region643: #{cbow_forward.2} parent=638 // loop_body
      %v830 = vld [vmem:[%s828] sm:%s821]
      %831 = vst [vmem:[%s829] sm:%s821] %v830
    $region644: #{cbow_forward.2} parent=638 // loop_footer
      %s827 = sadd.s32 1, %s823
    $region645: #{cbow_forward.2} parent=638 // loop_footer_branch
      %822 = sbr.rel target = $region641
    $region646: #{cbow_forward.2} parent=638 // loop_exit
      _
  $region639: #{cbow_forward.2} parent=0 // pred_fallthru
    _
  // Predicated region
  $region658: #{cbow_forward.2} parent=0 // pred_check
    _
  $region659: #{cbow_forward.2} parent=0 // pred_check_branch
    %848 = sbr.rel (0) target = $region661
  $region660: #{cbow_forward.2} parent=0 // pred_region
    %849 = vsyncadd [#allocation3], 16
  $region661: #{cbow_forward.2} parent=0 // pred_fallthru
    _
  %s850 = sadd.s32 %s15, 22
  %s851 = sld [smem:[#allocation5 + %s850]]
  %s852 = scalar_lea.vmem %s1, %s851
  %s853 = scalar_lea.vmem [#allocation2], 22
  // Predicated region
  $region662: #{cbow_forward.2} parent=0 // pred_check
    _
  $region663: #{cbow_forward.2} parent=0 // pred_check_branch
    %855 = sbr.rel target = $region665
  $region664: #{cbow_forward.2} parent=0 // pred_region
    // Predicated region
    $region677: #{cbow_forward.2} parent=664 // pred_check
      _
    $region678: #{cbow_forward.2} parent=664 // pred_check_branch
      %871 = sbr.rel (0) target = $region680
    $region679: #{cbow_forward.2} parent=664 // pred_region
      %s873 = ssub.s32 2, 1
      loop: start=0, step=1, limit=1
      $region681: #{cbow_forward.2} parent=679 // loop_pre_header
        _
      $region682: #{cbow_forward.2} parent=679 // loop_header
        %s875 = sphi 0, %s879
        %p876 = scmp.ge.s32.totalorder %s875, 1
        %s880 = sphi %s852, %s852
        %s881 = sphi %s853, %s853
      $region683: #{cbow_forward.2} parent=679 // loop_header_branch
        %878 = sbr.rel (%p876) target = $region687
      $region684: #{cbow_forward.2} parent=679 // loop_body
        %v882 = vld [vmem:[%s880] sm:%s873]
        %883 = vst [vmem:[%s881] sm:%s873] %v882
      $region685: #{cbow_forward.2} parent=679 // loop_footer
        %s879 = sadd.s32 1, %s875
      $region686: #{cbow_forward.2} parent=679 // loop_footer_branch
        %874 = sbr.rel target = $region682
      $region687: #{cbow_forward.2} parent=679 // loop_exit
        _
    $region680: #{cbow_forward.2} parent=664 // pred_fallthru
      _
  $region665: #{cbow_forward.2} parent=0 // pred_fallthru
    _
  // Predicated region
  $region666: #{cbow_forward.2} parent=0 // pred_check
    _
  $region667: #{cbow_forward.2} parent=0 // pred_check_branch
    %857 = sbr.rel (0) target = $region669
  $region668: #{cbow_forward.2} parent=0 // pred_region
    %s859 = ssub.s32 2, 1
    loop: start=0, step=1, limit=1
    $region670: #{cbow_forward.2} parent=668 // loop_pre_header
      _
    $region671: #{cbow_forward.2} parent=668 // loop_header
      %s861 = sphi 0, %s865
      %p862 = scmp.ge.s32.totalorder %s861, 1
      %s866 = sphi %s852, %s852
      %s867 = sphi %s853, %s853
    $region672: #{cbow_forward.2} parent=668 // loop_header_branch
      %864 = sbr.rel (%p862) target = $region676
    $region673: #{cbow_forward.2} parent=668 // loop_body
      %v868 = vld [vmem:[%s866] sm:%s859]
      %869 = vst [vmem:[%s867] sm:%s859] %v868
    $region674: #{cbow_forward.2} parent=668 // loop_footer
      %s865 = sadd.s32 1, %s861
    $region675: #{cbow_forward.2} parent=668 // loop_footer_branch
      %860 = sbr.rel target = $region671
    $region676: #{cbow_forward.2} parent=668 // loop_exit
      _
  $region669: #{cbow_forward.2} parent=0 // pred_fallthru
    _
  // Predicated region
  $region688: #{cbow_forward.2} parent=0 // pred_check
    _
  $region689: #{cbow_forward.2} parent=0 // pred_check_branch
    %886 = sbr.rel (0) target = $region691
  $region690: #{cbow_forward.2} parent=0 // pred_region
    %887 = vsyncadd [#allocation3], 16
  $region691: #{cbow_forward.2} parent=0 // pred_fallthru
    _
  %s888 = sadd.s32 %s15, 23
  %s889 = sld [smem:[#allocation5 + %s888]]
  %s890 = scalar_lea.vmem %s1, %s889
  %s891 = scalar_lea.vmem [#allocation2], 23
  // Predicated region
  $region692: #{cbow_forward.2} parent=0 // pred_check
    _
  $region693: #{cbow_forward.2} parent=0 // pred_check_branch
    %893 = sbr.rel target = $region695
  $region694: #{cbow_forward.2} parent=0 // pred_region
    // Predicated region
    $region707: #{cbow_forward.2} parent=694 // pred_check
      _
    $region708: #{cbow_forward.2} parent=694 // pred_check_branch
      %909 = sbr.rel (0) target = $region710
    $region709: #{cbow_forward.2} parent=694 // pred_region
      %s911 = ssub.s32 2, 1
      loop: start=0, step=1, limit=1
      $region711: #{cbow_forward.2} parent=709 // loop_pre_header
        _
      $region712: #{cbow_forward.2} parent=709 // loop_header
        %s913 = sphi 0, %s917
        %p914 = scmp.ge.s32.totalorder %s913, 1
        %s918 = sphi %s890, %s890
        %s919 = sphi %s891, %s891
      $region713: #{cbow_forward.2} parent=709 // loop_header_branch
        %916 = sbr.rel (%p914) target = $region717
      $region714: #{cbow_forward.2} parent=709 // loop_body
        %v920 = vld [vmem:[%s918] sm:%s911]
        %921 = vst [vmem:[%s919] sm:%s911] %v920
      $region715: #{cbow_forward.2} parent=709 // loop_footer
        %s917 = sadd.s32 1, %s913
      $region716: #{cbow_forward.2} parent=709 // loop_footer_branch
        %912 = sbr.rel target = $region712
      $region717: #{cbow_forward.2} parent=709 // loop_exit
        _
    $region710: #{cbow_forward.2} parent=694 // pred_fallthru
      _
  $region695: #{cbow_forward.2} parent=0 // pred_fallthru
    _
  // Predicated region
  $region696: #{cbow_forward.2} parent=0 // pred_check
    _
  $region697: #{cbow_forward.2} parent=0 // pred_check_branch
    %895 = sbr.rel (0) target = $region699
  $region698: #{cbow_forward.2} parent=0 // pred_region
    %s897 = ssub.s32 2, 1
    loop: start=0, step=1, limit=1
    $region700: #{cbow_forward.2} parent=698 // loop_pre_header
      _
    $region701: #{cbow_forward.2} parent=698 // loop_header
      %s899 = sphi 0, %s903
      %p900 = scmp.ge.s32.totalorder %s899, 1
      %s904 = sphi %s890, %s890
      %s905 = sphi %s891, %s891
    $region702: #{cbow_forward.2} parent=698 // loop_header_branch
      %902 = sbr.rel (%p900) target = $region706
    $region703: #{cbow_forward.2} parent=698 // loop_body
      %v906 = vld [vmem:[%s904] sm:%s897]
      %907 = vst [vmem:[%s905] sm:%s897] %v906
    $region704: #{cbow_forward.2} parent=698 // loop_footer
      %s903 = sadd.s32 1, %s899
    $region705: #{cbow_forward.2} parent=698 // loop_footer_branch
      %898 = sbr.rel target = $region701
    $region706: #{cbow_forward.2} parent=698 // loop_exit
      _
  $region699: #{cbow_forward.2} parent=0 // pred_fallthru
    _
  // Predicated region
  $region718: #{cbow_forward.2} parent=0 // pred_check
    _
  $region719: #{cbow_forward.2} parent=0 // pred_check_branch
    %924 = sbr.rel (0) target = $region721
  $region720: #{cbow_forward.2} parent=0 // pred_region
    %925 = vsyncadd [#allocation3], 16
  $region721: #{cbow_forward.2} parent=0 // pred_fallthru
    _
  %s926 = sadd.s32 %s15, 24
  %s927 = sld [smem:[#allocation5 + %s926]]
  %s928 = scalar_lea.vmem %s1, %s927
  %s929 = scalar_lea.vmem [#allocation2], 24
  // Predicated region
  $region722: #{cbow_forward.2} parent=0 // pred_check
    _
  $region723: #{cbow_forward.2} parent=0 // pred_check_branch
    %931 = sbr.rel target = $region725
  $region724: #{cbow_forward.2} parent=0 // pred_region
    // Predicated region
    $region737: #{cbow_forward.2} parent=724 // pred_check
      _
    $region738: #{cbow_forward.2} parent=724 // pred_check_branch
      %947 = sbr.rel (0) target = $region740
    $region739: #{cbow_forward.2} parent=724 // pred_region
      %s949 = ssub.s32 2, 1
      loop: start=0, step=1, limit=1
      $region741: #{cbow_forward.2} parent=739 // loop_pre_header
        _
      $region742: #{cbow_forward.2} parent=739 // loop_header
        %s951 = sphi 0, %s955
        %p952 = scmp.ge.s32.totalorder %s951, 1
        %s956 = sphi %s928, %s928
        %s957 = sphi %s929, %s929
      $region743: #{cbow_forward.2} parent=739 // loop_header_branch
        %954 = sbr.rel (%p952) target = $region747
      $region744: #{cbow_forward.2} parent=739 // loop_body
        %v958 = vld [vmem:[%s956] sm:%s949]
        %959 = vst [vmem:[%s957] sm:%s949] %v958
      $region745: #{cbow_forward.2} parent=739 // loop_footer
        %s955 = sadd.s32 1, %s951
      $region746: #{cbow_forward.2} parent=739 // loop_footer_branch
        %950 = sbr.rel target = $region742
      $region747: #{cbow_forward.2} parent=739 // loop_exit
        _
    $region740: #{cbow_forward.2} parent=724 // pred_fallthru
      _
  $region725: #{cbow_forward.2} parent=0 // pred_fallthru
    _
  // Predicated region
  $region726: #{cbow_forward.2} parent=0 // pred_check
    _
  $region727: #{cbow_forward.2} parent=0 // pred_check_branch
    %933 = sbr.rel (0) target = $region729
  $region728: #{cbow_forward.2} parent=0 // pred_region
    %s935 = ssub.s32 2, 1
    loop: start=0, step=1, limit=1
    $region730: #{cbow_forward.2} parent=728 // loop_pre_header
      _
    $region731: #{cbow_forward.2} parent=728 // loop_header
      %s937 = sphi 0, %s941
      %p938 = scmp.ge.s32.totalorder %s937, 1
      %s942 = sphi %s928, %s928
      %s943 = sphi %s929, %s929
    $region732: #{cbow_forward.2} parent=728 // loop_header_branch
      %940 = sbr.rel (%p938) target = $region736
    $region733: #{cbow_forward.2} parent=728 // loop_body
      %v944 = vld [vmem:[%s942] sm:%s935]
      %945 = vst [vmem:[%s943] sm:%s935] %v944
    $region734: #{cbow_forward.2} parent=728 // loop_footer
      %s941 = sadd.s32 1, %s937
    $region735: #{cbow_forward.2} parent=728 // loop_footer_branch
      %936 = sbr.rel target = $region731
    $region736: #{cbow_forward.2} parent=728 // loop_exit
      _
  $region729: #{cbow_forward.2} parent=0 // pred_fallthru
    _
  // Predicated region
  $region748: #{cbow_forward.2} parent=0 // pred_check
    _
  $region749: #{cbow_forward.2} parent=0 // pred_check_branch
    %962 = sbr.rel (0) target = $region751
  $region750: #{cbow_forward.2} parent=0 // pred_region
    %963 = vsyncadd [#allocation3], 16
  $region751: #{cbow_forward.2} parent=0 // pred_fallthru
    _
  %s964 = sadd.s32 %s15, 25
  %s965 = sld [smem:[#allocation5 + %s964]]
  %s966 = scalar_lea.vmem %s1, %s965
  %s967 = scalar_lea.vmem [#allocation2], 25
  // Predicated region
  $region752: #{cbow_forward.2} parent=0 // pred_check
    _
  $region753: #{cbow_forward.2} parent=0 // pred_check_branch
    %969 = sbr.rel target = $region755
  $region754: #{cbow_forward.2} parent=0 // pred_region
    // Predicated region
    $region767: #{cbow_forward.2} parent=754 // pred_check
      _
    $region768: #{cbow_forward.2} parent=754 // pred_check_branch
      %985 = sbr.rel (0) target = $region770
    $region769: #{cbow_forward.2} parent=754 // pred_region
      %s987 = ssub.s32 2, 1
      loop: start=0, step=1, limit=1
      $region771: #{cbow_forward.2} parent=769 // loop_pre_header
        _
      $region772: #{cbow_forward.2} parent=769 // loop_header
        %s989 = sphi 0, %s993
        %p990 = scmp.ge.s32.totalorder %s989, 1
        %s994 = sphi %s966, %s966
        %s995 = sphi %s967, %s967
      $region773: #{cbow_forward.2} parent=769 // loop_header_branch
        %992 = sbr.rel (%p990) target = $region777
      $region774: #{cbow_forward.2} parent=769 // loop_body
        %v996 = vld [vmem:[%s994] sm:%s987]
        %997 = vst [vmem:[%s995] sm:%s987] %v996
      $region775: #{cbow_forward.2} parent=769 // loop_footer
        %s993 = sadd.s32 1, %s989
      $region776: #{cbow_forward.2} parent=769 // loop_footer_branch
        %988 = sbr.rel target = $region772
      $region777: #{cbow_forward.2} parent=769 // loop_exit
        _
    $region770: #{cbow_forward.2} parent=754 // pred_fallthru
      _
  $region755: #{cbow_forward.2} parent=0 // pred_fallthru
    _
  // Predicated region
  $region756: #{cbow_forward.2} parent=0 // pred_check
    _
  $region757: #{cbow_forward.2} parent=0 // pred_check_branch
    %971 = sbr.rel (0) target = $region759
  $region758: #{cbow_forward.2} parent=0 // pred_region
    %s973 = ssub.s32 2, 1
    loop: start=0, step=1, limit=1
    $region760: #{cbow_forward.2} parent=758 // loop_pre_header
      _
    $region761: #{cbow_forward.2} parent=758 // loop_header
      %s975 = sphi 0, %s979
      %p976 = scmp.ge.s32.totalorder %s975, 1
      %s980 = sphi %s966, %s966
      %s981 = sphi %s967, %s967
    $region762: #{cbow_forward.2} parent=758 // loop_header_branch
      %978 = sbr.rel (%p976) target = $region766
    $region763: #{cbow_forward.2} parent=758 // loop_body
      %v982 = vld [vmem:[%s980] sm:%s973]
      %983 = vst [vmem:[%s981] sm:%s973] %v982
    $region764: #{cbow_forward.2} parent=758 // loop_footer
      %s979 = sadd.s32 1, %s975
    $region765: #{cbow_forward.2} parent=758 // loop_footer_branch
      %974 = sbr.rel target = $region761
    $region766: #{cbow_forward.2} parent=758 // loop_exit
      _
  $region759: #{cbow_forward.2} parent=0 // pred_fallthru
    _
  // Predicated region
  $region778: #{cbow_forward.2} parent=0 // pred_check
    _
  $region779: #{cbow_forward.2} parent=0 // pred_check_branch
    %1000 = sbr.rel (0) target = $region781
  $region780: #{cbow_forward.2} parent=0 // pred_region
    %1001 = vsyncadd [#allocation3], 16
  $region781: #{cbow_forward.2} parent=0 // pred_fallthru
    _
  %s1002 = sadd.s32 %s15, 26
  %s1003 = sld [smem:[#allocation5 + %s1002]]
  %s1004 = scalar_lea.vmem %s1, %s1003
  %s1005 = scalar_lea.vmem [#allocation2], 26
  // Predicated region
  $region782: #{cbow_forward.2} parent=0 // pred_check
    _
  $region783: #{cbow_forward.2} parent=0 // pred_check_branch
    %1007 = sbr.rel target = $region785
  $region784: #{cbow_forward.2} parent=0 // pred_region
    // Predicated region
    $region797: #{cbow_forward.2} parent=784 // pred_check
      _
    $region798: #{cbow_forward.2} parent=784 // pred_check_branch
      %1023 = sbr.rel (0) target = $region800
    $region799: #{cbow_forward.2} parent=784 // pred_region
      %s1025 = ssub.s32 2, 1
      loop: start=0, step=1, limit=1
      $region801: #{cbow_forward.2} parent=799 // loop_pre_header
        _
      $region802: #{cbow_forward.2} parent=799 // loop_header
        %s1027 = sphi 0, %s1031
        %p1028 = scmp.ge.s32.totalorder %s1027, 1
        %s1032 = sphi %s1004, %s1004
        %s1033 = sphi %s1005, %s1005
      $region803: #{cbow_forward.2} parent=799 // loop_header_branch
        %1030 = sbr.rel (%p1028) target = $region807
      $region804: #{cbow_forward.2} parent=799 // loop_body
        %v1034 = vld [vmem:[%s1032] sm:%s1025]
        %1035 = vst [vmem:[%s1033] sm:%s1025] %v1034
      $region805: #{cbow_forward.2} parent=799 // loop_footer
        %s1031 = sadd.s32 1, %s1027
      $region806: #{cbow_forward.2} parent=799 // loop_footer_branch
        %1026 = sbr.rel target = $region802
      $region807: #{cbow_forward.2} parent=799 // loop_exit
        _
    $region800: #{cbow_forward.2} parent=784 // pred_fallthru
      _
  $region785: #{cbow_forward.2} parent=0 // pred_fallthru
    _
  // Predicated region
  $region786: #{cbow_forward.2} parent=0 // pred_check
    _
  $region787: #{cbow_forward.2} parent=0 // pred_check_branch
    %1009 = sbr.rel (0) target = $region789
  $region788: #{cbow_forward.2} parent=0 // pred_region
    %s1011 = ssub.s32 2, 1
    loop: start=0, step=1, limit=1
    $region790: #{cbow_forward.2} parent=788 // loop_pre_header
      _
    $region791: #{cbow_forward.2} parent=788 // loop_header
      %s1013 = sphi 0, %s1017
      %p1014 = scmp.ge.s32.totalorder %s1013, 1
      %s1018 = sphi %s1004, %s1004
      %s1019 = sphi %s1005, %s1005
    $region792: #{cbow_forward.2} parent=788 // loop_header_branch
      %1016 = sbr.rel (%p1014) target = $region796
    $region793: #{cbow_forward.2} parent=788 // loop_body
      %v1020 = vld [vmem:[%s1018] sm:%s1011]
      %1021 = vst [vmem:[%s1019] sm:%s1011] %v1020
    $region794: #{cbow_forward.2} parent=788 // loop_footer
      %s1017 = sadd.s32 1, %s1013
    $region795: #{cbow_forward.2} parent=788 // loop_footer_branch
      %1012 = sbr.rel target = $region791
    $region796: #{cbow_forward.2} parent=788 // loop_exit
      _
  $region789: #{cbow_forward.2} parent=0 // pred_fallthru
    _
  // Predicated region
  $region808: #{cbow_forward.2} parent=0 // pred_check
    _
  $region809: #{cbow_forward.2} parent=0 // pred_check_branch
    %1038 = sbr.rel (0) target = $region811
  $region810: #{cbow_forward.2} parent=0 // pred_region
    %1039 = vsyncadd [#allocation3], 16
  $region811: #{cbow_forward.2} parent=0 // pred_fallthru
    _
  %s1040 = sadd.s32 %s15, 27
  %s1041 = sld [smem:[#allocation5 + %s1040]]
  %s1042 = scalar_lea.vmem %s1, %s1041
  %s1043 = scalar_lea.vmem [#allocation2], 27
  // Predicated region
  $region812: #{cbow_forward.2} parent=0 // pred_check
    _
  $region813: #{cbow_forward.2} parent=0 // pred_check_branch
    %1045 = sbr.rel target = $region815
  $region814: #{cbow_forward.2} parent=0 // pred_region
    // Predicated region
    $region827: #{cbow_forward.2} parent=814 // pred_check
      _
    $region828: #{cbow_forward.2} parent=814 // pred_check_branch
      %1061 = sbr.rel (0) target = $region830
    $region829: #{cbow_forward.2} parent=814 // pred_region
      %s1063 = ssub.s32 2, 1
      loop: start=0, step=1, limit=1
      $region831: #{cbow_forward.2} parent=829 // loop_pre_header
        _
      $region832: #{cbow_forward.2} parent=829 // loop_header
        %s1065 = sphi 0, %s1069
        %p1066 = scmp.ge.s32.totalorder %s1065, 1
        %s1070 = sphi %s1042, %s1042
        %s1071 = sphi %s1043, %s1043
      $region833: #{cbow_forward.2} parent=829 // loop_header_branch
        %1068 = sbr.rel (%p1066) target = $region837
      $region834: #{cbow_forward.2} parent=829 // loop_body
        %v1072 = vld [vmem:[%s1070] sm:%s1063]
        %1073 = vst [vmem:[%s1071] sm:%s1063] %v1072
      $region835: #{cbow_forward.2} parent=829 // loop_footer
        %s1069 = sadd.s32 1, %s1065
      $region836: #{cbow_forward.2} parent=829 // loop_footer_branch
        %1064 = sbr.rel target = $region832
      $region837: #{cbow_forward.2} parent=829 // loop_exit
        _
    $region830: #{cbow_forward.2} parent=814 // pred_fallthru
      _
  $region815: #{cbow_forward.2} parent=0 // pred_fallthru
    _
  // Predicated region
  $region816: #{cbow_forward.2} parent=0 // pred_check
    _
  $region817: #{cbow_forward.2} parent=0 // pred_check_branch
    %1047 = sbr.rel (0) target = $region819
  $region818: #{cbow_forward.2} parent=0 // pred_region
    %s1049 = ssub.s32 2, 1
    loop: start=0, step=1, limit=1
    $region820: #{cbow_forward.2} parent=818 // loop_pre_header
      _
    $region821: #{cbow_forward.2} parent=818 // loop_header
      %s1051 = sphi 0, %s1055
      %p1052 = scmp.ge.s32.totalorder %s1051, 1
      %s1056 = sphi %s1042, %s1042
      %s1057 = sphi %s1043, %s1043
    $region822: #{cbow_forward.2} parent=818 // loop_header_branch
      %1054 = sbr.rel (%p1052) target = $region826
    $region823: #{cbow_forward.2} parent=818 // loop_body
      %v1058 = vld [vmem:[%s1056] sm:%s1049]
      %1059 = vst [vmem:[%s1057] sm:%s1049] %v1058
    $region824: #{cbow_forward.2} parent=818 // loop_footer
      %s1055 = sadd.s32 1, %s1051
    $region825: #{cbow_forward.2} parent=818 // loop_footer_branch
      %1050 = sbr.rel target = $region821
    $region826: #{cbow_forward.2} parent=818 // loop_exit
      _
  $region819: #{cbow_forward.2} parent=0 // pred_fallthru
    _
  // Predicated region
  $region838: #{cbow_forward.2} parent=0 // pred_check
    _
  $region839: #{cbow_forward.2} parent=0 // pred_check_branch
    %1076 = sbr.rel (0) target = $region841
  $region840: #{cbow_forward.2} parent=0 // pred_region
    %1077 = vsyncadd [#allocation3], 16
  $region841: #{cbow_forward.2} parent=0 // pred_fallthru
    _
  %s1078 = sadd.s32 %s15, 28
  %s1079 = sld [smem:[#allocation5 + %s1078]]
  %s1080 = scalar_lea.vmem %s1, %s1079
  %s1081 = scalar_lea.vmem [#allocation2], 28
  // Predicated region
  $region842: #{cbow_forward.2} parent=0 // pred_check
    _
  $region843: #{cbow_forward.2} parent=0 // pred_check_branch
    %1083 = sbr.rel target = $region845
  $region844: #{cbow_forward.2} parent=0 // pred_region
    // Predicated region
    $region857: #{cbow_forward.2} parent=844 // pred_check
      _
    $region858: #{cbow_forward.2} parent=844 // pred_check_branch
      %1099 = sbr.rel (0) target = $region860
    $region859: #{cbow_forward.2} parent=844 // pred_region
      %s1101 = ssub.s32 2, 1
      loop: start=0, step=1, limit=1
      $region861: #{cbow_forward.2} parent=859 // loop_pre_header
        _
      $region862: #{cbow_forward.2} parent=859 // loop_header
        %s1103 = sphi 0, %s1107
        %p1104 = scmp.ge.s32.totalorder %s1103, 1
        %s1108 = sphi %s1080, %s1080
        %s1109 = sphi %s1081, %s1081
      $region863: #{cbow_forward.2} parent=859 // loop_header_branch
        %1106 = sbr.rel (%p1104) target = $region867
      $region864: #{cbow_forward.2} parent=859 // loop_body
        %v1110 = vld [vmem:[%s1108] sm:%s1101]
        %1111 = vst [vmem:[%s1109] sm:%s1101] %v1110
      $region865: #{cbow_forward.2} parent=859 // loop_footer
        %s1107 = sadd.s32 1, %s1103
      $region866: #{cbow_forward.2} parent=859 // loop_footer_branch
        %1102 = sbr.rel target = $region862
      $region867: #{cbow_forward.2} parent=859 // loop_exit
        _
    $region860: #{cbow_forward.2} parent=844 // pred_fallthru
      _
  $region845: #{cbow_forward.2} parent=0 // pred_fallthru
    _
  // Predicated region
  $region846: #{cbow_forward.2} parent=0 // pred_check
    _
  $region847: #{cbow_forward.2} parent=0 // pred_check_branch
    %1085 = sbr.rel (0) target = $region849
  $region848: #{cbow_forward.2} parent=0 // pred_region
    %s1087 = ssub.s32 2, 1
    loop: start=0, step=1, limit=1
    $region850: #{cbow_forward.2} parent=848 // loop_pre_header
      _
    $region851: #{cbow_forward.2} parent=848 // loop_header
      %s1089 = sphi 0, %s1093
      %p1090 = scmp.ge.s32.totalorder %s1089, 1
      %s1094 = sphi %s1080, %s1080
      %s1095 = sphi %s1081, %s1081
    $region852: #{cbow_forward.2} parent=848 // loop_header_branch
      %1092 = sbr.rel (%p1090) target = $region856
    $region853: #{cbow_forward.2} parent=848 // loop_body
      %v1096 = vld [vmem:[%s1094] sm:%s1087]
      %1097 = vst [vmem:[%s1095] sm:%s1087] %v1096
    $region854: #{cbow_forward.2} parent=848 // loop_footer
      %s1093 = sadd.s32 1, %s1089
    $region855: #{cbow_forward.2} parent=848 // loop_footer_branch
      %1088 = sbr.rel target = $region851
    $region856: #{cbow_forward.2} parent=848 // loop_exit
      _
  $region849: #{cbow_forward.2} parent=0 // pred_fallthru
    _
  // Predicated region
  $region868: #{cbow_forward.2} parent=0 // pred_check
    _
  $region869: #{cbow_forward.2} parent=0 // pred_check_branch
    %1114 = sbr.rel (0) target = $region871
  $region870: #{cbow_forward.2} parent=0 // pred_region
    %1115 = vsyncadd [#allocation3], 16
  $region871: #{cbow_forward.2} parent=0 // pred_fallthru
    _
  %s1116 = sadd.s32 %s15, 29
  %s1117 = sld [smem:[#allocation5 + %s1116]]
  %s1118 = scalar_lea.vmem %s1, %s1117
  %s1119 = scalar_lea.vmem [#allocation2], 29
  // Predicated region
  $region872: #{cbow_forward.2} parent=0 // pred_check
    _
  $region873: #{cbow_forward.2} parent=0 // pred_check_branch
    %1121 = sbr.rel target = $region875
  $region874: #{cbow_forward.2} parent=0 // pred_region
    // Predicated region
    $region887: #{cbow_forward.2} parent=874 // pred_check
      _
    $region888: #{cbow_forward.2} parent=874 // pred_check_branch
      %1137 = sbr.rel (0) target = $region890
    $region889: #{cbow_forward.2} parent=874 // pred_region
      %s1139 = ssub.s32 2, 1
      loop: start=0, step=1, limit=1
      $region891: #{cbow_forward.2} parent=889 // loop_pre_header
        _
      $region892: #{cbow_forward.2} parent=889 // loop_header
        %s1141 = sphi 0, %s1145
        %p1142 = scmp.ge.s32.totalorder %s1141, 1
        %s1146 = sphi %s1118, %s1118
        %s1147 = sphi %s1119, %s1119
      $region893: #{cbow_forward.2} parent=889 // loop_header_branch
        %1144 = sbr.rel (%p1142) target = $region897
      $region894: #{cbow_forward.2} parent=889 // loop_body
        %v1148 = vld [vmem:[%s1146] sm:%s1139]
        %1149 = vst [vmem:[%s1147] sm:%s1139] %v1148
      $region895: #{cbow_forward.2} parent=889 // loop_footer
        %s1145 = sadd.s32 1, %s1141
      $region896: #{cbow_forward.2} parent=889 // loop_footer_branch
        %1140 = sbr.rel target = $region892
      $region897: #{cbow_forward.2} parent=889 // loop_exit
        _
    $region890: #{cbow_forward.2} parent=874 // pred_fallthru
      _
  $region875: #{cbow_forward.2} parent=0 // pred_fallthru
    _
  // Predicated region
  $region876: #{cbow_forward.2} parent=0 // pred_check
    _
  $region877: #{cbow_forward.2} parent=0 // pred_check_branch
    %1123 = sbr.rel (0) target = $region879
  $region878: #{cbow_forward.2} parent=0 // pred_region
    %s1125 = ssub.s32 2, 1
    loop: start=0, step=1, limit=1
    $region880: #{cbow_forward.2} parent=878 // loop_pre_header
      _
    $region881: #{cbow_forward.2} parent=878 // loop_header
      %s1127 = sphi 0, %s1131
      %p1128 = scmp.ge.s32.totalorder %s1127, 1
      %s1132 = sphi %s1118, %s1118
      %s1133 = sphi %s1119, %s1119
    $region882: #{cbow_forward.2} parent=878 // loop_header_branch
      %1130 = sbr.rel (%p1128) target = $region886
    $region883: #{cbow_forward.2} parent=878 // loop_body
      %v1134 = vld [vmem:[%s1132] sm:%s1125]
      %1135 = vst [vmem:[%s1133] sm:%s1125] %v1134
    $region884: #{cbow_forward.2} parent=878 // loop_footer
      %s1131 = sadd.s32 1, %s1127
    $region885: #{cbow_forward.2} parent=878 // loop_footer_branch
      %1126 = sbr.rel target = $region881
    $region886: #{cbow_forward.2} parent=878 // loop_exit
      _
  $region879: #{cbow_forward.2} parent=0 // pred_fallthru
    _
  // Predicated region
  $region898: #{cbow_forward.2} parent=0 // pred_check
    _
  $region899: #{cbow_forward.2} parent=0 // pred_check_branch
    %1152 = sbr.rel (0) target = $region901
  $region900: #{cbow_forward.2} parent=0 // pred_region
    %1153 = vsyncadd [#allocation3], 16
  $region901: #{cbow_forward.2} parent=0 // pred_fallthru
    _
  %s1154 = sadd.s32 %s15, 30
  %s1155 = sld [smem:[#allocation5 + %s1154]]
  %s1156 = scalar_lea.vmem %s1, %s1155
  %s1157 = scalar_lea.vmem [#allocation2], 30
  // Predicated region
  $region902: #{cbow_forward.2} parent=0 // pred_check
    _
  $region903: #{cbow_forward.2} parent=0 // pred_check_branch
    %1159 = sbr.rel target = $region905
  $region904: #{cbow_forward.2} parent=0 // pred_region
    // Predicated region
    $region917: #{cbow_forward.2} parent=904 // pred_check
      _
    $region918: #{cbow_forward.2} parent=904 // pred_check_branch
      %1175 = sbr.rel (0) target = $region920
    $region919: #{cbow_forward.2} parent=904 // pred_region
      %s1177 = ssub.s32 2, 1
      loop: start=0, step=1, limit=1
      $region921: #{cbow_forward.2} parent=919 // loop_pre_header
        _
      $region922: #{cbow_forward.2} parent=919 // loop_header
        %s1179 = sphi 0, %s1183
        %p1180 = scmp.ge.s32.totalorder %s1179, 1
        %s1184 = sphi %s1156, %s1156
        %s1185 = sphi %s1157, %s1157
      $region923: #{cbow_forward.2} parent=919 // loop_header_branch
        %1182 = sbr.rel (%p1180) target = $region927
      $region924: #{cbow_forward.2} parent=919 // loop_body
        %v1186 = vld [vmem:[%s1184] sm:%s1177]
        %1187 = vst [vmem:[%s1185] sm:%s1177] %v1186
      $region925: #{cbow_forward.2} parent=919 // loop_footer
        %s1183 = sadd.s32 1, %s1179
      $region926: #{cbow_forward.2} parent=919 // loop_footer_branch
        %1178 = sbr.rel target = $region922
      $region927: #{cbow_forward.2} parent=919 // loop_exit
        _
    $region920: #{cbow_forward.2} parent=904 // pred_fallthru
      _
  $region905: #{cbow_forward.2} parent=0 // pred_fallthru
    _
  // Predicated region
  $region906: #{cbow_forward.2} parent=0 // pred_check
    _
  $region907: #{cbow_forward.2} parent=0 // pred_check_branch
    %1161 = sbr.rel (0) target = $region909
  $region908: #{cbow_forward.2} parent=0 // pred_region
    %s1163 = ssub.s32 2, 1
    loop: start=0, step=1, limit=1
    $region910: #{cbow_forward.2} parent=908 // loop_pre_header
      _
    $region911: #{cbow_forward.2} parent=908 // loop_header
      %s1165 = sphi 0, %s1169
      %p1166 = scmp.ge.s32.totalorder %s1165, 1
      %s1170 = sphi %s1156, %s1156
      %s1171 = sphi %s1157, %s1157
    $region912: #{cbow_forward.2} parent=908 // loop_header_branch
      %1168 = sbr.rel (%p1166) target = $region916
    $region913: #{cbow_forward.2} parent=908 // loop_body
      %v1172 = vld [vmem:[%s1170] sm:%s1163]
      %1173 = vst [vmem:[%s1171] sm:%s1163] %v1172
    $region914: #{cbow_forward.2} parent=908 // loop_footer
      %s1169 = sadd.s32 1, %s1165
    $region915: #{cbow_forward.2} parent=908 // loop_footer_branch
      %1164 = sbr.rel target = $region911
    $region916: #{cbow_forward.2} parent=908 // loop_exit
      _
  $region909: #{cbow_forward.2} parent=0 // pred_fallthru
    _
  // Predicated region
  $region928: #{cbow_forward.2} parent=0 // pred_check
    _
  $region929: #{cbow_forward.2} parent=0 // pred_check_branch
    %1190 = sbr.rel (0) target = $region931
  $region930: #{cbow_forward.2} parent=0 // pred_region
    %1191 = vsyncadd [#allocation3], 16
  $region931: #{cbow_forward.2} parent=0 // pred_fallthru
    _
  %s1192 = sadd.s32 %s15, 31
  %s1193 = sld [smem:[#allocation5 + %s1192]]
  %s1194 = scalar_lea.vmem %s1, %s1193
  %s1195 = scalar_lea.vmem [#allocation2], 31
  // Predicated region
  $region932: #{cbow_forward.2} parent=0 // pred_check
    _
  $region933: #{cbow_forward.2} parent=0 // pred_check_branch
    %1197 = sbr.rel target = $region935
  $region934: #{cbow_forward.2} parent=0 // pred_region
    // Predicated region
    $region947: #{cbow_forward.2} parent=934 // pred_check
      _
    $region948: #{cbow_forward.2} parent=934 // pred_check_branch
      %1213 = sbr.rel (0) target = $region950
    $region949: #{cbow_forward.2} parent=934 // pred_region
      %s1215 = ssub.s32 2, 1
      loop: start=0, step=1, limit=1
      $region951: #{cbow_forward.2} parent=949 // loop_pre_header
        _
      $region952: #{cbow_forward.2} parent=949 // loop_header
        %s1217 = sphi 0, %s1221
        %p1218 = scmp.ge.s32.totalorder %s1217, 1
        %s1222 = sphi %s1194, %s1194
        %s1223 = sphi %s1195, %s1195
      $region953: #{cbow_forward.2} parent=949 // loop_header_branch
        %1220 = sbr.rel (%p1218) target = $region957
      $region954: #{cbow_forward.2} parent=949 // loop_body
        %v1224 = vld [vmem:[%s1222] sm:%s1215]
        %1225 = vst [vmem:[%s1223] sm:%s1215] %v1224
      $region955: #{cbow_forward.2} parent=949 // loop_footer
        %s1221 = sadd.s32 1, %s1217
      $region956: #{cbow_forward.2} parent=949 // loop_footer_branch
        %1216 = sbr.rel target = $region952
      $region957: #{cbow_forward.2} parent=949 // loop_exit
        _
    $region950: #{cbow_forward.2} parent=934 // pred_fallthru
      _
  $region935: #{cbow_forward.2} parent=0 // pred_fallthru
    _
  // Predicated region
  $region936: #{cbow_forward.2} parent=0 // pred_check
    _
  $region937: #{cbow_forward.2} parent=0 // pred_check_branch
    %1199 = sbr.rel (0) target = $region939
  $region938: #{cbow_forward.2} parent=0 // pred_region
    %s1201 = ssub.s32 2, 1
    loop: start=0, step=1, limit=1
    $region940: #{cbow_forward.2} parent=938 // loop_pre_header
      _
    $region941: #{cbow_forward.2} parent=938 // loop_header
      %s1203 = sphi 0, %s1207
      %p1204 = scmp.ge.s32.totalorder %s1203, 1
      %s1208 = sphi %s1194, %s1194
      %s1209 = sphi %s1195, %s1195
    $region942: #{cbow_forward.2} parent=938 // loop_header_branch
      %1206 = sbr.rel (%p1204) target = $region946
    $region943: #{cbow_forward.2} parent=938 // loop_body
      %v1210 = vld [vmem:[%s1208] sm:%s1201]
      %1211 = vst [vmem:[%s1209] sm:%s1201] %v1210
    $region944: #{cbow_forward.2} parent=938 // loop_footer
      %s1207 = sadd.s32 1, %s1203
    $region945: #{cbow_forward.2} parent=938 // loop_footer_branch
      %1202 = sbr.rel target = $region941
    $region946: #{cbow_forward.2} parent=938 // loop_exit
      _
  $region939: #{cbow_forward.2} parent=0 // pred_fallthru
    _
  // Predicated region
  $region958: #{cbow_forward.2} parent=0 // pred_check
    _
  $region959: #{cbow_forward.2} parent=0 // pred_check_branch
    %1228 = sbr.rel (0) target = $region961
  $region960: #{cbow_forward.2} parent=0 // pred_region
    %1229 = vsyncadd [#allocation3], 16
  $region961: #{cbow_forward.2} parent=0 // pred_fallthru
    _
  %s1230 = sadd.s32 %s15, 32
  %s1231 = sld [smem:[#allocation5 + %s1230]]
  %s1232 = scalar_lea.vmem %s1, %s1231
  %s1233 = scalar_lea.vmem [#allocation2], 32
  // Predicated region
  $region962: #{cbow_forward.2} parent=0 // pred_check
    _
  $region963: #{cbow_forward.2} parent=0 // pred_check_branch
    %1235 = sbr.rel target = $region965
  $region964: #{cbow_forward.2} parent=0 // pred_region
    // Predicated region
    $region977: #{cbow_forward.2} parent=964 // pred_check
      _
    $region978: #{cbow_forward.2} parent=964 // pred_check_branch
      %1251 = sbr.rel (0) target = $region980
    $region979: #{cbow_forward.2} parent=964 // pred_region
      %s1253 = ssub.s32 2, 1
      loop: start=0, step=1, limit=1
      $region981: #{cbow_forward.2} parent=979 // loop_pre_header
        _
      $region982: #{cbow_forward.2} parent=979 // loop_header
        %s1255 = sphi 0, %s1259
        %p1256 = scmp.ge.s32.totalorder %s1255, 1
        %s1260 = sphi %s1232, %s1232
        %s1261 = sphi %s1233, %s1233
      $region983: #{cbow_forward.2} parent=979 // loop_header_branch
        %1258 = sbr.rel (%p1256) target = $region987
      $region984: #{cbow_forward.2} parent=979 // loop_body
        %v1262 = vld [vmem:[%s1260] sm:%s1253]
        %1263 = vst [vmem:[%s1261] sm:%s1253] %v1262
      $region985: #{cbow_forward.2} parent=979 // loop_footer
        %s1259 = sadd.s32 1, %s1255
      $region986: #{cbow_forward.2} parent=979 // loop_footer_branch
        %1254 = sbr.rel target = $region982
      $region987: #{cbow_forward.2} parent=979 // loop_exit
        _
    $region980: #{cbow_forward.2} parent=964 // pred_fallthru
      _
  $region965: #{cbow_forward.2} parent=0 // pred_fallthru
    _
  // Predicated region
  $region966: #{cbow_forward.2} parent=0 // pred_check
    _
  $region967: #{cbow_forward.2} parent=0 // pred_check_branch
    %1237 = sbr.rel (0) target = $region969
  $region968: #{cbow_forward.2} parent=0 // pred_region
    %s1239 = ssub.s32 2, 1
    loop: start=0, step=1, limit=1
    $region970: #{cbow_forward.2} parent=968 // loop_pre_header
      _
    $region971: #{cbow_forward.2} parent=968 // loop_header
      %s1241 = sphi 0, %s1245
      %p1242 = scmp.ge.s32.totalorder %s1241, 1
      %s1246 = sphi %s1232, %s1232
      %s1247 = sphi %s1233, %s1233
    $region972: #{cbow_forward.2} parent=968 // loop_header_branch
      %1244 = sbr.rel (%p1242) target = $region976
    $region973: #{cbow_forward.2} parent=968 // loop_body
      %v1248 = vld [vmem:[%s1246] sm:%s1239]
      %1249 = vst [vmem:[%s1247] sm:%s1239] %v1248
    $region974: #{cbow_forward.2} parent=968 // loop_footer
      %s1245 = sadd.s32 1, %s1241
    $region975: #{cbow_forward.2} parent=968 // loop_footer_branch
      %1240 = sbr.rel target = $region971
    $region976: #{cbow_forward.2} parent=968 // loop_exit
      _
  $region969: #{cbow_forward.2} parent=0 // pred_fallthru
    _
  // Predicated region
  $region988: #{cbow_forward.2} parent=0 // pred_check
    _
  $region989: #{cbow_forward.2} parent=0 // pred_check_branch
    %1266 = sbr.rel (0) target = $region991
  $region990: #{cbow_forward.2} parent=0 // pred_region
    %1267 = vsyncadd [#allocation3], 16
  $region991: #{cbow_forward.2} parent=0 // pred_fallthru
    _
  %s1268 = sadd.s32 %s15, 33
  %s1269 = sld [smem:[#allocation5 + %s1268]]
  %s1270 = scalar_lea.vmem %s1, %s1269
  %s1271 = scalar_lea.vmem [#allocation2], 33
  // Predicated region
  $region992: #{cbow_forward.2} parent=0 // pred_check
    _
  $region993: #{cbow_forward.2} parent=0 // pred_check_branch
    %1273 = sbr.rel target = $region995
  $region994: #{cbow_forward.2} parent=0 // pred_region
    // Predicated region
    $region1007: #{cbow_forward.2} parent=994 // pred_check
      _
    $region1008: #{cbow_forward.2} parent=994 // pred_check_branch
      %1289 = sbr.rel (0) target = $region1010
    $region1009: #{cbow_forward.2} parent=994 // pred_region
      %s1291 = ssub.s32 2, 1
      loop: start=0, step=1, limit=1
      $region1011: #{cbow_forward.2} parent=1009 // loop_pre_header
        _
      $region1012: #{cbow_forward.2} parent=1009 // loop_header
        %s1293 = sphi 0, %s1297
        %p1294 = scmp.ge.s32.totalorder %s1293, 1
        %s1298 = sphi %s1270, %s1270
        %s1299 = sphi %s1271, %s1271
      $region1013: #{cbow_forward.2} parent=1009 // loop_header_branch
        %1296 = sbr.rel (%p1294) target = $region1017
      $region1014: #{cbow_forward.2} parent=1009 // loop_body
        %v1300 = vld [vmem:[%s1298] sm:%s1291]
        %1301 = vst [vmem:[%s1299] sm:%s1291] %v1300
      $region1015: #{cbow_forward.2} parent=1009 // loop_footer
        %s1297 = sadd.s32 1, %s1293
      $region1016: #{cbow_forward.2} parent=1009 // loop_footer_branch
        %1292 = sbr.rel target = $region1012
      $region1017: #{cbow_forward.2} parent=1009 // loop_exit
        _
    $region1010: #{cbow_forward.2} parent=994 // pred_fallthru
      _
  $region995: #{cbow_forward.2} parent=0 // pred_fallthru
    _
  // Predicated region
  $region996: #{cbow_forward.2} parent=0 // pred_check
    _
  $region997: #{cbow_forward.2} parent=0 // pred_check_branch
    %1275 = sbr.rel (0) target = $region999
  $region998: #{cbow_forward.2} parent=0 // pred_region
    %s1277 = ssub.s32 2, 1
    loop: start=0, step=1, limit=1
    $region1000: #{cbow_forward.2} parent=998 // loop_pre_header
      _
    $region1001: #{cbow_forward.2} parent=998 // loop_header
      %s1279 = sphi 0, %s1283
      %p1280 = scmp.ge.s32.totalorder %s1279, 1
      %s1284 = sphi %s1270, %s1270
      %s1285 = sphi %s1271, %s1271
    $region1002: #{cbow_forward.2} parent=998 // loop_header_branch
      %1282 = sbr.rel (%p1280) target = $region1006
    $region1003: #{cbow_forward.2} parent=998 // loop_body
      %v1286 = vld [vmem:[%s1284] sm:%s1277]
      %1287 = vst [vmem:[%s1285] sm:%s1277] %v1286
    $region1004: #{cbow_forward.2} parent=998 // loop_footer
      %s1283 = sadd.s32 1, %s1279
    $region1005: #{cbow_forward.2} parent=998 // loop_footer_branch
      %1278 = sbr.rel target = $region1001
    $region1006: #{cbow_forward.2} parent=998 // loop_exit
      _
  $region999: #{cbow_forward.2} parent=0 // pred_fallthru
    _
  // Predicated region
  $region1018: #{cbow_forward.2} parent=0 // pred_check
    _
  $region1019: #{cbow_forward.2} parent=0 // pred_check_branch
    %1304 = sbr.rel (0) target = $region1021
  $region1020: #{cbow_forward.2} parent=0 // pred_region
    %1305 = vsyncadd [#allocation3], 16
  $region1021: #{cbow_forward.2} parent=0 // pred_fallthru
    _
  %s1306 = sadd.s32 %s15, 34
  %s1307 = sld [smem:[#allocation5 + %s1306]]
  %s1308 = scalar_lea.vmem %s1, %s1307
  %s1309 = scalar_lea.vmem [#allocation2], 34
  // Predicated region
  $region1022: #{cbow_forward.2} parent=0 // pred_check
    _
  $region1023: #{cbow_forward.2} parent=0 // pred_check_branch
    %1311 = sbr.rel target = $region1025
  $region1024: #{cbow_forward.2} parent=0 // pred_region
    // Predicated region
    $region1037: #{cbow_forward.2} parent=1024 // pred_check
      _
    $region1038: #{cbow_forward.2} parent=1024 // pred_check_branch
      %1327 = sbr.rel (0) target = $region1040
    $region1039: #{cbow_forward.2} parent=1024 // pred_region
      %s1329 = ssub.s32 2, 1
      loop: start=0, step=1, limit=1
      $region1041: #{cbow_forward.2} parent=1039 // loop_pre_header
        _
      $region1042: #{cbow_forward.2} parent=1039 // loop_header
        %s1331 = sphi 0, %s1335
        %p1332 = scmp.ge.s32.totalorder %s1331, 1
        %s1336 = sphi %s1308, %s1308
        %s1337 = sphi %s1309, %s1309
      $region1043: #{cbow_forward.2} parent=1039 // loop_header_branch
        %1334 = sbr.rel (%p1332) target = $region1047
      $region1044: #{cbow_forward.2} parent=1039 // loop_body
        %v1338 = vld [vmem:[%s1336] sm:%s1329]
        %1339 = vst [vmem:[%s1337] sm:%s1329] %v1338
      $region1045: #{cbow_forward.2} parent=1039 // loop_footer
        %s1335 = sadd.s32 1, %s1331
      $region1046: #{cbow_forward.2} parent=1039 // loop_footer_branch
        %1330 = sbr.rel target = $region1042
      $region1047: #{cbow_forward.2} parent=1039 // loop_exit
        _
    $region1040: #{cbow_forward.2} parent=1024 // pred_fallthru
      _
  $region1025: #{cbow_forward.2} parent=0 // pred_fallthru
    _
  // Predicated region
  $region1026: #{cbow_forward.2} parent=0 // pred_check
    _
  $region1027: #{cbow_forward.2} parent=0 // pred_check_branch
    %1313 = sbr.rel (0) target = $region1029
  $region1028: #{cbow_forward.2} parent=0 // pred_region
    %s1315 = ssub.s32 2, 1
    loop: start=0, step=1, limit=1
    $region1030: #{cbow_forward.2} parent=1028 // loop_pre_header
      _
    $region1031: #{cbow_forward.2} parent=1028 // loop_header
      %s1317 = sphi 0, %s1321
      %p1318 = scmp.ge.s32.totalorder %s1317, 1
      %s1322 = sphi %s1308, %s1308
      %s1323 = sphi %s1309, %s1309
    $region1032: #{cbow_forward.2} parent=1028 // loop_header_branch
      %1320 = sbr.rel (%p1318) target = $region1036
    $region1033: #{cbow_forward.2} parent=1028 // loop_body
      %v1324 = vld [vmem:[%s1322] sm:%s1315]
      %1325 = vst [vmem:[%s1323] sm:%s1315] %v1324
    $region1034: #{cbow_forward.2} parent=1028 // loop_footer
      %s1321 = sadd.s32 1, %s1317
    $region1035: #{cbow_forward.2} parent=1028 // loop_footer_branch
      %1316 = sbr.rel target = $region1031
    $region1036: #{cbow_forward.2} parent=1028 // loop_exit
      _
  $region1029: #{cbow_forward.2} parent=0 // pred_fallthru
    _
  // Predicated region
  $region1048: #{cbow_forward.2} parent=0 // pred_check
    _
  $region1049: #{cbow_forward.2} parent=0 // pred_check_branch
    %1342 = sbr.rel (0) target = $region1051
  $region1050: #{cbow_forward.2} parent=0 // pred_region
    %1343 = vsyncadd [#allocation3], 16
  $region1051: #{cbow_forward.2} parent=0 // pred_fallthru
    _
  %s1344 = sadd.s32 %s15, 35
  %s1345 = sld [smem:[#allocation5 + %s1344]]
  %s1346 = scalar_lea.vmem %s1, %s1345
  %s1347 = scalar_lea.vmem [#allocation2], 35
  // Predicated region
  $region1052: #{cbow_forward.2} parent=0 // pred_check
    _
  $region1053: #{cbow_forward.2} parent=0 // pred_check_branch
    %1349 = sbr.rel target = $region1055
  $region1054: #{cbow_forward.2} parent=0 // pred_region
    // Predicated region
    $region1067: #{cbow_forward.2} parent=1054 // pred_check
      _
    $region1068: #{cbow_forward.2} parent=1054 // pred_check_branch
      %1365 = sbr.rel (0) target = $region1070
    $region1069: #{cbow_forward.2} parent=1054 // pred_region
      %s1367 = ssub.s32 2, 1
      loop: start=0, step=1, limit=1
      $region1071: #{cbow_forward.2} parent=1069 // loop_pre_header
        _
      $region1072: #{cbow_forward.2} parent=1069 // loop_header
        %s1369 = sphi 0, %s1373
        %p1370 = scmp.ge.s32.totalorder %s1369, 1
        %s1374 = sphi %s1346, %s1346
        %s1375 = sphi %s1347, %s1347
      $region1073: #{cbow_forward.2} parent=1069 // loop_header_branch
        %1372 = sbr.rel (%p1370) target = $region1077
      $region1074: #{cbow_forward.2} parent=1069 // loop_body
        %v1376 = vld [vmem:[%s1374] sm:%s1367]
        %1377 = vst [vmem:[%s1375] sm:%s1367] %v1376
      $region1075: #{cbow_forward.2} parent=1069 // loop_footer
        %s1373 = sadd.s32 1, %s1369
      $region1076: #{cbow_forward.2} parent=1069 // loop_footer_branch
        %1368 = sbr.rel target = $region1072
      $region1077: #{cbow_forward.2} parent=1069 // loop_exit
        _
    $region1070: #{cbow_forward.2} parent=1054 // pred_fallthru
      _
  $region1055: #{cbow_forward.2} parent=0 // pred_fallthru
    _
  // Predicated region
  $region1056: #{cbow_forward.2} parent=0 // pred_check
    _
  $region1057: #{cbow_forward.2} parent=0 // pred_check_branch
    %1351 = sbr.rel (0) target = $region1059
  $region1058: #{cbow_forward.2} parent=0 // pred_region
    %s1353 = ssub.s32 2, 1
    loop: start=0, step=1, limit=1
    $region1060: #{cbow_forward.2} parent=1058 // loop_pre_header
      _
    $region1061: #{cbow_forward.2} parent=1058 // loop_header
      %s1355 = sphi 0, %s1359
      %p1356 = scmp.ge.s32.totalorder %s1355, 1
      %s1360 = sphi %s1346, %s1346
      %s1361 = sphi %s1347, %s1347
    $region1062: #{cbow_forward.2} parent=1058 // loop_header_branch
      %1358 = sbr.rel (%p1356) target = $region1066
    $region1063: #{cbow_forward.2} parent=1058 // loop_body
      %v1362 = vld [vmem:[%s1360] sm:%s1353]
      %1363 = vst [vmem:[%s1361] sm:%s1353] %v1362
    $region1064: #{cbow_forward.2} parent=1058 // loop_footer
      %s1359 = sadd.s32 1, %s1355
    $region1065: #{cbow_forward.2} parent=1058 // loop_footer_branch
      %1354 = sbr.rel target = $region1061
    $region1066: #{cbow_forward.2} parent=1058 // loop_exit
      _
  $region1059: #{cbow_forward.2} parent=0 // pred_fallthru
    _
  // Predicated region
  $region1078: #{cbow_forward.2} parent=0 // pred_check
    _
  $region1079: #{cbow_forward.2} parent=0 // pred_check_branch
    %1380 = sbr.rel (0) target = $region1081
  $region1080: #{cbow_forward.2} parent=0 // pred_region
    %1381 = vsyncadd [#allocation3], 16
  $region1081: #{cbow_forward.2} parent=0 // pred_fallthru
    _
  %s1382 = sadd.s32 %s15, 36
  %s1383 = sld [smem:[#allocation5 + %s1382]]
  %s1384 = scalar_lea.vmem %s1, %s1383
  %s1385 = scalar_lea.vmem [#allocation2], 36
  // Predicated region
  $region1082: #{cbow_forward.2} parent=0 // pred_check
    _
  $region1083: #{cbow_forward.2} parent=0 // pred_check_branch
    %1387 = sbr.rel target = $region1085
  $region1084: #{cbow_forward.2} parent=0 // pred_region
    // Predicated region
    $region1097: #{cbow_forward.2} parent=1084 // pred_check
      _
    $region1098: #{cbow_forward.2} parent=1084 // pred_check_branch
      %1403 = sbr.rel (0) target = $region1100
    $region1099: #{cbow_forward.2} parent=1084 // pred_region
      %s1405 = ssub.s32 2, 1
      loop: start=0, step=1, limit=1
      $region1101: #{cbow_forward.2} parent=1099 // loop_pre_header
        _
      $region1102: #{cbow_forward.2} parent=1099 // loop_header
        %s1407 = sphi 0, %s1411
        %p1408 = scmp.ge.s32.totalorder %s1407, 1
        %s1412 = sphi %s1384, %s1384
        %s1413 = sphi %s1385, %s1385
      $region1103: #{cbow_forward.2} parent=1099 // loop_header_branch
        %1410 = sbr.rel (%p1408) target = $region1107
      $region1104: #{cbow_forward.2} parent=1099 // loop_body
        %v1414 = vld [vmem:[%s1412] sm:%s1405]
        %1415 = vst [vmem:[%s1413] sm:%s1405] %v1414
      $region1105: #{cbow_forward.2} parent=1099 // loop_footer
        %s1411 = sadd.s32 1, %s1407
      $region1106: #{cbow_forward.2} parent=1099 // loop_footer_branch
        %1406 = sbr.rel target = $region1102
      $region1107: #{cbow_forward.2} parent=1099 // loop_exit
        _
    $region1100: #{cbow_forward.2} parent=1084 // pred_fallthru
      _
  $region1085: #{cbow_forward.2} parent=0 // pred_fallthru
    _
  // Predicated region
  $region1086: #{cbow_forward.2} parent=0 // pred_check
    _
  $region1087: #{cbow_forward.2} parent=0 // pred_check_branch
    %1389 = sbr.rel (0) target = $region1089
  $region1088: #{cbow_forward.2} parent=0 // pred_region
    %s1391 = ssub.s32 2, 1
    loop: start=0, step=1, limit=1
    $region1090: #{cbow_forward.2} parent=1088 // loop_pre_header
      _
    $region1091: #{cbow_forward.2} parent=1088 // loop_header
      %s1393 = sphi 0, %s1397
      %p1394 = scmp.ge.s32.totalorder %s1393, 1
      %s1398 = sphi %s1384, %s1384
      %s1399 = sphi %s1385, %s1385
    $region1092: #{cbow_forward.2} parent=1088 // loop_header_branch
      %1396 = sbr.rel (%p1394) target = $region1096
    $region1093: #{cbow_forward.2} parent=1088 // loop_body
      %v1400 = vld [vmem:[%s1398] sm:%s1391]
      %1401 = vst [vmem:[%s1399] sm:%s1391] %v1400
    $region1094: #{cbow_forward.2} parent=1088 // loop_footer
      %s1397 = sadd.s32 1, %s1393
    $region1095: #{cbow_forward.2} parent=1088 // loop_footer_branch
      %1392 = sbr.rel target = $region1091
    $region1096: #{cbow_forward.2} parent=1088 // loop_exit
      _
  $region1089: #{cbow_forward.2} parent=0 // pred_fallthru
    _
  // Predicated region
  $region1108: #{cbow_forward.2} parent=0 // pred_check
    _
  $region1109: #{cbow_forward.2} parent=0 // pred_check_branch
    %1418 = sbr.rel (0) target = $region1111
  $region1110: #{cbow_forward.2} parent=0 // pred_region
    %1419 = vsyncadd [#allocation3], 16
  $region1111: #{cbow_forward.2} parent=0 // pred_fallthru
    _
  %s1420 = sadd.s32 %s15, 37
  %s1421 = sld [smem:[#allocation5 + %s1420]]
  %s1422 = scalar_lea.vmem %s1, %s1421
  %s1423 = scalar_lea.vmem [#allocation2], 37
  // Predicated region
  $region1112: #{cbow_forward.2} parent=0 // pred_check
    _
  $region1113: #{cbow_forward.2} parent=0 // pred_check_branch
    %1425 = sbr.rel target = $region1115
  $region1114: #{cbow_forward.2} parent=0 // pred_region
    // Predicated region
    $region1127: #{cbow_forward.2} parent=1114 // pred_check
      _
    $region1128: #{cbow_forward.2} parent=1114 // pred_check_branch
      %1441 = sbr.rel (0) target = $region1130
    $region1129: #{cbow_forward.2} parent=1114 // pred_region
      %s1443 = ssub.s32 2, 1
      loop: start=0, step=1, limit=1
      $region1131: #{cbow_forward.2} parent=1129 // loop_pre_header
        _
      $region1132: #{cbow_forward.2} parent=1129 // loop_header
        %s1445 = sphi 0, %s1449
        %p1446 = scmp.ge.s32.totalorder %s1445, 1
        %s1450 = sphi %s1422, %s1422
        %s1451 = sphi %s1423, %s1423
      $region1133: #{cbow_forward.2} parent=1129 // loop_header_branch
        %1448 = sbr.rel (%p1446) target = $region1137
      $region1134: #{cbow_forward.2} parent=1129 // loop_body
        %v1452 = vld [vmem:[%s1450] sm:%s1443]
        %1453 = vst [vmem:[%s1451] sm:%s1443] %v1452
      $region1135: #{cbow_forward.2} parent=1129 // loop_footer
        %s1449 = sadd.s32 1, %s1445
      $region1136: #{cbow_forward.2} parent=1129 // loop_footer_branch
        %1444 = sbr.rel target = $region1132
      $region1137: #{cbow_forward.2} parent=1129 // loop_exit
        _
    $region1130: #{cbow_forward.2} parent=1114 // pred_fallthru
      _
  $region1115: #{cbow_forward.2} parent=0 // pred_fallthru
    _
  // Predicated region
  $region1116: #{cbow_forward.2} parent=0 // pred_check
    _
  $region1117: #{cbow_forward.2} parent=0 // pred_check_branch
    %1427 = sbr.rel (0) target = $region1119
  $region1118: #{cbow_forward.2} parent=0 // pred_region
    %s1429 = ssub.s32 2, 1
    loop: start=0, step=1, limit=1
    $region1120: #{cbow_forward.2} parent=1118 // loop_pre_header
      _
    $region1121: #{cbow_forward.2} parent=1118 // loop_header
      %s1431 = sphi 0, %s1435
      %p1432 = scmp.ge.s32.totalorder %s1431, 1
      %s1436 = sphi %s1422, %s1422
      %s1437 = sphi %s1423, %s1423
    $region1122: #{cbow_forward.2} parent=1118 // loop_header_branch
      %1434 = sbr.rel (%p1432) target = $region1126
    $region1123: #{cbow_forward.2} parent=1118 // loop_body
      %v1438 = vld [vmem:[%s1436] sm:%s1429]
      %1439 = vst [vmem:[%s1437] sm:%s1429] %v1438
    $region1124: #{cbow_forward.2} parent=1118 // loop_footer
      %s1435 = sadd.s32 1, %s1431
    $region1125: #{cbow_forward.2} parent=1118 // loop_footer_branch
      %1430 = sbr.rel target = $region1121
    $region1126: #{cbow_forward.2} parent=1118 // loop_exit
      _
  $region1119: #{cbow_forward.2} parent=0 // pred_fallthru
    _
  // Predicated region
  $region1138: #{cbow_forward.2} parent=0 // pred_check
    _
  $region1139: #{cbow_forward.2} parent=0 // pred_check_branch
    %1456 = sbr.rel (0) target = $region1141
  $region1140: #{cbow_forward.2} parent=0 // pred_region
    %1457 = vsyncadd [#allocation3], 16
  $region1141: #{cbow_forward.2} parent=0 // pred_fallthru
    _
  %s1458 = sadd.s32 %s15, 38
  %s1459 = sld [smem:[#allocation5 + %s1458]]
  %s1460 = scalar_lea.vmem %s1, %s1459
  %s1461 = scalar_lea.vmem [#allocation2], 38
  // Predicated region
  $region1142: #{cbow_forward.2} parent=0 // pred_check
    _
  $region1143: #{cbow_forward.2} parent=0 // pred_check_branch
    %1463 = sbr.rel target = $region1145
  $region1144: #{cbow_forward.2} parent=0 // pred_region
    // Predicated region
    $region1157: #{cbow_forward.2} parent=1144 // pred_check
      _
    $region1158: #{cbow_forward.2} parent=1144 // pred_check_branch
      %1479 = sbr.rel (0) target = $region1160
    $region1159: #{cbow_forward.2} parent=1144 // pred_region
      %s1481 = ssub.s32 2, 1
      loop: start=0, step=1, limit=1
      $region1161: #{cbow_forward.2} parent=1159 // loop_pre_header
        _
      $region1162: #{cbow_forward.2} parent=1159 // loop_header
        %s1483 = sphi 0, %s1487
        %p1484 = scmp.ge.s32.totalorder %s1483, 1
        %s1488 = sphi %s1460, %s1460
        %s1489 = sphi %s1461, %s1461
      $region1163: #{cbow_forward.2} parent=1159 // loop_header_branch
        %1486 = sbr.rel (%p1484) target = $region1167
      $region1164: #{cbow_forward.2} parent=1159 // loop_body
        %v1490 = vld [vmem:[%s1488] sm:%s1481]
        %1491 = vst [vmem:[%s1489] sm:%s1481] %v1490
      $region1165: #{cbow_forward.2} parent=1159 // loop_footer
        %s1487 = sadd.s32 1, %s1483
      $region1166: #{cbow_forward.2} parent=1159 // loop_footer_branch
        %1482 = sbr.rel target = $region1162
      $region1167: #{cbow_forward.2} parent=1159 // loop_exit
        _
    $region1160: #{cbow_forward.2} parent=1144 // pred_fallthru
      _
  $region1145: #{cbow_forward.2} parent=0 // pred_fallthru
    _
  // Predicated region
  $region1146: #{cbow_forward.2} parent=0 // pred_check
    _
  $region1147: #{cbow_forward.2} parent=0 // pred_check_branch
    %1465 = sbr.rel (0) target = $region1149
  $region1148: #{cbow_forward.2} parent=0 // pred_region
    %s1467 = ssub.s32 2, 1
    loop: start=0, step=1, limit=1
    $region1150: #{cbow_forward.2} parent=1148 // loop_pre_header
      _
    $region1151: #{cbow_forward.2} parent=1148 // loop_header
      %s1469 = sphi 0, %s1473
      %p1470 = scmp.ge.s32.totalorder %s1469, 1
      %s1474 = sphi %s1460, %s1460
      %s1475 = sphi %s1461, %s1461
    $region1152: #{cbow_forward.2} parent=1148 // loop_header_branch
      %1472 = sbr.rel (%p1470) target = $region1156
    $region1153: #{cbow_forward.2} parent=1148 // loop_body
      %v1476 = vld [vmem:[%s1474] sm:%s1467]
      %1477 = vst [vmem:[%s1475] sm:%s1467] %v1476
    $region1154: #{cbow_forward.2} parent=1148 // loop_footer
      %s1473 = sadd.s32 1, %s1469
    $region1155: #{cbow_forward.2} parent=1148 // loop_footer_branch
      %1468 = sbr.rel target = $region1151
    $region1156: #{cbow_forward.2} parent=1148 // loop_exit
      _
  $region1149: #{cbow_forward.2} parent=0 // pred_fallthru
    _
  // Predicated region
  $region1168: #{cbow_forward.2} parent=0 // pred_check
    _
  $region1169: #{cbow_forward.2} parent=0 // pred_check_branch
    %1494 = sbr.rel (0) target = $region1171
  $region1170: #{cbow_forward.2} parent=0 // pred_region
    %1495 = vsyncadd [#allocation3], 16
  $region1171: #{cbow_forward.2} parent=0 // pred_fallthru
    _
  %s1496 = sadd.s32 %s15, 39
  %s1497 = sld [smem:[#allocation5 + %s1496]]
  %s1498 = scalar_lea.vmem %s1, %s1497
  %s1499 = scalar_lea.vmem [#allocation2], 39
  // Predicated region
  $region1172: #{cbow_forward.2} parent=0 // pred_check
    _
  $region1173: #{cbow_forward.2} parent=0 // pred_check_branch
    %1501 = sbr.rel target = $region1175
  $region1174: #{cbow_forward.2} parent=0 // pred_region
    // Predicated region
    $region1187: #{cbow_forward.2} parent=1174 // pred_check
      _
    $region1188: #{cbow_forward.2} parent=1174 // pred_check_branch
      %1517 = sbr.rel (0) target = $region1190
    $region1189: #{cbow_forward.2} parent=1174 // pred_region
      %s1519 = ssub.s32 2, 1
      loop: start=0, step=1, limit=1
      $region1191: #{cbow_forward.2} parent=1189 // loop_pre_header
        _
      $region1192: #{cbow_forward.2} parent=1189 // loop_header
        %s1521 = sphi 0, %s1525
        %p1522 = scmp.ge.s32.totalorder %s1521, 1
        %s1526 = sphi %s1498, %s1498
        %s1527 = sphi %s1499, %s1499
      $region1193: #{cbow_forward.2} parent=1189 // loop_header_branch
        %1524 = sbr.rel (%p1522) target = $region1197
      $region1194: #{cbow_forward.2} parent=1189 // loop_body
        %v1528 = vld [vmem:[%s1526] sm:%s1519]
        %1529 = vst [vmem:[%s1527] sm:%s1519] %v1528
      $region1195: #{cbow_forward.2} parent=1189 // loop_footer
        %s1525 = sadd.s32 1, %s1521
      $region1196: #{cbow_forward.2} parent=1189 // loop_footer_branch
        %1520 = sbr.rel target = $region1192
      $region1197: #{cbow_forward.2} parent=1189 // loop_exit
        _
    $region1190: #{cbow_forward.2} parent=1174 // pred_fallthru
      _
  $region1175: #{cbow_forward.2} parent=0 // pred_fallthru
    _
  // Predicated region
  $region1176: #{cbow_forward.2} parent=0 // pred_check
    _
  $region1177: #{cbow_forward.2} parent=0 // pred_check_branch
    %1503 = sbr.rel (0) target = $region1179
  $region1178: #{cbow_forward.2} parent=0 // pred_region
    %s1505 = ssub.s32 2, 1
    loop: start=0, step=1, limit=1
    $region1180: #{cbow_forward.2} parent=1178 // loop_pre_header
      _
    $region1181: #{cbow_forward.2} parent=1178 // loop_header
      %s1507 = sphi 0, %s1511
      %p1508 = scmp.ge.s32.totalorder %s1507, 1
      %s1512 = sphi %s1498, %s1498
      %s1513 = sphi %s1499, %s1499
    $region1182: #{cbow_forward.2} parent=1178 // loop_header_branch
      %1510 = sbr.rel (%p1508) target = $region1186
    $region1183: #{cbow_forward.2} parent=1178 // loop_body
      %v1514 = vld [vmem:[%s1512] sm:%s1505]
      %1515 = vst [vmem:[%s1513] sm:%s1505] %v1514
    $region1184: #{cbow_forward.2} parent=1178 // loop_footer
      %s1511 = sadd.s32 1, %s1507
    $region1185: #{cbow_forward.2} parent=1178 // loop_footer_branch
      %1506 = sbr.rel target = $region1181
    $region1186: #{cbow_forward.2} parent=1178 // loop_exit
      _
  $region1179: #{cbow_forward.2} parent=0 // pred_fallthru
    _
  // Predicated region
  $region1198: #{cbow_forward.2} parent=0 // pred_check
    _
  $region1199: #{cbow_forward.2} parent=0 // pred_check_branch
    %1532 = sbr.rel (0) target = $region1201
  $region1200: #{cbow_forward.2} parent=0 // pred_region
    %1533 = vsyncadd [#allocation3], 16
  $region1201: #{cbow_forward.2} parent=0 // pred_fallthru
    _
  %s1534 = sadd.s32 %s15, 40
  %s1535 = sld [smem:[#allocation5 + %s1534]]
  %s1536 = scalar_lea.vmem %s1, %s1535
  %s1537 = scalar_lea.vmem [#allocation2], 40
  // Predicated region
  $region1202: #{cbow_forward.2} parent=0 // pred_check
    _
  $region1203: #{cbow_forward.2} parent=0 // pred_check_branch
    %1539 = sbr.rel target = $region1205
  $region1204: #{cbow_forward.2} parent=0 // pred_region
    // Predicated region
    $region1217: #{cbow_forward.2} parent=1204 // pred_check
      _
    $region1218: #{cbow_forward.2} parent=1204 // pred_check_branch
      %1555 = sbr.rel (0) target = $region1220
    $region1219: #{cbow_forward.2} parent=1204 // pred_region
      %s1557 = ssub.s32 2, 1
      loop: start=0, step=1, limit=1
      $region1221: #{cbow_forward.2} parent=1219 // loop_pre_header
        _
      $region1222: #{cbow_forward.2} parent=1219 // loop_header
        %s1559 = sphi 0, %s1563
        %p1560 = scmp.ge.s32.totalorder %s1559, 1
        %s1564 = sphi %s1536, %s1536
        %s1565 = sphi %s1537, %s1537
      $region1223: #{cbow_forward.2} parent=1219 // loop_header_branch
        %1562 = sbr.rel (%p1560) target = $region1227
      $region1224: #{cbow_forward.2} parent=1219 // loop_body
        %v1566 = vld [vmem:[%s1564] sm:%s1557]
        %1567 = vst [vmem:[%s1565] sm:%s1557] %v1566
      $region1225: #{cbow_forward.2} parent=1219 // loop_footer
        %s1563 = sadd.s32 1, %s1559
      $region1226: #{cbow_forward.2} parent=1219 // loop_footer_branch
        %1558 = sbr.rel target = $region1222
      $region1227: #{cbow_forward.2} parent=1219 // loop_exit
        _
    $region1220: #{cbow_forward.2} parent=1204 // pred_fallthru
      _
  $region1205: #{cbow_forward.2} parent=0 // pred_fallthru
    _
  // Predicated region
  $region1206: #{cbow_forward.2} parent=0 // pred_check
    _
  $region1207: #{cbow_forward.2} parent=0 // pred_check_branch
    %1541 = sbr.rel (0) target = $region1209
  $region1208: #{cbow_forward.2} parent=0 // pred_region
    %s1543 = ssub.s32 2, 1
    loop: start=0, step=1, limit=1
    $region1210: #{cbow_forward.2} parent=1208 // loop_pre_header
      _
    $region1211: #{cbow_forward.2} parent=1208 // loop_header
      %s1545 = sphi 0, %s1549
      %p1546 = scmp.ge.s32.totalorder %s1545, 1
      %s1550 = sphi %s1536, %s1536
      %s1551 = sphi %s1537, %s1537
    $region1212: #{cbow_forward.2} parent=1208 // loop_header_branch
      %1548 = sbr.rel (%p1546) target = $region1216
    $region1213: #{cbow_forward.2} parent=1208 // loop_body
      %v1552 = vld [vmem:[%s1550] sm:%s1543]
      %1553 = vst [vmem:[%s1551] sm:%s1543] %v1552
    $region1214: #{cbow_forward.2} parent=1208 // loop_footer
      %s1549 = sadd.s32 1, %s1545
    $region1215: #{cbow_forward.2} parent=1208 // loop_footer_branch
      %1544 = sbr.rel target = $region1211
    $region1216: #{cbow_forward.2} parent=1208 // loop_exit
      _
  $region1209: #{cbow_forward.2} parent=0 // pred_fallthru
    _
  // Predicated region
  $region1228: #{cbow_forward.2} parent=0 // pred_check
    _
  $region1229: #{cbow_forward.2} parent=0 // pred_check_branch
    %1570 = sbr.rel (0) target = $region1231
  $region1230: #{cbow_forward.2} parent=0 // pred_region
    %1571 = vsyncadd [#allocation3], 16
  $region1231: #{cbow_forward.2} parent=0 // pred_fallthru
    _
  %s1572 = sadd.s32 %s15, 41
  %s1573 = sld [smem:[#allocation5 + %s1572]]
  %s1574 = scalar_lea.vmem %s1, %s1573
  %s1575 = scalar_lea.vmem [#allocation2], 41
  // Predicated region
  $region1232: #{cbow_forward.2} parent=0 // pred_check
    _
  $region1233: #{cbow_forward.2} parent=0 // pred_check_branch
    %1577 = sbr.rel target = $region1235
  $region1234: #{cbow_forward.2} parent=0 // pred_region
    // Predicated region
    $region1247: #{cbow_forward.2} parent=1234 // pred_check
      _
    $region1248: #{cbow_forward.2} parent=1234 // pred_check_branch
      %1593 = sbr.rel (0) target = $region1250
    $region1249: #{cbow_forward.2} parent=1234 // pred_region
      %s1595 = ssub.s32 2, 1
      loop: start=0, step=1, limit=1
      $region1251: #{cbow_forward.2} parent=1249 // loop_pre_header
        _
      $region1252: #{cbow_forward.2} parent=1249 // loop_header
        %s1597 = sphi 0, %s1601
        %p1598 = scmp.ge.s32.totalorder %s1597, 1
        %s1602 = sphi %s1574, %s1574
        %s1603 = sphi %s1575, %s1575
      $region1253: #{cbow_forward.2} parent=1249 // loop_header_branch
        %1600 = sbr.rel (%p1598) target = $region1257
      $region1254: #{cbow_forward.2} parent=1249 // loop_body
        %v1604 = vld [vmem:[%s1602] sm:%s1595]
        %1605 = vst [vmem:[%s1603] sm:%s1595] %v1604
      $region1255: #{cbow_forward.2} parent=1249 // loop_footer
        %s1601 = sadd.s32 1, %s1597
      $region1256: #{cbow_forward.2} parent=1249 // loop_footer_branch
        %1596 = sbr.rel target = $region1252
      $region1257: #{cbow_forward.2} parent=1249 // loop_exit
        _
    $region1250: #{cbow_forward.2} parent=1234 // pred_fallthru
      _
  $region1235: #{cbow_forward.2} parent=0 // pred_fallthru
    _
  // Predicated region
  $region1236: #{cbow_forward.2} parent=0 // pred_check
    _
  $region1237: #{cbow_forward.2} parent=0 // pred_check_branch
    %1579 = sbr.rel (0) target = $region1239
  $region1238: #{cbow_forward.2} parent=0 // pred_region
    %s1581 = ssub.s32 2, 1
    loop: start=0, step=1, limit=1
    $region1240: #{cbow_forward.2} parent=1238 // loop_pre_header
      _
    $region1241: #{cbow_forward.2} parent=1238 // loop_header
      %s1583 = sphi 0, %s1587
      %p1584 = scmp.ge.s32.totalorder %s1583, 1
      %s1588 = sphi %s1574, %s1574
      %s1589 = sphi %s1575, %s1575
    $region1242: #{cbow_forward.2} parent=1238 // loop_header_branch
      %1586 = sbr.rel (%p1584) target = $region1246
    $region1243: #{cbow_forward.2} parent=1238 // loop_body
      %v1590 = vld [vmem:[%s1588] sm:%s1581]
      %1591 = vst [vmem:[%s1589] sm:%s1581] %v1590
    $region1244: #{cbow_forward.2} parent=1238 // loop_footer
      %s1587 = sadd.s32 1, %s1583
    $region1245: #{cbow_forward.2} parent=1238 // loop_footer_branch
      %1582 = sbr.rel target = $region1241
    $region1246: #{cbow_forward.2} parent=1238 // loop_exit
      _
  $region1239: #{cbow_forward.2} parent=0 // pred_fallthru
    _
  // Predicated region
  $region1258: #{cbow_forward.2} parent=0 // pred_check
    _
  $region1259: #{cbow_forward.2} parent=0 // pred_check_branch
    %1608 = sbr.rel (0) target = $region1261
  $region1260: #{cbow_forward.2} parent=0 // pred_region
    %1609 = vsyncadd [#allocation3], 16
  $region1261: #{cbow_forward.2} parent=0 // pred_fallthru
    _
  %s1610 = sadd.s32 %s15, 42
  %s1611 = sld [smem:[#allocation5 + %s1610]]
  %s1612 = scalar_lea.vmem %s1, %s1611
  %s1613 = scalar_lea.vmem [#allocation2], 42
  // Predicated region
  $region1262: #{cbow_forward.2} parent=0 // pred_check
    _
  $region1263: #{cbow_forward.2} parent=0 // pred_check_branch
    %1615 = sbr.rel target = $region1265
  $region1264: #{cbow_forward.2} parent=0 // pred_region
    // Predicated region
    $region1277: #{cbow_forward.2} parent=1264 // pred_check
      _
    $region1278: #{cbow_forward.2} parent=1264 // pred_check_branch
      %1631 = sbr.rel (0) target = $region1280
    $region1279: #{cbow_forward.2} parent=1264 // pred_region
      %s1633 = ssub.s32 2, 1
      loop: start=0, step=1, limit=1
      $region1281: #{cbow_forward.2} parent=1279 // loop_pre_header
        _
      $region1282: #{cbow_forward.2} parent=1279 // loop_header
        %s1635 = sphi 0, %s1639
        %p1636 = scmp.ge.s32.totalorder %s1635, 1
        %s1640 = sphi %s1612, %s1612
        %s1641 = sphi %s1613, %s1613
      $region1283: #{cbow_forward.2} parent=1279 // loop_header_branch
        %1638 = sbr.rel (%p1636) target = $region1287
      $region1284: #{cbow_forward.2} parent=1279 // loop_body
        %v1642 = vld [vmem:[%s1640] sm:%s1633]
        %1643 = vst [vmem:[%s1641] sm:%s1633] %v1642
      $region1285: #{cbow_forward.2} parent=1279 // loop_footer
        %s1639 = sadd.s32 1, %s1635
      $region1286: #{cbow_forward.2} parent=1279 // loop_footer_branch
        %1634 = sbr.rel target = $region1282
      $region1287: #{cbow_forward.2} parent=1279 // loop_exit
        _
    $region1280: #{cbow_forward.2} parent=1264 // pred_fallthru
      _
  $region1265: #{cbow_forward.2} parent=0 // pred_fallthru
    _
  // Predicated region
  $region1266: #{cbow_forward.2} parent=0 // pred_check
    _
  $region1267: #{cbow_forward.2} parent=0 // pred_check_branch
    %1617 = sbr.rel (0) target = $region1269
  $region1268: #{cbow_forward.2} parent=0 // pred_region
    %s1619 = ssub.s32 2, 1
    loop: start=0, step=1, limit=1
    $region1270: #{cbow_forward.2} parent=1268 // loop_pre_header
      _
    $region1271: #{cbow_forward.2} parent=1268 // loop_header
      %s1621 = sphi 0, %s1625
      %p1622 = scmp.ge.s32.totalorder %s1621, 1
      %s1626 = sphi %s1612, %s1612
      %s1627 = sphi %s1613, %s1613
    $region1272: #{cbow_forward.2} parent=1268 // loop_header_branch
      %1624 = sbr.rel (%p1622) target = $region1276
    $region1273: #{cbow_forward.2} parent=1268 // loop_body
      %v1628 = vld [vmem:[%s1626] sm:%s1619]
      %1629 = vst [vmem:[%s1627] sm:%s1619] %v1628
    $region1274: #{cbow_forward.2} parent=1268 // loop_footer
      %s1625 = sadd.s32 1, %s1621
    $region1275: #{cbow_forward.2} parent=1268 // loop_footer_branch
      %1620 = sbr.rel target = $region1271
    $region1276: #{cbow_forward.2} parent=1268 // loop_exit
      _
  $region1269: #{cbow_forward.2} parent=0 // pred_fallthru
    _
  // Predicated region
  $region1288: #{cbow_forward.2} parent=0 // pred_check
    _
  $region1289: #{cbow_forward.2} parent=0 // pred_check_branch
    %1646 = sbr.rel (0) target = $region1291
  $region1290: #{cbow_forward.2} parent=0 // pred_region
    %1647 = vsyncadd [#allocation3], 16
  $region1291: #{cbow_forward.2} parent=0 // pred_fallthru
    _
  %s1648 = sadd.s32 %s15, 43
  %s1649 = sld [smem:[#allocation5 + %s1648]]
  %s1650 = scalar_lea.vmem %s1, %s1649
  %s1651 = scalar_lea.vmem [#allocation2], 43
  // Predicated region
  $region1292: #{cbow_forward.2} parent=0 // pred_check
    _
  $region1293: #{cbow_forward.2} parent=0 // pred_check_branch
    %1653 = sbr.rel target = $region1295
  $region1294: #{cbow_forward.2} parent=0 // pred_region
    // Predicated region
    $region1307: #{cbow_forward.2} parent=1294 // pred_check
      _
    $region1308: #{cbow_forward.2} parent=1294 // pred_check_branch
      %1669 = sbr.rel (0) target = $region1310
    $region1309: #{cbow_forward.2} parent=1294 // pred_region
      %s1671 = ssub.s32 2, 1
      loop: start=0, step=1, limit=1
      $region1311: #{cbow_forward.2} parent=1309 // loop_pre_header
        _
      $region1312: #{cbow_forward.2} parent=1309 // loop_header
        %s1673 = sphi 0, %s1677
        %p1674 = scmp.ge.s32.totalorder %s1673, 1
        %s1678 = sphi %s1650, %s1650
        %s1679 = sphi %s1651, %s1651
      $region1313: #{cbow_forward.2} parent=1309 // loop_header_branch
        %1676 = sbr.rel (%p1674) target = $region1317
      $region1314: #{cbow_forward.2} parent=1309 // loop_body
        %v1680 = vld [vmem:[%s1678] sm:%s1671]
        %1681 = vst [vmem:[%s1679] sm:%s1671] %v1680
      $region1315: #{cbow_forward.2} parent=1309 // loop_footer
        %s1677 = sadd.s32 1, %s1673
      $region1316: #{cbow_forward.2} parent=1309 // loop_footer_branch
        %1672 = sbr.rel target = $region1312
      $region1317: #{cbow_forward.2} parent=1309 // loop_exit
        _
    $region1310: #{cbow_forward.2} parent=1294 // pred_fallthru
      _
  $region1295: #{cbow_forward.2} parent=0 // pred_fallthru
    _
  // Predicated region
  $region1296: #{cbow_forward.2} parent=0 // pred_check
    _
  $region1297: #{cbow_forward.2} parent=0 // pred_check_branch
    %1655 = sbr.rel (0) target = $region1299
  $region1298: #{cbow_forward.2} parent=0 // pred_region
    %s1657 = ssub.s32 2, 1
    loop: start=0, step=1, limit=1
    $region1300: #{cbow_forward.2} parent=1298 // loop_pre_header
      _
    $region1301: #{cbow_forward.2} parent=1298 // loop_header
      %s1659 = sphi 0, %s1663
      %p1660 = scmp.ge.s32.totalorder %s1659, 1
      %s1664 = sphi %s1650, %s1650
      %s1665 = sphi %s1651, %s1651
    $region1302: #{cbow_forward.2} parent=1298 // loop_header_branch
      %1662 = sbr.rel (%p1660) target = $region1306
    $region1303: #{cbow_forward.2} parent=1298 // loop_body
      %v1666 = vld [vmem:[%s1664] sm:%s1657]
      %1667 = vst [vmem:[%s1665] sm:%s1657] %v1666
    $region1304: #{cbow_forward.2} parent=1298 // loop_footer
      %s1663 = sadd.s32 1, %s1659
    $region1305: #{cbow_forward.2} parent=1298 // loop_footer_branch
      %1658 = sbr.rel target = $region1301
    $region1306: #{cbow_forward.2} parent=1298 // loop_exit
      _
  $region1299: #{cbow_forward.2} parent=0 // pred_fallthru
    _
  // Predicated region
  $region1318: #{cbow_forward.2} parent=0 // pred_check
    _
  $region1319: #{cbow_forward.2} parent=0 // pred_check_branch
    %1684 = sbr.rel (0) target = $region1321
  $region1320: #{cbow_forward.2} parent=0 // pred_region
    %1685 = vsyncadd [#allocation3], 16
  $region1321: #{cbow_forward.2} parent=0 // pred_fallthru
    _
  %s1686 = sadd.s32 %s15, 44
  %s1687 = sld [smem:[#allocation5 + %s1686]]
  %s1688 = scalar_lea.vmem %s1, %s1687
  %s1689 = scalar_lea.vmem [#allocation2], 44
  // Predicated region
  $region1322: #{cbow_forward.2} parent=0 // pred_check
    _
  $region1323: #{cbow_forward.2} parent=0 // pred_check_branch
    %1691 = sbr.rel target = $region1325
  $region1324: #{cbow_forward.2} parent=0 // pred_region
    // Predicated region
    $region1337: #{cbow_forward.2} parent=1324 // pred_check
      _
    $region1338: #{cbow_forward.2} parent=1324 // pred_check_branch
      %1707 = sbr.rel (0) target = $region1340
    $region1339: #{cbow_forward.2} parent=1324 // pred_region
      %s1709 = ssub.s32 2, 1
      loop: start=0, step=1, limit=1
      $region1341: #{cbow_forward.2} parent=1339 // loop_pre_header
        _
      $region1342: #{cbow_forward.2} parent=1339 // loop_header
        %s1711 = sphi 0, %s1715
        %p1712 = scmp.ge.s32.totalorder %s1711, 1
        %s1716 = sphi %s1688, %s1688
        %s1717 = sphi %s1689, %s1689
      $region1343: #{cbow_forward.2} parent=1339 // loop_header_branch
        %1714 = sbr.rel (%p1712) target = $region1347
      $region1344: #{cbow_forward.2} parent=1339 // loop_body
        %v1718 = vld [vmem:[%s1716] sm:%s1709]
        %1719 = vst [vmem:[%s1717] sm:%s1709] %v1718
      $region1345: #{cbow_forward.2} parent=1339 // loop_footer
        %s1715 = sadd.s32 1, %s1711
      $region1346: #{cbow_forward.2} parent=1339 // loop_footer_branch
        %1710 = sbr.rel target = $region1342
      $region1347: #{cbow_forward.2} parent=1339 // loop_exit
        _
    $region1340: #{cbow_forward.2} parent=1324 // pred_fallthru
      _
  $region1325: #{cbow_forward.2} parent=0 // pred_fallthru
    _
  // Predicated region
  $region1326: #{cbow_forward.2} parent=0 // pred_check
    _
  $region1327: #{cbow_forward.2} parent=0 // pred_check_branch
    %1693 = sbr.rel (0) target = $region1329
  $region1328: #{cbow_forward.2} parent=0 // pred_region
    %s1695 = ssub.s32 2, 1
    loop: start=0, step=1, limit=1
    $region1330: #{cbow_forward.2} parent=1328 // loop_pre_header
      _
    $region1331: #{cbow_forward.2} parent=1328 // loop_header
      %s1697 = sphi 0, %s1701
      %p1698 = scmp.ge.s32.totalorder %s1697, 1
      %s1702 = sphi %s1688, %s1688
      %s1703 = sphi %s1689, %s1689
    $region1332: #{cbow_forward.2} parent=1328 // loop_header_branch
      %1700 = sbr.rel (%p1698) target = $region1336
    $region1333: #{cbow_forward.2} parent=1328 // loop_body
      %v1704 = vld [vmem:[%s1702] sm:%s1695]
      %1705 = vst [vmem:[%s1703] sm:%s1695] %v1704
    $region1334: #{cbow_forward.2} parent=1328 // loop_footer
      %s1701 = sadd.s32 1, %s1697
    $region1335: #{cbow_forward.2} parent=1328 // loop_footer_branch
      %1696 = sbr.rel target = $region1331
    $region1336: #{cbow_forward.2} parent=1328 // loop_exit
      _
  $region1329: #{cbow_forward.2} parent=0 // pred_fallthru
    _
  // Predicated region
  $region1348: #{cbow_forward.2} parent=0 // pred_check
    _
  $region1349: #{cbow_forward.2} parent=0 // pred_check_branch
    %1722 = sbr.rel (0) target = $region1351
  $region1350: #{cbow_forward.2} parent=0 // pred_region
    %1723 = vsyncadd [#allocation3], 16
  $region1351: #{cbow_forward.2} parent=0 // pred_fallthru
    _
  %s1724 = sadd.s32 %s15, 45
  %s1725 = sld [smem:[#allocation5 + %s1724]]
  %s1726 = scalar_lea.vmem %s1, %s1725
  %s1727 = scalar_lea.vmem [#allocation2], 45
  // Predicated region
  $region1352: #{cbow_forward.2} parent=0 // pred_check
    _
  $region1353: #{cbow_forward.2} parent=0 // pred_check_branch
    %1729 = sbr.rel target = $region1355
  $region1354: #{cbow_forward.2} parent=0 // pred_region
    // Predicated region
    $region1367: #{cbow_forward.2} parent=1354 // pred_check
      _
    $region1368: #{cbow_forward.2} parent=1354 // pred_check_branch
      %1745 = sbr.rel (0) target = $region1370
    $region1369: #{cbow_forward.2} parent=1354 // pred_region
      %s1747 = ssub.s32 2, 1
      loop: start=0, step=1, limit=1
      $region1371: #{cbow_forward.2} parent=1369 // loop_pre_header
        _
      $region1372: #{cbow_forward.2} parent=1369 // loop_header
        %s1749 = sphi 0, %s1753
        %p1750 = scmp.ge.s32.totalorder %s1749, 1
        %s1754 = sphi %s1726, %s1726
        %s1755 = sphi %s1727, %s1727
      $region1373: #{cbow_forward.2} parent=1369 // loop_header_branch
        %1752 = sbr.rel (%p1750) target = $region1377
      $region1374: #{cbow_forward.2} parent=1369 // loop_body
        %v1756 = vld [vmem:[%s1754] sm:%s1747]
        %1757 = vst [vmem:[%s1755] sm:%s1747] %v1756
      $region1375: #{cbow_forward.2} parent=1369 // loop_footer
        %s1753 = sadd.s32 1, %s1749
      $region1376: #{cbow_forward.2} parent=1369 // loop_footer_branch
        %1748 = sbr.rel target = $region1372
      $region1377: #{cbow_forward.2} parent=1369 // loop_exit
        _
    $region1370: #{cbow_forward.2} parent=1354 // pred_fallthru
      _
  $region1355: #{cbow_forward.2} parent=0 // pred_fallthru
    _
  // Predicated region
  $region1356: #{cbow_forward.2} parent=0 // pred_check
    _
  $region1357: #{cbow_forward.2} parent=0 // pred_check_branch
    %1731 = sbr.rel (0) target = $region1359
  $region1358: #{cbow_forward.2} parent=0 // pred_region
    %s1733 = ssub.s32 2, 1
    loop: start=0, step=1, limit=1
    $region1360: #{cbow_forward.2} parent=1358 // loop_pre_header
      _
    $region1361: #{cbow_forward.2} parent=1358 // loop_header
      %s1735 = sphi 0, %s1739
      %p1736 = scmp.ge.s32.totalorder %s1735, 1
      %s1740 = sphi %s1726, %s1726
      %s1741 = sphi %s1727, %s1727
    $region1362: #{cbow_forward.2} parent=1358 // loop_header_branch
      %1738 = sbr.rel (%p1736) target = $region1366
    $region1363: #{cbow_forward.2} parent=1358 // loop_body
      %v1742 = vld [vmem:[%s1740] sm:%s1733]
      %1743 = vst [vmem:[%s1741] sm:%s1733] %v1742
    $region1364: #{cbow_forward.2} parent=1358 // loop_footer
      %s1739 = sadd.s32 1, %s1735
    $region1365: #{cbow_forward.2} parent=1358 // loop_footer_branch
      %1734 = sbr.rel target = $region1361
    $region1366: #{cbow_forward.2} parent=1358 // loop_exit
      _
  $region1359: #{cbow_forward.2} parent=0 // pred_fallthru
    _
  // Predicated region
  $region1378: #{cbow_forward.2} parent=0 // pred_check
    _
  $region1379: #{cbow_forward.2} parent=0 // pred_check_branch
    %1760 = sbr.rel (0) target = $region1381
  $region1380: #{cbow_forward.2} parent=0 // pred_region
    %1761 = vsyncadd [#allocation3], 16
  $region1381: #{cbow_forward.2} parent=0 // pred_fallthru
    _
  %s1762 = sadd.s32 %s15, 46
  %s1763 = sld [smem:[#allocation5 + %s1762]]
  %s1764 = scalar_lea.vmem %s1, %s1763
  %s1765 = scalar_lea.vmem [#allocation2], 46
  // Predicated region
  $region1382: #{cbow_forward.2} parent=0 // pred_check
    _
  $region1383: #{cbow_forward.2} parent=0 // pred_check_branch
    %1767 = sbr.rel target = $region1385
  $region1384: #{cbow_forward.2} parent=0 // pred_region
    // Predicated region
    $region1397: #{cbow_forward.2} parent=1384 // pred_check
      _
    $region1398: #{cbow_forward.2} parent=1384 // pred_check_branch
      %1783 = sbr.rel (0) target = $region1400
    $region1399: #{cbow_forward.2} parent=1384 // pred_region
      %s1785 = ssub.s32 2, 1
      loop: start=0, step=1, limit=1
      $region1401: #{cbow_forward.2} parent=1399 // loop_pre_header
        _
      $region1402: #{cbow_forward.2} parent=1399 // loop_header
        %s1787 = sphi 0, %s1791
        %p1788 = scmp.ge.s32.totalorder %s1787, 1
        %s1792 = sphi %s1764, %s1764
        %s1793 = sphi %s1765, %s1765
      $region1403: #{cbow_forward.2} parent=1399 // loop_header_branch
        %1790 = sbr.rel (%p1788) target = $region1407
      $region1404: #{cbow_forward.2} parent=1399 // loop_body
        %v1794 = vld [vmem:[%s1792] sm:%s1785]
        %1795 = vst [vmem:[%s1793] sm:%s1785] %v1794
      $region1405: #{cbow_forward.2} parent=1399 // loop_footer
        %s1791 = sadd.s32 1, %s1787
      $region1406: #{cbow_forward.2} parent=1399 // loop_footer_branch
        %1786 = sbr.rel target = $region1402
      $region1407: #{cbow_forward.2} parent=1399 // loop_exit
        _
    $region1400: #{cbow_forward.2} parent=1384 // pred_fallthru
      _
  $region1385: #{cbow_forward.2} parent=0 // pred_fallthru
    _
  // Predicated region
  $region1386: #{cbow_forward.2} parent=0 // pred_check
    _
  $region1387: #{cbow_forward.2} parent=0 // pred_check_branch
    %1769 = sbr.rel (0) target = $region1389
  $region1388: #{cbow_forward.2} parent=0 // pred_region
    %s1771 = ssub.s32 2, 1
    loop: start=0, step=1, limit=1
    $region1390: #{cbow_forward.2} parent=1388 // loop_pre_header
      _
    $region1391: #{cbow_forward.2} parent=1388 // loop_header
      %s1773 = sphi 0, %s1777
      %p1774 = scmp.ge.s32.totalorder %s1773, 1
      %s1778 = sphi %s1764, %s1764
      %s1779 = sphi %s1765, %s1765
    $region1392: #{cbow_forward.2} parent=1388 // loop_header_branch
      %1776 = sbr.rel (%p1774) target = $region1396
    $region1393: #{cbow_forward.2} parent=1388 // loop_body
      %v1780 = vld [vmem:[%s1778] sm:%s1771]
      %1781 = vst [vmem:[%s1779] sm:%s1771] %v1780
    $region1394: #{cbow_forward.2} parent=1388 // loop_footer
      %s1777 = sadd.s32 1, %s1773
    $region1395: #{cbow_forward.2} parent=1388 // loop_footer_branch
      %1772 = sbr.rel target = $region1391
    $region1396: #{cbow_forward.2} parent=1388 // loop_exit
      _
  $region1389: #{cbow_forward.2} parent=0 // pred_fallthru
    _
  // Predicated region
  $region1408: #{cbow_forward.2} parent=0 // pred_check
    _
  $region1409: #{cbow_forward.2} parent=0 // pred_check_branch
    %1798 = sbr.rel (0) target = $region1411
  $region1410: #{cbow_forward.2} parent=0 // pred_region
    %1799 = vsyncadd [#allocation3], 16
  $region1411: #{cbow_forward.2} parent=0 // pred_fallthru
    _
  %s1800 = sadd.s32 %s15, 47
  %s1801 = sld [smem:[#allocation5 + %s1800]]
  %s1802 = scalar_lea.vmem %s1, %s1801
  %s1803 = scalar_lea.vmem [#allocation2], 47
  // Predicated region
  $region1412: #{cbow_forward.2} parent=0 // pred_check
    _
  $region1413: #{cbow_forward.2} parent=0 // pred_check_branch
    %1805 = sbr.rel target = $region1415
  $region1414: #{cbow_forward.2} parent=0 // pred_region
    // Predicated region
    $region1427: #{cbow_forward.2} parent=1414 // pred_check
      _
    $region1428: #{cbow_forward.2} parent=1414 // pred_check_branch
      %1821 = sbr.rel (0) target = $region1430
    $region1429: #{cbow_forward.2} parent=1414 // pred_region
      %s1823 = ssub.s32 2, 1
      loop: start=0, step=1, limit=1
      $region1431: #{cbow_forward.2} parent=1429 // loop_pre_header
        _
      $region1432: #{cbow_forward.2} parent=1429 // loop_header
        %s1825 = sphi 0, %s1829
        %p1826 = scmp.ge.s32.totalorder %s1825, 1
        %s1830 = sphi %s1802, %s1802
        %s1831 = sphi %s1803, %s1803
      $region1433: #{cbow_forward.2} parent=1429 // loop_header_branch
        %1828 = sbr.rel (%p1826) target = $region1437
      $region1434: #{cbow_forward.2} parent=1429 // loop_body
        %v1832 = vld [vmem:[%s1830] sm:%s1823]
        %1833 = vst [vmem:[%s1831] sm:%s1823] %v1832
      $region1435: #{cbow_forward.2} parent=1429 // loop_footer
        %s1829 = sadd.s32 1, %s1825
      $region1436: #{cbow_forward.2} parent=1429 // loop_footer_branch
        %1824 = sbr.rel target = $region1432
      $region1437: #{cbow_forward.2} parent=1429 // loop_exit
        _
    $region1430: #{cbow_forward.2} parent=1414 // pred_fallthru
      _
  $region1415: #{cbow_forward.2} parent=0 // pred_fallthru
    _
  // Predicated region
  $region1416: #{cbow_forward.2} parent=0 // pred_check
    _
  $region1417: #{cbow_forward.2} parent=0 // pred_check_branch
    %1807 = sbr.rel (0) target = $region1419
  $region1418: #{cbow_forward.2} parent=0 // pred_region
    %s1809 = ssub.s32 2, 1
    loop: start=0, step=1, limit=1
    $region1420: #{cbow_forward.2} parent=1418 // loop_pre_header
      _
    $region1421: #{cbow_forward.2} parent=1418 // loop_header
      %s1811 = sphi 0, %s1815
      %p1812 = scmp.ge.s32.totalorder %s1811, 1
      %s1816 = sphi %s1802, %s1802
      %s1817 = sphi %s1803, %s1803
    $region1422: #{cbow_forward.2} parent=1418 // loop_header_branch
      %1814 = sbr.rel (%p1812) target = $region1426
    $region1423: #{cbow_forward.2} parent=1418 // loop_body
      %v1818 = vld [vmem:[%s1816] sm:%s1809]
      %1819 = vst [vmem:[%s1817] sm:%s1809] %v1818
    $region1424: #{cbow_forward.2} parent=1418 // loop_footer
      %s1815 = sadd.s32 1, %s1811
    $region1425: #{cbow_forward.2} parent=1418 // loop_footer_branch
      %1810 = sbr.rel target = $region1421
    $region1426: #{cbow_forward.2} parent=1418 // loop_exit
      _
  $region1419: #{cbow_forward.2} parent=0 // pred_fallthru
    _
  // Predicated region
  $region1438: #{cbow_forward.2} parent=0 // pred_check
    _
  $region1439: #{cbow_forward.2} parent=0 // pred_check_branch
    %1836 = sbr.rel (0) target = $region1441
  $region1440: #{cbow_forward.2} parent=0 // pred_region
    %1837 = vsyncadd [#allocation3], 16
  $region1441: #{cbow_forward.2} parent=0 // pred_fallthru
    _
  %s1838 = sadd.s32 %s15, 48
  %s1839 = sld [smem:[#allocation5 + %s1838]]
  %s1840 = scalar_lea.vmem %s1, %s1839
  %s1841 = scalar_lea.vmem [#allocation2], 48
  // Predicated region
  $region1442: #{cbow_forward.2} parent=0 // pred_check
    _
  $region1443: #{cbow_forward.2} parent=0 // pred_check_branch
    %1843 = sbr.rel target = $region1445
  $region1444: #{cbow_forward.2} parent=0 // pred_region
    // Predicated region
    $region1457: #{cbow_forward.2} parent=1444 // pred_check
      _
    $region1458: #{cbow_forward.2} parent=1444 // pred_check_branch
      %1859 = sbr.rel (0) target = $region1460
    $region1459: #{cbow_forward.2} parent=1444 // pred_region
      %s1861 = ssub.s32 2, 1
      loop: start=0, step=1, limit=1
      $region1461: #{cbow_forward.2} parent=1459 // loop_pre_header
        _
      $region1462: #{cbow_forward.2} parent=1459 // loop_header
        %s1863 = sphi 0, %s1867
        %p1864 = scmp.ge.s32.totalorder %s1863, 1
        %s1868 = sphi %s1840, %s1840
        %s1869 = sphi %s1841, %s1841
      $region1463: #{cbow_forward.2} parent=1459 // loop_header_branch
        %1866 = sbr.rel (%p1864) target = $region1467
      $region1464: #{cbow_forward.2} parent=1459 // loop_body
        %v1870 = vld [vmem:[%s1868] sm:%s1861]
        %1871 = vst [vmem:[%s1869] sm:%s1861] %v1870
      $region1465: #{cbow_forward.2} parent=1459 // loop_footer
        %s1867 = sadd.s32 1, %s1863
      $region1466: #{cbow_forward.2} parent=1459 // loop_footer_branch
        %1862 = sbr.rel target = $region1462
      $region1467: #{cbow_forward.2} parent=1459 // loop_exit
        _
    $region1460: #{cbow_forward.2} parent=1444 // pred_fallthru
      _
  $region1445: #{cbow_forward.2} parent=0 // pred_fallthru
    _
  // Predicated region
  $region1446: #{cbow_forward.2} parent=0 // pred_check
    _
  $region1447: #{cbow_forward.2} parent=0 // pred_check_branch
    %1845 = sbr.rel (0) target = $region1449
  $region1448: #{cbow_forward.2} parent=0 // pred_region
    %s1847 = ssub.s32 2, 1
    loop: start=0, step=1, limit=1
    $region1450: #{cbow_forward.2} parent=1448 // loop_pre_header
      _
    $region1451: #{cbow_forward.2} parent=1448 // loop_header
      %s1849 = sphi 0, %s1853
      %p1850 = scmp.ge.s32.totalorder %s1849, 1
      %s1854 = sphi %s1840, %s1840
      %s1855 = sphi %s1841, %s1841
    $region1452: #{cbow_forward.2} parent=1448 // loop_header_branch
      %1852 = sbr.rel (%p1850) target = $region1456
    $region1453: #{cbow_forward.2} parent=1448 // loop_body
      %v1856 = vld [vmem:[%s1854] sm:%s1847]
      %1857 = vst [vmem:[%s1855] sm:%s1847] %v1856
    $region1454: #{cbow_forward.2} parent=1448 // loop_footer
      %s1853 = sadd.s32 1, %s1849
    $region1455: #{cbow_forward.2} parent=1448 // loop_footer_branch
      %1848 = sbr.rel target = $region1451
    $region1456: #{cbow_forward.2} parent=1448 // loop_exit
      _
  $region1449: #{cbow_forward.2} parent=0 // pred_fallthru
    _
  // Predicated region
  $region1468: #{cbow_forward.2} parent=0 // pred_check
    _
  $region1469: #{cbow_forward.2} parent=0 // pred_check_branch
    %1874 = sbr.rel (0) target = $region1471
  $region1470: #{cbow_forward.2} parent=0 // pred_region
    %1875 = vsyncadd [#allocation3], 16
  $region1471: #{cbow_forward.2} parent=0 // pred_fallthru
    _
  %s1876 = sadd.s32 %s15, 49
  %s1877 = sld [smem:[#allocation5 + %s1876]]
  %s1878 = scalar_lea.vmem %s1, %s1877
  %s1879 = scalar_lea.vmem [#allocation2], 49
  // Predicated region
  $region1472: #{cbow_forward.2} parent=0 // pred_check
    _
  $region1473: #{cbow_forward.2} parent=0 // pred_check_branch
    %1881 = sbr.rel target = $region1475
  $region1474: #{cbow_forward.2} parent=0 // pred_region
    // Predicated region
    $region1487: #{cbow_forward.2} parent=1474 // pred_check
      _
    $region1488: #{cbow_forward.2} parent=1474 // pred_check_branch
      %1897 = sbr.rel (0) target = $region1490
    $region1489: #{cbow_forward.2} parent=1474 // pred_region
      %s1899 = ssub.s32 2, 1
      loop: start=0, step=1, limit=1
      $region1491: #{cbow_forward.2} parent=1489 // loop_pre_header
        _
      $region1492: #{cbow_forward.2} parent=1489 // loop_header
        %s1901 = sphi 0, %s1905
        %p1902 = scmp.ge.s32.totalorder %s1901, 1
        %s1906 = sphi %s1878, %s1878
        %s1907 = sphi %s1879, %s1879
      $region1493: #{cbow_forward.2} parent=1489 // loop_header_branch
        %1904 = sbr.rel (%p1902) target = $region1497
      $region1494: #{cbow_forward.2} parent=1489 // loop_body
        %v1908 = vld [vmem:[%s1906] sm:%s1899]
        %1909 = vst [vmem:[%s1907] sm:%s1899] %v1908
      $region1495: #{cbow_forward.2} parent=1489 // loop_footer
        %s1905 = sadd.s32 1, %s1901
      $region1496: #{cbow_forward.2} parent=1489 // loop_footer_branch
        %1900 = sbr.rel target = $region1492
      $region1497: #{cbow_forward.2} parent=1489 // loop_exit
        _
    $region1490: #{cbow_forward.2} parent=1474 // pred_fallthru
      _
  $region1475: #{cbow_forward.2} parent=0 // pred_fallthru
    _
  // Predicated region
  $region1476: #{cbow_forward.2} parent=0 // pred_check
    _
  $region1477: #{cbow_forward.2} parent=0 // pred_check_branch
    %1883 = sbr.rel (0) target = $region1479
  $region1478: #{cbow_forward.2} parent=0 // pred_region
    %s1885 = ssub.s32 2, 1
    loop: start=0, step=1, limit=1
    $region1480: #{cbow_forward.2} parent=1478 // loop_pre_header
      _
    $region1481: #{cbow_forward.2} parent=1478 // loop_header
      %s1887 = sphi 0, %s1891
      %p1888 = scmp.ge.s32.totalorder %s1887, 1
      %s1892 = sphi %s1878, %s1878
      %s1893 = sphi %s1879, %s1879
    $region1482: #{cbow_forward.2} parent=1478 // loop_header_branch
      %1890 = sbr.rel (%p1888) target = $region1486
    $region1483: #{cbow_forward.2} parent=1478 // loop_body
      %v1894 = vld [vmem:[%s1892] sm:%s1885]
      %1895 = vst [vmem:[%s1893] sm:%s1885] %v1894
    $region1484: #{cbow_forward.2} parent=1478 // loop_footer
      %s1891 = sadd.s32 1, %s1887
    $region1485: #{cbow_forward.2} parent=1478 // loop_footer_branch
      %1886 = sbr.rel target = $region1481
    $region1486: #{cbow_forward.2} parent=1478 // loop_exit
      _
  $region1479: #{cbow_forward.2} parent=0 // pred_fallthru
    _
  // Predicated region
  $region1498: #{cbow_forward.2} parent=0 // pred_check
    _
  $region1499: #{cbow_forward.2} parent=0 // pred_check_branch
    %1912 = sbr.rel (0) target = $region1501
  $region1500: #{cbow_forward.2} parent=0 // pred_region
    %1913 = vsyncadd [#allocation3], 16
  $region1501: #{cbow_forward.2} parent=0 // pred_fallthru
    _
  %s1914 = sadd.s32 %s15, 50
  %s1915 = sld [smem:[#allocation5 + %s1914]]
  %s1916 = scalar_lea.vmem %s1, %s1915
  %s1917 = scalar_lea.vmem [#allocation2], 50
  // Predicated region
  $region1502: #{cbow_forward.2} parent=0 // pred_check
    _
  $region1503: #{cbow_forward.2} parent=0 // pred_check_branch
    %1919 = sbr.rel target = $region1505
  $region1504: #{cbow_forward.2} parent=0 // pred_region
    // Predicated region
    $region1517: #{cbow_forward.2} parent=1504 // pred_check
      _
    $region1518: #{cbow_forward.2} parent=1504 // pred_check_branch
      %1935 = sbr.rel (0) target = $region1520
    $region1519: #{cbow_forward.2} parent=1504 // pred_region
      %s1937 = ssub.s32 2, 1
      loop: start=0, step=1, limit=1
      $region1521: #{cbow_forward.2} parent=1519 // loop_pre_header
        _
      $region1522: #{cbow_forward.2} parent=1519 // loop_header
        %s1939 = sphi 0, %s1943
        %p1940 = scmp.ge.s32.totalorder %s1939, 1
        %s1944 = sphi %s1916, %s1916
        %s1945 = sphi %s1917, %s1917
      $region1523: #{cbow_forward.2} parent=1519 // loop_header_branch
        %1942 = sbr.rel (%p1940) target = $region1527
      $region1524: #{cbow_forward.2} parent=1519 // loop_body
        %v1946 = vld [vmem:[%s1944] sm:%s1937]
        %1947 = vst [vmem:[%s1945] sm:%s1937] %v1946
      $region1525: #{cbow_forward.2} parent=1519 // loop_footer
        %s1943 = sadd.s32 1, %s1939
      $region1526: #{cbow_forward.2} parent=1519 // loop_footer_branch
        %1938 = sbr.rel target = $region1522
      $region1527: #{cbow_forward.2} parent=1519 // loop_exit
        _
    $region1520: #{cbow_forward.2} parent=1504 // pred_fallthru
      _
  $region1505: #{cbow_forward.2} parent=0 // pred_fallthru
    _
  // Predicated region
  $region1506: #{cbow_forward.2} parent=0 // pred_check
    _
  $region1507: #{cbow_forward.2} parent=0 // pred_check_branch
    %1921 = sbr.rel (0) target = $region1509
  $region1508: #{cbow_forward.2} parent=0 // pred_region
    %s1923 = ssub.s32 2, 1
    loop: start=0, step=1, limit=1
    $region1510: #{cbow_forward.2} parent=1508 // loop_pre_header
      _
    $region1511: #{cbow_forward.2} parent=1508 // loop_header
      %s1925 = sphi 0, %s1929
      %p1926 = scmp.ge.s32.totalorder %s1925, 1
      %s1930 = sphi %s1916, %s1916
      %s1931 = sphi %s1917, %s1917
    $region1512: #{cbow_forward.2} parent=1508 // loop_header_branch
      %1928 = sbr.rel (%p1926) target = $region1516
    $region1513: #{cbow_forward.2} parent=1508 // loop_body
      %v1932 = vld [vmem:[%s1930] sm:%s1923]
      %1933 = vst [vmem:[%s1931] sm:%s1923] %v1932
    $region1514: #{cbow_forward.2} parent=1508 // loop_footer
      %s1929 = sadd.s32 1, %s1925
    $region1515: #{cbow_forward.2} parent=1508 // loop_footer_branch
      %1924 = sbr.rel target = $region1511
    $region1516: #{cbow_forward.2} parent=1508 // loop_exit
      _
  $region1509: #{cbow_forward.2} parent=0 // pred_fallthru
    _
  // Predicated region
  $region1528: #{cbow_forward.2} parent=0 // pred_check
    _
  $region1529: #{cbow_forward.2} parent=0 // pred_check_branch
    %1950 = sbr.rel (0) target = $region1531
  $region1530: #{cbow_forward.2} parent=0 // pred_region
    %1951 = vsyncadd [#allocation3], 16
  $region1531: #{cbow_forward.2} parent=0 // pred_fallthru
    _
  %s1952 = sadd.s32 %s15, 51
  %s1953 = sld [smem:[#allocation5 + %s1952]]
  %s1954 = scalar_lea.vmem %s1, %s1953
  %s1955 = scalar_lea.vmem [#allocation2], 51
  // Predicated region
  $region1532: #{cbow_forward.2} parent=0 // pred_check
    _
  $region1533: #{cbow_forward.2} parent=0 // pred_check_branch
    %1957 = sbr.rel target = $region1535
  $region1534: #{cbow_forward.2} parent=0 // pred_region
    // Predicated region
    $region1547: #{cbow_forward.2} parent=1534 // pred_check
      _
    $region1548: #{cbow_forward.2} parent=1534 // pred_check_branch
      %1973 = sbr.rel (0) target = $region1550
    $region1549: #{cbow_forward.2} parent=1534 // pred_region
      %s1975 = ssub.s32 2, 1
      loop: start=0, step=1, limit=1
      $region1551: #{cbow_forward.2} parent=1549 // loop_pre_header
        _
      $region1552: #{cbow_forward.2} parent=1549 // loop_header
        %s1977 = sphi 0, %s1981
        %p1978 = scmp.ge.s32.totalorder %s1977, 1
        %s1982 = sphi %s1954, %s1954
        %s1983 = sphi %s1955, %s1955
      $region1553: #{cbow_forward.2} parent=1549 // loop_header_branch
        %1980 = sbr.rel (%p1978) target = $region1557
      $region1554: #{cbow_forward.2} parent=1549 // loop_body
        %v1984 = vld [vmem:[%s1982] sm:%s1975]
        %1985 = vst [vmem:[%s1983] sm:%s1975] %v1984
      $region1555: #{cbow_forward.2} parent=1549 // loop_footer
        %s1981 = sadd.s32 1, %s1977
      $region1556: #{cbow_forward.2} parent=1549 // loop_footer_branch
        %1976 = sbr.rel target = $region1552
      $region1557: #{cbow_forward.2} parent=1549 // loop_exit
        _
    $region1550: #{cbow_forward.2} parent=1534 // pred_fallthru
      _
  $region1535: #{cbow_forward.2} parent=0 // pred_fallthru
    _
  // Predicated region
  $region1536: #{cbow_forward.2} parent=0 // pred_check
    _
  $region1537: #{cbow_forward.2} parent=0 // pred_check_branch
    %1959 = sbr.rel (0) target = $region1539
  $region1538: #{cbow_forward.2} parent=0 // pred_region
    %s1961 = ssub.s32 2, 1
    loop: start=0, step=1, limit=1
    $region1540: #{cbow_forward.2} parent=1538 // loop_pre_header
      _
    $region1541: #{cbow_forward.2} parent=1538 // loop_header
      %s1963 = sphi 0, %s1967
      %p1964 = scmp.ge.s32.totalorder %s1963, 1
      %s1968 = sphi %s1954, %s1954
      %s1969 = sphi %s1955, %s1955
    $region1542: #{cbow_forward.2} parent=1538 // loop_header_branch
      %1966 = sbr.rel (%p1964) target = $region1546
    $region1543: #{cbow_forward.2} parent=1538 // loop_body
      %v1970 = vld [vmem:[%s1968] sm:%s1961]
      %1971 = vst [vmem:[%s1969] sm:%s1961] %v1970
    $region1544: #{cbow_forward.2} parent=1538 // loop_footer
      %s1967 = sadd.s32 1, %s1963
    $region1545: #{cbow_forward.2} parent=1538 // loop_footer_branch
      %1962 = sbr.rel target = $region1541
    $region1546: #{cbow_forward.2} parent=1538 // loop_exit
      _
  $region1539: #{cbow_forward.2} parent=0 // pred_fallthru
    _
  // Predicated region
  $region1558: #{cbow_forward.2} parent=0 // pred_check
    _
  $region1559: #{cbow_forward.2} parent=0 // pred_check_branch
    %1988 = sbr.rel (0) target = $region1561
  $region1560: #{cbow_forward.2} parent=0 // pred_region
    %1989 = vsyncadd [#allocation3], 16
  $region1561: #{cbow_forward.2} parent=0 // pred_fallthru
    _
  %s1990 = sadd.s32 %s15, 52
  %s1991 = sld [smem:[#allocation5 + %s1990]]
  %s1992 = scalar_lea.vmem %s1, %s1991
  %s1993 = scalar_lea.vmem [#allocation2], 52
  // Predicated region
  $region1562: #{cbow_forward.2} parent=0 // pred_check
    _
  $region1563: #{cbow_forward.2} parent=0 // pred_check_branch
    %1995 = sbr.rel target = $region1565
  $region1564: #{cbow_forward.2} parent=0 // pred_region
    // Predicated region
    $region1577: #{cbow_forward.2} parent=1564 // pred_check
      _
    $region1578: #{cbow_forward.2} parent=1564 // pred_check_branch
      %2011 = sbr.rel (0) target = $region1580
    $region1579: #{cbow_forward.2} parent=1564 // pred_region
      %s2013 = ssub.s32 2, 1
      loop: start=0, step=1, limit=1
      $region1581: #{cbow_forward.2} parent=1579 // loop_pre_header
        _
      $region1582: #{cbow_forward.2} parent=1579 // loop_header
        %s2015 = sphi 0, %s2019
        %p2016 = scmp.ge.s32.totalorder %s2015, 1
        %s2020 = sphi %s1992, %s1992
        %s2021 = sphi %s1993, %s1993
      $region1583: #{cbow_forward.2} parent=1579 // loop_header_branch
        %2018 = sbr.rel (%p2016) target = $region1587
      $region1584: #{cbow_forward.2} parent=1579 // loop_body
        %v2022 = vld [vmem:[%s2020] sm:%s2013]
        %2023 = vst [vmem:[%s2021] sm:%s2013] %v2022
      $region1585: #{cbow_forward.2} parent=1579 // loop_footer
        %s2019 = sadd.s32 1, %s2015
      $region1586: #{cbow_forward.2} parent=1579 // loop_footer_branch
        %2014 = sbr.rel target = $region1582
      $region1587: #{cbow_forward.2} parent=1579 // loop_exit
        _
    $region1580: #{cbow_forward.2} parent=1564 // pred_fallthru
      _
  $region1565: #{cbow_forward.2} parent=0 // pred_fallthru
    _
  // Predicated region
  $region1566: #{cbow_forward.2} parent=0 // pred_check
    _
  $region1567: #{cbow_forward.2} parent=0 // pred_check_branch
    %1997 = sbr.rel (0) target = $region1569
  $region1568: #{cbow_forward.2} parent=0 // pred_region
    %s1999 = ssub.s32 2, 1
    loop: start=0, step=1, limit=1
    $region1570: #{cbow_forward.2} parent=1568 // loop_pre_header
      _
    $region1571: #{cbow_forward.2} parent=1568 // loop_header
      %s2001 = sphi 0, %s2005
      %p2002 = scmp.ge.s32.totalorder %s2001, 1
      %s2006 = sphi %s1992, %s1992
      %s2007 = sphi %s1993, %s1993
    $region1572: #{cbow_forward.2} parent=1568 // loop_header_branch
      %2004 = sbr.rel (%p2002) target = $region1576
    $region1573: #{cbow_forward.2} parent=1568 // loop_body
      %v2008 = vld [vmem:[%s2006] sm:%s1999]
      %2009 = vst [vmem:[%s2007] sm:%s1999] %v2008
    $region1574: #{cbow_forward.2} parent=1568 // loop_footer
      %s2005 = sadd.s32 1, %s2001
    $region1575: #{cbow_forward.2} parent=1568 // loop_footer_branch
      %2000 = sbr.rel target = $region1571
    $region1576: #{cbow_forward.2} parent=1568 // loop_exit
      _
  $region1569: #{cbow_forward.2} parent=0 // pred_fallthru
    _
  // Predicated region
  $region1588: #{cbow_forward.2} parent=0 // pred_check
    _
  $region1589: #{cbow_forward.2} parent=0 // pred_check_branch
    %2026 = sbr.rel (0) target = $region1591
  $region1590: #{cbow_forward.2} parent=0 // pred_region
    %2027 = vsyncadd [#allocation3], 16
  $region1591: #{cbow_forward.2} parent=0 // pred_fallthru
    _
  %s2028 = sadd.s32 %s15, 53
  %s2029 = sld [smem:[#allocation5 + %s2028]]
  %s2030 = scalar_lea.vmem %s1, %s2029
  %s2031 = scalar_lea.vmem [#allocation2], 53
  // Predicated region
  $region1592: #{cbow_forward.2} parent=0 // pred_check
    _
  $region1593: #{cbow_forward.2} parent=0 // pred_check_branch
    %2033 = sbr.rel target = $region1595
  $region1594: #{cbow_forward.2} parent=0 // pred_region
    // Predicated region
    $region1607: #{cbow_forward.2} parent=1594 // pred_check
      _
    $region1608: #{cbow_forward.2} parent=1594 // pred_check_branch
      %2049 = sbr.rel (0) target = $region1610
    $region1609: #{cbow_forward.2} parent=1594 // pred_region
      %s2051 = ssub.s32 2, 1
      loop: start=0, step=1, limit=1
      $region1611: #{cbow_forward.2} parent=1609 // loop_pre_header
        _
      $region1612: #{cbow_forward.2} parent=1609 // loop_header
        %s2053 = sphi 0, %s2057
        %p2054 = scmp.ge.s32.totalorder %s2053, 1
        %s2058 = sphi %s2030, %s2030
        %s2059 = sphi %s2031, %s2031
      $region1613: #{cbow_forward.2} parent=1609 // loop_header_branch
        %2056 = sbr.rel (%p2054) target = $region1617
      $region1614: #{cbow_forward.2} parent=1609 // loop_body
        %v2060 = vld [vmem:[%s2058] sm:%s2051]
        %2061 = vst [vmem:[%s2059] sm:%s2051] %v2060
      $region1615: #{cbow_forward.2} parent=1609 // loop_footer
        %s2057 = sadd.s32 1, %s2053
      $region1616: #{cbow_forward.2} parent=1609 // loop_footer_branch
        %2052 = sbr.rel target = $region1612
      $region1617: #{cbow_forward.2} parent=1609 // loop_exit
        _
    $region1610: #{cbow_forward.2} parent=1594 // pred_fallthru
      _
  $region1595: #{cbow_forward.2} parent=0 // pred_fallthru
    _
  // Predicated region
  $region1596: #{cbow_forward.2} parent=0 // pred_check
    _
  $region1597: #{cbow_forward.2} parent=0 // pred_check_branch
    %2035 = sbr.rel (0) target = $region1599
  $region1598: #{cbow_forward.2} parent=0 // pred_region
    %s2037 = ssub.s32 2, 1
    loop: start=0, step=1, limit=1
    $region1600: #{cbow_forward.2} parent=1598 // loop_pre_header
      _
    $region1601: #{cbow_forward.2} parent=1598 // loop_header
      %s2039 = sphi 0, %s2043
      %p2040 = scmp.ge.s32.totalorder %s2039, 1
      %s2044 = sphi %s2030, %s2030
      %s2045 = sphi %s2031, %s2031
    $region1602: #{cbow_forward.2} parent=1598 // loop_header_branch
      %2042 = sbr.rel (%p2040) target = $region1606
    $region1603: #{cbow_forward.2} parent=1598 // loop_body
      %v2046 = vld [vmem:[%s2044] sm:%s2037]
      %2047 = vst [vmem:[%s2045] sm:%s2037] %v2046
    $region1604: #{cbow_forward.2} parent=1598 // loop_footer
      %s2043 = sadd.s32 1, %s2039
    $region1605: #{cbow_forward.2} parent=1598 // loop_footer_branch
      %2038 = sbr.rel target = $region1601
    $region1606: #{cbow_forward.2} parent=1598 // loop_exit
      _
  $region1599: #{cbow_forward.2} parent=0 // pred_fallthru
    _
  // Predicated region
  $region1618: #{cbow_forward.2} parent=0 // pred_check
    _
  $region1619: #{cbow_forward.2} parent=0 // pred_check_branch
    %2064 = sbr.rel (0) target = $region1621
  $region1620: #{cbow_forward.2} parent=0 // pred_region
    %2065 = vsyncadd [#allocation3], 16
  $region1621: #{cbow_forward.2} parent=0 // pred_fallthru
    _
  %s2066 = sadd.s32 %s15, 54
  %s2067 = sld [smem:[#allocation5 + %s2066]]
  %s2068 = scalar_lea.vmem %s1, %s2067
  %s2069 = scalar_lea.vmem [#allocation2], 54
  // Predicated region
  $region1622: #{cbow_forward.2} parent=0 // pred_check
    _
  $region1623: #{cbow_forward.2} parent=0 // pred_check_branch
    %2071 = sbr.rel target = $region1625
  $region1624: #{cbow_forward.2} parent=0 // pred_region
    // Predicated region
    $region1637: #{cbow_forward.2} parent=1624 // pred_check
      _
    $region1638: #{cbow_forward.2} parent=1624 // pred_check_branch
      %2087 = sbr.rel (0) target = $region1640
    $region1639: #{cbow_forward.2} parent=1624 // pred_region
      %s2089 = ssub.s32 2, 1
      loop: start=0, step=1, limit=1
      $region1641: #{cbow_forward.2} parent=1639 // loop_pre_header
        _
      $region1642: #{cbow_forward.2} parent=1639 // loop_header
        %s2091 = sphi 0, %s2095
        %p2092 = scmp.ge.s32.totalorder %s2091, 1
        %s2096 = sphi %s2068, %s2068
        %s2097 = sphi %s2069, %s2069
      $region1643: #{cbow_forward.2} parent=1639 // loop_header_branch
        %2094 = sbr.rel (%p2092) target = $region1647
      $region1644: #{cbow_forward.2} parent=1639 // loop_body
        %v2098 = vld [vmem:[%s2096] sm:%s2089]
        %2099 = vst [vmem:[%s2097] sm:%s2089] %v2098
      $region1645: #{cbow_forward.2} parent=1639 // loop_footer
        %s2095 = sadd.s32 1, %s2091
      $region1646: #{cbow_forward.2} parent=1639 // loop_footer_branch
        %2090 = sbr.rel target = $region1642
      $region1647: #{cbow_forward.2} parent=1639 // loop_exit
        _
    $region1640: #{cbow_forward.2} parent=1624 // pred_fallthru
      _
  $region1625: #{cbow_forward.2} parent=0 // pred_fallthru
    _
  // Predicated region
  $region1626: #{cbow_forward.2} parent=0 // pred_check
    _
  $region1627: #{cbow_forward.2} parent=0 // pred_check_branch
    %2073 = sbr.rel (0) target = $region1629
  $region1628: #{cbow_forward.2} parent=0 // pred_region
    %s2075 = ssub.s32 2, 1
    loop: start=0, step=1, limit=1
    $region1630: #{cbow_forward.2} parent=1628 // loop_pre_header
      _
    $region1631: #{cbow_forward.2} parent=1628 // loop_header
      %s2077 = sphi 0, %s2081
      %p2078 = scmp.ge.s32.totalorder %s2077, 1
      %s2082 = sphi %s2068, %s2068
      %s2083 = sphi %s2069, %s2069
    $region1632: #{cbow_forward.2} parent=1628 // loop_header_branch
      %2080 = sbr.rel (%p2078) target = $region1636
    $region1633: #{cbow_forward.2} parent=1628 // loop_body
      %v2084 = vld [vmem:[%s2082] sm:%s2075]
      %2085 = vst [vmem:[%s2083] sm:%s2075] %v2084
    $region1634: #{cbow_forward.2} parent=1628 // loop_footer
      %s2081 = sadd.s32 1, %s2077
    $region1635: #{cbow_forward.2} parent=1628 // loop_footer_branch
      %2076 = sbr.rel target = $region1631
    $region1636: #{cbow_forward.2} parent=1628 // loop_exit
      _
  $region1629: #{cbow_forward.2} parent=0 // pred_fallthru
    _
  // Predicated region
  $region1648: #{cbow_forward.2} parent=0 // pred_check
    _
  $region1649: #{cbow_forward.2} parent=0 // pred_check_branch
    %2102 = sbr.rel (0) target = $region1651
  $region1650: #{cbow_forward.2} parent=0 // pred_region
    %2103 = vsyncadd [#allocation3], 16
  $region1651: #{cbow_forward.2} parent=0 // pred_fallthru
    _
  %s2104 = sadd.s32 %s15, 55
  %s2105 = sld [smem:[#allocation5 + %s2104]]
  %s2106 = scalar_lea.vmem %s1, %s2105
  %s2107 = scalar_lea.vmem [#allocation2], 55
  // Predicated region
  $region1652: #{cbow_forward.2} parent=0 // pred_check
    _
  $region1653: #{cbow_forward.2} parent=0 // pred_check_branch
    %2109 = sbr.rel target = $region1655
  $region1654: #{cbow_forward.2} parent=0 // pred_region
    // Predicated region
    $region1667: #{cbow_forward.2} parent=1654 // pred_check
      _
    $region1668: #{cbow_forward.2} parent=1654 // pred_check_branch
      %2125 = sbr.rel (0) target = $region1670
    $region1669: #{cbow_forward.2} parent=1654 // pred_region
      %s2127 = ssub.s32 2, 1
      loop: start=0, step=1, limit=1
      $region1671: #{cbow_forward.2} parent=1669 // loop_pre_header
        _
      $region1672: #{cbow_forward.2} parent=1669 // loop_header
        %s2129 = sphi 0, %s2133
        %p2130 = scmp.ge.s32.totalorder %s2129, 1
        %s2134 = sphi %s2106, %s2106
        %s2135 = sphi %s2107, %s2107
      $region1673: #{cbow_forward.2} parent=1669 // loop_header_branch
        %2132 = sbr.rel (%p2130) target = $region1677
      $region1674: #{cbow_forward.2} parent=1669 // loop_body
        %v2136 = vld [vmem:[%s2134] sm:%s2127]
        %2137 = vst [vmem:[%s2135] sm:%s2127] %v2136
      $region1675: #{cbow_forward.2} parent=1669 // loop_footer
        %s2133 = sadd.s32 1, %s2129
      $region1676: #{cbow_forward.2} parent=1669 // loop_footer_branch
        %2128 = sbr.rel target = $region1672
      $region1677: #{cbow_forward.2} parent=1669 // loop_exit
        _
    $region1670: #{cbow_forward.2} parent=1654 // pred_fallthru
      _
  $region1655: #{cbow_forward.2} parent=0 // pred_fallthru
    _
  // Predicated region
  $region1656: #{cbow_forward.2} parent=0 // pred_check
    _
  $region1657: #{cbow_forward.2} parent=0 // pred_check_branch
    %2111 = sbr.rel (0) target = $region1659
  $region1658: #{cbow_forward.2} parent=0 // pred_region
    %s2113 = ssub.s32 2, 1
    loop: start=0, step=1, limit=1
    $region1660: #{cbow_forward.2} parent=1658 // loop_pre_header
      _
    $region1661: #{cbow_forward.2} parent=1658 // loop_header
      %s2115 = sphi 0, %s2119
      %p2116 = scmp.ge.s32.totalorder %s2115, 1
      %s2120 = sphi %s2106, %s2106
      %s2121 = sphi %s2107, %s2107
    $region1662: #{cbow_forward.2} parent=1658 // loop_header_branch
      %2118 = sbr.rel (%p2116) target = $region1666
    $region1663: #{cbow_forward.2} parent=1658 // loop_body
      %v2122 = vld [vmem:[%s2120] sm:%s2113]
      %2123 = vst [vmem:[%s2121] sm:%s2113] %v2122
    $region1664: #{cbow_forward.2} parent=1658 // loop_footer
      %s2119 = sadd.s32 1, %s2115
    $region1665: #{cbow_forward.2} parent=1658 // loop_footer_branch
      %2114 = sbr.rel target = $region1661
    $region1666: #{cbow_forward.2} parent=1658 // loop_exit
      _
  $region1659: #{cbow_forward.2} parent=0 // pred_fallthru
    _
  // Predicated region
  $region1678: #{cbow_forward.2} parent=0 // pred_check
    _
  $region1679: #{cbow_forward.2} parent=0 // pred_check_branch
    %2140 = sbr.rel (0) target = $region1681
  $region1680: #{cbow_forward.2} parent=0 // pred_region
    %2141 = vsyncadd [#allocation3], 16
  $region1681: #{cbow_forward.2} parent=0 // pred_fallthru
    _
  %s2142 = sadd.s32 %s15, 56
  %s2143 = sld [smem:[#allocation5 + %s2142]]
  %s2144 = scalar_lea.vmem %s1, %s2143
  %s2145 = scalar_lea.vmem [#allocation2], 56
  // Predicated region
  $region1682: #{cbow_forward.2} parent=0 // pred_check
    _
  $region1683: #{cbow_forward.2} parent=0 // pred_check_branch
    %2147 = sbr.rel target = $region1685
  $region1684: #{cbow_forward.2} parent=0 // pred_region
    // Predicated region
    $region1697: #{cbow_forward.2} parent=1684 // pred_check
      _
    $region1698: #{cbow_forward.2} parent=1684 // pred_check_branch
      %2163 = sbr.rel (0) target = $region1700
    $region1699: #{cbow_forward.2} parent=1684 // pred_region
      %s2165 = ssub.s32 2, 1
      loop: start=0, step=1, limit=1
      $region1701: #{cbow_forward.2} parent=1699 // loop_pre_header
        _
      $region1702: #{cbow_forward.2} parent=1699 // loop_header
        %s2167 = sphi 0, %s2171
        %p2168 = scmp.ge.s32.totalorder %s2167, 1
        %s2172 = sphi %s2144, %s2144
        %s2173 = sphi %s2145, %s2145
      $region1703: #{cbow_forward.2} parent=1699 // loop_header_branch
        %2170 = sbr.rel (%p2168) target = $region1707
      $region1704: #{cbow_forward.2} parent=1699 // loop_body
        %v2174 = vld [vmem:[%s2172] sm:%s2165]
        %2175 = vst [vmem:[%s2173] sm:%s2165] %v2174
      $region1705: #{cbow_forward.2} parent=1699 // loop_footer
        %s2171 = sadd.s32 1, %s2167
      $region1706: #{cbow_forward.2} parent=1699 // loop_footer_branch
        %2166 = sbr.rel target = $region1702
      $region1707: #{cbow_forward.2} parent=1699 // loop_exit
        _
    $region1700: #{cbow_forward.2} parent=1684 // pred_fallthru
      _
  $region1685: #{cbow_forward.2} parent=0 // pred_fallthru
    _
  // Predicated region
  $region1686: #{cbow_forward.2} parent=0 // pred_check
    _
  $region1687: #{cbow_forward.2} parent=0 // pred_check_branch
    %2149 = sbr.rel (0) target = $region1689
  $region1688: #{cbow_forward.2} parent=0 // pred_region
    %s2151 = ssub.s32 2, 1
    loop: start=0, step=1, limit=1
    $region1690: #{cbow_forward.2} parent=1688 // loop_pre_header
      _
    $region1691: #{cbow_forward.2} parent=1688 // loop_header
      %s2153 = sphi 0, %s2157
      %p2154 = scmp.ge.s32.totalorder %s2153, 1
      %s2158 = sphi %s2144, %s2144
      %s2159 = sphi %s2145, %s2145
    $region1692: #{cbow_forward.2} parent=1688 // loop_header_branch
      %2156 = sbr.rel (%p2154) target = $region1696
    $region1693: #{cbow_forward.2} parent=1688 // loop_body
      %v2160 = vld [vmem:[%s2158] sm:%s2151]
      %2161 = vst [vmem:[%s2159] sm:%s2151] %v2160
    $region1694: #{cbow_forward.2} parent=1688 // loop_footer
      %s2157 = sadd.s32 1, %s2153
    $region1695: #{cbow_forward.2} parent=1688 // loop_footer_branch
      %2152 = sbr.rel target = $region1691
    $region1696: #{cbow_forward.2} parent=1688 // loop_exit
      _
  $region1689: #{cbow_forward.2} parent=0 // pred_fallthru
    _
  // Predicated region
  $region1708: #{cbow_forward.2} parent=0 // pred_check
    _
  $region1709: #{cbow_forward.2} parent=0 // pred_check_branch
    %2178 = sbr.rel (0) target = $region1711
  $region1710: #{cbow_forward.2} parent=0 // pred_region
    %2179 = vsyncadd [#allocation3], 16
  $region1711: #{cbow_forward.2} parent=0 // pred_fallthru
    _
  %s2180 = sadd.s32 %s15, 57
  %s2181 = sld [smem:[#allocation5 + %s2180]]
  %s2182 = scalar_lea.vmem %s1, %s2181
  %s2183 = scalar_lea.vmem [#allocation2], 57
  // Predicated region
  $region1712: #{cbow_forward.2} parent=0 // pred_check
    _
  $region1713: #{cbow_forward.2} parent=0 // pred_check_branch
    %2185 = sbr.rel target = $region1715
  $region1714: #{cbow_forward.2} parent=0 // pred_region
    // Predicated region
    $region1727: #{cbow_forward.2} parent=1714 // pred_check
      _
    $region1728: #{cbow_forward.2} parent=1714 // pred_check_branch
      %2201 = sbr.rel (0) target = $region1730
    $region1729: #{cbow_forward.2} parent=1714 // pred_region
      %s2203 = ssub.s32 2, 1
      loop: start=0, step=1, limit=1
      $region1731: #{cbow_forward.2} parent=1729 // loop_pre_header
        _
      $region1732: #{cbow_forward.2} parent=1729 // loop_header
        %s2205 = sphi 0, %s2209
        %p2206 = scmp.ge.s32.totalorder %s2205, 1
        %s2210 = sphi %s2182, %s2182
        %s2211 = sphi %s2183, %s2183
      $region1733: #{cbow_forward.2} parent=1729 // loop_header_branch
        %2208 = sbr.rel (%p2206) target = $region1737
      $region1734: #{cbow_forward.2} parent=1729 // loop_body
        %v2212 = vld [vmem:[%s2210] sm:%s2203]
        %2213 = vst [vmem:[%s2211] sm:%s2203] %v2212
      $region1735: #{cbow_forward.2} parent=1729 // loop_footer
        %s2209 = sadd.s32 1, %s2205
      $region1736: #{cbow_forward.2} parent=1729 // loop_footer_branch
        %2204 = sbr.rel target = $region1732
      $region1737: #{cbow_forward.2} parent=1729 // loop_exit
        _
    $region1730: #{cbow_forward.2} parent=1714 // pred_fallthru
      _
  $region1715: #{cbow_forward.2} parent=0 // pred_fallthru
    _
  // Predicated region
  $region1716: #{cbow_forward.2} parent=0 // pred_check
    _
  $region1717: #{cbow_forward.2} parent=0 // pred_check_branch
    %2187 = sbr.rel (0) target = $region1719
  $region1718: #{cbow_forward.2} parent=0 // pred_region
    %s2189 = ssub.s32 2, 1
    loop: start=0, step=1, limit=1
    $region1720: #{cbow_forward.2} parent=1718 // loop_pre_header
      _
    $region1721: #{cbow_forward.2} parent=1718 // loop_header
      %s2191 = sphi 0, %s2195
      %p2192 = scmp.ge.s32.totalorder %s2191, 1
      %s2196 = sphi %s2182, %s2182
      %s2197 = sphi %s2183, %s2183
    $region1722: #{cbow_forward.2} parent=1718 // loop_header_branch
      %2194 = sbr.rel (%p2192) target = $region1726
    $region1723: #{cbow_forward.2} parent=1718 // loop_body
      %v2198 = vld [vmem:[%s2196] sm:%s2189]
      %2199 = vst [vmem:[%s2197] sm:%s2189] %v2198
    $region1724: #{cbow_forward.2} parent=1718 // loop_footer
      %s2195 = sadd.s32 1, %s2191
    $region1725: #{cbow_forward.2} parent=1718 // loop_footer_branch
      %2190 = sbr.rel target = $region1721
    $region1726: #{cbow_forward.2} parent=1718 // loop_exit
      _
  $region1719: #{cbow_forward.2} parent=0 // pred_fallthru
    _
  // Predicated region
  $region1738: #{cbow_forward.2} parent=0 // pred_check
    _
  $region1739: #{cbow_forward.2} parent=0 // pred_check_branch
    %2216 = sbr.rel (0) target = $region1741
  $region1740: #{cbow_forward.2} parent=0 // pred_region
    %2217 = vsyncadd [#allocation3], 16
  $region1741: #{cbow_forward.2} parent=0 // pred_fallthru
    _
  %s2218 = sadd.s32 %s15, 58
  %s2219 = sld [smem:[#allocation5 + %s2218]]
  %s2220 = scalar_lea.vmem %s1, %s2219
  %s2221 = scalar_lea.vmem [#allocation2], 58
  // Predicated region
  $region1742: #{cbow_forward.2} parent=0 // pred_check
    _
  $region1743: #{cbow_forward.2} parent=0 // pred_check_branch
    %2223 = sbr.rel target = $region1745
  $region1744: #{cbow_forward.2} parent=0 // pred_region
    // Predicated region
    $region1757: #{cbow_forward.2} parent=1744 // pred_check
      _
    $region1758: #{cbow_forward.2} parent=1744 // pred_check_branch
      %2239 = sbr.rel (0) target = $region1760
    $region1759: #{cbow_forward.2} parent=1744 // pred_region
      %s2241 = ssub.s32 2, 1
      loop: start=0, step=1, limit=1
      $region1761: #{cbow_forward.2} parent=1759 // loop_pre_header
        _
      $region1762: #{cbow_forward.2} parent=1759 // loop_header
        %s2243 = sphi 0, %s2247
        %p2244 = scmp.ge.s32.totalorder %s2243, 1
        %s2248 = sphi %s2220, %s2220
        %s2249 = sphi %s2221, %s2221
      $region1763: #{cbow_forward.2} parent=1759 // loop_header_branch
        %2246 = sbr.rel (%p2244) target = $region1767
      $region1764: #{cbow_forward.2} parent=1759 // loop_body
        %v2250 = vld [vmem:[%s2248] sm:%s2241]
        %2251 = vst [vmem:[%s2249] sm:%s2241] %v2250
      $region1765: #{cbow_forward.2} parent=1759 // loop_footer
        %s2247 = sadd.s32 1, %s2243
      $region1766: #{cbow_forward.2} parent=1759 // loop_footer_branch
        %2242 = sbr.rel target = $region1762
      $region1767: #{cbow_forward.2} parent=1759 // loop_exit
        _
    $region1760: #{cbow_forward.2} parent=1744 // pred_fallthru
      _
  $region1745: #{cbow_forward.2} parent=0 // pred_fallthru
    _
  // Predicated region
  $region1746: #{cbow_forward.2} parent=0 // pred_check
    _
  $region1747: #{cbow_forward.2} parent=0 // pred_check_branch
    %2225 = sbr.rel (0) target = $region1749
  $region1748: #{cbow_forward.2} parent=0 // pred_region
    %s2227 = ssub.s32 2, 1
    loop: start=0, step=1, limit=1
    $region1750: #{cbow_forward.2} parent=1748 // loop_pre_header
      _
    $region1751: #{cbow_forward.2} parent=1748 // loop_header
      %s2229 = sphi 0, %s2233
      %p2230 = scmp.ge.s32.totalorder %s2229, 1
      %s2234 = sphi %s2220, %s2220
      %s2235 = sphi %s2221, %s2221
    $region1752: #{cbow_forward.2} parent=1748 // loop_header_branch
      %2232 = sbr.rel (%p2230) target = $region1756
    $region1753: #{cbow_forward.2} parent=1748 // loop_body
      %v2236 = vld [vmem:[%s2234] sm:%s2227]
      %2237 = vst [vmem:[%s2235] sm:%s2227] %v2236
    $region1754: #{cbow_forward.2} parent=1748 // loop_footer
      %s2233 = sadd.s32 1, %s2229
    $region1755: #{cbow_forward.2} parent=1748 // loop_footer_branch
      %2228 = sbr.rel target = $region1751
    $region1756: #{cbow_forward.2} parent=1748 // loop_exit
      _
  $region1749: #{cbow_forward.2} parent=0 // pred_fallthru
    _
  // Predicated region
  $region1768: #{cbow_forward.2} parent=0 // pred_check
    _
  $region1769: #{cbow_forward.2} parent=0 // pred_check_branch
    %2254 = sbr.rel (0) target = $region1771
  $region1770: #{cbow_forward.2} parent=0 // pred_region
    %2255 = vsyncadd [#allocation3], 16
  $region1771: #{cbow_forward.2} parent=0 // pred_fallthru
    _
  %s2256 = sadd.s32 %s15, 59
  %s2257 = sld [smem:[#allocation5 + %s2256]]
  %s2258 = scalar_lea.vmem %s1, %s2257
  %s2259 = scalar_lea.vmem [#allocation2], 59
  // Predicated region
  $region1772: #{cbow_forward.2} parent=0 // pred_check
    _
  $region1773: #{cbow_forward.2} parent=0 // pred_check_branch
    %2261 = sbr.rel target = $region1775
  $region1774: #{cbow_forward.2} parent=0 // pred_region
    // Predicated region
    $region1787: #{cbow_forward.2} parent=1774 // pred_check
      _
    $region1788: #{cbow_forward.2} parent=1774 // pred_check_branch
      %2277 = sbr.rel (0) target = $region1790
    $region1789: #{cbow_forward.2} parent=1774 // pred_region
      %s2279 = ssub.s32 2, 1
      loop: start=0, step=1, limit=1
      $region1791: #{cbow_forward.2} parent=1789 // loop_pre_header
        _
      $region1792: #{cbow_forward.2} parent=1789 // loop_header
        %s2281 = sphi 0, %s2285
        %p2282 = scmp.ge.s32.totalorder %s2281, 1
        %s2286 = sphi %s2258, %s2258
        %s2287 = sphi %s2259, %s2259
      $region1793: #{cbow_forward.2} parent=1789 // loop_header_branch
        %2284 = sbr.rel (%p2282) target = $region1797
      $region1794: #{cbow_forward.2} parent=1789 // loop_body
        %v2288 = vld [vmem:[%s2286] sm:%s2279]
        %2289 = vst [vmem:[%s2287] sm:%s2279] %v2288
      $region1795: #{cbow_forward.2} parent=1789 // loop_footer
        %s2285 = sadd.s32 1, %s2281
      $region1796: #{cbow_forward.2} parent=1789 // loop_footer_branch
        %2280 = sbr.rel target = $region1792
      $region1797: #{cbow_forward.2} parent=1789 // loop_exit
        _
    $region1790: #{cbow_forward.2} parent=1774 // pred_fallthru
      _
  $region1775: #{cbow_forward.2} parent=0 // pred_fallthru
    _
  // Predicated region
  $region1776: #{cbow_forward.2} parent=0 // pred_check
    _
  $region1777: #{cbow_forward.2} parent=0 // pred_check_branch
    %2263 = sbr.rel (0) target = $region1779
  $region1778: #{cbow_forward.2} parent=0 // pred_region
    %s2265 = ssub.s32 2, 1
    loop: start=0, step=1, limit=1
    $region1780: #{cbow_forward.2} parent=1778 // loop_pre_header
      _
    $region1781: #{cbow_forward.2} parent=1778 // loop_header
      %s2267 = sphi 0, %s2271
      %p2268 = scmp.ge.s32.totalorder %s2267, 1
      %s2272 = sphi %s2258, %s2258
      %s2273 = sphi %s2259, %s2259
    $region1782: #{cbow_forward.2} parent=1778 // loop_header_branch
      %2270 = sbr.rel (%p2268) target = $region1786
    $region1783: #{cbow_forward.2} parent=1778 // loop_body
      %v2274 = vld [vmem:[%s2272] sm:%s2265]
      %2275 = vst [vmem:[%s2273] sm:%s2265] %v2274
    $region1784: #{cbow_forward.2} parent=1778 // loop_footer
      %s2271 = sadd.s32 1, %s2267
    $region1785: #{cbow_forward.2} parent=1778 // loop_footer_branch
      %2266 = sbr.rel target = $region1781
    $region1786: #{cbow_forward.2} parent=1778 // loop_exit
      _
  $region1779: #{cbow_forward.2} parent=0 // pred_fallthru
    _
  // Predicated region
  $region1798: #{cbow_forward.2} parent=0 // pred_check
    _
  $region1799: #{cbow_forward.2} parent=0 // pred_check_branch
    %2292 = sbr.rel (0) target = $region1801
  $region1800: #{cbow_forward.2} parent=0 // pred_region
    %2293 = vsyncadd [#allocation3], 16
  $region1801: #{cbow_forward.2} parent=0 // pred_fallthru
    _
  %s2294 = sadd.s32 %s15, 60
  %s2295 = sld [smem:[#allocation5 + %s2294]]
  %s2296 = scalar_lea.vmem %s1, %s2295
  %s2297 = scalar_lea.vmem [#allocation2], 60
  // Predicated region
  $region1802: #{cbow_forward.2} parent=0 // pred_check
    _
  $region1803: #{cbow_forward.2} parent=0 // pred_check_branch
    %2299 = sbr.rel target = $region1805
  $region1804: #{cbow_forward.2} parent=0 // pred_region
    // Predicated region
    $region1817: #{cbow_forward.2} parent=1804 // pred_check
      _
    $region1818: #{cbow_forward.2} parent=1804 // pred_check_branch
      %2315 = sbr.rel (0) target = $region1820
    $region1819: #{cbow_forward.2} parent=1804 // pred_region
      %s2317 = ssub.s32 2, 1
      loop: start=0, step=1, limit=1
      $region1821: #{cbow_forward.2} parent=1819 // loop_pre_header
        _
      $region1822: #{cbow_forward.2} parent=1819 // loop_header
        %s2319 = sphi 0, %s2323
        %p2320 = scmp.ge.s32.totalorder %s2319, 1
        %s2324 = sphi %s2296, %s2296
        %s2325 = sphi %s2297, %s2297
      $region1823: #{cbow_forward.2} parent=1819 // loop_header_branch
        %2322 = sbr.rel (%p2320) target = $region1827
      $region1824: #{cbow_forward.2} parent=1819 // loop_body
        %v2326 = vld [vmem:[%s2324] sm:%s2317]
        %2327 = vst [vmem:[%s2325] sm:%s2317] %v2326
      $region1825: #{cbow_forward.2} parent=1819 // loop_footer
        %s2323 = sadd.s32 1, %s2319
      $region1826: #{cbow_forward.2} parent=1819 // loop_footer_branch
        %2318 = sbr.rel target = $region1822
      $region1827: #{cbow_forward.2} parent=1819 // loop_exit
        _
    $region1820: #{cbow_forward.2} parent=1804 // pred_fallthru
      _
  $region1805: #{cbow_forward.2} parent=0 // pred_fallthru
    _
  // Predicated region
  $region1806: #{cbow_forward.2} parent=0 // pred_check
    _
  $region1807: #{cbow_forward.2} parent=0 // pred_check_branch
    %2301 = sbr.rel (0) target = $region1809
  $region1808: #{cbow_forward.2} parent=0 // pred_region
    %s2303 = ssub.s32 2, 1
    loop: start=0, step=1, limit=1
    $region1810: #{cbow_forward.2} parent=1808 // loop_pre_header
      _
    $region1811: #{cbow_forward.2} parent=1808 // loop_header
      %s2305 = sphi 0, %s2309
      %p2306 = scmp.ge.s32.totalorder %s2305, 1
      %s2310 = sphi %s2296, %s2296
      %s2311 = sphi %s2297, %s2297
    $region1812: #{cbow_forward.2} parent=1808 // loop_header_branch
      %2308 = sbr.rel (%p2306) target = $region1816
    $region1813: #{cbow_forward.2} parent=1808 // loop_body
      %v2312 = vld [vmem:[%s2310] sm:%s2303]
      %2313 = vst [vmem:[%s2311] sm:%s2303] %v2312
    $region1814: #{cbow_forward.2} parent=1808 // loop_footer
      %s2309 = sadd.s32 1, %s2305
    $region1815: #{cbow_forward.2} parent=1808 // loop_footer_branch
      %2304 = sbr.rel target = $region1811
    $region1816: #{cbow_forward.2} parent=1808 // loop_exit
      _
  $region1809: #{cbow_forward.2} parent=0 // pred_fallthru
    _
  // Predicated region
  $region1828: #{cbow_forward.2} parent=0 // pred_check
    _
  $region1829: #{cbow_forward.2} parent=0 // pred_check_branch
    %2330 = sbr.rel (0) target = $region1831
  $region1830: #{cbow_forward.2} parent=0 // pred_region
    %2331 = vsyncadd [#allocation3], 16
  $region1831: #{cbow_forward.2} parent=0 // pred_fallthru
    _
  %s2332 = sadd.s32 %s15, 61
  %s2333 = sld [smem:[#allocation5 + %s2332]]
  %s2334 = scalar_lea.vmem %s1, %s2333
  %s2335 = scalar_lea.vmem [#allocation2], 61
  // Predicated region
  $region1832: #{cbow_forward.2} parent=0 // pred_check
    _
  $region1833: #{cbow_forward.2} parent=0 // pred_check_branch
    %2337 = sbr.rel target = $region1835
  $region1834: #{cbow_forward.2} parent=0 // pred_region
    // Predicated region
    $region1847: #{cbow_forward.2} parent=1834 // pred_check
      _
    $region1848: #{cbow_forward.2} parent=1834 // pred_check_branch
      %2353 = sbr.rel (0) target = $region1850
    $region1849: #{cbow_forward.2} parent=1834 // pred_region
      %s2355 = ssub.s32 2, 1
      loop: start=0, step=1, limit=1
      $region1851: #{cbow_forward.2} parent=1849 // loop_pre_header
        _
      $region1852: #{cbow_forward.2} parent=1849 // loop_header
        %s2357 = sphi 0, %s2361
        %p2358 = scmp.ge.s32.totalorder %s2357, 1
        %s2362 = sphi %s2334, %s2334
        %s2363 = sphi %s2335, %s2335
      $region1853: #{cbow_forward.2} parent=1849 // loop_header_branch
        %2360 = sbr.rel (%p2358) target = $region1857
      $region1854: #{cbow_forward.2} parent=1849 // loop_body
        %v2364 = vld [vmem:[%s2362] sm:%s2355]
        %2365 = vst [vmem:[%s2363] sm:%s2355] %v2364
      $region1855: #{cbow_forward.2} parent=1849 // loop_footer
        %s2361 = sadd.s32 1, %s2357
      $region1856: #{cbow_forward.2} parent=1849 // loop_footer_branch
        %2356 = sbr.rel target = $region1852
      $region1857: #{cbow_forward.2} parent=1849 // loop_exit
        _
    $region1850: #{cbow_forward.2} parent=1834 // pred_fallthru
      _
  $region1835: #{cbow_forward.2} parent=0 // pred_fallthru
    _
  // Predicated region
  $region1836: #{cbow_forward.2} parent=0 // pred_check
    _
  $region1837: #{cbow_forward.2} parent=0 // pred_check_branch
    %2339 = sbr.rel (0) target = $region1839
  $region1838: #{cbow_forward.2} parent=0 // pred_region
    %s2341 = ssub.s32 2, 1
    loop: start=0, step=1, limit=1
    $region1840: #{cbow_forward.2} parent=1838 // loop_pre_header
      _
    $region1841: #{cbow_forward.2} parent=1838 // loop_header
      %s2343 = sphi 0, %s2347
      %p2344 = scmp.ge.s32.totalorder %s2343, 1
      %s2348 = sphi %s2334, %s2334
      %s2349 = sphi %s2335, %s2335
    $region1842: #{cbow_forward.2} parent=1838 // loop_header_branch
      %2346 = sbr.rel (%p2344) target = $region1846
    $region1843: #{cbow_forward.2} parent=1838 // loop_body
      %v2350 = vld [vmem:[%s2348] sm:%s2341]
      %2351 = vst [vmem:[%s2349] sm:%s2341] %v2350
    $region1844: #{cbow_forward.2} parent=1838 // loop_footer
      %s2347 = sadd.s32 1, %s2343
    $region1845: #{cbow_forward.2} parent=1838 // loop_footer_branch
      %2342 = sbr.rel target = $region1841
    $region1846: #{cbow_forward.2} parent=1838 // loop_exit
      _
  $region1839: #{cbow_forward.2} parent=0 // pred_fallthru
    _
  // Predicated region
  $region1858: #{cbow_forward.2} parent=0 // pred_check
    _
  $region1859: #{cbow_forward.2} parent=0 // pred_check_branch
    %2368 = sbr.rel (0) target = $region1861
  $region1860: #{cbow_forward.2} parent=0 // pred_region
    %2369 = vsyncadd [#allocation3], 16
  $region1861: #{cbow_forward.2} parent=0 // pred_fallthru
    _
  %s2370 = sadd.s32 %s15, 62
  %s2371 = sld [smem:[#allocation5 + %s2370]]
  %s2372 = scalar_lea.vmem %s1, %s2371
  %s2373 = scalar_lea.vmem [#allocation2], 62
  // Predicated region
  $region1862: #{cbow_forward.2} parent=0 // pred_check
    _
  $region1863: #{cbow_forward.2} parent=0 // pred_check_branch
    %2375 = sbr.rel target = $region1865
  $region1864: #{cbow_forward.2} parent=0 // pred_region
    // Predicated region
    $region1877: #{cbow_forward.2} parent=1864 // pred_check
      _
    $region1878: #{cbow_forward.2} parent=1864 // pred_check_branch
      %2391 = sbr.rel (0) target = $region1880
    $region1879: #{cbow_forward.2} parent=1864 // pred_region
      %s2393 = ssub.s32 2, 1
      loop: start=0, step=1, limit=1
      $region1881: #{cbow_forward.2} parent=1879 // loop_pre_header
        _
      $region1882: #{cbow_forward.2} parent=1879 // loop_header
        %s2395 = sphi 0, %s2399
        %p2396 = scmp.ge.s32.totalorder %s2395, 1
        %s2400 = sphi %s2372, %s2372
        %s2401 = sphi %s2373, %s2373
      $region1883: #{cbow_forward.2} parent=1879 // loop_header_branch
        %2398 = sbr.rel (%p2396) target = $region1887
      $region1884: #{cbow_forward.2} parent=1879 // loop_body
        %v2402 = vld [vmem:[%s2400] sm:%s2393]
        %2403 = vst [vmem:[%s2401] sm:%s2393] %v2402
      $region1885: #{cbow_forward.2} parent=1879 // loop_footer
        %s2399 = sadd.s32 1, %s2395
      $region1886: #{cbow_forward.2} parent=1879 // loop_footer_branch
        %2394 = sbr.rel target = $region1882
      $region1887: #{cbow_forward.2} parent=1879 // loop_exit
        _
    $region1880: #{cbow_forward.2} parent=1864 // pred_fallthru
      _
  $region1865: #{cbow_forward.2} parent=0 // pred_fallthru
    _
  // Predicated region
  $region1866: #{cbow_forward.2} parent=0 // pred_check
    _
  $region1867: #{cbow_forward.2} parent=0 // pred_check_branch
    %2377 = sbr.rel (0) target = $region1869
  $region1868: #{cbow_forward.2} parent=0 // pred_region
    %s2379 = ssub.s32 2, 1
    loop: start=0, step=1, limit=1
    $region1870: #{cbow_forward.2} parent=1868 // loop_pre_header
      _
    $region1871: #{cbow_forward.2} parent=1868 // loop_header
      %s2381 = sphi 0, %s2385
      %p2382 = scmp.ge.s32.totalorder %s2381, 1
      %s2386 = sphi %s2372, %s2372
      %s2387 = sphi %s2373, %s2373
    $region1872: #{cbow_forward.2} parent=1868 // loop_header_branch
      %2384 = sbr.rel (%p2382) target = $region1876
    $region1873: #{cbow_forward.2} parent=1868 // loop_body
      %v2388 = vld [vmem:[%s2386] sm:%s2379]
      %2389 = vst [vmem:[%s2387] sm:%s2379] %v2388
    $region1874: #{cbow_forward.2} parent=1868 // loop_footer
      %s2385 = sadd.s32 1, %s2381
    $region1875: #{cbow_forward.2} parent=1868 // loop_footer_branch
      %2380 = sbr.rel target = $region1871
    $region1876: #{cbow_forward.2} parent=1868 // loop_exit
      _
  $region1869: #{cbow_forward.2} parent=0 // pred_fallthru
    _
  // Predicated region
  $region1888: #{cbow_forward.2} parent=0 // pred_check
    _
  $region1889: #{cbow_forward.2} parent=0 // pred_check_branch
    %2406 = sbr.rel (0) target = $region1891
  $region1890: #{cbow_forward.2} parent=0 // pred_region
    %2407 = vsyncadd [#allocation3], 16
  $region1891: #{cbow_forward.2} parent=0 // pred_fallthru
    _
  %s2408 = sadd.s32 %s15, 63
  %s2409 = sld [smem:[#allocation5 + %s2408]]
  %s2410 = scalar_lea.vmem %s1, %s2409
  %s2411 = scalar_lea.vmem [#allocation2], 63
  // Predicated region
  $region1892: #{cbow_forward.2} parent=0 // pred_check
    _
  $region1893: #{cbow_forward.2} parent=0 // pred_check_branch
    %2413 = sbr.rel target = $region1895
  $region1894: #{cbow_forward.2} parent=0 // pred_region
    // Predicated region
    $region1907: #{cbow_forward.2} parent=1894 // pred_check
      _
    $region1908: #{cbow_forward.2} parent=1894 // pred_check_branch
      %2429 = sbr.rel (0) target = $region1910
    $region1909: #{cbow_forward.2} parent=1894 // pred_region
      %s2431 = ssub.s32 2, 1
      loop: start=0, step=1, limit=1
      $region1911: #{cbow_forward.2} parent=1909 // loop_pre_header
        _
      $region1912: #{cbow_forward.2} parent=1909 // loop_header
        %s2433 = sphi 0, %s2437
        %p2434 = scmp.ge.s32.totalorder %s2433, 1
        %s2438 = sphi %s2410, %s2410
        %s2439 = sphi %s2411, %s2411
      $region1913: #{cbow_forward.2} parent=1909 // loop_header_branch
        %2436 = sbr.rel (%p2434) target = $region1917
      $region1914: #{cbow_forward.2} parent=1909 // loop_body
        %v2440 = vld [vmem:[%s2438] sm:%s2431]
        %2441 = vst [vmem:[%s2439] sm:%s2431] %v2440
      $region1915: #{cbow_forward.2} parent=1909 // loop_footer
        %s2437 = sadd.s32 1, %s2433
      $region1916: #{cbow_forward.2} parent=1909 // loop_footer_branch
        %2432 = sbr.rel target = $region1912
      $region1917: #{cbow_forward.2} parent=1909 // loop_exit
        _
    $region1910: #{cbow_forward.2} parent=1894 // pred_fallthru
      _
  $region1895: #{cbow_forward.2} parent=0 // pred_fallthru
    _
  // Predicated region
  $region1896: #{cbow_forward.2} parent=0 // pred_check
    _
  $region1897: #{cbow_forward.2} parent=0 // pred_check_branch
    %2415 = sbr.rel (0) target = $region1899
  $region1898: #{cbow_forward.2} parent=0 // pred_region
    %s2417 = ssub.s32 2, 1
    loop: start=0, step=1, limit=1
    $region1900: #{cbow_forward.2} parent=1898 // loop_pre_header
      _
    $region1901: #{cbow_forward.2} parent=1898 // loop_header
      %s2419 = sphi 0, %s2423
      %p2420 = scmp.ge.s32.totalorder %s2419, 1
      %s2424 = sphi %s2410, %s2410
      %s2425 = sphi %s2411, %s2411
    $region1902: #{cbow_forward.2} parent=1898 // loop_header_branch
      %2422 = sbr.rel (%p2420) target = $region1906
    $region1903: #{cbow_forward.2} parent=1898 // loop_body
      %v2426 = vld [vmem:[%s2424] sm:%s2417]
      %2427 = vst [vmem:[%s2425] sm:%s2417] %v2426
    $region1904: #{cbow_forward.2} parent=1898 // loop_footer
      %s2423 = sadd.s32 1, %s2419
    $region1905: #{cbow_forward.2} parent=1898 // loop_footer_branch
      %2418 = sbr.rel target = $region1901
    $region1906: #{cbow_forward.2} parent=1898 // loop_exit
      _
  $region1899: #{cbow_forward.2} parent=0 // pred_fallthru
    _
  // Predicated region
  $region1918: #{cbow_forward.2} parent=0 // pred_check
    _
  $region1919: #{cbow_forward.2} parent=0 // pred_check_branch
    %2444 = sbr.rel (0) target = $region1921
  $region1920: #{cbow_forward.2} parent=0 // pred_region
    %2445 = vsyncadd [#allocation3], 16
  $region1921: #{cbow_forward.2} parent=0 // pred_fallthru
    _
  %s2446 = smul.u32 1, 1
  %s2447 = sshll.u32 %s2446, 4
  %2448 = dma.done [#allocation3], %s2447
  %s2449 = sshll.u32 %s2446, 4
  %2450 = dma.done [#allocation3], %s2449
  %s2451 = sshll.u32 %s2446, 4
  %2452 = dma.done [#allocation3], %s2451
  %s2453 = sshll.u32 %s2446, 4
  %2454 = dma.done [#allocation3], %s2453
  %s2455 = sshll.u32 %s2446, 4
  %2456 = dma.done [#allocation3], %s2455
  %s2457 = sshll.u32 %s2446, 4
  %2458 = dma.done [#allocation3], %s2457
  %s2459 = sshll.u32 %s2446, 4
  %2460 = dma.done [#allocation3], %s2459
  %s2461 = sshll.u32 %s2446, 4
  %2462 = dma.done [#allocation3], %s2461
  %s2463 = sshll.u32 %s2446, 4
  %2464 = dma.done [#allocation3], %s2463
  %s2465 = sshll.u32 %s2446, 4
  %2466 = dma.done [#allocation3], %s2465
  %s2467 = sshll.u32 %s2446, 4
  %2468 = dma.done [#allocation3], %s2467
  %s2469 = sshll.u32 %s2446, 4
  %2470 = dma.done [#allocation3], %s2469
  %s2471 = sshll.u32 %s2446, 4
  %2472 = dma.done [#allocation3], %s2471
  %s2473 = sshll.u32 %s2446, 4
  %2474 = dma.done [#allocation3], %s2473
  %s2475 = sshll.u32 %s2446, 4
  %2476 = dma.done [#allocation3], %s2475
  %s2477 = sshll.u32 %s2446, 4
  %2478 = dma.done [#allocation3], %s2477
  %s2479 = sshll.u32 %s2446, 4
  %2480 = dma.done [#allocation3], %s2479
  %s2481 = sshll.u32 %s2446, 4
  %2482 = dma.done [#allocation3], %s2481
  %s2483 = sshll.u32 %s2446, 4
  %2484 = dma.done [#allocation3], %s2483
  %s2485 = sshll.u32 %s2446, 4
  %2486 = dma.done [#allocation3], %s2485
  %s2487 = sshll.u32 %s2446, 4
  %2488 = dma.done [#allocation3], %s2487
  %s2489 = sshll.u32 %s2446, 4
  %2490 = dma.done [#allocation3], %s2489
  %s2491 = sshll.u32 %s2446, 4
  %2492 = dma.done [#allocation3], %s2491
  %s2493 = sshll.u32 %s2446, 4
  %2494 = dma.done [#allocation3], %s2493
  %s2495 = sshll.u32 %s2446, 4
  %2496 = dma.done [#allocation3], %s2495
  %s2497 = sshll.u32 %s2446, 4
  %2498 = dma.done [#allocation3], %s2497
  %s2499 = sshll.u32 %s2446, 4
  %2500 = dma.done [#allocation3], %s2499
  %s2501 = sshll.u32 %s2446, 4
  %2502 = dma.done [#allocation3], %s2501
  %s2503 = sshll.u32 %s2446, 4
  %2504 = dma.done [#allocation3], %s2503
  %s2505 = sshll.u32 %s2446, 4
  %2506 = dma.done [#allocation3], %s2505
  %s2507 = sshll.u32 %s2446, 4
  %2508 = dma.done [#allocation3], %s2507
  %s2509 = sshll.u32 %s2446, 4
  %2510 = dma.done [#allocation3], %s2509
  %s2511 = sshll.u32 %s2446, 4
  %2512 = dma.done [#allocation3], %s2511
  %s2513 = sshll.u32 %s2446, 4
  %2514 = dma.done [#allocation3], %s2513
  %s2515 = sshll.u32 %s2446, 4
  %2516 = dma.done [#allocation3], %s2515
  %s2517 = sshll.u32 %s2446, 4
  %2518 = dma.done [#allocation3], %s2517
  %s2519 = sshll.u32 %s2446, 4
  %2520 = dma.done [#allocation3], %s2519
  %s2521 = sshll.u32 %s2446, 4
  %2522 = dma.done [#allocation3], %s2521
  %s2523 = sshll.u32 %s2446, 4
  %2524 = dma.done [#allocation3], %s2523
  %s2525 = sshll.u32 %s2446, 4
  %2526 = dma.done [#allocation3], %s2525
  %s2527 = sshll.u32 %s2446, 4
  %2528 = dma.done [#allocation3], %s2527
  %s2529 = sshll.u32 %s2446, 4
  %2530 = dma.done [#allocation3], %s2529
  %s2531 = sshll.u32 %s2446, 4
  %2532 = dma.done [#allocation3], %s2531
  %s2533 = sshll.u32 %s2446, 4
  %2534 = dma.done [#allocation3], %s2533
  %s2535 = sshll.u32 %s2446, 4
  %2536 = dma.done [#allocation3], %s2535
  %s2537 = sshll.u32 %s2446, 4
  %2538 = dma.done [#allocation3], %s2537
  %s2539 = sshll.u32 %s2446, 4
  %2540 = dma.done [#allocation3], %s2539
  %s2541 = sshll.u32 %s2446, 4
  %2542 = dma.done [#allocation3], %s2541
  %s2543 = sshll.u32 %s2446, 4
  %2544 = dma.done [#allocation3], %s2543
  %s2545 = sshll.u32 %s2446, 4
  %2546 = dma.done [#allocation3], %s2545
  %s2547 = sshll.u32 %s2446, 4
  %2548 = dma.done [#allocation3], %s2547
  %s2549 = sshll.u32 %s2446, 4
  %2550 = dma.done [#allocation3], %s2549
  %s2551 = sshll.u32 %s2446, 4
  %2552 = dma.done [#allocation3], %s2551
  %s2553 = sshll.u32 %s2446, 4
  %2554 = dma.done [#allocation3], %s2553
  %s2555 = sshll.u32 %s2446, 4
  %2556 = dma.done [#allocation3], %s2555
  %s2557 = sshll.u32 %s2446, 4
  %2558 = dma.done [#allocation3], %s2557
  %s2559 = sshll.u32 %s2446, 4
  %2560 = dma.done [#allocation3], %s2559
  %s2561 = sshll.u32 %s2446, 4
  %2562 = dma.done [#allocation3], %s2561
  %s2563 = sshll.u32 %s2446, 4
  %2564 = dma.done [#allocation3], %s2563
  %s2565 = sshll.u32 %s2446, 4
  %2566 = dma.done [#allocation3], %s2565
  %s2567 = sshll.u32 %s2446, 4
  %2568 = dma.done [#allocation3], %s2567
  %s2569 = sshll.u32 %s2446, 4
  %2570 = dma.done [#allocation3], %s2569
  %s2571 = sshll.u32 %s2446, 4
  %2572 = dma.done [#allocation3], %s2571
  %s2573 = sshll.u32 %s2446, 4
  %2574 = dma.done [#allocation3], %s2573
  %v2575 = vld [vmem:[#allocation2] sm:$0xff]
  %v2576 = vld [vmem:[#allocation2 + $0x8] sm:$0xff]
  %v2577 = vld [vmem:[#allocation2 + $0x10] sm:$0xff]
  %v2578 = vld [vmem:[#allocation2 + $0x18] sm:$0xff]
  %v2579 = vld [vmem:[#allocation2 + $0x20] sm:$0xff]
  %v2580 = vld [vmem:[#allocation2 + $0x28] sm:$0xff]
  %v2581 = vld [vmem:[#allocation2 + $0x30] sm:$0xff]
  %v2582 = vld [vmem:[#allocation2 + $0x38] sm:$0xff]
  %v2583 = vlaneseq
  %v2584 = vshrl.u32 %v2583, 7
  %v2585 = vadd.s32 %v2584, 8
  %v2586 = vlaneseq
  %v2587 = vand.u32 %v2586, 127
  %v2588 = vmul.u32 %v2584, 4
  %v2589 = vmul.u32 %v2585, 4
  %vm2590 = vcmp.ge.s32.totalorder %v2587, %v2588
  %vm2591 = vcmp.ge.s32.totalorder %v2587, %v2589
  %v2592 = vadd.s32 %v2588, 4
  %v2593 = vadd.s32 %v2589, 4
  %vm2594 = vcmp.lt.s32.totalorder %v2587, %v2592
  %vm2595 = vcmp.lt.s32.totalorder %v2587, %v2593
  %vm2596 = vmand %vm2590, %vm2594
  %vm2597 = vmand %vm2591, %vm2595
  %v2598 = vsel %vm2596, 1.0, 0.0
  %v2599 = vsel %vm2597, 1.0, 0.0
  %vm2600 = vcmask 523264
  %v2602 = vsel %vm2600, %v2598, 0
  %v2605 = vsel %vm2600, %v2599, 0
  %2607 = vmatpush.msra.mxu0 0.0
  %2608 = vmatpush.msra.mxu0 0.0
  %2609 = vmatpush.msra.mxu0 0.0
  %2610 = vmatpush.msra.mxu0 0.0
  %2611 = vmatpush.msra.mxu0 0.0
  %2612 = vmatpush.msra.mxu0 0.0
  %2613 = vmatpush.msra.mxu0 0.0
  %2614 = vmatpush.msra.mxu0 0.0
  %2615 = vmatpush.msra.mxu0 %v2582
  %2616 = vmatpush.msra.mxu0 %v2581
  %2617 = vmatpush.msra.mxu0 %v2580
  %2618 = vmatpush.msra.mxu0 %v2579
  %2619 = vmatpush.msra.mxu0 %v2578
  %2620 = vmatpush.msra.mxu0 %v2577
  %2621 = vmatpush.msra.mxu0 %v2576
  %2622 = vmatpush.msra.mxu0 %v2575
  %2623 = vmatmul.f32.gmra.mxu0 %v2602
  %v2624 = vpop.f32.mrf.mxu0
  %v2625 = vadd.f32 0.0, %v2624
  %2626 = vmatmul.f32.gmra.mxu0 %v2605
  %v2627 = vpop.f32.mrf.mxu0
  %v2628 = vadd.f32 0.0, %v2627
  %2629 = vdwg.mxu0
  %v2630 = vmul.f32 %v2625, 0.25
  %v2631 = vmul.f32 %v2628, 0.25
  %v2632 = vpack.c.bf16 %v2630, %v2630
  %v2633 = vpack.c.bf16 %v2631, %v2631
  %2634 = vst [vmem:[%s2] sm:$0xf] %v2632
  %2635 = vst [vmem:[%s2 + $0x4] sm:$0xf] %v2633
  // Predicated region
  $region1922: #{cbow_forward.2} parent=0 // pred_check
    _
  $region1923: #{cbow_forward.2} parent=0 // pred_check_branch
    %2637 = sbr.rel (0) target = $region1925
  $region1924: #{cbow_forward.2} parent=0 // pred_region
    _
  $region1925: #{cbow_forward.2} parent=0 // pred_fallthru
    _
  // Predicated region
  $region1926: #{cbow_forward.2} parent=0 // pred_check
    _
  $region1927: #{cbow_forward.2} parent=0 // pred_check_branch
    %2639 = sbr.rel (0) target = $region1929
  $region1928: #{cbow_forward.2} parent=0 // pred_region
    _
  $region1929: #{cbow_forward.2} parent=0 // pred_fallthru
    _
  %2640 = vsyncmov [#allocation3]
  %s2641 = vpop.sfrf %2640
  %p2642 = scmp.eq.s32.totalorder %s2641, 0
  %p2643 = pneg %p2642
  %2645 = shalt.err (%p2643)

</llo_original>
